<compile_context>
chip_gen: v7x
topology: tpu7x:2x2x1
jax: 0.10.0
libtpu: 0.0.40
codegen_flags: <defaults>
</compile_context>

<pallas_src>
import functools

import jax
import jax.numpy as jnp
import numpy as np
from jax import lax
from jax.experimental import pallas as pl
from jax.experimental.pallas import tpu as pltpu

LANES = 128           # TPU lane width: conv/fc3 output channels padded to this
CONV_ROW_TILE = 4096  # row tile (im2col patch rows) for the conv matmul kernel

_PARAMS_PARALLEL = pltpu.CompilerParams(
    dimension_semantics=("parallel",),
    vmem_limit_bytes=48 << 20,
)
_PARAMS_SINGLE = pltpu.CompilerParams(
    dimension_semantics=("arbitrary",),
    vmem_limit_bytes=48 << 20,
)


def _round_up(x, m):
    return ((x + m - 1) // m) * m


# ---------------------------------------------------------------------------
# Pallas kernels
# ---------------------------------------------------------------------------
def _conv_matmul_kernel(x_ref, w_ref, b_ref, o_ref):
    """One row tile of im2col patches @ lane-dense weights, + bias, ReLU."""
    acc = jnp.dot(x_ref[...], w_ref[...], preferred_element_type=jnp.float32)
    acc = jnp.maximum(acc + b_ref[...], 0.0)
    o_ref[...] = acc.astype(o_ref.dtype)


def conv_matmul_relu(patches, w_mat, b_row):
    """(M, K) @ (K, 128) + b, ReLU.  Lane-dense, zero-padded output channels."""
    M, K = patches.shape
    Kw, N = w_mat.shape
    assert K == Kw and N % LANES == 0
    tm = M if M <= CONV_ROW_TILE else CONV_ROW_TILE
    return pl.pallas_call(
        _conv_matmul_kernel,
        out_shape=jax.ShapeDtypeStruct((M, N), jnp.float32),
        grid=(pl.cdiv(M, tm),),
        in_specs=[
            pl.BlockSpec((tm, K), lambda i: (i, 0)),
            pl.BlockSpec((K, N), lambda i: (0, 0)),
            pl.BlockSpec((1, N), lambda i: (0, 0)),
        ],
        out_specs=pl.BlockSpec((tm, N), lambda i: (i, 0)),
        compiler_params=_PARAMS_PARALLEL,
    )(patches, w_mat, b_row)


def _fc_fused_kernel(x_ref, w1_ref, b1_ref, w2_ref, b2_ref, w3_ref, b3_ref,
                     o_ref):
    """fc1+ReLU -> fc2+ReLU -> fc3; activations stay in VMEM/vregs throughout."""
    h = jnp.dot(x_ref[...], w1_ref[...], preferred_element_type=jnp.float32)
    h = jnp.maximum(h + b1_ref[...], 0.0)
    h = jnp.dot(h, w2_ref[...], preferred_element_type=jnp.float32)
    h = jnp.maximum(h + b2_ref[...], 0.0)
    o = jnp.dot(h, w3_ref[...], preferred_element_type=jnp.float32) + b3_ref[...]
    o_ref[...] = o.astype(o_ref.dtype)


def fc_fused(x, w1, b1, w2, b2, w3, b3):
    """Single pallas_call for the whole fully-connected head (lane-dense out)."""
    M, K1 = x.shape
    N1, N2, N3 = w1.shape[1], w2.shape[1], w3.shape[1]

    def full(shape):
        return pl.BlockSpec(shape, lambda i, _s=shape: (0,) * len(_s))

    return pl.pallas_call(
        _fc_fused_kernel,
        out_shape=jax.ShapeDtypeStruct((M, N3), jnp.float32),
        grid=(1,),
        in_specs=[
            full((M, K1)),
            full((K1, N1)), full((1, N1)),
            full((N1, N2)), full((1, N2)),
            full((N2, N3)), full((1, N3)),
        ],
        out_specs=full((M, N3)),
        compiler_params=_PARAMS_SINGLE,
    )(x, w1, b1, w2, b2, w3, b3)


# ---------------------------------------------------------------------------
# Conv-as-im2col (NHWC) + pooling glue (runs fused inside jit)
# ---------------------------------------------------------------------------
def _im2col_3x3_nhwc(x):
    """NHWC -> (N*Ho*Wo, C*9) patches; K order (Cin, ky, kx) matches PyTorch."""
    N, H, W, C = x.shape
    Ho, Wo = H - 2, W - 2
    cols = [x[:, dy:dy + Ho, dx:dx + Wo, :] for dy in range(3) for dx in range(3)]
    p = jnp.stack(cols, axis=3)            # (N, Ho, Wo, 9, C)
    p = p.transpose(0, 1, 2, 4, 3)         # (N, Ho, Wo, C, 9)
    return p.reshape(N * Ho * Wo, C * 9), Ho, Wo


def conv2d_relu_nhwc(x, w_mat, b_row, cout):
    """nn.Conv2d(k=3, s=1, p=0) + ReLU on NHWC via lane-dense im2col matmul."""
    N = x.shape[0]
    patches, Ho, Wo = _im2col_3x3_nhwc(x)
    out = conv_matmul_relu(patches, w_mat, b_row)          # (N*Ho*Wo, 128)
    return out.reshape(N, Ho, Wo, LANES)[..., :cout]


def max_pool_3x3_nhwc(x):
    """F.max_pool2d(kernel_size=3) (stride=3, floor mode) on NHWC."""
    return lax.reduce_window(
        x, -jnp.inf, lax.max,
        window_dimensions=(1, 3, 3, 1),
        window_strides=(1, 3, 3, 1),
        padding="VALID")


# ---------------------------------------------------------------------------
# Parameters
# ---------------------------------------------------------------------------
def init_params(key, num_class):
    """Deterministic synthetic init in PyTorch layout (uniform(+/-1/sqrt(fan_in)))."""
    ks = jax.random.split(key, 10)

    def u(k, shape, fan_in):
        bound = 1.0 / float(fan_in) ** 0.5
        return jax.random.uniform(k, shape, jnp.float32, -bound, bound)

    return dict(
        w1=u(ks[0], (8, 1, 3, 3), 9),          b1=u(ks[1], (8,), 9),
        w2=u(ks[2], (16, 8, 3, 3), 72),        b2=u(ks[3], (16,), 72),
        fc1_w=u(ks[4], (2048, 768), 768),      fc1_b=u(ks[5], (2048,), 768),
        fc2_w=u(ks[6], (128, 2048), 2048),     fc2_b=u(ks[7], (128,), 2048),
        fc3_w=u(ks[8], (num_class, 128), 128), fc3_b=u(ks[9], (num_class,), 128),
    )


def prepare_params(params):
    """One-time layout prep: flatten + transpose + lane-pad conv weights,
    pre-transpose FC weights to (in, out), lane-pad fc3 out columns,
    reshape biases to (1, N)."""
    def conv_wb(w, b):
        cout, cin = w.shape[0], w.shape[1]
        w_mat = w.reshape(cout, cin * 9).T                     # (Cin*9, Cout)
        w_mat = jnp.pad(w_mat, ((0, 0), (0, LANES - cout)))    # lane-dense
        b_row = jnp.pad(b, (0, LANES - cout)).reshape(1, LANES)
        return w_mat, b_row

    w1_mat, b1_row = conv_wb(params["w1"], params["b1"])
    w2_mat, b2_row = conv_wb(params["w2"], params["b2"])

    num_class = params["fc3_w"].shape[0]
    n3p = _round_up(num_class, LANES)                          # lane-dense fc3 out
    fc3_w = jnp.pad(params["fc3_w"].T, ((0, 0), (0, n3p - num_class)))
    fc3_b = jnp.pad(params["fc3_b"], (0, n3p - num_class)).reshape(1, n3p)

    return dict(
        w1_mat=w1_mat, b1_row=b1_row,
        w2_mat=w2_mat, b2_row=b2_row,
        fc1_w=params["fc1_w"].T, fc1_b=params["fc1_b"].reshape(1, -1),
        fc2_w=params["fc2_w"].T, fc2_b=params["fc2_b"].reshape(1, -1),
        fc3_w=fc3_w, fc3_b=fc3_b,
    )


# ---------------------------------------------------------------------------
# Forward
# ---------------------------------------------------------------------------
@functools.partial(jax.jit, static_argnames=("num_class",))
def nn2dmel_forward(p, x, num_class):
    # x: (N, 1, H, W) float32 (mel spectrogram), NCHW as in PyTorch.
    x = x.transpose(0, 2, 3, 1)                               # -> NHWC
    x = max_pool_3x3_nhwc(conv2d_relu_nhwc(x, p["w1_mat"], p["b1_row"], 8))
    # dropout1: identity at inference
    x = max_pool_3x3_nhwc(conv2d_relu_nhwc(x, p["w2_mat"], p["b2_row"], 16))
    # dropout2: identity at inference
    n = x.shape[0]
    x = x.transpose(0, 3, 1, 2).reshape(n, -1)                # NCHW flatten -> (N, 768)
    # dropout5 / dropout6: identity at inference
    out = fc_fused(x, p["fc1_w"], p["fc1_b"],
                   p["fc2_w"], p["fc2_b"],
                   p["fc3_w"], p["fc3_b"])                    # (N, padded)
    return out[:, :num_class]


# ---------------------------------------------------------------------------
# Pure-JAX reference (layout / semantics sanity check)
# ---------------------------------------------------------------------------
def reference_forward(params, x):
    dn = ("NCHW", "OIHW", "NCHW")
    y = lax.conv_general_dilated(x, params["w1"], (1, 1), "VALID",
                                 dimension_numbers=dn)
    y = jax.nn.relu(y + params["b1"][None, :, None, None])
    y = lax.reduce_window(y, -jnp.inf, lax.max, (1, 1, 3, 3), (1, 1, 3, 3),
                          "VALID")
    y = lax.conv_general_dilated(y, params["w2"], (1, 1), "VALID",
                                 dimension_numbers=dn)
    y = jax.nn.relu(y + params["b2"][None, :, None, None])
    y = lax.reduce_window(y, -jnp.inf, lax.max, (1, 1, 3, 3), (1, 1, 3, 3),
                          "VALID")
    y = y.reshape(y.shape[0], -1)
    y = jax.nn.relu(y @ params["fc1_w"].T + params["fc1_b"])
    y = jax.nn.relu(y @ params["fc2_w"].T + params["fc2_b"])
    return y @ params["fc3_w"].T + params["fc3_b"]


if __name__ == "__main__":
    num_class = 10
    key = jax.random.PRNGKey(0)
    k_params, k_x = jax.random.split(key)

    # Spatial size 64x80 -> conv(62x78) -> pool(20x26) -> conv(18x24) -> pool(6x8),
    # so the flattened feature size is 16*6*8 = 768, matching fc1's in_features.
    x = jax.random.normal(k_x, (2, 1, 64, 80), dtype=jnp.float32)
    raw_params = init_params(k_params, num_class)
    params = prepare_params(raw_params)

    out = jax.block_until_ready(nn2dmel_forward(params, x, num_class=num_class))
    assert out.shape == (2, num_class), out.shape
    assert out.dtype == jnp.float32

    ref = jax.block_until_ready(jax.jit(reference_forward)(raw_params, x))
    np.testing.assert_allclose(np.asarray(out), np.asarray(ref),
                               rtol=5e-2, atol=2e-2)
    print("KERNEL_OK")
</pallas_src>

<mosaic_0001>
module attributes {stable_mosaic.version = 11 : i64} {
  func.func @_conv_matmul_kernel(%arg0: i32, %arg1: memref<4096x9xf32, #tpu.memory_space<vmem>>, %arg2: memref<9x128xf32, #tpu.memory_space<vmem>>, %arg3: memref<1x128xf32, #tpu.memory_space<vmem>>, %arg4: memref<4096x128xf32, #tpu.memory_space<vmem>>) attributes {dimension_semantics = [#tpu.dimension_semantics<parallel>], iteration_bounds = array<i64: 3>, scalar_prefetch = 0 : i64, scratch_operands = 0 : i64, tpu.core_type = #tpu.core_type<tc>, window_params = [{transform_indices = @transform_0, window_bounds = array<i64: 4096, 9>}, {pipeline_mode = #tpu.pipeline_mode<synchronous>, transform_indices = @transform_1, window_bounds = array<i64: 9, 128>}, {pipeline_mode = #tpu.pipeline_mode<synchronous>, transform_indices = @transform_2, window_bounds = array<i64: 1, 128>}, {transform_indices = @transform_3, window_bounds = array<i64: 4096, 128>}]} {
    %c0 = arith.constant 0 : index
    %c0_0 = arith.constant 0 : index
    %0 = vector.load %arg1[%c0, %c0_0] : memref<4096x9xf32, #tpu.memory_space<vmem>>, vector<4096x9xf32>
    %c0_1 = arith.constant 0 : index
    %c0_2 = arith.constant 0 : index
    %1 = vector.load %arg2[%c0_1, %c0_2] : memref<9x128xf32, #tpu.memory_space<vmem>>, vector<9x128xf32>
    %cst = arith.constant dense<0.000000e+00> : vector<4096x128xf32>
    %2 = tpu.matmul %0, %1, %cst {dimension_numbers = #tpu.dot_dimension_numbers<[1], [0], [0], [1], [0, 0, 1, 1], [], []>} : vector<4096x9xf32>, vector<9x128xf32>, vector<4096x128xf32> -> vector<4096x128xf32>
    %c0_3 = arith.constant 0 : index
    %c0_4 = arith.constant 0 : index
    %3 = vector.load %arg3[%c0_3, %c0_4] : memref<1x128xf32, #tpu.memory_space<vmem>>, vector<1x128xf32>
    %4 = vector.broadcast %3 : vector<1x128xf32> to vector<4096x128xf32>
    %5 = arith.addf %2, %4 : vector<4096x128xf32>
    %cst_5 = arith.constant 0.000000e+00 : f32
    %6 = vector.broadcast %cst_5 : f32 to vector<4096x128xf32>
    %7 = arith.maximumf %5, %6 : vector<4096x128xf32>
    %c0_6 = arith.constant 0 : index
    %c0_7 = arith.constant 0 : index
    %8 = vector.load %arg4[%c0_6, %c0_7] : memref<4096x128xf32, #tpu.memory_space<vmem>>, vector<4096x128xf32>
    tpu.vector_store %arg4[%c0_6, %c0_7], %7 {strides = array<i32>} : memref<4096x128xf32, #tpu.memory_space<vmem>>, vector<4096x128xf32>,
    return
  }
  func.func @transform_0(%arg0: i32) -> (i32, i32) {
    %c0_i32 = arith.constant 0 : i32
    %c0_i32_0 = arith.constant 0 : i32
    return %arg0, %c0_i32 : i32, i32
  }
  func.func @transform_1(%arg0: i32) -> (i32, i32) {
    %c0_i32 = arith.constant 0 : i32
    %c0_i32_0 = arith.constant 0 : i32
    %c0_i32_1 = arith.constant 0 : i32
    return %c0_i32, %c0_i32_0 : i32, i32
  }
  func.func @transform_2(%arg0: i32) -> (i32, i32) {
    %c0_i32 = arith.constant 0 : i32
    %c0_i32_0 = arith.constant 0 : i32
    %c0_i32_1 = arith.constant 0 : i32
    return %c0_i32, %c0_i32_0 : i32, i32
  }
  func.func @transform_3(%arg0: i32) -> (i32, i32) {
    %c0_i32 = arith.constant 0 : i32
    %c0_i32_0 = arith.constant 0 : i32
    return %arg0, %c0_i32 : i32, i32
  }
}

module attributes {stable_mosaic.version = 11 : i64} {
  func.func @_conv_matmul_kernel(%arg0: i32, %arg1: memref<864x72xf32, #tpu.memory_space<vmem>>, %arg2: memref<72x128xf32, #tpu.memory_space<vmem>>, %arg3: memref<1x128xf32, #tpu.memory_space<vmem>>, %arg4: memref<864x128xf32, #tpu.memory_space<vmem>>) attributes {dimension_semantics = [#tpu.dimension_semantics<parallel>], iteration_bounds = array<i64: 1>, scalar_prefetch = 0 : i64, scratch_operands = 0 : i64, tpu.core_type = #tpu.core_type<tc>, window_params = [{transform_indices = @transform_0, window_bounds = array<i64: 864, 72>}, {pipeline_mode = #tpu.pipeline_mode<synchronous>, transform_indices = @transform_1, window_bounds = array<i64: 72, 128>}, {pipeline_mode = #tpu.pipeline_mode<synchronous>, transform_indices = @transform_2, window_bounds = array<i64: 1, 128>}, {transform_indices = @transform_3, window_bounds = array<i64: 864, 128>}]} {
    %c0 = arith.constant 0 : index
    %c0_0 = arith.constant 0 : index
    %0 = vector.load %arg1[%c0, %c0_0] : memref<864x72xf32, #tpu.memory_space<vmem>>, vector<864x72xf32>
    %c0_1 = arith.constant 0 : index
    %c0_2 = arith.constant 0 : index
    %1 = vector.load %arg2[%c0_1, %c0_2] : memref<72x128xf32, #tpu.memory_space<vmem>>, vector<72x128xf32>
    %cst = arith.constant dense<0.000000e+00> : vector<864x128xf32>
    %2 = tpu.matmul %0, %1, %cst {dimension_numbers = #tpu.dot_dimension_numbers<[1], [0], [0], [1], [0, 0, 1, 1], [], []>} : vector<864x72xf32>, vector<72x128xf32>, vector<864x128xf32> -> vector<864x128xf32>
    %c0_3 = arith.constant 0 : index
    %c0_4 = arith.constant 0 : index
    %3 = vector.load %arg3[%c0_3, %c0_4] : memref<1x128xf32, #tpu.memory_space<vmem>>, vector<1x128xf32>
    %4 = vector.broadcast %3 : vector<1x128xf32> to vector<864x128xf32>
    %5 = arith.addf %2, %4 : vector<864x128xf32>
    %cst_5 = arith.constant 0.000000e+00 : f32
    %6 = vector.broadcast %cst_5 : f32 to vector<864x128xf32>
    %7 = arith.maximumf %5, %6 : vector<864x128xf32>
    %c0_6 = arith.constant 0 : index
    %c0_7 = arith.constant 0 : index
    %8 = vector.load %arg4[%c0_6, %c0_7] : memref<864x128xf32, #tpu.memory_space<vmem>>, vector<864x128xf32>
    tpu.vector_store %arg4[%c0_6, %c0_7], %7 {strides = array<i32>} : memref<864x128xf32, #tpu.memory_space<vmem>>, vector<864x128xf32>,
    return
  }
  func.func @transform_0(%arg0: i32) -> (i32, i32) {
    %c0_i32 = arith.constant 0 : i32
    %c0_i32_0 = arith.constant 0 : i32
    return %arg0, %c0_i32 : i32, i32
  }
  func.func @transform_1(%arg0: i32) -> (i32, i32) {
    %c0_i32 = arith.constant 0 : i32
    %c0_i32_0 = arith.constant 0 : i32
    %c0_i32_1 = arith.constant 0 : i32
    return %c0_i32, %c0_i32_0 : i32, i32
  }
  func.func @transform_2(%arg0: i32) -> (i32, i32) {
    %c0_i32 = arith.constant 0 : i32
    %c0_i32_0 = arith.constant 0 : i32
    %c0_i32_1 = arith.constant 0 : i32
    return %c0_i32, %c0_i32_0 : i32, i32
  }
  func.func @transform_3(%arg0: i32) -> (i32, i32) {
    %c0_i32 = arith.constant 0 : i32
    %c0_i32_0 = arith.constant 0 : i32
    return %arg0, %c0_i32 : i32, i32
  }
}

module attributes {stable_mosaic.version = 11 : i64} {
  func.func @_fc_fused_kernel(%arg0: i32, %arg1: memref<2x768xf32, #tpu.memory_space<vmem>>, %arg2: memref<768x2048xf32, #tpu.memory_space<vmem>>, %arg3: memref<1x2048xf32, #tpu.memory_space<vmem>>, %arg4: memref<2048x128xf32, #tpu.memory_space<vmem>>, %arg5: memref<1x128xf32, #tpu.memory_space<vmem>>, %arg6: memref<128x128xf32, #tpu.memory_space<vmem>>, %arg7: memref<1x128xf32, #tpu.memory_space<vmem>>, %arg8: memref<2x128xf32, #tpu.memory_space<vmem>>) attributes {dimension_semantics = [#tpu.dimension_semantics<arbitrary>], iteration_bounds = array<i64: 1>, scalar_prefetch = 0 : i64, scratch_operands = 0 : i64, tpu.core_type = #tpu.core_type<tc>, window_params = [{pipeline_mode = #tpu.pipeline_mode<synchronous>, transform_indices = @transform_0, window_bounds = array<i64: 2, 768>}, {pipeline_mode = #tpu.pipeline_mode<synchronous>, transform_indices = @transform_1, window_bounds = array<i64: 768, 2048>}, {pipeline_mode = #tpu.pipeline_mode<synchronous>, transform_indices = @transform_2, window_bounds = array<i64: 1, 2048>}, {pipeline_mode = #tpu.pipeline_mode<synchronous>, transform_indices = @transform_3, window_bounds = array<i64: 2048, 128>}, {pipeline_mode = #tpu.pipeline_mode<synchronous>, transform_indices = @transform_4, window_bounds = array<i64: 1, 128>}, {pipeline_mode = #tpu.pipeline_mode<synchronous>, transform_indices = @transform_5, window_bounds = array<i64: 128, 128>}, {pipeline_mode = #tpu.pipeline_mode<synchronous>, transform_indices = @transform_6, window_bounds = array<i64: 1, 128>}, {pipeline_mode = #tpu.pipeline_mode<synchronous>, transform_indices = @transform_7, window_bounds = array<i64: 2, 128>}]} {
    %c0 = arith.constant 0 : index
    %c0_0 = arith.constant 0 : index
    %0 = vector.load %arg1[%c0, %c0_0] : memref<2x768xf32, #tpu.memory_space<vmem>>, vector<2x768xf32>
    %c0_1 = arith.constant 0 : index
    %c0_2 = arith.constant 0 : index
    %1 = vector.load %arg2[%c0_1, %c0_2] : memref<768x2048xf32, #tpu.memory_space<vmem>>, vector<768x2048xf32>
    %cst = arith.constant dense<0.000000e+00> : vector<2x2048xf32>
    %2 = tpu.matmul %0, %1, %cst {dimension_numbers = #tpu.dot_dimension_numbers<[1], [0], [0], [1], [0, 0, 1, 1], [], []>} : vector<2x768xf32>, vector<768x2048xf32>, vector<2x2048xf32> -> vector<2x2048xf32>
    %c0_3 = arith.constant 0 : index
    %c0_4 = arith.constant 0 : index
    %3 = vector.load %arg3[%c0_3, %c0_4] : memref<1x2048xf32, #tpu.memory_space<vmem>>, vector<1x2048xf32>
    %4 = vector.broadcast %3 : vector<1x2048xf32> to vector<2x2048xf32>
    %5 = arith.addf %2, %4 : vector<2x2048xf32>
    %cst_5 = arith.constant 0.000000e+00 : f32
    %6 = vector.broadcast %cst_5 : f32 to vector<2x2048xf32>
    %7 = arith.maximumf %5, %6 : vector<2x2048xf32>
    %c0_6 = arith.constant 0 : index
    %c0_7 = arith.constant 0 : index
    %8 = vector.load %arg4[%c0_6, %c0_7] : memref<2048x128xf32, #tpu.memory_space<vmem>>, vector<2048x128xf32>
    %cst_8 = arith.constant dense<0.000000e+00> : vector<2x128xf32>
    %9 = tpu.matmul %7, %8, %cst_8 {dimension_numbers = #tpu.dot_dimension_numbers<[1], [0], [0], [1], [0, 0, 1, 1], [], []>} : vector<2x2048xf32>, vector<2048x128xf32>, vector<2x128xf32> -> vector<2x128xf32>
    %c0_9 = arith.constant 0 : index
    %c0_10 = arith.constant 0 : index
    %10 = vector.load %arg5[%c0_9, %c0_10] : memref<1x128xf32, #tpu.memory_space<vmem>>, vector<1x128xf32>
    %11 = vector.broadcast %10 : vector<1x128xf32> to vector<2x128xf32>
    %12 = arith.addf %9, %11 : vector<2x128xf32>
    %cst_11 = arith.constant 0.000000e+00 : f32
    %13 = vector.broadcast %cst_11 : f32 to vector<2x128xf32>
    %14 = arith.maximumf %12, %13 : vector<2x128xf32>
    %c0_12 = arith.constant 0 : index
    %c0_13 = arith.constant 0 : index
    %15 = vector.load %arg6[%c0_12, %c0_13] : memref<128x128xf32, #tpu.memory_space<vmem>>, vector<128x128xf32>
    %cst_14 = arith.constant dense<0.000000e+00> : vector<2x128xf32>
    %16 = tpu.matmul %14, %15, %cst_14 {dimension_numbers = #tpu.dot_dimension_numbers<[1], [0], [0], [1], [0, 0, 1, 1], [], []>} : vector<2x128xf32>, vector<128x128xf32>, vector<2x128xf32> -> vector<2x128xf32>
    %c0_15 = arith.constant 0 : index
    %c0_16 = arith.constant 0 : index
    %17 = vector.load %arg7[%c0_15, %c0_16] : memref<1x128xf32, #tpu.memory_space<vmem>>, vector<1x128xf32>
    %18 = vector.broadcast %17 : vector<1x128xf32> to vector<2x128xf32>
    %19 = arith.addf %16, %18 : vector<2x128xf32>
    %c0_17 = arith.constant 0 : index
    %c0_18 = arith.constant 0 : index
    %20 = vector.load %arg8[%c0_17, %c0_18] : memref<2x128xf32, #tpu.memory_space<vmem>>, vector<2x128xf32>
    tpu.vector_store %arg8[%c0_17, %c0_18], %19 {strides = array<i32>} : memref<2x128xf32, #tpu.memory_space<vmem>>, vector<2x128xf32>,
    return
  }
  func.func @transform_0(%arg0: i32) -> (i32, i32) {
    %c0_i32 = arith.constant 0 : i32
    %c0_i32_0 = arith.constant 0 : i32
    %c0_i32_1 = arith.constant 0 : i32
    return %c0_i32, %c0_i32_0 : i32, i32
  }
  func.func @transform_1(%arg0: i32) -> (i32, i32) {
    %c0_i32 = arith.constant 0 : i32
    %c0_i32_0 = arith.constant 0 : i32
    %c0_i32_1 = arith.constant 0 : i32
    return %c0_i32, %c0_i32_0 : i32, i32
  }
  func.func @transform_2(%arg0: i32) -> (i32, i32) {
    %c0_i32 = arith.constant 0 : i32
    %c0_i32_0 = arith.constant 0 : i32
    %c0_i32_1 = arith.constant 0 : i32
    return %c0_i32, %c0_i32_0 : i32, i32
  }
  func.func @transform_3(%arg0: i32) -> (i32, i32) {
    %c0_i32 = arith.constant 0 : i32
    %c0_i32_0 = arith.constant 0 : i32
    %c0_i32_1 = arith.constant 0 : i32
    return %c0_i32, %c0_i32_0 : i32, i32
  }
  func.func @transform_4(%arg0: i32) -> (i32, i32) {
    %c0_i32 = arith.constant 0 : i32
    %c0_i32_0 = arith.constant 0 : i32
    %c0_i32_1 = arith.constant 0 : i32
    return %c0_i32, %c0_i32_0 : i32, i32
  }
  func.func @transform_5(%arg0: i32) -> (i32, i32) {
    %c0_i32 = arith.constant 0 : i32
    %c0_i32_0 = arith.constant 0 : i32
    %c0_i32_1 = arith.constant 0 : i32
    return %c0_i32, %c0_i32_0 : i32, i32
  }
  func.func @transform_6(%arg0: i32) -> (i32, i32) {
    %c0_i32 = arith.constant 0 : i32
    %c0_i32_0 = arith.constant 0 : i32
    %c0_i32_1 = arith.constant 0 : i32
    return %c0_i32, %c0_i32_0 : i32, i32
  }
  func.func @transform_7(%arg0: i32) -> (i32, i32) {
    %c0_i32 = arith.constant 0 : i32
    %c0_i32_0 = arith.constant 0 : i32
    %c0_i32_1 = arith.constant 0 : i32
    return %c0_i32, %c0_i32_0 : i32, i32
  }
}

</mosaic_0001>

<llo_original>
// kernel: nn2dmel_forward.3
$region0: #{nn2dmel_forward.3}
  #allocation0 [shape = 'u32[]', space=smem, size = 0x4, offset = 0x4, fixed_abs, tag = 'smem constant byte address 0x4 - core index']
  #allocation1 [shape = 'u32[144,128]{1,0:T(1,128)}', space=vmem, size = 0x12000, scoped, tag = 'internal scratch']
  %s0 = inlined_call_operand.vmem [shape: f32[9672,9], index: 0, kind: input, shape index: {}]
  %s1 = inlined_call_operand.vmem [shape: f32[9,128], index: 1, kind: input, shape index: {}]
  %s2 = inlined_call_operand.vmem [shape: f32[1,128], index: 2, kind: input, shape index: {}]
  %s3 = inlined_call_operand.vmem [shape: f32[9672,128], index: 3, kind: output, shape index: {}]
  %s4 = sld [smem:[#allocation0]]
  $region93: #{nn2dmel_forward.3} parent=0
    _
  %s6 = ssub.s32 1, %s4
  %s7 = scalar_select 0, %s6, %s4
  $region1: #{nn2dmel_forward.3} parent=0
    #allocation2 [shape = 'u8[4194304]{0}', space=vmem, size = 0x400000, scoped, tag = 'output window, operand 0']
    loop: start=0, step=1, limit=5
    $region2: #{nn2dmel_forward.3} parent=1 // loop_pre_header
      _
    $region3: #{nn2dmel_forward.3} parent=1 // loop_header
      %s9 = sphi 0, %s13
      %p10 = scmp.ge.s32.totalorder %s9, 5
      %s19 = sphi 0, %s21
      %s22 = sphi 0, %s19
      %s23 = sphi 0, %s22
      %s39 = sphi 0, %s23
      %s43 = sphi 0, %s43
      %s45 = sphi 0, %s43
      %s46 = sphi 0, %s45
      %s60 = sphi 0, %s46
      %s64 = sphi 0, %s64
      %s66 = sphi 0, %s64
      %s67 = sphi 0, %s66
      %s81 = sphi 0, %s67
      %s87 = sphi 0, %s89
      %s90 = sphi 0, %s87
      %s91 = sphi 0, %s90
      %s107 = sphi 0, %s91
    $region4: #{nn2dmel_forward.3} parent=1 // loop_header_branch
      %12 = sbr.rel (%p10) target = $region8
    $region5: #{nn2dmel_forward.3} parent=1 // loop_body
      %s14 = ssub.s32 %s9, 1
      %s15 = ssub.s32 %s9, 2
      %s16 = sadd.s32 %s9, 1
      %s17 = ssub.s32 %s9, %s16
      %p18 = scmp.eq.s32.totalorder %s17, 0
      %s20 = sadd.s32 %s19, 1
      %s21 = scalar_select %p18, %s19, %s20
      %p24 = pneg %p18
      %p25 = scmp.eq.s32.totalorder %s9, 2
      %p26 = por %p24, %p25
      %p27 = scmp.ne.s32.totalorder %s19, %s22
      %p28 = scmp.eq.s32.totalorder %s9, 0
      %p29 = por %p27, %p28
      %p30 = scmp.ne.s32.totalorder %s19, %s22
      %p31 = scmp.eq.s32.totalorder %s14, 2
      %p32 = por %p30, %p31
      %p33 = scmp.ne.s32.totalorder %s22, %s23
      %p34 = scmp.eq.s32.totalorder %s14, 0
      %p35 = por %p33, %p34
      %p36 = scmp.ne.s32.totalorder %s22, %s23
      %p37 = scmp.eq.s32.totalorder %s15, 2
      %p38 = por %p36, %p37
      %p40 = scmp.ne.s32.totalorder %s23, %s39
      %p41 = scmp.eq.s32.totalorder %s15, 0
      %p42 = por %p40, %p41
      %s44 = sadd.s32 %s43, 1
      %p47 = scmp.eq.s32.totalorder %s9, 2
      %p48 = scmp.ne.s32.totalorder %s43, %s45
      %p49 = scmp.eq.s32.totalorder %s9, 0
      %p50 = por %p48, %p49
      %p51 = scmp.ne.s32.totalorder %s43, %s45
      %p52 = scmp.eq.s32.totalorder %s14, 2
      %p53 = por %p51, %p52
      %p54 = scmp.ne.s32.totalorder %s45, %s46
      %p55 = scmp.eq.s32.totalorder %s14, 0
      %p56 = por %p54, %p55
      %p57 = scmp.ne.s32.totalorder %s45, %s46
      %p58 = scmp.eq.s32.totalorder %s15, 2
      %p59 = por %p57, %p58
      %p61 = scmp.ne.s32.totalorder %s46, %s60
      %p62 = scmp.eq.s32.totalorder %s15, 0
      %p63 = por %p61, %p62
      %s65 = sadd.s32 %s64, 1
      %p68 = scmp.eq.s32.totalorder %s9, 2
      %p69 = scmp.ne.s32.totalorder %s64, %s66
      %p70 = scmp.eq.s32.totalorder %s9, 0
      %p71 = por %p69, %p70
      %p72 = scmp.ne.s32.totalorder %s64, %s66
      %p73 = scmp.eq.s32.totalorder %s14, 2
      %p74 = por %p72, %p73
      %p75 = scmp.ne.s32.totalorder %s66, %s67
      %p76 = scmp.eq.s32.totalorder %s14, 0
      %p77 = por %p75, %p76
      %p78 = scmp.ne.s32.totalorder %s66, %s67
      %p79 = scmp.eq.s32.totalorder %s15, 2
      %p80 = por %p78, %p79
      %p82 = scmp.ne.s32.totalorder %s67, %s81
      %p83 = scmp.eq.s32.totalorder %s15, 0
      %p84 = por %p82, %p83
      %s85 = ssub.s32 %s9, %s16
      %p86 = scmp.eq.s32.totalorder %s85, 0
      %s88 = sadd.s32 %s87, 1
      %s89 = scalar_select %p86, %s87, %s88
      %p92 = pneg %p86
      %p93 = scmp.eq.s32.totalorder %s9, 2
      %p94 = por %p92, %p93
      %p95 = scmp.ne.s32.totalorder %s87, %s90
      %p96 = scmp.eq.s32.totalorder %s9, 0
      %p97 = por %p95, %p96
      %p98 = scmp.ne.s32.totalorder %s87, %s90
      %p99 = scmp.eq.s32.totalorder %s14, 2
      %p100 = por %p98, %p99
      %p101 = scmp.ne.s32.totalorder %s90, %s91
      %p102 = scmp.eq.s32.totalorder %s14, 0
      %p103 = por %p101, %p102
      %p104 = scmp.ne.s32.totalorder %s90, %s91
      %p105 = scmp.eq.s32.totalorder %s15, 2
      %p106 = por %p104, %p105
      %p108 = scmp.ne.s32.totalorder %s91, %s107
      %p109 = scmp.eq.s32.totalorder %s15, 0
      %p110 = por %p108, %p109
      %p111 = scmp.le.s32.totalorder 1, %s9
      %p112 = scmp.lt.s32.totalorder %s9, 4
      %p113 = pnand %p111, %p112
      %p114 = pneg %p113
      // Predicated region
      $region9: #{nn2dmel_forward.3} parent=5 // pred_check
        _
      $region10: #{nn2dmel_forward.3} parent=5 // pred_check_branch
        %116 = sbr.rel (%p113) target = $region12
      $region11: #{nn2dmel_forward.3} parent=5 // pred_region
        %s117 = ssub.s32 %s9, 1
        // Predicated region
        $region13: #{nn2dmel_forward.3} parent=11 // pred_check
          %p118 = pneg %p56
        $region14: #{nn2dmel_forward.3} parent=11 // pred_check_branch
          %120 = sbr.rel (%p118) target = $region16
        $region15: #{nn2dmel_forward.3} parent=11 // pred_region
          _
        $region16: #{nn2dmel_forward.3} parent=11 // pred_fallthru
          _
        // Predicated region
        $region17: #{nn2dmel_forward.3} parent=11 // pred_check
          %p121 = pneg %p77
        $region18: #{nn2dmel_forward.3} parent=11 // pred_check_branch
          %123 = sbr.rel (%p121) target = $region20
        $region19: #{nn2dmel_forward.3} parent=11 // pred_region
          _
        $region20: #{nn2dmel_forward.3} parent=11 // pred_fallthru
          _
      $region12: #{nn2dmel_forward.3} parent=5 // pred_fallthru
        _
      %p124 = scmp.lt.s32.totalorder %s9, 3
      // Predicated region
      $region21: #{nn2dmel_forward.3} parent=5 // pred_check
        %p125 = pneg %p124
      $region22: #{nn2dmel_forward.3} parent=5 // pred_check_branch
        %127 = sbr.rel (%p125) target = $region24
      $region23: #{nn2dmel_forward.3} parent=5 // pred_region
        // Predicated region
        $region25: #{nn2dmel_forward.3} parent=23 // pred_check
          %p128 = pneg %p29
        $region26: #{nn2dmel_forward.3} parent=23 // pred_check_branch
          %130 = sbr.rel (%p128) target = $region28
        $region27: #{nn2dmel_forward.3} parent=23 // pred_region
          %s131 = smul.u32 512, %s9
          %s132 = ssub.s32 1209, %s131
          %p133 = scmp.lt.s32.totalorder %s132, 512
          %s134 = scalar_select %p133, %s132, 512
          %s135 = smul.u32 128, %s134
          %p136 = scmp.lt.s32.totalorder %s131, 1208
          %s137 = scalar_select %p136, %s131, 1208
          %s138 = smul.addr %s137, 8
          %s139 = scalar_lea.vmem %s0, %s138
          %s140 = smul.u32 512, %s9
          %s141 = ssub.s32 1209, %s140
          %p142 = scmp.lt.s32.totalorder %s141, 512
          %s143 = scalar_select %p142, %s141, 512
          %s144 = smul.u32 128, %s143
        $region28: #{nn2dmel_forward.3} parent=23 // pred_fallthru
          _
      $region24: #{nn2dmel_forward.3} parent=5 // pred_fallthru
        _
      %p145 = scmp.le.s32.totalorder 1, %s9
      %p146 = scmp.lt.s32.totalorder %s9, 4
      %p147 = pnand %p145, %p146
      %p148 = pneg %p147
      // Predicated region
      $region29: #{nn2dmel_forward.3} parent=5 // pred_check
        _
      $region30: #{nn2dmel_forward.3} parent=5 // pred_check_branch
        %150 = sbr.rel (%p147) target = $region32
      $region31: #{nn2dmel_forward.3} parent=5 // pred_region
        %s151 = ssub.s32 %s9, 1
        %s152 = smul.u32 512, %s14
        %s153 = ssub.s32 1209, %s152
        %p154 = scmp.lt.s32.totalorder %s153, 512
        %s155 = scalar_select %p154, %s153, 512
        %s156 = smul.u32 128, %s155
        %p157 = scmp.lt.s32.totalorder %s152, 1208
        %s158 = scalar_select %p157, %s152, 1208
        %s159 = smul.addr %s158, 8
        %s160 = scalar_lea.vmem %s0, %s159
        %p161 = pneg %p35
        %p162 = pneg %p32
        %p163 = pneg %p56
        %p164 = pneg %p53
        %p165 = pneg %p77
        %p166 = pneg %p74
        %p167 = pneg %p103
        %p168 = pneg %p100
        %s169 = sand.u32 %s90, 1
        %s170 = sand.u32 %s90, 1
        %s171 = smul.addr %s170, 4096
        %s172 = scalar_lea.vmem [#allocation2], %s171
        %s173 = smul.u32 512, %s14
        %s174 = ssub.s32 1209, %s173
        %p175 = scmp.lt.s32.totalorder %s174, 512
        %s176 = scalar_select %p175, %s174, 512
        %s177 = smul.u32 128, %s176
        %p178 = scmp.lt.s32.totalorder %s173, 1208
        %s179 = scalar_select %p178, %s173, 1208
        %s180 = smul.addr %s179, 8
        %s181 = scalar_lea.vmem %s0, %s180
        %s182 = smul.u32 512, %s14
        %s183 = ssub.s32 1209, %s182
        %p184 = scmp.lt.s32.totalorder %s183, 512
        %s185 = scalar_select %p184, %s183, 512
        %s186 = smul.u32 128, %s185
        %s187 = smul.u32 512, %s14
        %s188 = ssub.s32 1209, %s187
        %p189 = scmp.lt.s32.totalorder %s188, 512
        %s190 = scalar_select %p189, %s188, 512
        %s191 = smul.u32 128, %s190
        %v192 = vld [vmem:[%s181] sm:$0xff]
        %v193 = vld [vmem:[%s181 + $0x8] sm:$0xff]
        %v194 = vld [vmem:[%s181 + $0x10] sm:$0xff]
        %v195 = vld [vmem:[%s181 + $0x18] sm:$0xff]
        %v196 = vld [vmem:[%s181 + $0x20] sm:$0xff]
        %v197 = vld [vmem:[%s181 + $0x28] sm:$0xff]
        %v198 = vld [vmem:[%s181 + $0x30] sm:$0xff]
        %v199 = vld [vmem:[%s181 + $0x38] sm:$0xff]
        %v200 = vld [vmem:[%s181 + $0x40] sm:$0xff]
        %v201 = vld [vmem:[%s181 + $0x48] sm:$0xff]
        %v202 = vld [vmem:[%s181 + $0x50] sm:$0xff]
        %v203 = vld [vmem:[%s181 + $0x58] sm:$0xff]
        %v204 = vld [vmem:[%s181 + $0x60] sm:$0xff]
        %v205 = vld [vmem:[%s181 + $0x68] sm:$0xff]
        %v206 = vld [vmem:[%s181 + $0x70] sm:$0xff]
        %v207 = vld [vmem:[%s181 + $0x78] sm:$0xff]
        %v208 = vld [vmem:[%s181 + $0x80] sm:$0xff]
        %v209 = vld [vmem:[%s181 + $0x88] sm:$0xff]
        %v210 = vld [vmem:[%s181 + $0x90] sm:$0xff]
        %v211 = vld [vmem:[%s181 + $0x98] sm:$0xff]
        %v212 = vld [vmem:[%s181 + $0xa0] sm:$0xff]
        %v213 = vld [vmem:[%s181 + $0xa8] sm:$0xff]
        %v214 = vld [vmem:[%s181 + $0xb0] sm:$0xff]
        %v215 = vld [vmem:[%s181 + $0xb8] sm:$0xff]
        %v216 = vld [vmem:[%s181 + $0xc0] sm:$0xff]
        %v217 = vld [vmem:[%s181 + $0xc8] sm:$0xff]
        %v218 = vld [vmem:[%s181 + $0xd0] sm:$0xff]
        %v219 = vld [vmem:[%s181 + $0xd8] sm:$0xff]
        %v220 = vld [vmem:[%s181 + $0xe0] sm:$0xff]
        %v221 = vld [vmem:[%s181 + $0xe8] sm:$0xff]
        %v222 = vld [vmem:[%s181 + $0xf0] sm:$0xff]
        %v223 = vld [vmem:[%s181 + $0xf8] sm:$0xff]
        %v224 = vld [vmem:[%s181 + $0x100] sm:$0xff]
        %v225 = vld [vmem:[%s181 + $0x108] sm:$0xff]
        %v226 = vld [vmem:[%s181 + $0x110] sm:$0xff]
        %v227 = vld [vmem:[%s181 + $0x118] sm:$0xff]
        %v228 = vld [vmem:[%s181 + $0x120] sm:$0xff]
        %v229 = vld [vmem:[%s181 + $0x128] sm:$0xff]
        %v230 = vld [vmem:[%s181 + $0x130] sm:$0xff]
        %v231 = vld [vmem:[%s181 + $0x138] sm:$0xff]
        %v232 = vld [vmem:[%s181 + $0x140] sm:$0xff]
        %v233 = vld [vmem:[%s181 + $0x148] sm:$0xff]
        %v234 = vld [vmem:[%s181 + $0x150] sm:$0xff]
        %v235 = vld [vmem:[%s181 + $0x158] sm:$0xff]
        %v236 = vld [vmem:[%s181 + $0x160] sm:$0xff]
        %v237 = vld [vmem:[%s181 + $0x168] sm:$0xff]
        %v238 = vld [vmem:[%s181 + $0x170] sm:$0xff]
        %v239 = vld [vmem:[%s181 + $0x178] sm:$0xff]
        %v240 = vld [vmem:[%s181 + $0x180] sm:$0xff]
        %v241 = vld [vmem:[%s181 + $0x188] sm:$0xff]
        %v242 = vld [vmem:[%s181 + $0x190] sm:$0xff]
        %v243 = vld [vmem:[%s181 + $0x198] sm:$0xff]
        %v244 = vld [vmem:[%s181 + $0x1a0] sm:$0xff]
        %v245 = vld [vmem:[%s181 + $0x1a8] sm:$0xff]
        %v246 = vld [vmem:[%s181 + $0x1b0] sm:$0xff]
        %v247 = vld [vmem:[%s181 + $0x1b8] sm:$0xff]
        %v248 = vld [vmem:[%s181 + $0x1c0] sm:$0xff]
        %v249 = vld [vmem:[%s181 + $0x1c8] sm:$0xff]
        %v250 = vld [vmem:[%s181 + $0x1d0] sm:$0xff]
        %v251 = vld [vmem:[%s181 + $0x1d8] sm:$0xff]
        %v252 = vld [vmem:[%s181 + $0x1e0] sm:$0xff]
        %v253 = vld [vmem:[%s181 + $0x1e8] sm:$0xff]
        %v254 = vld [vmem:[%s181 + $0x1f0] sm:$0xff]
        %v255 = vld [vmem:[%s181 + $0x1f8] sm:$0xff]
        %v256 = vld [vmem:[%s181 + $0x200] sm:$0xff]
        %v257 = vld [vmem:[%s181 + $0x208] sm:$0xff]
        %v258 = vld [vmem:[%s181 + $0x210] sm:$0xff]
        %v259 = vld [vmem:[%s181 + $0x218] sm:$0xff]
        %v260 = vld [vmem:[%s181 + $0x220] sm:$0xff]
        %v261 = vld [vmem:[%s181 + $0x228] sm:$0xff]
        %v262 = vld [vmem:[%s181 + $0x230] sm:$0xff]
        %v263 = vld [vmem:[%s181 + $0x238] sm:$0xff]
        %v264 = vld [vmem:[%s181 + $0x240] sm:$0xff]
        %v265 = vld [vmem:[%s181 + $0x248] sm:$0xff]
        %v266 = vld [vmem:[%s181 + $0x250] sm:$0xff]
        %v267 = vld [vmem:[%s181 + $0x258] sm:$0xff]
        %v268 = vld [vmem:[%s181 + $0x260] sm:$0xff]
        %v269 = vld [vmem:[%s181 + $0x268] sm:$0xff]
        %v270 = vld [vmem:[%s181 + $0x270] sm:$0xff]
        %v271 = vld [vmem:[%s181 + $0x278] sm:$0xff]
        %v272 = vld [vmem:[%s181 + $0x280] sm:$0xff]
        %v273 = vld [vmem:[%s181 + $0x288] sm:$0xff]
        %v274 = vld [vmem:[%s181 + $0x290] sm:$0xff]
        %v275 = vld [vmem:[%s181 + $0x298] sm:$0xff]
        %v276 = vld [vmem:[%s181 + $0x2a0] sm:$0xff]
        %v277 = vld [vmem:[%s181 + $0x2a8] sm:$0xff]
        %v278 = vld [vmem:[%s181 + $0x2b0] sm:$0xff]
        %v279 = vld [vmem:[%s181 + $0x2b8] sm:$0xff]
        %v280 = vld [vmem:[%s181 + $0x2c0] sm:$0xff]
        %v281 = vld [vmem:[%s181 + $0x2c8] sm:$0xff]
        %v282 = vld [vmem:[%s181 + $0x2d0] sm:$0xff]
        %v283 = vld [vmem:[%s181 + $0x2d8] sm:$0xff]
        %v284 = vld [vmem:[%s181 + $0x2e0] sm:$0xff]
        %v285 = vld [vmem:[%s181 + $0x2e8] sm:$0xff]
        %v286 = vld [vmem:[%s181 + $0x2f0] sm:$0xff]
        %v287 = vld [vmem:[%s181 + $0x2f8] sm:$0xff]
        %v288 = vld [vmem:[%s181 + $0x300] sm:$0xff]
        %v289 = vld [vmem:[%s181 + $0x308] sm:$0xff]
        %v290 = vld [vmem:[%s181 + $0x310] sm:$0xff]
        %v291 = vld [vmem:[%s181 + $0x318] sm:$0xff]
        %v292 = vld [vmem:[%s181 + $0x320] sm:$0xff]
        %v293 = vld [vmem:[%s181 + $0x328] sm:$0xff]
        %v294 = vld [vmem:[%s181 + $0x330] sm:$0xff]
        %v295 = vld [vmem:[%s181 + $0x338] sm:$0xff]
        %v296 = vld [vmem:[%s181 + $0x340] sm:$0xff]
        %v297 = vld [vmem:[%s181 + $0x348] sm:$0xff]
        %v298 = vld [vmem:[%s181 + $0x350] sm:$0xff]
        %v299 = vld [vmem:[%s181 + $0x358] sm:$0xff]
        %v300 = vld [vmem:[%s181 + $0x360] sm:$0xff]
        %v301 = vld [vmem:[%s181 + $0x368] sm:$0xff]
        %v302 = vld [vmem:[%s181 + $0x370] sm:$0xff]
        %v303 = vld [vmem:[%s181 + $0x378] sm:$0xff]
        %v304 = vld [vmem:[%s181 + $0x380] sm:$0xff]
        %v305 = vld [vmem:[%s181 + $0x388] sm:$0xff]
        %v306 = vld [vmem:[%s181 + $0x390] sm:$0xff]
        %v307 = vld [vmem:[%s181 + $0x398] sm:$0xff]
        %v308 = vld [vmem:[%s181 + $0x3a0] sm:$0xff]
        %v309 = vld [vmem:[%s181 + $0x3a8] sm:$0xff]
        %v310 = vld [vmem:[%s181 + $0x3b0] sm:$0xff]
        %v311 = vld [vmem:[%s181 + $0x3b8] sm:$0xff]
        %v312 = vld [vmem:[%s181 + $0x3c0] sm:$0xff]
        %v313 = vld [vmem:[%s181 + $0x3c8] sm:$0xff]
        %v314 = vld [vmem:[%s181 + $0x3d0] sm:$0xff]
        %v315 = vld [vmem:[%s181 + $0x3d8] sm:$0xff]
        %v316 = vld [vmem:[%s181 + $0x3e0] sm:$0xff]
        %v317 = vld [vmem:[%s181 + $0x3e8] sm:$0xff]
        %v318 = vld [vmem:[%s181 + $0x3f0] sm:$0xff]
        %v319 = vld [vmem:[%s181 + $0x3f8] sm:$0xff]
        %v320 = vld [vmem:[%s181 + $0x400] sm:$0xff]
        %v321 = vld [vmem:[%s181 + $0x408] sm:$0xff]
        %v322 = vld [vmem:[%s181 + $0x410] sm:$0xff]
        %v323 = vld [vmem:[%s181 + $0x418] sm:$0xff]
        %v324 = vld [vmem:[%s181 + $0x420] sm:$0xff]
        %v325 = vld [vmem:[%s181 + $0x428] sm:$0xff]
        %v326 = vld [vmem:[%s181 + $0x430] sm:$0xff]
        %v327 = vld [vmem:[%s181 + $0x438] sm:$0xff]
        %v328 = vld [vmem:[%s181 + $0x440] sm:$0xff]
        %v329 = vld [vmem:[%s181 + $0x448] sm:$0xff]
        %v330 = vld [vmem:[%s181 + $0x450] sm:$0xff]
        %v331 = vld [vmem:[%s181 + $0x458] sm:$0xff]
        %v332 = vld [vmem:[%s181 + $0x460] sm:$0xff]
        %v333 = vld [vmem:[%s181 + $0x468] sm:$0xff]
        %v334 = vld [vmem:[%s181 + $0x470] sm:$0xff]
        %v335 = vld [vmem:[%s181 + $0x478] sm:$0xff]
        %v336 = vld [vmem:[%s181 + $0x480] sm:$0xff]
        %v337 = vld [vmem:[%s181 + $0x488] sm:$0xff]
        %v338 = vld [vmem:[%s181 + $0x490] sm:$0xff]
        %v339 = vld [vmem:[%s181 + $0x498] sm:$0xff]
        %v340 = vld [vmem:[%s181 + $0x4a0] sm:$0xff]
        %v341 = vld [vmem:[%s181 + $0x4a8] sm:$0xff]
        %v342 = vld [vmem:[%s181 + $0x4b0] sm:$0xff]
        %v343 = vld [vmem:[%s181 + $0x4b8] sm:$0xff]
        %v344 = vld [vmem:[%s181 + $0x4c0] sm:$0xff]
        %v345 = vld [vmem:[%s181 + $0x4c8] sm:$0xff]
        %v346 = vld [vmem:[%s181 + $0x4d0] sm:$0xff]
        %v347 = vld [vmem:[%s181 + $0x4d8] sm:$0xff]
        %v348 = vld [vmem:[%s181 + $0x4e0] sm:$0xff]
        %v349 = vld [vmem:[%s181 + $0x4e8] sm:$0xff]
        %v350 = vld [vmem:[%s181 + $0x4f0] sm:$0xff]
        %v351 = vld [vmem:[%s181 + $0x4f8] sm:$0xff]
        %v352 = vld [vmem:[%s181 + $0x500] sm:$0xff]
        %v353 = vld [vmem:[%s181 + $0x508] sm:$0xff]
        %v354 = vld [vmem:[%s181 + $0x510] sm:$0xff]
        %v355 = vld [vmem:[%s181 + $0x518] sm:$0xff]
        %v356 = vld [vmem:[%s181 + $0x520] sm:$0xff]
        %v357 = vld [vmem:[%s181 + $0x528] sm:$0xff]
        %v358 = vld [vmem:[%s181 + $0x530] sm:$0xff]
        %v359 = vld [vmem:[%s181 + $0x538] sm:$0xff]
        %v360 = vld [vmem:[%s181 + $0x540] sm:$0xff]
        %v361 = vld [vmem:[%s181 + $0x548] sm:$0xff]
        %v362 = vld [vmem:[%s181 + $0x550] sm:$0xff]
        %v363 = vld [vmem:[%s181 + $0x558] sm:$0xff]
        %v364 = vld [vmem:[%s181 + $0x560] sm:$0xff]
        %v365 = vld [vmem:[%s181 + $0x568] sm:$0xff]
        %v366 = vld [vmem:[%s181 + $0x570] sm:$0xff]
        %v367 = vld [vmem:[%s181 + $0x578] sm:$0xff]
        %v368 = vld [vmem:[%s181 + $0x580] sm:$0xff]
        %v369 = vld [vmem:[%s181 + $0x588] sm:$0xff]
        %v370 = vld [vmem:[%s181 + $0x590] sm:$0xff]
        %v371 = vld [vmem:[%s181 + $0x598] sm:$0xff]
        %v372 = vld [vmem:[%s181 + $0x5a0] sm:$0xff]
        %v373 = vld [vmem:[%s181 + $0x5a8] sm:$0xff]
        %v374 = vld [vmem:[%s181 + $0x5b0] sm:$0xff]
        %v375 = vld [vmem:[%s181 + $0x5b8] sm:$0xff]
        %v376 = vld [vmem:[%s181 + $0x5c0] sm:$0xff]
        %v377 = vld [vmem:[%s181 + $0x5c8] sm:$0xff]
        %v378 = vld [vmem:[%s181 + $0x5d0] sm:$0xff]
        %v379 = vld [vmem:[%s181 + $0x5d8] sm:$0xff]
        %v380 = vld [vmem:[%s181 + $0x5e0] sm:$0xff]
        %v381 = vld [vmem:[%s181 + $0x5e8] sm:$0xff]
        %v382 = vld [vmem:[%s181 + $0x5f0] sm:$0xff]
        %v383 = vld [vmem:[%s181 + $0x5f8] sm:$0xff]
        %v384 = vld [vmem:[%s181 + $0x600] sm:$0xff]
        %v385 = vld [vmem:[%s181 + $0x608] sm:$0xff]
        %v386 = vld [vmem:[%s181 + $0x610] sm:$0xff]
        %v387 = vld [vmem:[%s181 + $0x618] sm:$0xff]
        %v388 = vld [vmem:[%s181 + $0x620] sm:$0xff]
        %v389 = vld [vmem:[%s181 + $0x628] sm:$0xff]
        %v390 = vld [vmem:[%s181 + $0x630] sm:$0xff]
        %v391 = vld [vmem:[%s181 + $0x638] sm:$0xff]
        %v392 = vld [vmem:[%s181 + $0x640] sm:$0xff]
        %v393 = vld [vmem:[%s181 + $0x648] sm:$0xff]
        %v394 = vld [vmem:[%s181 + $0x650] sm:$0xff]
        %v395 = vld [vmem:[%s181 + $0x658] sm:$0xff]
        %v396 = vld [vmem:[%s181 + $0x660] sm:$0xff]
        %v397 = vld [vmem:[%s181 + $0x668] sm:$0xff]
        %v398 = vld [vmem:[%s181 + $0x670] sm:$0xff]
        %v399 = vld [vmem:[%s181 + $0x678] sm:$0xff]
        %v400 = vld [vmem:[%s181 + $0x680] sm:$0xff]
        %v401 = vld [vmem:[%s181 + $0x688] sm:$0xff]
        %v402 = vld [vmem:[%s181 + $0x690] sm:$0xff]
        %v403 = vld [vmem:[%s181 + $0x698] sm:$0xff]
        %v404 = vld [vmem:[%s181 + $0x6a0] sm:$0xff]
        %v405 = vld [vmem:[%s181 + $0x6a8] sm:$0xff]
        %v406 = vld [vmem:[%s181 + $0x6b0] sm:$0xff]
        %v407 = vld [vmem:[%s181 + $0x6b8] sm:$0xff]
        %v408 = vld [vmem:[%s181 + $0x6c0] sm:$0xff]
        %v409 = vld [vmem:[%s181 + $0x6c8] sm:$0xff]
        %v410 = vld [vmem:[%s181 + $0x6d0] sm:$0xff]
        %v411 = vld [vmem:[%s181 + $0x6d8] sm:$0xff]
        %v412 = vld [vmem:[%s181 + $0x6e0] sm:$0xff]
        %v413 = vld [vmem:[%s181 + $0x6e8] sm:$0xff]
        %v414 = vld [vmem:[%s181 + $0x6f0] sm:$0xff]
        %v415 = vld [vmem:[%s181 + $0x6f8] sm:$0xff]
        %v416 = vld [vmem:[%s181 + $0x700] sm:$0xff]
        %v417 = vld [vmem:[%s181 + $0x708] sm:$0xff]
        %v418 = vld [vmem:[%s181 + $0x710] sm:$0xff]
        %v419 = vld [vmem:[%s181 + $0x718] sm:$0xff]
        %v420 = vld [vmem:[%s181 + $0x720] sm:$0xff]
        %v421 = vld [vmem:[%s181 + $0x728] sm:$0xff]
        %v422 = vld [vmem:[%s181 + $0x730] sm:$0xff]
        %v423 = vld [vmem:[%s181 + $0x738] sm:$0xff]
        %v424 = vld [vmem:[%s181 + $0x740] sm:$0xff]
        %v425 = vld [vmem:[%s181 + $0x748] sm:$0xff]
        %v426 = vld [vmem:[%s181 + $0x750] sm:$0xff]
        %v427 = vld [vmem:[%s181 + $0x758] sm:$0xff]
        %v428 = vld [vmem:[%s181 + $0x760] sm:$0xff]
        %v429 = vld [vmem:[%s181 + $0x768] sm:$0xff]
        %v430 = vld [vmem:[%s181 + $0x770] sm:$0xff]
        %v431 = vld [vmem:[%s181 + $0x778] sm:$0xff]
        %v432 = vld [vmem:[%s181 + $0x780] sm:$0xff]
        %v433 = vld [vmem:[%s181 + $0x788] sm:$0xff]
        %v434 = vld [vmem:[%s181 + $0x790] sm:$0xff]
        %v435 = vld [vmem:[%s181 + $0x798] sm:$0xff]
        %v436 = vld [vmem:[%s181 + $0x7a0] sm:$0xff]
        %v437 = vld [vmem:[%s181 + $0x7a8] sm:$0xff]
        %v438 = vld [vmem:[%s181 + $0x7b0] sm:$0xff]
        %v439 = vld [vmem:[%s181 + $0x7b8] sm:$0xff]
        %v440 = vld [vmem:[%s181 + $0x7c0] sm:$0xff]
        %v441 = vld [vmem:[%s181 + $0x7c8] sm:$0xff]
        %v442 = vld [vmem:[%s181 + $0x7d0] sm:$0xff]
        %v443 = vld [vmem:[%s181 + $0x7d8] sm:$0xff]
        %v444 = vld [vmem:[%s181 + $0x7e0] sm:$0xff]
        %v445 = vld [vmem:[%s181 + $0x7e8] sm:$0xff]
        %v446 = vld [vmem:[%s181 + $0x7f0] sm:$0xff]
        %v447 = vld [vmem:[%s181 + $0x7f8] sm:$0xff]
        %v448 = vld [vmem:[%s181 + $0x800] sm:$0xff]
        %v449 = vld [vmem:[%s181 + $0x808] sm:$0xff]
        %v450 = vld [vmem:[%s181 + $0x810] sm:$0xff]
        %v451 = vld [vmem:[%s181 + $0x818] sm:$0xff]
        %v452 = vld [vmem:[%s181 + $0x820] sm:$0xff]
        %v453 = vld [vmem:[%s181 + $0x828] sm:$0xff]
        %v454 = vld [vmem:[%s181 + $0x830] sm:$0xff]
        %v455 = vld [vmem:[%s181 + $0x838] sm:$0xff]
        %v456 = vld [vmem:[%s181 + $0x840] sm:$0xff]
        %v457 = vld [vmem:[%s181 + $0x848] sm:$0xff]
        %v458 = vld [vmem:[%s181 + $0x850] sm:$0xff]
        %v459 = vld [vmem:[%s181 + $0x858] sm:$0xff]
        %v460 = vld [vmem:[%s181 + $0x860] sm:$0xff]
        %v461 = vld [vmem:[%s181 + $0x868] sm:$0xff]
        %v462 = vld [vmem:[%s181 + $0x870] sm:$0xff]
        %v463 = vld [vmem:[%s181 + $0x878] sm:$0xff]
        %v464 = vld [vmem:[%s181 + $0x880] sm:$0xff]
        %v465 = vld [vmem:[%s181 + $0x888] sm:$0xff]
        %v466 = vld [vmem:[%s181 + $0x890] sm:$0xff]
        %v467 = vld [vmem:[%s181 + $0x898] sm:$0xff]
        %v468 = vld [vmem:[%s181 + $0x8a0] sm:$0xff]
        %v469 = vld [vmem:[%s181 + $0x8a8] sm:$0xff]
        %v470 = vld [vmem:[%s181 + $0x8b0] sm:$0xff]
        %v471 = vld [vmem:[%s181 + $0x8b8] sm:$0xff]
        %v472 = vld [vmem:[%s181 + $0x8c0] sm:$0xff]
        %v473 = vld [vmem:[%s181 + $0x8c8] sm:$0xff]
        %v474 = vld [vmem:[%s181 + $0x8d0] sm:$0xff]
        %v475 = vld [vmem:[%s181 + $0x8d8] sm:$0xff]
        %v476 = vld [vmem:[%s181 + $0x8e0] sm:$0xff]
        %v477 = vld [vmem:[%s181 + $0x8e8] sm:$0xff]
        %v478 = vld [vmem:[%s181 + $0x8f0] sm:$0xff]
        %v479 = vld [vmem:[%s181 + $0x8f8] sm:$0xff]
        %v480 = vld [vmem:[%s181 + $0x900] sm:$0xff]
        %v481 = vld [vmem:[%s181 + $0x908] sm:$0xff]
        %v482 = vld [vmem:[%s181 + $0x910] sm:$0xff]
        %v483 = vld [vmem:[%s181 + $0x918] sm:$0xff]
        %v484 = vld [vmem:[%s181 + $0x920] sm:$0xff]
        %v485 = vld [vmem:[%s181 + $0x928] sm:$0xff]
        %v486 = vld [vmem:[%s181 + $0x930] sm:$0xff]
        %v487 = vld [vmem:[%s181 + $0x938] sm:$0xff]
        %v488 = vld [vmem:[%s181 + $0x940] sm:$0xff]
        %v489 = vld [vmem:[%s181 + $0x948] sm:$0xff]
        %v490 = vld [vmem:[%s181 + $0x950] sm:$0xff]
        %v491 = vld [vmem:[%s181 + $0x958] sm:$0xff]
        %v492 = vld [vmem:[%s181 + $0x960] sm:$0xff]
        %v493 = vld [vmem:[%s181 + $0x968] sm:$0xff]
        %v494 = vld [vmem:[%s181 + $0x970] sm:$0xff]
        %v495 = vld [vmem:[%s181 + $0x978] sm:$0xff]
        %v496 = vld [vmem:[%s181 + $0x980] sm:$0xff]
        %v497 = vld [vmem:[%s181 + $0x988] sm:$0xff]
        %v498 = vld [vmem:[%s181 + $0x990] sm:$0xff]
        %v499 = vld [vmem:[%s181 + $0x998] sm:$0xff]
        %v500 = vld [vmem:[%s181 + $0x9a0] sm:$0xff]
        %v501 = vld [vmem:[%s181 + $0x9a8] sm:$0xff]
        %v502 = vld [vmem:[%s181 + $0x9b0] sm:$0xff]
        %v503 = vld [vmem:[%s181 + $0x9b8] sm:$0xff]
        %v504 = vld [vmem:[%s181 + $0x9c0] sm:$0xff]
        %v505 = vld [vmem:[%s181 + $0x9c8] sm:$0xff]
        %v506 = vld [vmem:[%s181 + $0x9d0] sm:$0xff]
        %v507 = vld [vmem:[%s181 + $0x9d8] sm:$0xff]
        %v508 = vld [vmem:[%s181 + $0x9e0] sm:$0xff]
        %v509 = vld [vmem:[%s181 + $0x9e8] sm:$0xff]
        %v510 = vld [vmem:[%s181 + $0x9f0] sm:$0xff]
        %v511 = vld [vmem:[%s181 + $0x9f8] sm:$0xff]
        %v512 = vld [vmem:[%s181 + $0xa00] sm:$0xff]
        %v513 = vld [vmem:[%s181 + $0xa08] sm:$0xff]
        %v514 = vld [vmem:[%s181 + $0xa10] sm:$0xff]
        %v515 = vld [vmem:[%s181 + $0xa18] sm:$0xff]
        %v516 = vld [vmem:[%s181 + $0xa20] sm:$0xff]
        %v517 = vld [vmem:[%s181 + $0xa28] sm:$0xff]
        %v518 = vld [vmem:[%s181 + $0xa30] sm:$0xff]
        %v519 = vld [vmem:[%s181 + $0xa38] sm:$0xff]
        %v520 = vld [vmem:[%s181 + $0xa40] sm:$0xff]
        %v521 = vld [vmem:[%s181 + $0xa48] sm:$0xff]
        %v522 = vld [vmem:[%s181 + $0xa50] sm:$0xff]
        %v523 = vld [vmem:[%s181 + $0xa58] sm:$0xff]
        %v524 = vld [vmem:[%s181 + $0xa60] sm:$0xff]
        %v525 = vld [vmem:[%s181 + $0xa68] sm:$0xff]
        %v526 = vld [vmem:[%s181 + $0xa70] sm:$0xff]
        %v527 = vld [vmem:[%s181 + $0xa78] sm:$0xff]
        %v528 = vld [vmem:[%s181 + $0xa80] sm:$0xff]
        %v529 = vld [vmem:[%s181 + $0xa88] sm:$0xff]
        %v530 = vld [vmem:[%s181 + $0xa90] sm:$0xff]
        %v531 = vld [vmem:[%s181 + $0xa98] sm:$0xff]
        %v532 = vld [vmem:[%s181 + $0xaa0] sm:$0xff]
        %v533 = vld [vmem:[%s181 + $0xaa8] sm:$0xff]
        %v534 = vld [vmem:[%s181 + $0xab0] sm:$0xff]
        %v535 = vld [vmem:[%s181 + $0xab8] sm:$0xff]
        %v536 = vld [vmem:[%s181 + $0xac0] sm:$0xff]
        %v537 = vld [vmem:[%s181 + $0xac8] sm:$0xff]
        %v538 = vld [vmem:[%s181 + $0xad0] sm:$0xff]
        %v539 = vld [vmem:[%s181 + $0xad8] sm:$0xff]
        %v540 = vld [vmem:[%s181 + $0xae0] sm:$0xff]
        %v541 = vld [vmem:[%s181 + $0xae8] sm:$0xff]
        %v542 = vld [vmem:[%s181 + $0xaf0] sm:$0xff]
        %v543 = vld [vmem:[%s181 + $0xaf8] sm:$0xff]
        %v544 = vld [vmem:[%s181 + $0xb00] sm:$0xff]
        %v545 = vld [vmem:[%s181 + $0xb08] sm:$0xff]
        %v546 = vld [vmem:[%s181 + $0xb10] sm:$0xff]
        %v547 = vld [vmem:[%s181 + $0xb18] sm:$0xff]
        %v548 = vld [vmem:[%s181 + $0xb20] sm:$0xff]
        %v549 = vld [vmem:[%s181 + $0xb28] sm:$0xff]
        %v550 = vld [vmem:[%s181 + $0xb30] sm:$0xff]
        %v551 = vld [vmem:[%s181 + $0xb38] sm:$0xff]
        %v552 = vld [vmem:[%s181 + $0xb40] sm:$0xff]
        %v553 = vld [vmem:[%s181 + $0xb48] sm:$0xff]
        %v554 = vld [vmem:[%s181 + $0xb50] sm:$0xff]
        %v555 = vld [vmem:[%s181 + $0xb58] sm:$0xff]
        %v556 = vld [vmem:[%s181 + $0xb60] sm:$0xff]
        %v557 = vld [vmem:[%s181 + $0xb68] sm:$0xff]
        %v558 = vld [vmem:[%s181 + $0xb70] sm:$0xff]
        %v559 = vld [vmem:[%s181 + $0xb78] sm:$0xff]
        %v560 = vld [vmem:[%s181 + $0xb80] sm:$0xff]
        %v561 = vld [vmem:[%s181 + $0xb88] sm:$0xff]
        %v562 = vld [vmem:[%s181 + $0xb90] sm:$0xff]
        %v563 = vld [vmem:[%s181 + $0xb98] sm:$0xff]
        %v564 = vld [vmem:[%s181 + $0xba0] sm:$0xff]
        %v565 = vld [vmem:[%s181 + $0xba8] sm:$0xff]
        %v566 = vld [vmem:[%s181 + $0xbb0] sm:$0xff]
        %v567 = vld [vmem:[%s181 + $0xbb8] sm:$0xff]
        %v568 = vld [vmem:[%s181 + $0xbc0] sm:$0xff]
        %v569 = vld [vmem:[%s181 + $0xbc8] sm:$0xff]
        %v570 = vld [vmem:[%s181 + $0xbd0] sm:$0xff]
        %v571 = vld [vmem:[%s181 + $0xbd8] sm:$0xff]
        %v572 = vld [vmem:[%s181 + $0xbe0] sm:$0xff]
        %v573 = vld [vmem:[%s181 + $0xbe8] sm:$0xff]
        %v574 = vld [vmem:[%s181 + $0xbf0] sm:$0xff]
        %v575 = vld [vmem:[%s181 + $0xbf8] sm:$0xff]
        %v576 = vld [vmem:[%s181 + $0xc00] sm:$0xff]
        %v577 = vld [vmem:[%s181 + $0xc08] sm:$0xff]
        %v578 = vld [vmem:[%s181 + $0xc10] sm:$0xff]
        %v579 = vld [vmem:[%s181 + $0xc18] sm:$0xff]
        %v580 = vld [vmem:[%s181 + $0xc20] sm:$0xff]
        %v581 = vld [vmem:[%s181 + $0xc28] sm:$0xff]
        %v582 = vld [vmem:[%s181 + $0xc30] sm:$0xff]
        %v583 = vld [vmem:[%s181 + $0xc38] sm:$0xff]
        %v584 = vld [vmem:[%s181 + $0xc40] sm:$0xff]
        %v585 = vld [vmem:[%s181 + $0xc48] sm:$0xff]
        %v586 = vld [vmem:[%s181 + $0xc50] sm:$0xff]
        %v587 = vld [vmem:[%s181 + $0xc58] sm:$0xff]
        %v588 = vld [vmem:[%s181 + $0xc60] sm:$0xff]
        %v589 = vld [vmem:[%s181 + $0xc68] sm:$0xff]
        %v590 = vld [vmem:[%s181 + $0xc70] sm:$0xff]
        %v591 = vld [vmem:[%s181 + $0xc78] sm:$0xff]
        %v592 = vld [vmem:[%s181 + $0xc80] sm:$0xff]
        %v593 = vld [vmem:[%s181 + $0xc88] sm:$0xff]
        %v594 = vld [vmem:[%s181 + $0xc90] sm:$0xff]
        %v595 = vld [vmem:[%s181 + $0xc98] sm:$0xff]
        %v596 = vld [vmem:[%s181 + $0xca0] sm:$0xff]
        %v597 = vld [vmem:[%s181 + $0xca8] sm:$0xff]
        %v598 = vld [vmem:[%s181 + $0xcb0] sm:$0xff]
        %v599 = vld [vmem:[%s181 + $0xcb8] sm:$0xff]
        %v600 = vld [vmem:[%s181 + $0xcc0] sm:$0xff]
        %v601 = vld [vmem:[%s181 + $0xcc8] sm:$0xff]
        %v602 = vld [vmem:[%s181 + $0xcd0] sm:$0xff]
        %v603 = vld [vmem:[%s181 + $0xcd8] sm:$0xff]
        %v604 = vld [vmem:[%s181 + $0xce0] sm:$0xff]
        %v605 = vld [vmem:[%s181 + $0xce8] sm:$0xff]
        %v606 = vld [vmem:[%s181 + $0xcf0] sm:$0xff]
        %v607 = vld [vmem:[%s181 + $0xcf8] sm:$0xff]
        %v608 = vld [vmem:[%s181 + $0xd00] sm:$0xff]
        %v609 = vld [vmem:[%s181 + $0xd08] sm:$0xff]
        %v610 = vld [vmem:[%s181 + $0xd10] sm:$0xff]
        %v611 = vld [vmem:[%s181 + $0xd18] sm:$0xff]
        %v612 = vld [vmem:[%s181 + $0xd20] sm:$0xff]
        %v613 = vld [vmem:[%s181 + $0xd28] sm:$0xff]
        %v614 = vld [vmem:[%s181 + $0xd30] sm:$0xff]
        %v615 = vld [vmem:[%s181 + $0xd38] sm:$0xff]
        %v616 = vld [vmem:[%s181 + $0xd40] sm:$0xff]
        %v617 = vld [vmem:[%s181 + $0xd48] sm:$0xff]
        %v618 = vld [vmem:[%s181 + $0xd50] sm:$0xff]
        %v619 = vld [vmem:[%s181 + $0xd58] sm:$0xff]
        %v620 = vld [vmem:[%s181 + $0xd60] sm:$0xff]
        %v621 = vld [vmem:[%s181 + $0xd68] sm:$0xff]
        %v622 = vld [vmem:[%s181 + $0xd70] sm:$0xff]
        %v623 = vld [vmem:[%s181 + $0xd78] sm:$0xff]
        %v624 = vld [vmem:[%s181 + $0xd80] sm:$0xff]
        %v625 = vld [vmem:[%s181 + $0xd88] sm:$0xff]
        %v626 = vld [vmem:[%s181 + $0xd90] sm:$0xff]
        %v627 = vld [vmem:[%s181 + $0xd98] sm:$0xff]
        %v628 = vld [vmem:[%s181 + $0xda0] sm:$0xff]
        %v629 = vld [vmem:[%s181 + $0xda8] sm:$0xff]
        %v630 = vld [vmem:[%s181 + $0xdb0] sm:$0xff]
        %v631 = vld [vmem:[%s181 + $0xdb8] sm:$0xff]
        %v632 = vld [vmem:[%s181 + $0xdc0] sm:$0xff]
        %v633 = vld [vmem:[%s181 + $0xdc8] sm:$0xff]
        %v634 = vld [vmem:[%s181 + $0xdd0] sm:$0xff]
        %v635 = vld [vmem:[%s181 + $0xdd8] sm:$0xff]
        %v636 = vld [vmem:[%s181 + $0xde0] sm:$0xff]
        %v637 = vld [vmem:[%s181 + $0xde8] sm:$0xff]
        %v638 = vld [vmem:[%s181 + $0xdf0] sm:$0xff]
        %v639 = vld [vmem:[%s181 + $0xdf8] sm:$0xff]
        %v640 = vld [vmem:[%s181 + $0xe00] sm:$0xff]
        %v641 = vld [vmem:[%s181 + $0xe08] sm:$0xff]
        %v642 = vld [vmem:[%s181 + $0xe10] sm:$0xff]
        %v643 = vld [vmem:[%s181 + $0xe18] sm:$0xff]
        %v644 = vld [vmem:[%s181 + $0xe20] sm:$0xff]
        %v645 = vld [vmem:[%s181 + $0xe28] sm:$0xff]
        %v646 = vld [vmem:[%s181 + $0xe30] sm:$0xff]
        %v647 = vld [vmem:[%s181 + $0xe38] sm:$0xff]
        %v648 = vld [vmem:[%s181 + $0xe40] sm:$0xff]
        %v649 = vld [vmem:[%s181 + $0xe48] sm:$0xff]
        %v650 = vld [vmem:[%s181 + $0xe50] sm:$0xff]
        %v651 = vld [vmem:[%s181 + $0xe58] sm:$0xff]
        %v652 = vld [vmem:[%s181 + $0xe60] sm:$0xff]
        %v653 = vld [vmem:[%s181 + $0xe68] sm:$0xff]
        %v654 = vld [vmem:[%s181 + $0xe70] sm:$0xff]
        %v655 = vld [vmem:[%s181 + $0xe78] sm:$0xff]
        %v656 = vld [vmem:[%s181 + $0xe80] sm:$0xff]
        %v657 = vld [vmem:[%s181 + $0xe88] sm:$0xff]
        %v658 = vld [vmem:[%s181 + $0xe90] sm:$0xff]
        %v659 = vld [vmem:[%s181 + $0xe98] sm:$0xff]
        %v660 = vld [vmem:[%s181 + $0xea0] sm:$0xff]
        %v661 = vld [vmem:[%s181 + $0xea8] sm:$0xff]
        %v662 = vld [vmem:[%s181 + $0xeb0] sm:$0xff]
        %v663 = vld [vmem:[%s181 + $0xeb8] sm:$0xff]
        %v664 = vld [vmem:[%s181 + $0xec0] sm:$0xff]
        %v665 = vld [vmem:[%s181 + $0xec8] sm:$0xff]
        %v666 = vld [vmem:[%s181 + $0xed0] sm:$0xff]
        %v667 = vld [vmem:[%s181 + $0xed8] sm:$0xff]
        %v668 = vld [vmem:[%s181 + $0xee0] sm:$0xff]
        %v669 = vld [vmem:[%s181 + $0xee8] sm:$0xff]
        %v670 = vld [vmem:[%s181 + $0xef0] sm:$0xff]
        %v671 = vld [vmem:[%s181 + $0xef8] sm:$0xff]
        %v672 = vld [vmem:[%s181 + $0xf00] sm:$0xff]
        %v673 = vld [vmem:[%s181 + $0xf08] sm:$0xff]
        %v674 = vld [vmem:[%s181 + $0xf10] sm:$0xff]
        %v675 = vld [vmem:[%s181 + $0xf18] sm:$0xff]
        %v676 = vld [vmem:[%s181 + $0xf20] sm:$0xff]
        %v677 = vld [vmem:[%s181 + $0xf28] sm:$0xff]
        %v678 = vld [vmem:[%s181 + $0xf30] sm:$0xff]
        %v679 = vld [vmem:[%s181 + $0xf38] sm:$0xff]
        %v680 = vld [vmem:[%s181 + $0xf40] sm:$0xff]
        %v681 = vld [vmem:[%s181 + $0xf48] sm:$0xff]
        %v682 = vld [vmem:[%s181 + $0xf50] sm:$0xff]
        %v683 = vld [vmem:[%s181 + $0xf58] sm:$0xff]
        %v684 = vld [vmem:[%s181 + $0xf60] sm:$0xff]
        %v685 = vld [vmem:[%s181 + $0xf68] sm:$0xff]
        %v686 = vld [vmem:[%s181 + $0xf70] sm:$0xff]
        %v687 = vld [vmem:[%s181 + $0xf78] sm:$0xff]
        %v688 = vld [vmem:[%s181 + $0xf80] sm:$0xff]
        %v689 = vld [vmem:[%s181 + $0xf88] sm:$0xff]
        %v690 = vld [vmem:[%s181 + $0xf90] sm:$0xff]
        %v691 = vld [vmem:[%s181 + $0xf98] sm:$0xff]
        %v692 = vld [vmem:[%s181 + $0xfa0] sm:$0xff]
        %v693 = vld [vmem:[%s181 + $0xfa8] sm:$0xff]
        %v694 = vld [vmem:[%s181 + $0xfb0] sm:$0xff]
        %v695 = vld [vmem:[%s181 + $0xfb8] sm:$0xff]
        %v696 = vld [vmem:[%s181 + $0xfc0] sm:$0xff]
        %v697 = vld [vmem:[%s181 + $0xfc8] sm:$0xff]
        %v698 = vld [vmem:[%s181 + $0xfd0] sm:$0xff]
        %v699 = vld [vmem:[%s181 + $0xfd8] sm:$0xff]
        %v700 = vld [vmem:[%s181 + $0xfe0] sm:$0xff]
        %v701 = vld [vmem:[%s181 + $0xfe8] sm:$0xff]
        %v702 = vld [vmem:[%s181 + $0xff0] sm:$0xff]
        %v703 = vld [vmem:[%s181 + $0xff8] sm:$0xff]
        %v704 = vld [vmem:[%s1] sm:$0xff]
        %v705 = vld [vmem:[%s1 + $0x8] sm:$0x1]
        %v706 = vld [vmem:[%s2] sm:$0x1]
        %v708 = vlaneseq
        %v709 = vshrl.u32 %v708, 7
        %v710 = vsub.s32 0, %v709
        %v711 = vrot.slane %v706, %v710
        %vm713 = vcmask 72704
        %v715 = vsel %vm713, %v192, 0
        %v718 = vsel %vm713, %v193, 0
        %v721 = vsel %vm713, %v194, 0
        %v724 = vsel %vm713, %v195, 0
        %v727 = vsel %vm713, %v196, 0
        %v730 = vsel %vm713, %v197, 0
        %v733 = vsel %vm713, %v198, 0
        %v736 = vsel %vm713, %v199, 0
        %v739 = vsel %vm713, %v200, 0
        %v742 = vsel %vm713, %v201, 0
        %v745 = vsel %vm713, %v202, 0
        %v748 = vsel %vm713, %v203, 0
        %v751 = vsel %vm713, %v204, 0
        %v754 = vsel %vm713, %v205, 0
        %v757 = vsel %vm713, %v206, 0
        %v760 = vsel %vm713, %v207, 0
        %v763 = vsel %vm713, %v208, 0
        %v766 = vsel %vm713, %v209, 0
        %v769 = vsel %vm713, %v210, 0
        %v772 = vsel %vm713, %v211, 0
        %v775 = vsel %vm713, %v212, 0
        %v778 = vsel %vm713, %v213, 0
        %v781 = vsel %vm713, %v214, 0
        %v784 = vsel %vm713, %v215, 0
        %v787 = vsel %vm713, %v216, 0
        %v790 = vsel %vm713, %v217, 0
        %v793 = vsel %vm713, %v218, 0
        %v796 = vsel %vm713, %v219, 0
        %v799 = vsel %vm713, %v220, 0
        %v802 = vsel %vm713, %v221, 0
        %v805 = vsel %vm713, %v222, 0
        %v808 = vsel %vm713, %v223, 0
        %v811 = vsel %vm713, %v224, 0
        %v814 = vsel %vm713, %v225, 0
        %v817 = vsel %vm713, %v226, 0
        %v820 = vsel %vm713, %v227, 0
        %v823 = vsel %vm713, %v228, 0
        %v826 = vsel %vm713, %v229, 0
        %v829 = vsel %vm713, %v230, 0
        %v832 = vsel %vm713, %v231, 0
        %v835 = vsel %vm713, %v232, 0
        %v838 = vsel %vm713, %v233, 0
        %v841 = vsel %vm713, %v234, 0
        %v844 = vsel %vm713, %v235, 0
        %v847 = vsel %vm713, %v236, 0
        %v850 = vsel %vm713, %v237, 0
        %v853 = vsel %vm713, %v238, 0
        %v856 = vsel %vm713, %v239, 0
        %v859 = vsel %vm713, %v240, 0
        %v862 = vsel %vm713, %v241, 0
        %v865 = vsel %vm713, %v242, 0
        %v868 = vsel %vm713, %v243, 0
        %v871 = vsel %vm713, %v244, 0
        %v874 = vsel %vm713, %v245, 0
        %v877 = vsel %vm713, %v246, 0
        %v880 = vsel %vm713, %v247, 0
        %v883 = vsel %vm713, %v248, 0
        %v886 = vsel %vm713, %v249, 0
        %v889 = vsel %vm713, %v250, 0
        %v892 = vsel %vm713, %v251, 0
        %v895 = vsel %vm713, %v252, 0
        %v898 = vsel %vm713, %v253, 0
        %v901 = vsel %vm713, %v254, 0
        %v904 = vsel %vm713, %v255, 0
        %v907 = vsel %vm713, %v256, 0
        %v910 = vsel %vm713, %v257, 0
        %v913 = vsel %vm713, %v258, 0
        %v916 = vsel %vm713, %v259, 0
        %v919 = vsel %vm713, %v260, 0
        %v922 = vsel %vm713, %v261, 0
        %v925 = vsel %vm713, %v262, 0
        %v928 = vsel %vm713, %v263, 0
        %v931 = vsel %vm713, %v264, 0
        %v934 = vsel %vm713, %v265, 0
        %v937 = vsel %vm713, %v266, 0
        %v940 = vsel %vm713, %v267, 0
        %v943 = vsel %vm713, %v268, 0
        %v946 = vsel %vm713, %v269, 0
        %v949 = vsel %vm713, %v270, 0
        %v952 = vsel %vm713, %v271, 0
        %v955 = vsel %vm713, %v272, 0
        %v958 = vsel %vm713, %v273, 0
        %v961 = vsel %vm713, %v274, 0
        %v964 = vsel %vm713, %v275, 0
        %v967 = vsel %vm713, %v276, 0
        %v970 = vsel %vm713, %v277, 0
        %v973 = vsel %vm713, %v278, 0
        %v976 = vsel %vm713, %v279, 0
        %v979 = vsel %vm713, %v280, 0
        %v982 = vsel %vm713, %v281, 0
        %v985 = vsel %vm713, %v282, 0
        %v988 = vsel %vm713, %v283, 0
        %v991 = vsel %vm713, %v284, 0
        %v994 = vsel %vm713, %v285, 0
        %v997 = vsel %vm713, %v286, 0
        %v1000 = vsel %vm713, %v287, 0
        %v1003 = vsel %vm713, %v288, 0
        %v1006 = vsel %vm713, %v289, 0
        %v1009 = vsel %vm713, %v290, 0
        %v1012 = vsel %vm713, %v291, 0
        %v1015 = vsel %vm713, %v292, 0
        %v1018 = vsel %vm713, %v293, 0
        %v1021 = vsel %vm713, %v294, 0
        %v1024 = vsel %vm713, %v295, 0
        %v1027 = vsel %vm713, %v296, 0
        %v1030 = vsel %vm713, %v297, 0
        %v1033 = vsel %vm713, %v298, 0
        %v1036 = vsel %vm713, %v299, 0
        %v1039 = vsel %vm713, %v300, 0
        %v1042 = vsel %vm713, %v301, 0
        %v1045 = vsel %vm713, %v302, 0
        %v1048 = vsel %vm713, %v303, 0
        %v1051 = vsel %vm713, %v304, 0
        %v1054 = vsel %vm713, %v305, 0
        %v1057 = vsel %vm713, %v306, 0
        %v1060 = vsel %vm713, %v307, 0
        %v1063 = vsel %vm713, %v308, 0
        %v1066 = vsel %vm713, %v309, 0
        %v1069 = vsel %vm713, %v310, 0
        %v1072 = vsel %vm713, %v311, 0
        %v1075 = vsel %vm713, %v312, 0
        %v1078 = vsel %vm713, %v313, 0
        %v1081 = vsel %vm713, %v314, 0
        %v1084 = vsel %vm713, %v315, 0
        %v1087 = vsel %vm713, %v316, 0
        %v1090 = vsel %vm713, %v317, 0
        %v1093 = vsel %vm713, %v318, 0
        %v1096 = vsel %vm713, %v319, 0
        %v1099 = vsel %vm713, %v320, 0
        %v1102 = vsel %vm713, %v321, 0
        %v1105 = vsel %vm713, %v322, 0
        %v1108 = vsel %vm713, %v323, 0
        %v1111 = vsel %vm713, %v324, 0
        %v1114 = vsel %vm713, %v325, 0
        %v1117 = vsel %vm713, %v326, 0
        %v1120 = vsel %vm713, %v327, 0
        %v1123 = vsel %vm713, %v328, 0
        %v1126 = vsel %vm713, %v329, 0
        %v1129 = vsel %vm713, %v330, 0
        %v1132 = vsel %vm713, %v331, 0
        %v1135 = vsel %vm713, %v332, 0
        %v1138 = vsel %vm713, %v333, 0
        %v1141 = vsel %vm713, %v334, 0
        %v1144 = vsel %vm713, %v335, 0
        %v1147 = vsel %vm713, %v336, 0
        %v1150 = vsel %vm713, %v337, 0
        %v1153 = vsel %vm713, %v338, 0
        %v1156 = vsel %vm713, %v339, 0
        %v1159 = vsel %vm713, %v340, 0
        %v1162 = vsel %vm713, %v341, 0
        %v1165 = vsel %vm713, %v342, 0
        %v1168 = vsel %vm713, %v343, 0
        %v1171 = vsel %vm713, %v344, 0
        %v1174 = vsel %vm713, %v345, 0
        %v1177 = vsel %vm713, %v346, 0
        %v1180 = vsel %vm713, %v347, 0
        %v1183 = vsel %vm713, %v348, 0
        %v1186 = vsel %vm713, %v349, 0
        %v1189 = vsel %vm713, %v350, 0
        %v1192 = vsel %vm713, %v351, 0
        %v1195 = vsel %vm713, %v352, 0
        %v1198 = vsel %vm713, %v353, 0
        %v1201 = vsel %vm713, %v354, 0
        %v1204 = vsel %vm713, %v355, 0
        %v1207 = vsel %vm713, %v356, 0
        %v1210 = vsel %vm713, %v357, 0
        %v1213 = vsel %vm713, %v358, 0
        %v1216 = vsel %vm713, %v359, 0
        %v1219 = vsel %vm713, %v360, 0
        %v1222 = vsel %vm713, %v361, 0
        %v1225 = vsel %vm713, %v362, 0
        %v1228 = vsel %vm713, %v363, 0
        %v1231 = vsel %vm713, %v364, 0
        %v1234 = vsel %vm713, %v365, 0
        %v1237 = vsel %vm713, %v366, 0
        %v1240 = vsel %vm713, %v367, 0
        %v1243 = vsel %vm713, %v368, 0
        %v1246 = vsel %vm713, %v369, 0
        %v1249 = vsel %vm713, %v370, 0
        %v1252 = vsel %vm713, %v371, 0
        %v1255 = vsel %vm713, %v372, 0
        %v1258 = vsel %vm713, %v373, 0
        %v1261 = vsel %vm713, %v374, 0
        %v1264 = vsel %vm713, %v375, 0
        %v1267 = vsel %vm713, %v376, 0
        %v1270 = vsel %vm713, %v377, 0
        %v1273 = vsel %vm713, %v378, 0
        %v1276 = vsel %vm713, %v379, 0
        %v1279 = vsel %vm713, %v380, 0
        %v1282 = vsel %vm713, %v381, 0
        %v1285 = vsel %vm713, %v382, 0
        %v1288 = vsel %vm713, %v383, 0
        %v1291 = vsel %vm713, %v384, 0
        %v1294 = vsel %vm713, %v385, 0
        %v1297 = vsel %vm713, %v386, 0
        %v1300 = vsel %vm713, %v387, 0
        %v1303 = vsel %vm713, %v388, 0
        %v1306 = vsel %vm713, %v389, 0
        %v1309 = vsel %vm713, %v390, 0
        %v1312 = vsel %vm713, %v391, 0
        %v1315 = vsel %vm713, %v392, 0
        %v1318 = vsel %vm713, %v393, 0
        %v1321 = vsel %vm713, %v394, 0
        %v1324 = vsel %vm713, %v395, 0
        %v1327 = vsel %vm713, %v396, 0
        %v1330 = vsel %vm713, %v397, 0
        %v1333 = vsel %vm713, %v398, 0
        %v1336 = vsel %vm713, %v399, 0
        %v1339 = vsel %vm713, %v400, 0
        %v1342 = vsel %vm713, %v401, 0
        %v1345 = vsel %vm713, %v402, 0
        %v1348 = vsel %vm713, %v403, 0
        %v1351 = vsel %vm713, %v404, 0
        %v1354 = vsel %vm713, %v405, 0
        %v1357 = vsel %vm713, %v406, 0
        %v1360 = vsel %vm713, %v407, 0
        %v1363 = vsel %vm713, %v408, 0
        %v1366 = vsel %vm713, %v409, 0
        %v1369 = vsel %vm713, %v410, 0
        %v1372 = vsel %vm713, %v411, 0
        %v1375 = vsel %vm713, %v412, 0
        %v1378 = vsel %vm713, %v413, 0
        %v1381 = vsel %vm713, %v414, 0
        %v1384 = vsel %vm713, %v415, 0
        %v1387 = vsel %vm713, %v416, 0
        %v1390 = vsel %vm713, %v417, 0
        %v1393 = vsel %vm713, %v418, 0
        %v1396 = vsel %vm713, %v419, 0
        %v1399 = vsel %vm713, %v420, 0
        %v1402 = vsel %vm713, %v421, 0
        %v1405 = vsel %vm713, %v422, 0
        %v1408 = vsel %vm713, %v423, 0
        %v1411 = vsel %vm713, %v424, 0
        %v1414 = vsel %vm713, %v425, 0
        %v1417 = vsel %vm713, %v426, 0
        %v1420 = vsel %vm713, %v427, 0
        %v1423 = vsel %vm713, %v428, 0
        %v1426 = vsel %vm713, %v429, 0
        %v1429 = vsel %vm713, %v430, 0
        %v1432 = vsel %vm713, %v431, 0
        %v1435 = vsel %vm713, %v432, 0
        %v1438 = vsel %vm713, %v433, 0
        %v1441 = vsel %vm713, %v434, 0
        %v1444 = vsel %vm713, %v435, 0
        %v1447 = vsel %vm713, %v436, 0
        %v1450 = vsel %vm713, %v437, 0
        %v1453 = vsel %vm713, %v438, 0
        %v1456 = vsel %vm713, %v439, 0
        %v1459 = vsel %vm713, %v440, 0
        %v1462 = vsel %vm713, %v441, 0
        %v1465 = vsel %vm713, %v442, 0
        %v1468 = vsel %vm713, %v443, 0
        %v1471 = vsel %vm713, %v444, 0
        %v1474 = vsel %vm713, %v445, 0
        %v1477 = vsel %vm713, %v446, 0
        %v1480 = vsel %vm713, %v447, 0
        %v1483 = vsel %vm713, %v448, 0
        %v1486 = vsel %vm713, %v449, 0
        %v1489 = vsel %vm713, %v450, 0
        %v1492 = vsel %vm713, %v451, 0
        %v1495 = vsel %vm713, %v452, 0
        %v1498 = vsel %vm713, %v453, 0
        %v1501 = vsel %vm713, %v454, 0
        %v1504 = vsel %vm713, %v455, 0
        %v1507 = vsel %vm713, %v456, 0
        %v1510 = vsel %vm713, %v457, 0
        %v1513 = vsel %vm713, %v458, 0
        %v1516 = vsel %vm713, %v459, 0
        %v1519 = vsel %vm713, %v460, 0
        %v1522 = vsel %vm713, %v461, 0
        %v1525 = vsel %vm713, %v462, 0
        %v1528 = vsel %vm713, %v463, 0
        %v1531 = vsel %vm713, %v464, 0
        %v1534 = vsel %vm713, %v465, 0
        %v1537 = vsel %vm713, %v466, 0
        %v1540 = vsel %vm713, %v467, 0
        %v1543 = vsel %vm713, %v468, 0
        %v1546 = vsel %vm713, %v469, 0
        %v1549 = vsel %vm713, %v470, 0
        %v1552 = vsel %vm713, %v471, 0
        %v1555 = vsel %vm713, %v472, 0
        %v1558 = vsel %vm713, %v473, 0
        %v1561 = vsel %vm713, %v474, 0
        %v1564 = vsel %vm713, %v475, 0
        %v1567 = vsel %vm713, %v476, 0
        %v1570 = vsel %vm713, %v477, 0
        %v1573 = vsel %vm713, %v478, 0
        %v1576 = vsel %vm713, %v479, 0
        %v1579 = vsel %vm713, %v480, 0
        %v1582 = vsel %vm713, %v481, 0
        %v1585 = vsel %vm713, %v482, 0
        %v1588 = vsel %vm713, %v483, 0
        %v1591 = vsel %vm713, %v484, 0
        %v1594 = vsel %vm713, %v485, 0
        %v1597 = vsel %vm713, %v486, 0
        %v1600 = vsel %vm713, %v487, 0
        %v1603 = vsel %vm713, %v488, 0
        %v1606 = vsel %vm713, %v489, 0
        %v1609 = vsel %vm713, %v490, 0
        %v1612 = vsel %vm713, %v491, 0
        %v1615 = vsel %vm713, %v492, 0
        %v1618 = vsel %vm713, %v493, 0
        %v1621 = vsel %vm713, %v494, 0
        %v1624 = vsel %vm713, %v495, 0
        %v1627 = vsel %vm713, %v496, 0
        %v1630 = vsel %vm713, %v497, 0
        %v1633 = vsel %vm713, %v498, 0
        %v1636 = vsel %vm713, %v499, 0
        %v1639 = vsel %vm713, %v500, 0
        %v1642 = vsel %vm713, %v501, 0
        %v1645 = vsel %vm713, %v502, 0
        %v1648 = vsel %vm713, %v503, 0
        %v1651 = vsel %vm713, %v504, 0
        %v1654 = vsel %vm713, %v505, 0
        %v1657 = vsel %vm713, %v506, 0
        %v1660 = vsel %vm713, %v507, 0
        %v1663 = vsel %vm713, %v508, 0
        %v1666 = vsel %vm713, %v509, 0
        %v1669 = vsel %vm713, %v510, 0
        %v1672 = vsel %vm713, %v511, 0
        %v1675 = vsel %vm713, %v512, 0
        %v1678 = vsel %vm713, %v513, 0
        %v1681 = vsel %vm713, %v514, 0
        %v1684 = vsel %vm713, %v515, 0
        %v1687 = vsel %vm713, %v516, 0
        %v1690 = vsel %vm713, %v517, 0
        %v1693 = vsel %vm713, %v518, 0
        %v1696 = vsel %vm713, %v519, 0
        %v1699 = vsel %vm713, %v520, 0
        %v1702 = vsel %vm713, %v521, 0
        %v1705 = vsel %vm713, %v522, 0
        %v1708 = vsel %vm713, %v523, 0
        %v1711 = vsel %vm713, %v524, 0
        %v1714 = vsel %vm713, %v525, 0
        %v1717 = vsel %vm713, %v526, 0
        %v1720 = vsel %vm713, %v527, 0
        %v1723 = vsel %vm713, %v528, 0
        %v1726 = vsel %vm713, %v529, 0
        %v1729 = vsel %vm713, %v530, 0
        %v1732 = vsel %vm713, %v531, 0
        %v1735 = vsel %vm713, %v532, 0
        %v1738 = vsel %vm713, %v533, 0
        %v1741 = vsel %vm713, %v534, 0
        %v1744 = vsel %vm713, %v535, 0
        %v1747 = vsel %vm713, %v536, 0
        %v1750 = vsel %vm713, %v537, 0
        %v1753 = vsel %vm713, %v538, 0
        %v1756 = vsel %vm713, %v539, 0
        %v1759 = vsel %vm713, %v540, 0
        %v1762 = vsel %vm713, %v541, 0
        %v1765 = vsel %vm713, %v542, 0
        %v1768 = vsel %vm713, %v543, 0
        %v1771 = vsel %vm713, %v544, 0
        %v1774 = vsel %vm713, %v545, 0
        %v1777 = vsel %vm713, %v546, 0
        %v1780 = vsel %vm713, %v547, 0
        %v1783 = vsel %vm713, %v548, 0
        %v1786 = vsel %vm713, %v549, 0
        %v1789 = vsel %vm713, %v550, 0
        %v1792 = vsel %vm713, %v551, 0
        %v1795 = vsel %vm713, %v552, 0
        %v1798 = vsel %vm713, %v553, 0
        %v1801 = vsel %vm713, %v554, 0
        %v1804 = vsel %vm713, %v555, 0
        %v1807 = vsel %vm713, %v556, 0
        %v1810 = vsel %vm713, %v557, 0
        %v1813 = vsel %vm713, %v558, 0
        %v1816 = vsel %vm713, %v559, 0
        %v1819 = vsel %vm713, %v560, 0
        %v1822 = vsel %vm713, %v561, 0
        %v1825 = vsel %vm713, %v562, 0
        %v1828 = vsel %vm713, %v563, 0
        %v1831 = vsel %vm713, %v564, 0
        %v1834 = vsel %vm713, %v565, 0
        %v1837 = vsel %vm713, %v566, 0
        %v1840 = vsel %vm713, %v567, 0
        %v1843 = vsel %vm713, %v568, 0
        %v1846 = vsel %vm713, %v569, 0
        %v1849 = vsel %vm713, %v570, 0
        %v1852 = vsel %vm713, %v571, 0
        %v1855 = vsel %vm713, %v572, 0
        %v1858 = vsel %vm713, %v573, 0
        %v1861 = vsel %vm713, %v574, 0
        %v1864 = vsel %vm713, %v575, 0
        %v1867 = vsel %vm713, %v576, 0
        %v1870 = vsel %vm713, %v577, 0
        %v1873 = vsel %vm713, %v578, 0
        %v1876 = vsel %vm713, %v579, 0
        %v1879 = vsel %vm713, %v580, 0
        %v1882 = vsel %vm713, %v581, 0
        %v1885 = vsel %vm713, %v582, 0
        %v1888 = vsel %vm713, %v583, 0
        %v1891 = vsel %vm713, %v584, 0
        %v1894 = vsel %vm713, %v585, 0
        %v1897 = vsel %vm713, %v586, 0
        %v1900 = vsel %vm713, %v587, 0
        %v1903 = vsel %vm713, %v588, 0
        %v1906 = vsel %vm713, %v589, 0
        %v1909 = vsel %vm713, %v590, 0
        %v1912 = vsel %vm713, %v591, 0
        %v1915 = vsel %vm713, %v592, 0
        %v1918 = vsel %vm713, %v593, 0
        %v1921 = vsel %vm713, %v594, 0
        %v1924 = vsel %vm713, %v595, 0
        %v1927 = vsel %vm713, %v596, 0
        %v1930 = vsel %vm713, %v597, 0
        %v1933 = vsel %vm713, %v598, 0
        %v1936 = vsel %vm713, %v599, 0
        %v1939 = vsel %vm713, %v600, 0
        %v1942 = vsel %vm713, %v601, 0
        %v1945 = vsel %vm713, %v602, 0
        %v1948 = vsel %vm713, %v603, 0
        %v1951 = vsel %vm713, %v604, 0
        %v1954 = vsel %vm713, %v605, 0
        %v1957 = vsel %vm713, %v606, 0
        %v1960 = vsel %vm713, %v607, 0
        %v1963 = vsel %vm713, %v608, 0
        %v1966 = vsel %vm713, %v609, 0
        %v1969 = vsel %vm713, %v610, 0
        %v1972 = vsel %vm713, %v611, 0
        %v1975 = vsel %vm713, %v612, 0
        %v1978 = vsel %vm713, %v613, 0
        %v1981 = vsel %vm713, %v614, 0
        %v1984 = vsel %vm713, %v615, 0
        %v1987 = vsel %vm713, %v616, 0
        %v1990 = vsel %vm713, %v617, 0
        %v1993 = vsel %vm713, %v618, 0
        %v1996 = vsel %vm713, %v619, 0
        %v1999 = vsel %vm713, %v620, 0
        %v2002 = vsel %vm713, %v621, 0
        %v2005 = vsel %vm713, %v622, 0
        %v2008 = vsel %vm713, %v623, 0
        %v2011 = vsel %vm713, %v624, 0
        %v2014 = vsel %vm713, %v625, 0
        %v2017 = vsel %vm713, %v626, 0
        %v2020 = vsel %vm713, %v627, 0
        %v2023 = vsel %vm713, %v628, 0
        %v2026 = vsel %vm713, %v629, 0
        %v2029 = vsel %vm713, %v630, 0
        %v2032 = vsel %vm713, %v631, 0
        %v2035 = vsel %vm713, %v632, 0
        %v2038 = vsel %vm713, %v633, 0
        %v2041 = vsel %vm713, %v634, 0
        %v2044 = vsel %vm713, %v635, 0
        %v2047 = vsel %vm713, %v636, 0
        %v2050 = vsel %vm713, %v637, 0
        %v2053 = vsel %vm713, %v638, 0
        %v2056 = vsel %vm713, %v639, 0
        %v2059 = vsel %vm713, %v640, 0
        %v2062 = vsel %vm713, %v641, 0
        %v2065 = vsel %vm713, %v642, 0
        %v2068 = vsel %vm713, %v643, 0
        %v2071 = vsel %vm713, %v644, 0
        %v2074 = vsel %vm713, %v645, 0
        %v2077 = vsel %vm713, %v646, 0
        %v2080 = vsel %vm713, %v647, 0
        %v2083 = vsel %vm713, %v648, 0
        %v2086 = vsel %vm713, %v649, 0
        %v2089 = vsel %vm713, %v650, 0
        %v2092 = vsel %vm713, %v651, 0
        %v2095 = vsel %vm713, %v652, 0
        %v2098 = vsel %vm713, %v653, 0
        %v2101 = vsel %vm713, %v654, 0
        %v2104 = vsel %vm713, %v655, 0
        %v2107 = vsel %vm713, %v656, 0
        %v2110 = vsel %vm713, %v657, 0
        %v2113 = vsel %vm713, %v658, 0
        %v2116 = vsel %vm713, %v659, 0
        %v2119 = vsel %vm713, %v660, 0
        %v2122 = vsel %vm713, %v661, 0
        %v2125 = vsel %vm713, %v662, 0
        %v2128 = vsel %vm713, %v663, 0
        %v2131 = vsel %vm713, %v664, 0
        %v2134 = vsel %vm713, %v665, 0
        %v2137 = vsel %vm713, %v666, 0
        %v2140 = vsel %vm713, %v667, 0
        %v2143 = vsel %vm713, %v668, 0
        %v2146 = vsel %vm713, %v669, 0
        %v2149 = vsel %vm713, %v670, 0
        %v2152 = vsel %vm713, %v671, 0
        %v2155 = vsel %vm713, %v672, 0
        %v2158 = vsel %vm713, %v673, 0
        %v2161 = vsel %vm713, %v674, 0
        %v2164 = vsel %vm713, %v675, 0
        %v2167 = vsel %vm713, %v676, 0
        %v2170 = vsel %vm713, %v677, 0
        %v2173 = vsel %vm713, %v678, 0
        %v2176 = vsel %vm713, %v679, 0
        %v2179 = vsel %vm713, %v680, 0
        %v2182 = vsel %vm713, %v681, 0
        %v2185 = vsel %vm713, %v682, 0
        %v2188 = vsel %vm713, %v683, 0
        %v2191 = vsel %vm713, %v684, 0
        %v2194 = vsel %vm713, %v685, 0
        %v2197 = vsel %vm713, %v686, 0
        %v2200 = vsel %vm713, %v687, 0
        %v2203 = vsel %vm713, %v688, 0
        %v2206 = vsel %vm713, %v689, 0
        %v2209 = vsel %vm713, %v690, 0
        %v2212 = vsel %vm713, %v691, 0
        %v2215 = vsel %vm713, %v692, 0
        %v2218 = vsel %vm713, %v693, 0
        %v2221 = vsel %vm713, %v694, 0
        %v2224 = vsel %vm713, %v695, 0
        %v2227 = vsel %vm713, %v696, 0
        %v2230 = vsel %vm713, %v697, 0
        %v2233 = vsel %vm713, %v698, 0
        %v2236 = vsel %vm713, %v699, 0
        %v2239 = vsel %vm713, %v700, 0
        %v2242 = vsel %vm713, %v701, 0
        %v2245 = vsel %vm713, %v702, 0
        %v2248 = vsel %vm713, %v703, 0
        %vm2250 = vcmask 1040384
        %v2252 = vsel %vm2250, %v705, 0
        %2254 = vmatprep.subr.mxu0 0.0
        %2255 = vmatpush1.msra.mxu0 %v704
        %2256 = vmatprep.subr.mxu0 0.0
        %2257 = vmatpush1.msra.mxu0 %v2252
        %2258 = vmatprep.subr.mxu0 0.0
        %2259 = vmatpush1.msra.mxu0 0.0
        %2260 = vmatprep.subr.mxu0 0.0
        %2261 = vmatpush1.msra.mxu0 0.0
        %2262 = vmatprep.subr.mxu0 0.0
        %2263 = vmatpush1.msra.mxu0 0.0
        %2264 = vmatprep.subr.mxu0 0.0
        %2265 = vmatpush1.msra.mxu0 0.0
        %2266 = vmatprep.subr.mxu0 0.0
        %2267 = vmatpush1.msra.mxu0 0.0
        %2268 = vmatprep.subr.mxu0 0.0
        %2269 = vmatpush1.msra.mxu0 0.0
        %2270 = vmatprep.subr.mxu0 0.0
        %2271 = vmatpush1.msra.mxu0 0.0
        %2272 = vmatprep.subr.mxu0 0.0
        %2273 = vmatpush1.msra.mxu0 0.0
        %2274 = vmatprep.subr.mxu0 0.0
        %2275 = vmatpush1.msra.mxu0 0.0
        %2276 = vmatprep.subr.mxu0 0.0
        %2277 = vmatpush1.msra.mxu0 0.0
        %2278 = vmatprep.subr.mxu0 0.0
        %2279 = vmatpush1.msra.mxu0 0.0
        %2280 = vmatprep.subr.mxu0 0.0
        %2281 = vmatpush1.msra.mxu0 0.0
        %2282 = vmatprep.subr.mxu0 0.0
        %2283 = vmatpush1.msra.mxu0 0.0
        %2284 = vmatprep.subr.mxu0 0.0
        %2285 = vmatpush1.msra.mxu0 0.0
        %2286 = vmatprep.subr.mxu0 0.0
        %2287 = vmatpush1.msra.mxu0 0.0
        %2288 = vmatprep.subr.mxu0 0.0
        %2289 = vmatpush1.msra.mxu0 0.0
        %2290 = vmatprep.subr.mxu0 0.0
        %2291 = vmatpush1.msra.mxu0 0.0
        %2292 = vmatprep.subr.mxu0 0.0
        %2293 = vmatpush1.msra.mxu0 0.0
        %2294 = vmatprep.subr.mxu0 0.0
        %2295 = vmatpush1.msra.mxu0 0.0
        %2296 = vmatprep.subr.mxu0 0.0
        %2297 = vmatpush1.msra.mxu0 0.0
        %2298 = vmatprep.subr.mxu0 0.0
        %2299 = vmatpush1.msra.mxu0 0.0
        %2300 = vmatprep.subr.mxu0 0.0
        %2301 = vmatpush1.msra.mxu0 0.0
        %2302 = vmatprep.subr.mxu0 0.0
        %2303 = vmatpush1.msra.mxu0 0.0
        %2304 = vmatprep.subr.mxu0 0.0
        %2305 = vmatpush1.msra.mxu0 0.0
        %2306 = vmatprep.subr.mxu0 0.0
        %2307 = vmatpush1.msra.mxu0 0.0
        %2308 = vmatprep.subr.mxu0 0.0
        %2309 = vmatpush1.msra.mxu0 0.0
        %2310 = vmatprep.subr.mxu0 0.0
        %2311 = vmatpush1.msra.mxu0 0.0
        %2312 = vmatprep.subr.mxu0 0.0
        %2313 = vmatpush1.msra.mxu0 0.0
        %2314 = vmatprep.subr.mxu0 0.0
        %2315 = vmatpush1.msra.mxu0 0.0
        %2316 = vmatprep.subr.mxu0 0.0
        %2317 = vmatpush1.msra.mxu0 0.0
        %2318 = vmatprep.mubr.f32.mxu0 0.0
        %2319 = vmatmul.mubr.f32.gmra.mrb[0].mxu0 %v715
        %v2320 = vpop.f32.mrb[0].mxu0
        %v2321 = vadd.f32 %v711, %v2320
        %v2322 = vpop.f32.mrb[0].mxu0
        %2323 = vmatprep.mubr.f32.mxu0 0.0
        %2324 = vmatmul.mubr.f32.gmra.mrb[0].mxu0 %v718
        %v2325 = vpop.f32.mrb[0].mxu0
        %v2326 = vadd.f32 %v711, %v2325
        %v2327 = vpop.f32.mrb[0].mxu0
        %2328 = vmatprep.mubr.f32.mxu0 0.0
        %2329 = vmatmul.mubr.f32.gmra.mrb[0].mxu0 %v721
        %v2330 = vpop.f32.mrb[0].mxu0
        %v2331 = vadd.f32 %v711, %v2330
        %v2332 = vpop.f32.mrb[0].mxu0
        %2333 = vmatprep.mubr.f32.mxu0 0.0
        %2334 = vmatmul.mubr.f32.gmra.mrb[0].mxu0 %v724
        %v2335 = vpop.f32.mrb[0].mxu0
        %v2336 = vadd.f32 %v711, %v2335
        %v2337 = vpop.f32.mrb[0].mxu0
        %2338 = vmatprep.mubr.f32.mxu0 0.0
        %2339 = vmatmul.mubr.f32.gmra.mrb[0].mxu0 %v727
        %v2340 = vpop.f32.mrb[0].mxu0
        %v2341 = vadd.f32 %v711, %v2340
        %v2342 = vpop.f32.mrb[0].mxu0
        %2343 = vmatprep.mubr.f32.mxu0 0.0
        %2344 = vmatmul.mubr.f32.gmra.mrb[0].mxu0 %v730
        %v2345 = vpop.f32.mrb[0].mxu0
        %v2346 = vadd.f32 %v711, %v2345
        %v2347 = vpop.f32.mrb[0].mxu0
        %2348 = vmatprep.mubr.f32.mxu0 0.0
        %2349 = vmatmul.mubr.f32.gmra.mrb[0].mxu0 %v733
        %v2350 = vpop.f32.mrb[0].mxu0
        %v2351 = vadd.f32 %v711, %v2350
        %v2352 = vpop.f32.mrb[0].mxu0
        %2353 = vmatprep.mubr.f32.mxu0 0.0
        %2354 = vmatmul.mubr.f32.gmra.mrb[0].mxu0 %v736
        %v2355 = vpop.f32.mrb[0].mxu0
        %v2356 = vadd.f32 %v711, %v2355
        %v2357 = vpop.f32.mrb[0].mxu0
        %2358 = vmatprep.mubr.f32.mxu0 0.0
        %2359 = vmatmul.mubr.f32.gmra.mrb[0].mxu0 %v739
        %v2360 = vpop.f32.mrb[0].mxu0
        %v2361 = vadd.f32 %v711, %v2360
        %v2362 = vpop.f32.mrb[0].mxu0
        %2363 = vmatprep.mubr.f32.mxu0 0.0
        %2364 = vmatmul.mubr.f32.gmra.mrb[0].mxu0 %v742
        %v2365 = vpop.f32.mrb[0].mxu0
        %v2366 = vadd.f32 %v711, %v2365
        %v2367 = vpop.f32.mrb[0].mxu0
        %2368 = vmatprep.mubr.f32.mxu0 0.0
        %2369 = vmatmul.mubr.f32.gmra.mrb[0].mxu0 %v745
        %v2370 = vpop.f32.mrb[0].mxu0
        %v2371 = vadd.f32 %v711, %v2370
        %v2372 = vpop.f32.mrb[0].mxu0
        %2373 = vmatprep.mubr.f32.mxu0 0.0
        %2374 = vmatmul.mubr.f32.gmra.mrb[0].mxu0 %v748
        %v2375 = vpop.f32.mrb[0].mxu0
        %v2376 = vadd.f32 %v711, %v2375
        %v2377 = vpop.f32.mrb[0].mxu0
        %2378 = vmatprep.mubr.f32.mxu0 0.0
        %2379 = vmatmul.mubr.f32.gmra.mrb[0].mxu0 %v751
        %v2380 = vpop.f32.mrb[0].mxu0
        %v2381 = vadd.f32 %v711, %v2380
        %v2382 = vpop.f32.mrb[0].mxu0
        %2383 = vmatprep.mubr.f32.mxu0 0.0
        %2384 = vmatmul.mubr.f32.gmra.mrb[0].mxu0 %v754
        %v2385 = vpop.f32.mrb[0].mxu0
        %v2386 = vadd.f32 %v711, %v2385
        %v2387 = vpop.f32.mrb[0].mxu0
        %2388 = vmatprep.mubr.f32.mxu0 0.0
        %2389 = vmatmul.mubr.f32.gmra.mrb[0].mxu0 %v757
        %v2390 = vpop.f32.mrb[0].mxu0
        %v2391 = vadd.f32 %v711, %v2390
        %v2392 = vpop.f32.mrb[0].mxu0
        %2393 = vmatprep.mubr.f32.mxu0 0.0
        %2394 = vmatmul.mubr.f32.gmra.mrb[0].mxu0 %v760
        %v2395 = vpop.f32.mrb[0].mxu0
        %v2396 = vadd.f32 %v711, %v2395
        %v2397 = vpop.f32.mrb[0].mxu0
        %2398 = vmatprep.mubr.f32.mxu0 0.0
        %2399 = vmatmul.mubr.f32.gmra.mrb[0].mxu0 %v763
        %v2400 = vpop.f32.mrb[0].mxu0
        %v2401 = vadd.f32 %v711, %v2400
        %v2402 = vpop.f32.mrb[0].mxu0
        %2403 = vmatprep.mubr.f32.mxu0 0.0
        %2404 = vmatmul.mubr.f32.gmra.mrb[0].mxu0 %v766
        %v2405 = vpop.f32.mrb[0].mxu0
        %v2406 = vadd.f32 %v711, %v2405
        %v2407 = vpop.f32.mrb[0].mxu0
        %2408 = vmatprep.mubr.f32.mxu0 0.0
        %2409 = vmatmul.mubr.f32.gmra.mrb[0].mxu0 %v769
        %v2410 = vpop.f32.mrb[0].mxu0
        %v2411 = vadd.f32 %v711, %v2410
        %v2412 = vpop.f32.mrb[0].mxu0
        %2413 = vmatprep.mubr.f32.mxu0 0.0
        %2414 = vmatmul.mubr.f32.gmra.mrb[0].mxu0 %v772
        %v2415 = vpop.f32.mrb[0].mxu0
        %v2416 = vadd.f32 %v711, %v2415
        %v2417 = vpop.f32.mrb[0].mxu0
        %2418 = vmatprep.mubr.f32.mxu0 0.0
        %2419 = vmatmul.mubr.f32.gmra.mrb[0].mxu0 %v775
        %v2420 = vpop.f32.mrb[0].mxu0
        %v2421 = vadd.f32 %v711, %v2420
        %v2422 = vpop.f32.mrb[0].mxu0
        %2423 = vmatprep.mubr.f32.mxu0 0.0
        %2424 = vmatmul.mubr.f32.gmra.mrb[0].mxu0 %v778
        %v2425 = vpop.f32.mrb[0].mxu0
        %v2426 = vadd.f32 %v711, %v2425
        %v2427 = vpop.f32.mrb[0].mxu0
        %2428 = vmatprep.mubr.f32.mxu0 0.0
        %2429 = vmatmul.mubr.f32.gmra.mrb[0].mxu0 %v781
        %v2430 = vpop.f32.mrb[0].mxu0
        %v2431 = vadd.f32 %v711, %v2430
        %v2432 = vpop.f32.mrb[0].mxu0
        %2433 = vmatprep.mubr.f32.mxu0 0.0
        %2434 = vmatmul.mubr.f32.gmra.mrb[0].mxu0 %v784
        %v2435 = vpop.f32.mrb[0].mxu0
        %v2436 = vadd.f32 %v711, %v2435
        %v2437 = vpop.f32.mrb[0].mxu0
        %2438 = vmatprep.mubr.f32.mxu0 0.0
        %2439 = vmatmul.mubr.f32.gmra.mrb[0].mxu0 %v787
        %v2440 = vpop.f32.mrb[0].mxu0
        %v2441 = vadd.f32 %v711, %v2440
        %v2442 = vpop.f32.mrb[0].mxu0
        %2443 = vmatprep.mubr.f32.mxu0 0.0
        %2444 = vmatmul.mubr.f32.gmra.mrb[0].mxu0 %v790
        %v2445 = vpop.f32.mrb[0].mxu0
        %v2446 = vadd.f32 %v711, %v2445
        %v2447 = vpop.f32.mrb[0].mxu0
        %2448 = vmatprep.mubr.f32.mxu0 0.0
        %2449 = vmatmul.mubr.f32.gmra.mrb[0].mxu0 %v793
        %v2450 = vpop.f32.mrb[0].mxu0
        %v2451 = vadd.f32 %v711, %v2450
        %v2452 = vpop.f32.mrb[0].mxu0
        %2453 = vmatprep.mubr.f32.mxu0 0.0
        %2454 = vmatmul.mubr.f32.gmra.mrb[0].mxu0 %v796
        %v2455 = vpop.f32.mrb[0].mxu0
        %v2456 = vadd.f32 %v711, %v2455
        %v2457 = vpop.f32.mrb[0].mxu0
        %2458 = vmatprep.mubr.f32.mxu0 0.0
        %2459 = vmatmul.mubr.f32.gmra.mrb[0].mxu0 %v799
        %v2460 = vpop.f32.mrb[0].mxu0
        %v2461 = vadd.f32 %v711, %v2460
        %v2462 = vpop.f32.mrb[0].mxu0
        %2463 = vmatprep.mubr.f32.mxu0 0.0
        %2464 = vmatmul.mubr.f32.gmra.mrb[0].mxu0 %v802
        %v2465 = vpop.f32.mrb[0].mxu0
        %v2466 = vadd.f32 %v711, %v2465
        %v2467 = vpop.f32.mrb[0].mxu0
        %2468 = vmatprep.mubr.f32.mxu0 0.0
        %2469 = vmatmul.mubr.f32.gmra.mrb[0].mxu0 %v805
        %v2470 = vpop.f32.mrb[0].mxu0
        %v2471 = vadd.f32 %v711, %v2470
        %v2472 = vpop.f32.mrb[0].mxu0
        %2473 = vmatprep.mubr.f32.mxu0 0.0
        %2474 = vmatmul.mubr.f32.gmra.mrb[0].mxu0 %v808
        %v2475 = vpop.f32.mrb[0].mxu0
        %v2476 = vadd.f32 %v711, %v2475
        %v2477 = vpop.f32.mrb[0].mxu0
        %2478 = vmatprep.mubr.f32.mxu0 0.0
        %2479 = vmatmul.mubr.f32.gmra.mrb[0].mxu0 %v811
        %v2480 = vpop.f32.mrb[0].mxu0
        %v2481 = vadd.f32 %v711, %v2480
        %v2482 = vpop.f32.mrb[0].mxu0
        %2483 = vmatprep.mubr.f32.mxu0 0.0
        %2484 = vmatmul.mubr.f32.gmra.mrb[0].mxu0 %v814
        %v2485 = vpop.f32.mrb[0].mxu0
        %v2486 = vadd.f32 %v711, %v2485
        %v2487 = vpop.f32.mrb[0].mxu0
        %2488 = vmatprep.mubr.f32.mxu0 0.0
        %2489 = vmatmul.mubr.f32.gmra.mrb[0].mxu0 %v817
        %v2490 = vpop.f32.mrb[0].mxu0
        %v2491 = vadd.f32 %v711, %v2490
        %v2492 = vpop.f32.mrb[0].mxu0
        %2493 = vmatprep.mubr.f32.mxu0 0.0
        %2494 = vmatmul.mubr.f32.gmra.mrb[0].mxu0 %v820
        %v2495 = vpop.f32.mrb[0].mxu0
        %v2496 = vadd.f32 %v711, %v2495
        %v2497 = vpop.f32.mrb[0].mxu0
        %2498 = vmatprep.mubr.f32.mxu0 0.0
        %2499 = vmatmul.mubr.f32.gmra.mrb[0].mxu0 %v823
        %v2500 = vpop.f32.mrb[0].mxu0
        %v2501 = vadd.f32 %v711, %v2500
        %v2502 = vpop.f32.mrb[0].mxu0
        %2503 = vmatprep.mubr.f32.mxu0 0.0
        %2504 = vmatmul.mubr.f32.gmra.mrb[0].mxu0 %v826
        %v2505 = vpop.f32.mrb[0].mxu0
        %v2506 = vadd.f32 %v711, %v2505
        %v2507 = vpop.f32.mrb[0].mxu0
        %2508 = vmatprep.mubr.f32.mxu0 0.0
        %2509 = vmatmul.mubr.f32.gmra.mrb[0].mxu0 %v829
        %v2510 = vpop.f32.mrb[0].mxu0
        %v2511 = vadd.f32 %v711, %v2510
        %v2512 = vpop.f32.mrb[0].mxu0
        %2513 = vmatprep.mubr.f32.mxu0 0.0
        %2514 = vmatmul.mubr.f32.gmra.mrb[0].mxu0 %v832
        %v2515 = vpop.f32.mrb[0].mxu0
        %v2516 = vadd.f32 %v711, %v2515
        %v2517 = vpop.f32.mrb[0].mxu0
        %2518 = vmatprep.mubr.f32.mxu0 0.0
        %2519 = vmatmul.mubr.f32.gmra.mrb[0].mxu0 %v835
        %v2520 = vpop.f32.mrb[0].mxu0
        %v2521 = vadd.f32 %v711, %v2520
        %v2522 = vpop.f32.mrb[0].mxu0
        %2523 = vmatprep.mubr.f32.mxu0 0.0
        %2524 = vmatmul.mubr.f32.gmra.mrb[0].mxu0 %v838
        %v2525 = vpop.f32.mrb[0].mxu0
        %v2526 = vadd.f32 %v711, %v2525
        %v2527 = vpop.f32.mrb[0].mxu0
        %2528 = vmatprep.mubr.f32.mxu0 0.0
        %2529 = vmatmul.mubr.f32.gmra.mrb[0].mxu0 %v841
        %v2530 = vpop.f32.mrb[0].mxu0
        %v2531 = vadd.f32 %v711, %v2530
        %v2532 = vpop.f32.mrb[0].mxu0
        %2533 = vmatprep.mubr.f32.mxu0 0.0
        %2534 = vmatmul.mubr.f32.gmra.mrb[0].mxu0 %v844
        %v2535 = vpop.f32.mrb[0].mxu0
        %v2536 = vadd.f32 %v711, %v2535
        %v2537 = vpop.f32.mrb[0].mxu0
        %2538 = vmatprep.mubr.f32.mxu0 0.0
        %2539 = vmatmul.mubr.f32.gmra.mrb[0].mxu0 %v847
        %v2540 = vpop.f32.mrb[0].mxu0
        %v2541 = vadd.f32 %v711, %v2540
        %v2542 = vpop.f32.mrb[0].mxu0
        %2543 = vmatprep.mubr.f32.mxu0 0.0
        %2544 = vmatmul.mubr.f32.gmra.mrb[0].mxu0 %v850
        %v2545 = vpop.f32.mrb[0].mxu0
        %v2546 = vadd.f32 %v711, %v2545
        %v2547 = vpop.f32.mrb[0].mxu0
        %2548 = vmatprep.mubr.f32.mxu0 0.0
        %2549 = vmatmul.mubr.f32.gmra.mrb[0].mxu0 %v853
        %v2550 = vpop.f32.mrb[0].mxu0
        %v2551 = vadd.f32 %v711, %v2550
        %v2552 = vpop.f32.mrb[0].mxu0
        %2553 = vmatprep.mubr.f32.mxu0 0.0
        %2554 = vmatmul.mubr.f32.gmra.mrb[0].mxu0 %v856
        %v2555 = vpop.f32.mrb[0].mxu0
        %v2556 = vadd.f32 %v711, %v2555
        %v2557 = vpop.f32.mrb[0].mxu0
        %2558 = vmatprep.mubr.f32.mxu0 0.0
        %2559 = vmatmul.mubr.f32.gmra.mrb[0].mxu0 %v859
        %v2560 = vpop.f32.mrb[0].mxu0
        %v2561 = vadd.f32 %v711, %v2560
        %v2562 = vpop.f32.mrb[0].mxu0
        %2563 = vmatprep.mubr.f32.mxu0 0.0
        %2564 = vmatmul.mubr.f32.gmra.mrb[0].mxu0 %v862
        %v2565 = vpop.f32.mrb[0].mxu0
        %v2566 = vadd.f32 %v711, %v2565
        %v2567 = vpop.f32.mrb[0].mxu0
        %2568 = vmatprep.mubr.f32.mxu0 0.0
        %2569 = vmatmul.mubr.f32.gmra.mrb[0].mxu0 %v865
        %v2570 = vpop.f32.mrb[0].mxu0
        %v2571 = vadd.f32 %v711, %v2570
        %v2572 = vpop.f32.mrb[0].mxu0
        %2573 = vmatprep.mubr.f32.mxu0 0.0
        %2574 = vmatmul.mubr.f32.gmra.mrb[0].mxu0 %v868
        %v2575 = vpop.f32.mrb[0].mxu0
        %v2576 = vadd.f32 %v711, %v2575
        %v2577 = vpop.f32.mrb[0].mxu0
        %2578 = vmatprep.mubr.f32.mxu0 0.0
        %2579 = vmatmul.mubr.f32.gmra.mrb[0].mxu0 %v871
        %v2580 = vpop.f32.mrb[0].mxu0
        %v2581 = vadd.f32 %v711, %v2580
        %v2582 = vpop.f32.mrb[0].mxu0
        %2583 = vmatprep.mubr.f32.mxu0 0.0
        %2584 = vmatmul.mubr.f32.gmra.mrb[0].mxu0 %v874
        %v2585 = vpop.f32.mrb[0].mxu0
        %v2586 = vadd.f32 %v711, %v2585
        %v2587 = vpop.f32.mrb[0].mxu0
        %2588 = vmatprep.mubr.f32.mxu0 0.0
        %2589 = vmatmul.mubr.f32.gmra.mrb[0].mxu0 %v877
        %v2590 = vpop.f32.mrb[0].mxu0
        %v2591 = vadd.f32 %v711, %v2590
        %v2592 = vpop.f32.mrb[0].mxu0
        %2593 = vmatprep.mubr.f32.mxu0 0.0
        %2594 = vmatmul.mubr.f32.gmra.mrb[0].mxu0 %v880
        %v2595 = vpop.f32.mrb[0].mxu0
        %v2596 = vadd.f32 %v711, %v2595
        %v2597 = vpop.f32.mrb[0].mxu0
        %2598 = vmatprep.mubr.f32.mxu0 0.0
        %2599 = vmatmul.mubr.f32.gmra.mrb[0].mxu0 %v883
        %v2600 = vpop.f32.mrb[0].mxu0
        %v2601 = vadd.f32 %v711, %v2600
        %v2602 = vpop.f32.mrb[0].mxu0
        %2603 = vmatprep.mubr.f32.mxu0 0.0
        %2604 = vmatmul.mubr.f32.gmra.mrb[0].mxu0 %v886
        %v2605 = vpop.f32.mrb[0].mxu0
        %v2606 = vadd.f32 %v711, %v2605
        %v2607 = vpop.f32.mrb[0].mxu0
        %2608 = vmatprep.mubr.f32.mxu0 0.0
        %2609 = vmatmul.mubr.f32.gmra.mrb[0].mxu0 %v889
        %v2610 = vpop.f32.mrb[0].mxu0
        %v2611 = vadd.f32 %v711, %v2610
        %v2612 = vpop.f32.mrb[0].mxu0
        %2613 = vmatprep.mubr.f32.mxu0 0.0
        %2614 = vmatmul.mubr.f32.gmra.mrb[0].mxu0 %v892
        %v2615 = vpop.f32.mrb[0].mxu0
        %v2616 = vadd.f32 %v711, %v2615
        %v2617 = vpop.f32.mrb[0].mxu0
        %2618 = vmatprep.mubr.f32.mxu0 0.0
        %2619 = vmatmul.mubr.f32.gmra.mrb[0].mxu0 %v895
        %v2620 = vpop.f32.mrb[0].mxu0
        %v2621 = vadd.f32 %v711, %v2620
        %v2622 = vpop.f32.mrb[0].mxu0
        %2623 = vmatprep.mubr.f32.mxu0 0.0
        %2624 = vmatmul.mubr.f32.gmra.mrb[0].mxu0 %v898
        %v2625 = vpop.f32.mrb[0].mxu0
        %v2626 = vadd.f32 %v711, %v2625
        %v2627 = vpop.f32.mrb[0].mxu0
        %2628 = vmatprep.mubr.f32.mxu0 0.0
        %2629 = vmatmul.mubr.f32.gmra.mrb[0].mxu0 %v901
        %v2630 = vpop.f32.mrb[0].mxu0
        %v2631 = vadd.f32 %v711, %v2630
        %v2632 = vpop.f32.mrb[0].mxu0
        %2633 = vmatprep.mubr.f32.mxu0 0.0
        %2634 = vmatmul.mubr.f32.gmra.mrb[0].mxu0 %v904
        %v2635 = vpop.f32.mrb[0].mxu0
        %v2636 = vadd.f32 %v711, %v2635
        %v2637 = vpop.f32.mrb[0].mxu0
        %2638 = vmatprep.mubr.f32.mxu0 0.0
        %2639 = vmatmul.mubr.f32.gmra.mrb[0].mxu0 %v907
        %v2640 = vpop.f32.mrb[0].mxu0
        %v2641 = vadd.f32 %v711, %v2640
        %v2642 = vpop.f32.mrb[0].mxu0
        %2643 = vmatprep.mubr.f32.mxu0 0.0
        %2644 = vmatmul.mubr.f32.gmra.mrb[0].mxu0 %v910
        %v2645 = vpop.f32.mrb[0].mxu0
        %v2646 = vadd.f32 %v711, %v2645
        %v2647 = vpop.f32.mrb[0].mxu0
        %2648 = vmatprep.mubr.f32.mxu0 0.0
        %2649 = vmatmul.mubr.f32.gmra.mrb[0].mxu0 %v913
        %v2650 = vpop.f32.mrb[0].mxu0
        %v2651 = vadd.f32 %v711, %v2650
        %v2652 = vpop.f32.mrb[0].mxu0
        %2653 = vmatprep.mubr.f32.mxu0 0.0
        %2654 = vmatmul.mubr.f32.gmra.mrb[0].mxu0 %v916
        %v2655 = vpop.f32.mrb[0].mxu0
        %v2656 = vadd.f32 %v711, %v2655
        %v2657 = vpop.f32.mrb[0].mxu0
        %2658 = vmatprep.mubr.f32.mxu0 0.0
        %2659 = vmatmul.mubr.f32.gmra.mrb[0].mxu0 %v919
        %v2660 = vpop.f32.mrb[0].mxu0
        %v2661 = vadd.f32 %v711, %v2660
        %v2662 = vpop.f32.mrb[0].mxu0
        %2663 = vmatprep.mubr.f32.mxu0 0.0
        %2664 = vmatmul.mubr.f32.gmra.mrb[0].mxu0 %v922
        %v2665 = vpop.f32.mrb[0].mxu0
        %v2666 = vadd.f32 %v711, %v2665
        %v2667 = vpop.f32.mrb[0].mxu0
        %2668 = vmatprep.mubr.f32.mxu0 0.0
        %2669 = vmatmul.mubr.f32.gmra.mrb[0].mxu0 %v925
        %v2670 = vpop.f32.mrb[0].mxu0
        %v2671 = vadd.f32 %v711, %v2670
        %v2672 = vpop.f32.mrb[0].mxu0
        %2673 = vmatprep.mubr.f32.mxu0 0.0
        %2674 = vmatmul.mubr.f32.gmra.mrb[0].mxu0 %v928
        %v2675 = vpop.f32.mrb[0].mxu0
        %v2676 = vadd.f32 %v711, %v2675
        %v2677 = vpop.f32.mrb[0].mxu0
        %2678 = vmatprep.mubr.f32.mxu0 0.0
        %2679 = vmatmul.mubr.f32.gmra.mrb[0].mxu0 %v931
        %v2680 = vpop.f32.mrb[0].mxu0
        %v2681 = vadd.f32 %v711, %v2680
        %v2682 = vpop.f32.mrb[0].mxu0
        %2683 = vmatprep.mubr.f32.mxu0 0.0
        %2684 = vmatmul.mubr.f32.gmra.mrb[0].mxu0 %v934
        %v2685 = vpop.f32.mrb[0].mxu0
        %v2686 = vadd.f32 %v711, %v2685
        %v2687 = vpop.f32.mrb[0].mxu0
        %2688 = vmatprep.mubr.f32.mxu0 0.0
        %2689 = vmatmul.mubr.f32.gmra.mrb[0].mxu0 %v937
        %v2690 = vpop.f32.mrb[0].mxu0
        %v2691 = vadd.f32 %v711, %v2690
        %v2692 = vpop.f32.mrb[0].mxu0
        %2693 = vmatprep.mubr.f32.mxu0 0.0
        %2694 = vmatmul.mubr.f32.gmra.mrb[0].mxu0 %v940
        %v2695 = vpop.f32.mrb[0].mxu0
        %v2696 = vadd.f32 %v711, %v2695
        %v2697 = vpop.f32.mrb[0].mxu0
        %2698 = vmatprep.mubr.f32.mxu0 0.0
        %2699 = vmatmul.mubr.f32.gmra.mrb[0].mxu0 %v943
        %v2700 = vpop.f32.mrb[0].mxu0
        %v2701 = vadd.f32 %v711, %v2700
        %v2702 = vpop.f32.mrb[0].mxu0
        %2703 = vmatprep.mubr.f32.mxu0 0.0
        %2704 = vmatmul.mubr.f32.gmra.mrb[0].mxu0 %v946
        %v2705 = vpop.f32.mrb[0].mxu0
        %v2706 = vadd.f32 %v711, %v2705
        %v2707 = vpop.f32.mrb[0].mxu0
        %2708 = vmatprep.mubr.f32.mxu0 0.0
        %2709 = vmatmul.mubr.f32.gmra.mrb[0].mxu0 %v949
        %v2710 = vpop.f32.mrb[0].mxu0
        %v2711 = vadd.f32 %v711, %v2710
        %v2712 = vpop.f32.mrb[0].mxu0
        %2713 = vmatprep.mubr.f32.mxu0 0.0
        %2714 = vmatmul.mubr.f32.gmra.mrb[0].mxu0 %v952
        %v2715 = vpop.f32.mrb[0].mxu0
        %v2716 = vadd.f32 %v711, %v2715
        %v2717 = vpop.f32.mrb[0].mxu0
        %2718 = vmatprep.mubr.f32.mxu0 0.0
        %2719 = vmatmul.mubr.f32.gmra.mrb[0].mxu0 %v955
        %v2720 = vpop.f32.mrb[0].mxu0
        %v2721 = vadd.f32 %v711, %v2720
        %v2722 = vpop.f32.mrb[0].mxu0
        %2723 = vmatprep.mubr.f32.mxu0 0.0
        %2724 = vmatmul.mubr.f32.gmra.mrb[0].mxu0 %v958
        %v2725 = vpop.f32.mrb[0].mxu0
        %v2726 = vadd.f32 %v711, %v2725
        %v2727 = vpop.f32.mrb[0].mxu0
        %2728 = vmatprep.mubr.f32.mxu0 0.0
        %2729 = vmatmul.mubr.f32.gmra.mrb[0].mxu0 %v961
        %v2730 = vpop.f32.mrb[0].mxu0
        %v2731 = vadd.f32 %v711, %v2730
        %v2732 = vpop.f32.mrb[0].mxu0
        %2733 = vmatprep.mubr.f32.mxu0 0.0
        %2734 = vmatmul.mubr.f32.gmra.mrb[0].mxu0 %v964
        %v2735 = vpop.f32.mrb[0].mxu0
        %v2736 = vadd.f32 %v711, %v2735
        %v2737 = vpop.f32.mrb[0].mxu0
        %2738 = vmatprep.mubr.f32.mxu0 0.0
        %2739 = vmatmul.mubr.f32.gmra.mrb[0].mxu0 %v967
        %v2740 = vpop.f32.mrb[0].mxu0
        %v2741 = vadd.f32 %v711, %v2740
        %v2742 = vpop.f32.mrb[0].mxu0
        %2743 = vmatprep.mubr.f32.mxu0 0.0
        %2744 = vmatmul.mubr.f32.gmra.mrb[0].mxu0 %v970
        %v2745 = vpop.f32.mrb[0].mxu0
        %v2746 = vadd.f32 %v711, %v2745
        %v2747 = vpop.f32.mrb[0].mxu0
        %2748 = vmatprep.mubr.f32.mxu0 0.0
        %2749 = vmatmul.mubr.f32.gmra.mrb[0].mxu0 %v973
        %v2750 = vpop.f32.mrb[0].mxu0
        %v2751 = vadd.f32 %v711, %v2750
        %v2752 = vpop.f32.mrb[0].mxu0
        %2753 = vmatprep.mubr.f32.mxu0 0.0
        %2754 = vmatmul.mubr.f32.gmra.mrb[0].mxu0 %v976
        %v2755 = vpop.f32.mrb[0].mxu0
        %v2756 = vadd.f32 %v711, %v2755
        %v2757 = vpop.f32.mrb[0].mxu0
        %2758 = vmatprep.mubr.f32.mxu0 0.0
        %2759 = vmatmul.mubr.f32.gmra.mrb[0].mxu0 %v979
        %v2760 = vpop.f32.mrb[0].mxu0
        %v2761 = vadd.f32 %v711, %v2760
        %v2762 = vpop.f32.mrb[0].mxu0
        %2763 = vmatprep.mubr.f32.mxu0 0.0
        %2764 = vmatmul.mubr.f32.gmra.mrb[0].mxu0 %v982
        %v2765 = vpop.f32.mrb[0].mxu0
        %v2766 = vadd.f32 %v711, %v2765
        %v2767 = vpop.f32.mrb[0].mxu0
        %2768 = vmatprep.mubr.f32.mxu0 0.0
        %2769 = vmatmul.mubr.f32.gmra.mrb[0].mxu0 %v985
        %v2770 = vpop.f32.mrb[0].mxu0
        %v2771 = vadd.f32 %v711, %v2770
        %v2772 = vpop.f32.mrb[0].mxu0
        %2773 = vmatprep.mubr.f32.mxu0 0.0
        %2774 = vmatmul.mubr.f32.gmra.mrb[0].mxu0 %v988
        %v2775 = vpop.f32.mrb[0].mxu0
        %v2776 = vadd.f32 %v711, %v2775
        %v2777 = vpop.f32.mrb[0].mxu0
        %2778 = vmatprep.mubr.f32.mxu0 0.0
        %2779 = vmatmul.mubr.f32.gmra.mrb[0].mxu0 %v991
        %v2780 = vpop.f32.mrb[0].mxu0
        %v2781 = vadd.f32 %v711, %v2780
        %v2782 = vpop.f32.mrb[0].mxu0
        %2783 = vmatprep.mubr.f32.mxu0 0.0
        %2784 = vmatmul.mubr.f32.gmra.mrb[0].mxu0 %v994
        %v2785 = vpop.f32.mrb[0].mxu0
        %v2786 = vadd.f32 %v711, %v2785
        %v2787 = vpop.f32.mrb[0].mxu0
        %2788 = vmatprep.mubr.f32.mxu0 0.0
        %2789 = vmatmul.mubr.f32.gmra.mrb[0].mxu0 %v997
        %v2790 = vpop.f32.mrb[0].mxu0
        %v2791 = vadd.f32 %v711, %v2790
        %v2792 = vpop.f32.mrb[0].mxu0
        %2793 = vmatprep.mubr.f32.mxu0 0.0
        %2794 = vmatmul.mubr.f32.gmra.mrb[0].mxu0 %v1000
        %v2795 = vpop.f32.mrb[0].mxu0
        %v2796 = vadd.f32 %v711, %v2795
        %v2797 = vpop.f32.mrb[0].mxu0
        %2798 = vmatprep.mubr.f32.mxu0 0.0
        %2799 = vmatmul.mubr.f32.gmra.mrb[0].mxu0 %v1003
        %v2800 = vpop.f32.mrb[0].mxu0
        %v2801 = vadd.f32 %v711, %v2800
        %v2802 = vpop.f32.mrb[0].mxu0
        %2803 = vmatprep.mubr.f32.mxu0 0.0
        %2804 = vmatmul.mubr.f32.gmra.mrb[0].mxu0 %v1006
        %v2805 = vpop.f32.mrb[0].mxu0
        %v2806 = vadd.f32 %v711, %v2805
        %v2807 = vpop.f32.mrb[0].mxu0
        %2808 = vmatprep.mubr.f32.mxu0 0.0
        %2809 = vmatmul.mubr.f32.gmra.mrb[0].mxu0 %v1009
        %v2810 = vpop.f32.mrb[0].mxu0
        %v2811 = vadd.f32 %v711, %v2810
        %v2812 = vpop.f32.mrb[0].mxu0
        %2813 = vmatprep.mubr.f32.mxu0 0.0
        %2814 = vmatmul.mubr.f32.gmra.mrb[0].mxu0 %v1012
        %v2815 = vpop.f32.mrb[0].mxu0
        %v2816 = vadd.f32 %v711, %v2815
        %v2817 = vpop.f32.mrb[0].mxu0
        %2818 = vmatprep.mubr.f32.mxu0 0.0
        %2819 = vmatmul.mubr.f32.gmra.mrb[0].mxu0 %v1015
        %v2820 = vpop.f32.mrb[0].mxu0
        %v2821 = vadd.f32 %v711, %v2820
        %v2822 = vpop.f32.mrb[0].mxu0
        %2823 = vmatprep.mubr.f32.mxu0 0.0
        %2824 = vmatmul.mubr.f32.gmra.mrb[0].mxu0 %v1018
        %v2825 = vpop.f32.mrb[0].mxu0
        %v2826 = vadd.f32 %v711, %v2825
        %v2827 = vpop.f32.mrb[0].mxu0
        %2828 = vmatprep.mubr.f32.mxu0 0.0
        %2829 = vmatmul.mubr.f32.gmra.mrb[0].mxu0 %v1021
        %v2830 = vpop.f32.mrb[0].mxu0
        %v2831 = vadd.f32 %v711, %v2830
        %v2832 = vpop.f32.mrb[0].mxu0
        %2833 = vmatprep.mubr.f32.mxu0 0.0
        %2834 = vmatmul.mubr.f32.gmra.mrb[0].mxu0 %v1024
        %v2835 = vpop.f32.mrb[0].mxu0
        %v2836 = vadd.f32 %v711, %v2835
        %v2837 = vpop.f32.mrb[0].mxu0
        %2838 = vmatprep.mubr.f32.mxu0 0.0
        %2839 = vmatmul.mubr.f32.gmra.mrb[0].mxu0 %v1027
        %v2840 = vpop.f32.mrb[0].mxu0
        %v2841 = vadd.f32 %v711, %v2840
        %v2842 = vpop.f32.mrb[0].mxu0
        %2843 = vmatprep.mubr.f32.mxu0 0.0
        %2844 = vmatmul.mubr.f32.gmra.mrb[0].mxu0 %v1030
        %v2845 = vpop.f32.mrb[0].mxu0
        %v2846 = vadd.f32 %v711, %v2845
        %v2847 = vpop.f32.mrb[0].mxu0
        %2848 = vmatprep.mubr.f32.mxu0 0.0
        %2849 = vmatmul.mubr.f32.gmra.mrb[0].mxu0 %v1033
        %v2850 = vpop.f32.mrb[0].mxu0
        %v2851 = vadd.f32 %v711, %v2850
        %v2852 = vpop.f32.mrb[0].mxu0
        %2853 = vmatprep.mubr.f32.mxu0 0.0
        %2854 = vmatmul.mubr.f32.gmra.mrb[0].mxu0 %v1036
        %v2855 = vpop.f32.mrb[0].mxu0
        %v2856 = vadd.f32 %v711, %v2855
        %v2857 = vpop.f32.mrb[0].mxu0
        %2858 = vmatprep.mubr.f32.mxu0 0.0
        %2859 = vmatmul.mubr.f32.gmra.mrb[0].mxu0 %v1039
        %v2860 = vpop.f32.mrb[0].mxu0
        %v2861 = vadd.f32 %v711, %v2860
        %v2862 = vpop.f32.mrb[0].mxu0
        %2863 = vmatprep.mubr.f32.mxu0 0.0
        %2864 = vmatmul.mubr.f32.gmra.mrb[0].mxu0 %v1042
        %v2865 = vpop.f32.mrb[0].mxu0
        %v2866 = vadd.f32 %v711, %v2865
        %v2867 = vpop.f32.mrb[0].mxu0
        %2868 = vmatprep.mubr.f32.mxu0 0.0
        %2869 = vmatmul.mubr.f32.gmra.mrb[0].mxu0 %v1045
        %v2870 = vpop.f32.mrb[0].mxu0
        %v2871 = vadd.f32 %v711, %v2870
        %v2872 = vpop.f32.mrb[0].mxu0
        %2873 = vmatprep.mubr.f32.mxu0 0.0
        %2874 = vmatmul.mubr.f32.gmra.mrb[0].mxu0 %v1048
        %v2875 = vpop.f32.mrb[0].mxu0
        %v2876 = vadd.f32 %v711, %v2875
        %v2877 = vpop.f32.mrb[0].mxu0
        %2878 = vmatprep.mubr.f32.mxu0 0.0
        %2879 = vmatmul.mubr.f32.gmra.mrb[0].mxu0 %v1051
        %v2880 = vpop.f32.mrb[0].mxu0
        %v2881 = vadd.f32 %v711, %v2880
        %v2882 = vpop.f32.mrb[0].mxu0
        %2883 = vmatprep.mubr.f32.mxu0 0.0
        %2884 = vmatmul.mubr.f32.gmra.mrb[0].mxu0 %v1054
        %v2885 = vpop.f32.mrb[0].mxu0
        %v2886 = vadd.f32 %v711, %v2885
        %v2887 = vpop.f32.mrb[0].mxu0
        %2888 = vmatprep.mubr.f32.mxu0 0.0
        %2889 = vmatmul.mubr.f32.gmra.mrb[0].mxu0 %v1057
        %v2890 = vpop.f32.mrb[0].mxu0
        %v2891 = vadd.f32 %v711, %v2890
        %v2892 = vpop.f32.mrb[0].mxu0
        %2893 = vmatprep.mubr.f32.mxu0 0.0
        %2894 = vmatmul.mubr.f32.gmra.mrb[0].mxu0 %v1060
        %v2895 = vpop.f32.mrb[0].mxu0
        %v2896 = vadd.f32 %v711, %v2895
        %v2897 = vpop.f32.mrb[0].mxu0
        %2898 = vmatprep.mubr.f32.mxu0 0.0
        %2899 = vmatmul.mubr.f32.gmra.mrb[0].mxu0 %v1063
        %v2900 = vpop.f32.mrb[0].mxu0
        %v2901 = vadd.f32 %v711, %v2900
        %v2902 = vpop.f32.mrb[0].mxu0
        %2903 = vmatprep.mubr.f32.mxu0 0.0
        %2904 = vmatmul.mubr.f32.gmra.mrb[0].mxu0 %v1066
        %v2905 = vpop.f32.mrb[0].mxu0
        %v2906 = vadd.f32 %v711, %v2905
        %v2907 = vpop.f32.mrb[0].mxu0
        %2908 = vmatprep.mubr.f32.mxu0 0.0
        %2909 = vmatmul.mubr.f32.gmra.mrb[0].mxu0 %v1069
        %v2910 = vpop.f32.mrb[0].mxu0
        %v2911 = vadd.f32 %v711, %v2910
        %v2912 = vpop.f32.mrb[0].mxu0
        %2913 = vmatprep.mubr.f32.mxu0 0.0
        %2914 = vmatmul.mubr.f32.gmra.mrb[0].mxu0 %v1072
        %v2915 = vpop.f32.mrb[0].mxu0
        %v2916 = vadd.f32 %v711, %v2915
        %v2917 = vpop.f32.mrb[0].mxu0
        %2918 = vmatprep.mubr.f32.mxu0 0.0
        %2919 = vmatmul.mubr.f32.gmra.mrb[0].mxu0 %v1075
        %v2920 = vpop.f32.mrb[0].mxu0
        %v2921 = vadd.f32 %v711, %v2920
        %v2922 = vpop.f32.mrb[0].mxu0
        %2923 = vmatprep.mubr.f32.mxu0 0.0
        %2924 = vmatmul.mubr.f32.gmra.mrb[0].mxu0 %v1078
        %v2925 = vpop.f32.mrb[0].mxu0
        %v2926 = vadd.f32 %v711, %v2925
        %v2927 = vpop.f32.mrb[0].mxu0
        %2928 = vmatprep.mubr.f32.mxu0 0.0
        %2929 = vmatmul.mubr.f32.gmra.mrb[0].mxu0 %v1081
        %v2930 = vpop.f32.mrb[0].mxu0
        %v2931 = vadd.f32 %v711, %v2930
        %v2932 = vpop.f32.mrb[0].mxu0
        %2933 = vmatprep.mubr.f32.mxu0 0.0
        %2934 = vmatmul.mubr.f32.gmra.mrb[0].mxu0 %v1084
        %v2935 = vpop.f32.mrb[0].mxu0
        %v2936 = vadd.f32 %v711, %v2935
        %v2937 = vpop.f32.mrb[0].mxu0
        %2938 = vmatprep.mubr.f32.mxu0 0.0
        %2939 = vmatmul.mubr.f32.gmra.mrb[0].mxu0 %v1087
        %v2940 = vpop.f32.mrb[0].mxu0
        %v2941 = vadd.f32 %v711, %v2940
        %v2942 = vpop.f32.mrb[0].mxu0
        %2943 = vmatprep.mubr.f32.mxu0 0.0
        %2944 = vmatmul.mubr.f32.gmra.mrb[0].mxu0 %v1090
        %v2945 = vpop.f32.mrb[0].mxu0
        %v2946 = vadd.f32 %v711, %v2945
        %v2947 = vpop.f32.mrb[0].mxu0
        %2948 = vmatprep.mubr.f32.mxu0 0.0
        %2949 = vmatmul.mubr.f32.gmra.mrb[0].mxu0 %v1093
        %v2950 = vpop.f32.mrb[0].mxu0
        %v2951 = vadd.f32 %v711, %v2950
        %v2952 = vpop.f32.mrb[0].mxu0
        %2953 = vmatprep.mubr.f32.mxu0 0.0
        %2954 = vmatmul.mubr.f32.gmra.mrb[0].mxu0 %v1096
        %v2955 = vpop.f32.mrb[0].mxu0
        %v2956 = vadd.f32 %v711, %v2955
        %v2957 = vpop.f32.mrb[0].mxu0
        %2958 = vmatprep.mubr.f32.mxu0 0.0
        %2959 = vmatmul.mubr.f32.gmra.mrb[0].mxu0 %v1099
        %v2960 = vpop.f32.mrb[0].mxu0
        %v2961 = vadd.f32 %v711, %v2960
        %v2962 = vpop.f32.mrb[0].mxu0
        %2963 = vmatprep.mubr.f32.mxu0 0.0
        %2964 = vmatmul.mubr.f32.gmra.mrb[0].mxu0 %v1102
        %v2965 = vpop.f32.mrb[0].mxu0
        %v2966 = vadd.f32 %v711, %v2965
        %v2967 = vpop.f32.mrb[0].mxu0
        %2968 = vmatprep.mubr.f32.mxu0 0.0
        %2969 = vmatmul.mubr.f32.gmra.mrb[0].mxu0 %v1105
        %v2970 = vpop.f32.mrb[0].mxu0
        %v2971 = vadd.f32 %v711, %v2970
        %v2972 = vpop.f32.mrb[0].mxu0
        %2973 = vmatprep.mubr.f32.mxu0 0.0
        %2974 = vmatmul.mubr.f32.gmra.mrb[0].mxu0 %v1108
        %v2975 = vpop.f32.mrb[0].mxu0
        %v2976 = vadd.f32 %v711, %v2975
        %v2977 = vpop.f32.mrb[0].mxu0
        %2978 = vmatprep.mubr.f32.mxu0 0.0
        %2979 = vmatmul.mubr.f32.gmra.mrb[0].mxu0 %v1111
        %v2980 = vpop.f32.mrb[0].mxu0
        %v2981 = vadd.f32 %v711, %v2980
        %v2982 = vpop.f32.mrb[0].mxu0
        %2983 = vmatprep.mubr.f32.mxu0 0.0
        %2984 = vmatmul.mubr.f32.gmra.mrb[0].mxu0 %v1114
        %v2985 = vpop.f32.mrb[0].mxu0
        %v2986 = vadd.f32 %v711, %v2985
        %v2987 = vpop.f32.mrb[0].mxu0
        %2988 = vmatprep.mubr.f32.mxu0 0.0
        %2989 = vmatmul.mubr.f32.gmra.mrb[0].mxu0 %v1117
        %v2990 = vpop.f32.mrb[0].mxu0
        %v2991 = vadd.f32 %v711, %v2990
        %v2992 = vpop.f32.mrb[0].mxu0
        %2993 = vmatprep.mubr.f32.mxu0 0.0
        %2994 = vmatmul.mubr.f32.gmra.mrb[0].mxu0 %v1120
        %v2995 = vpop.f32.mrb[0].mxu0
        %v2996 = vadd.f32 %v711, %v2995
        %v2997 = vpop.f32.mrb[0].mxu0
        %2998 = vmatprep.mubr.f32.mxu0 0.0
        %2999 = vmatmul.mubr.f32.gmra.mrb[0].mxu0 %v1123
        %v3000 = vpop.f32.mrb[0].mxu0
        %v3001 = vadd.f32 %v711, %v3000
        %v3002 = vpop.f32.mrb[0].mxu0
        %3003 = vmatprep.mubr.f32.mxu0 0.0
        %3004 = vmatmul.mubr.f32.gmra.mrb[0].mxu0 %v1126
        %v3005 = vpop.f32.mrb[0].mxu0
        %v3006 = vadd.f32 %v711, %v3005
        %v3007 = vpop.f32.mrb[0].mxu0
        %3008 = vmatprep.mubr.f32.mxu0 0.0
        %3009 = vmatmul.mubr.f32.gmra.mrb[0].mxu0 %v1129
        %v3010 = vpop.f32.mrb[0].mxu0
        %v3011 = vadd.f32 %v711, %v3010
        %v3012 = vpop.f32.mrb[0].mxu0
        %3013 = vmatprep.mubr.f32.mxu0 0.0
        %3014 = vmatmul.mubr.f32.gmra.mrb[0].mxu0 %v1132
        %v3015 = vpop.f32.mrb[0].mxu0
        %v3016 = vadd.f32 %v711, %v3015
        %v3017 = vpop.f32.mrb[0].mxu0
        %3018 = vmatprep.mubr.f32.mxu0 0.0
        %3019 = vmatmul.mubr.f32.gmra.mrb[0].mxu0 %v1135
        %v3020 = vpop.f32.mrb[0].mxu0
        %v3021 = vadd.f32 %v711, %v3020
        %v3022 = vpop.f32.mrb[0].mxu0
        %3023 = vmatprep.mubr.f32.mxu0 0.0
        %3024 = vmatmul.mubr.f32.gmra.mrb[0].mxu0 %v1138
        %v3025 = vpop.f32.mrb[0].mxu0
        %v3026 = vadd.f32 %v711, %v3025
        %v3027 = vpop.f32.mrb[0].mxu0
        %3028 = vmatprep.mubr.f32.mxu0 0.0
        %3029 = vmatmul.mubr.f32.gmra.mrb[0].mxu0 %v1141
        %v3030 = vpop.f32.mrb[0].mxu0
        %v3031 = vadd.f32 %v711, %v3030
        %v3032 = vpop.f32.mrb[0].mxu0
        %3033 = vmatprep.mubr.f32.mxu0 0.0
        %3034 = vmatmul.mubr.f32.gmra.mrb[0].mxu0 %v1144
        %v3035 = vpop.f32.mrb[0].mxu0
        %v3036 = vadd.f32 %v711, %v3035
        %v3037 = vpop.f32.mrb[0].mxu0
        %3038 = vmatprep.mubr.f32.mxu0 0.0
        %3039 = vmatmul.mubr.f32.gmra.mrb[0].mxu0 %v1147
        %v3040 = vpop.f32.mrb[0].mxu0
        %v3041 = vadd.f32 %v711, %v3040
        %v3042 = vpop.f32.mrb[0].mxu0
        %3043 = vmatprep.mubr.f32.mxu0 0.0
        %3044 = vmatmul.mubr.f32.gmra.mrb[0].mxu0 %v1150
        %v3045 = vpop.f32.mrb[0].mxu0
        %v3046 = vadd.f32 %v711, %v3045
        %v3047 = vpop.f32.mrb[0].mxu0
        %3048 = vmatprep.mubr.f32.mxu0 0.0
        %3049 = vmatmul.mubr.f32.gmra.mrb[0].mxu0 %v1153
        %v3050 = vpop.f32.mrb[0].mxu0
        %v3051 = vadd.f32 %v711, %v3050
        %v3052 = vpop.f32.mrb[0].mxu0
        %3053 = vmatprep.mubr.f32.mxu0 0.0
        %3054 = vmatmul.mubr.f32.gmra.mrb[0].mxu0 %v1156
        %v3055 = vpop.f32.mrb[0].mxu0
        %v3056 = vadd.f32 %v711, %v3055
        %v3057 = vpop.f32.mrb[0].mxu0
        %3058 = vmatprep.mubr.f32.mxu0 0.0
        %3059 = vmatmul.mubr.f32.gmra.mrb[0].mxu0 %v1159
        %v3060 = vpop.f32.mrb[0].mxu0
        %v3061 = vadd.f32 %v711, %v3060
        %v3062 = vpop.f32.mrb[0].mxu0
        %3063 = vmatprep.mubr.f32.mxu0 0.0
        %3064 = vmatmul.mubr.f32.gmra.mrb[0].mxu0 %v1162
        %v3065 = vpop.f32.mrb[0].mxu0
        %v3066 = vadd.f32 %v711, %v3065
        %v3067 = vpop.f32.mrb[0].mxu0
        %3068 = vmatprep.mubr.f32.mxu0 0.0
        %3069 = vmatmul.mubr.f32.gmra.mrb[0].mxu0 %v1165
        %v3070 = vpop.f32.mrb[0].mxu0
        %v3071 = vadd.f32 %v711, %v3070
        %v3072 = vpop.f32.mrb[0].mxu0
        %3073 = vmatprep.mubr.f32.mxu0 0.0
        %3074 = vmatmul.mubr.f32.gmra.mrb[0].mxu0 %v1168
        %v3075 = vpop.f32.mrb[0].mxu0
        %v3076 = vadd.f32 %v711, %v3075
        %v3077 = vpop.f32.mrb[0].mxu0
        %3078 = vmatprep.mubr.f32.mxu0 0.0
        %3079 = vmatmul.mubr.f32.gmra.mrb[0].mxu0 %v1171
        %v3080 = vpop.f32.mrb[0].mxu0
        %v3081 = vadd.f32 %v711, %v3080
        %v3082 = vpop.f32.mrb[0].mxu0
        %3083 = vmatprep.mubr.f32.mxu0 0.0
        %3084 = vmatmul.mubr.f32.gmra.mrb[0].mxu0 %v1174
        %v3085 = vpop.f32.mrb[0].mxu0
        %v3086 = vadd.f32 %v711, %v3085
        %v3087 = vpop.f32.mrb[0].mxu0
        %3088 = vmatprep.mubr.f32.mxu0 0.0
        %3089 = vmatmul.mubr.f32.gmra.mrb[0].mxu0 %v1177
        %v3090 = vpop.f32.mrb[0].mxu0
        %v3091 = vadd.f32 %v711, %v3090
        %v3092 = vpop.f32.mrb[0].mxu0
        %3093 = vmatprep.mubr.f32.mxu0 0.0
        %3094 = vmatmul.mubr.f32.gmra.mrb[0].mxu0 %v1180
        %v3095 = vpop.f32.mrb[0].mxu0
        %v3096 = vadd.f32 %v711, %v3095
        %v3097 = vpop.f32.mrb[0].mxu0
        %3098 = vmatprep.mubr.f32.mxu0 0.0
        %3099 = vmatmul.mubr.f32.gmra.mrb[0].mxu0 %v1183
        %v3100 = vpop.f32.mrb[0].mxu0
        %v3101 = vadd.f32 %v711, %v3100
        %v3102 = vpop.f32.mrb[0].mxu0
        %3103 = vmatprep.mubr.f32.mxu0 0.0
        %3104 = vmatmul.mubr.f32.gmra.mrb[0].mxu0 %v1186
        %v3105 = vpop.f32.mrb[0].mxu0
        %v3106 = vadd.f32 %v711, %v3105
        %v3107 = vpop.f32.mrb[0].mxu0
        %3108 = vmatprep.mubr.f32.mxu0 0.0
        %3109 = vmatmul.mubr.f32.gmra.mrb[0].mxu0 %v1189
        %v3110 = vpop.f32.mrb[0].mxu0
        %v3111 = vadd.f32 %v711, %v3110
        %v3112 = vpop.f32.mrb[0].mxu0
        %3113 = vmatprep.mubr.f32.mxu0 0.0
        %3114 = vmatmul.mubr.f32.gmra.mrb[0].mxu0 %v1192
        %v3115 = vpop.f32.mrb[0].mxu0
        %v3116 = vadd.f32 %v711, %v3115
        %v3117 = vpop.f32.mrb[0].mxu0
        %3118 = vmatprep.mubr.f32.mxu0 0.0
        %3119 = vmatmul.mubr.f32.gmra.mrb[0].mxu0 %v1195
        %v3120 = vpop.f32.mrb[0].mxu0
        %v3121 = vadd.f32 %v711, %v3120
        %v3122 = vpop.f32.mrb[0].mxu0
        %3123 = vmatprep.mubr.f32.mxu0 0.0
        %3124 = vmatmul.mubr.f32.gmra.mrb[0].mxu0 %v1198
        %v3125 = vpop.f32.mrb[0].mxu0
        %v3126 = vadd.f32 %v711, %v3125
        %v3127 = vpop.f32.mrb[0].mxu0
        %3128 = vmatprep.mubr.f32.mxu0 0.0
        %3129 = vmatmul.mubr.f32.gmra.mrb[0].mxu0 %v1201
        %v3130 = vpop.f32.mrb[0].mxu0
        %v3131 = vadd.f32 %v711, %v3130
        %v3132 = vpop.f32.mrb[0].mxu0
        %3133 = vmatprep.mubr.f32.mxu0 0.0
        %3134 = vmatmul.mubr.f32.gmra.mrb[0].mxu0 %v1204
        %v3135 = vpop.f32.mrb[0].mxu0
        %v3136 = vadd.f32 %v711, %v3135
        %v3137 = vpop.f32.mrb[0].mxu0
        %3138 = vmatprep.mubr.f32.mxu0 0.0
        %3139 = vmatmul.mubr.f32.gmra.mrb[0].mxu0 %v1207
        %v3140 = vpop.f32.mrb[0].mxu0
        %v3141 = vadd.f32 %v711, %v3140
        %v3142 = vpop.f32.mrb[0].mxu0
        %3143 = vmatprep.mubr.f32.mxu0 0.0
        %3144 = vmatmul.mubr.f32.gmra.mrb[0].mxu0 %v1210
        %v3145 = vpop.f32.mrb[0].mxu0
        %v3146 = vadd.f32 %v711, %v3145
        %v3147 = vpop.f32.mrb[0].mxu0
        %3148 = vmatprep.mubr.f32.mxu0 0.0
        %3149 = vmatmul.mubr.f32.gmra.mrb[0].mxu0 %v1213
        %v3150 = vpop.f32.mrb[0].mxu0
        %v3151 = vadd.f32 %v711, %v3150
        %v3152 = vpop.f32.mrb[0].mxu0
        %3153 = vmatprep.mubr.f32.mxu0 0.0
        %3154 = vmatmul.mubr.f32.gmra.mrb[0].mxu0 %v1216
        %v3155 = vpop.f32.mrb[0].mxu0
        %v3156 = vadd.f32 %v711, %v3155
        %v3157 = vpop.f32.mrb[0].mxu0
        %3158 = vmatprep.mubr.f32.mxu0 0.0
        %3159 = vmatmul.mubr.f32.gmra.mrb[0].mxu0 %v1219
        %v3160 = vpop.f32.mrb[0].mxu0
        %v3161 = vadd.f32 %v711, %v3160
        %v3162 = vpop.f32.mrb[0].mxu0
        %3163 = vmatprep.mubr.f32.mxu0 0.0
        %3164 = vmatmul.mubr.f32.gmra.mrb[0].mxu0 %v1222
        %v3165 = vpop.f32.mrb[0].mxu0
        %v3166 = vadd.f32 %v711, %v3165
        %v3167 = vpop.f32.mrb[0].mxu0
        %3168 = vmatprep.mubr.f32.mxu0 0.0
        %3169 = vmatmul.mubr.f32.gmra.mrb[0].mxu0 %v1225
        %v3170 = vpop.f32.mrb[0].mxu0
        %v3171 = vadd.f32 %v711, %v3170
        %v3172 = vpop.f32.mrb[0].mxu0
        %3173 = vmatprep.mubr.f32.mxu0 0.0
        %3174 = vmatmul.mubr.f32.gmra.mrb[0].mxu0 %v1228
        %v3175 = vpop.f32.mrb[0].mxu0
        %v3176 = vadd.f32 %v711, %v3175
        %v3177 = vpop.f32.mrb[0].mxu0
        %3178 = vmatprep.mubr.f32.mxu0 0.0
        %3179 = vmatmul.mubr.f32.gmra.mrb[0].mxu0 %v1231
        %v3180 = vpop.f32.mrb[0].mxu0
        %v3181 = vadd.f32 %v711, %v3180
        %v3182 = vpop.f32.mrb[0].mxu0
        %3183 = vmatprep.mubr.f32.mxu0 0.0
        %3184 = vmatmul.mubr.f32.gmra.mrb[0].mxu0 %v1234
        %v3185 = vpop.f32.mrb[0].mxu0
        %v3186 = vadd.f32 %v711, %v3185
        %v3187 = vpop.f32.mrb[0].mxu0
        %3188 = vmatprep.mubr.f32.mxu0 0.0
        %3189 = vmatmul.mubr.f32.gmra.mrb[0].mxu0 %v1237
        %v3190 = vpop.f32.mrb[0].mxu0
        %v3191 = vadd.f32 %v711, %v3190
        %v3192 = vpop.f32.mrb[0].mxu0
        %3193 = vmatprep.mubr.f32.mxu0 0.0
        %3194 = vmatmul.mubr.f32.gmra.mrb[0].mxu0 %v1240
        %v3195 = vpop.f32.mrb[0].mxu0
        %v3196 = vadd.f32 %v711, %v3195
        %v3197 = vpop.f32.mrb[0].mxu0
        %3198 = vmatprep.mubr.f32.mxu0 0.0
        %3199 = vmatmul.mubr.f32.gmra.mrb[0].mxu0 %v1243
        %v3200 = vpop.f32.mrb[0].mxu0
        %v3201 = vadd.f32 %v711, %v3200
        %v3202 = vpop.f32.mrb[0].mxu0
        %3203 = vmatprep.mubr.f32.mxu0 0.0
        %3204 = vmatmul.mubr.f32.gmra.mrb[0].mxu0 %v1246
        %v3205 = vpop.f32.mrb[0].mxu0
        %v3206 = vadd.f32 %v711, %v3205
        %v3207 = vpop.f32.mrb[0].mxu0
        %3208 = vmatprep.mubr.f32.mxu0 0.0
        %3209 = vmatmul.mubr.f32.gmra.mrb[0].mxu0 %v1249
        %v3210 = vpop.f32.mrb[0].mxu0
        %v3211 = vadd.f32 %v711, %v3210
        %v3212 = vpop.f32.mrb[0].mxu0
        %3213 = vmatprep.mubr.f32.mxu0 0.0
        %3214 = vmatmul.mubr.f32.gmra.mrb[0].mxu0 %v1252
        %v3215 = vpop.f32.mrb[0].mxu0
        %v3216 = vadd.f32 %v711, %v3215
        %v3217 = vpop.f32.mrb[0].mxu0
        %3218 = vmatprep.mubr.f32.mxu0 0.0
        %3219 = vmatmul.mubr.f32.gmra.mrb[0].mxu0 %v1255
        %v3220 = vpop.f32.mrb[0].mxu0
        %v3221 = vadd.f32 %v711, %v3220
        %v3222 = vpop.f32.mrb[0].mxu0
        %3223 = vmatprep.mubr.f32.mxu0 0.0
        %3224 = vmatmul.mubr.f32.gmra.mrb[0].mxu0 %v1258
        %v3225 = vpop.f32.mrb[0].mxu0
        %v3226 = vadd.f32 %v711, %v3225
        %v3227 = vpop.f32.mrb[0].mxu0
        %3228 = vmatprep.mubr.f32.mxu0 0.0
        %3229 = vmatmul.mubr.f32.gmra.mrb[0].mxu0 %v1261
        %v3230 = vpop.f32.mrb[0].mxu0
        %v3231 = vadd.f32 %v711, %v3230
        %v3232 = vpop.f32.mrb[0].mxu0
        %3233 = vmatprep.mubr.f32.mxu0 0.0
        %3234 = vmatmul.mubr.f32.gmra.mrb[0].mxu0 %v1264
        %v3235 = vpop.f32.mrb[0].mxu0
        %v3236 = vadd.f32 %v711, %v3235
        %v3237 = vpop.f32.mrb[0].mxu0
        %3238 = vmatprep.mubr.f32.mxu0 0.0
        %3239 = vmatmul.mubr.f32.gmra.mrb[0].mxu0 %v1267
        %v3240 = vpop.f32.mrb[0].mxu0
        %v3241 = vadd.f32 %v711, %v3240
        %v3242 = vpop.f32.mrb[0].mxu0
        %3243 = vmatprep.mubr.f32.mxu0 0.0
        %3244 = vmatmul.mubr.f32.gmra.mrb[0].mxu0 %v1270
        %v3245 = vpop.f32.mrb[0].mxu0
        %v3246 = vadd.f32 %v711, %v3245
        %v3247 = vpop.f32.mrb[0].mxu0
        %3248 = vmatprep.mubr.f32.mxu0 0.0
        %3249 = vmatmul.mubr.f32.gmra.mrb[0].mxu0 %v1273
        %v3250 = vpop.f32.mrb[0].mxu0
        %v3251 = vadd.f32 %v711, %v3250
        %v3252 = vpop.f32.mrb[0].mxu0
        %3253 = vmatprep.mubr.f32.mxu0 0.0
        %3254 = vmatmul.mubr.f32.gmra.mrb[0].mxu0 %v1276
        %v3255 = vpop.f32.mrb[0].mxu0
        %v3256 = vadd.f32 %v711, %v3255
        %v3257 = vpop.f32.mrb[0].mxu0
        %3258 = vmatprep.mubr.f32.mxu0 0.0
        %3259 = vmatmul.mubr.f32.gmra.mrb[0].mxu0 %v1279
        %v3260 = vpop.f32.mrb[0].mxu0
        %v3261 = vadd.f32 %v711, %v3260
        %v3262 = vpop.f32.mrb[0].mxu0
        %3263 = vmatprep.mubr.f32.mxu0 0.0
        %3264 = vmatmul.mubr.f32.gmra.mrb[0].mxu0 %v1282
        %v3265 = vpop.f32.mrb[0].mxu0
        %v3266 = vadd.f32 %v711, %v3265
        %v3267 = vpop.f32.mrb[0].mxu0
        %3268 = vmatprep.mubr.f32.mxu0 0.0
        %3269 = vmatmul.mubr.f32.gmra.mrb[0].mxu0 %v1285
        %v3270 = vpop.f32.mrb[0].mxu0
        %v3271 = vadd.f32 %v711, %v3270
        %v3272 = vpop.f32.mrb[0].mxu0
        %3273 = vmatprep.mubr.f32.mxu0 0.0
        %3274 = vmatmul.mubr.f32.gmra.mrb[0].mxu0 %v1288
        %v3275 = vpop.f32.mrb[0].mxu0
        %v3276 = vadd.f32 %v711, %v3275
        %v3277 = vpop.f32.mrb[0].mxu0
        %3278 = vmatprep.mubr.f32.mxu0 0.0
        %3279 = vmatmul.mubr.f32.gmra.mrb[0].mxu0 %v1291
        %v3280 = vpop.f32.mrb[0].mxu0
        %v3281 = vadd.f32 %v711, %v3280
        %v3282 = vpop.f32.mrb[0].mxu0
        %3283 = vmatprep.mubr.f32.mxu0 0.0
        %3284 = vmatmul.mubr.f32.gmra.mrb[0].mxu0 %v1294
        %v3285 = vpop.f32.mrb[0].mxu0
        %v3286 = vadd.f32 %v711, %v3285
        %v3287 = vpop.f32.mrb[0].mxu0
        %3288 = vmatprep.mubr.f32.mxu0 0.0
        %3289 = vmatmul.mubr.f32.gmra.mrb[0].mxu0 %v1297
        %v3290 = vpop.f32.mrb[0].mxu0
        %v3291 = vadd.f32 %v711, %v3290
        %v3292 = vpop.f32.mrb[0].mxu0
        %3293 = vmatprep.mubr.f32.mxu0 0.0
        %3294 = vmatmul.mubr.f32.gmra.mrb[0].mxu0 %v1300
        %v3295 = vpop.f32.mrb[0].mxu0
        %v3296 = vadd.f32 %v711, %v3295
        %v3297 = vpop.f32.mrb[0].mxu0
        %3298 = vmatprep.mubr.f32.mxu0 0.0
        %3299 = vmatmul.mubr.f32.gmra.mrb[0].mxu0 %v1303
        %v3300 = vpop.f32.mrb[0].mxu0
        %v3301 = vadd.f32 %v711, %v3300
        %v3302 = vpop.f32.mrb[0].mxu0
        %3303 = vmatprep.mubr.f32.mxu0 0.0
        %3304 = vmatmul.mubr.f32.gmra.mrb[0].mxu0 %v1306
        %v3305 = vpop.f32.mrb[0].mxu0
        %v3306 = vadd.f32 %v711, %v3305
        %v3307 = vpop.f32.mrb[0].mxu0
        %3308 = vmatprep.mubr.f32.mxu0 0.0
        %3309 = vmatmul.mubr.f32.gmra.mrb[0].mxu0 %v1309
        %v3310 = vpop.f32.mrb[0].mxu0
        %v3311 = vadd.f32 %v711, %v3310
        %v3312 = vpop.f32.mrb[0].mxu0
        %3313 = vmatprep.mubr.f32.mxu0 0.0
        %3314 = vmatmul.mubr.f32.gmra.mrb[0].mxu0 %v1312
        %v3315 = vpop.f32.mrb[0].mxu0
        %v3316 = vadd.f32 %v711, %v3315
        %v3317 = vpop.f32.mrb[0].mxu0
        %3318 = vmatprep.mubr.f32.mxu0 0.0
        %3319 = vmatmul.mubr.f32.gmra.mrb[0].mxu0 %v1315
        %v3320 = vpop.f32.mrb[0].mxu0
        %v3321 = vadd.f32 %v711, %v3320
        %v3322 = vpop.f32.mrb[0].mxu0
        %3323 = vmatprep.mubr.f32.mxu0 0.0
        %3324 = vmatmul.mubr.f32.gmra.mrb[0].mxu0 %v1318
        %v3325 = vpop.f32.mrb[0].mxu0
        %v3326 = vadd.f32 %v711, %v3325
        %v3327 = vpop.f32.mrb[0].mxu0
        %3328 = vmatprep.mubr.f32.mxu0 0.0
        %3329 = vmatmul.mubr.f32.gmra.mrb[0].mxu0 %v1321
        %v3330 = vpop.f32.mrb[0].mxu0
        %v3331 = vadd.f32 %v711, %v3330
        %v3332 = vpop.f32.mrb[0].mxu0
        %3333 = vmatprep.mubr.f32.mxu0 0.0
        %3334 = vmatmul.mubr.f32.gmra.mrb[0].mxu0 %v1324
        %v3335 = vpop.f32.mrb[0].mxu0
        %v3336 = vadd.f32 %v711, %v3335
        %v3337 = vpop.f32.mrb[0].mxu0
        %3338 = vmatprep.mubr.f32.mxu0 0.0
        %3339 = vmatmul.mubr.f32.gmra.mrb[0].mxu0 %v1327
        %v3340 = vpop.f32.mrb[0].mxu0
        %v3341 = vadd.f32 %v711, %v3340
        %v3342 = vpop.f32.mrb[0].mxu0
        %3343 = vmatprep.mubr.f32.mxu0 0.0
        %3344 = vmatmul.mubr.f32.gmra.mrb[0].mxu0 %v1330
        %v3345 = vpop.f32.mrb[0].mxu0
        %v3346 = vadd.f32 %v711, %v3345
        %v3347 = vpop.f32.mrb[0].mxu0
        %3348 = vmatprep.mubr.f32.mxu0 0.0
        %3349 = vmatmul.mubr.f32.gmra.mrb[0].mxu0 %v1333
        %v3350 = vpop.f32.mrb[0].mxu0
        %v3351 = vadd.f32 %v711, %v3350
        %v3352 = vpop.f32.mrb[0].mxu0
        %3353 = vmatprep.mubr.f32.mxu0 0.0
        %3354 = vmatmul.mubr.f32.gmra.mrb[0].mxu0 %v1336
        %v3355 = vpop.f32.mrb[0].mxu0
        %v3356 = vadd.f32 %v711, %v3355
        %v3357 = vpop.f32.mrb[0].mxu0
        %3358 = vmatprep.mubr.f32.mxu0 0.0
        %3359 = vmatmul.mubr.f32.gmra.mrb[0].mxu0 %v1339
        %v3360 = vpop.f32.mrb[0].mxu0
        %v3361 = vadd.f32 %v711, %v3360
        %v3362 = vpop.f32.mrb[0].mxu0
        %3363 = vmatprep.mubr.f32.mxu0 0.0
        %3364 = vmatmul.mubr.f32.gmra.mrb[0].mxu0 %v1342
        %v3365 = vpop.f32.mrb[0].mxu0
        %v3366 = vadd.f32 %v711, %v3365
        %v3367 = vpop.f32.mrb[0].mxu0
        %3368 = vmatprep.mubr.f32.mxu0 0.0
        %3369 = vmatmul.mubr.f32.gmra.mrb[0].mxu0 %v1345
        %v3370 = vpop.f32.mrb[0].mxu0
        %v3371 = vadd.f32 %v711, %v3370
        %v3372 = vpop.f32.mrb[0].mxu0
        %3373 = vmatprep.mubr.f32.mxu0 0.0
        %3374 = vmatmul.mubr.f32.gmra.mrb[0].mxu0 %v1348
        %v3375 = vpop.f32.mrb[0].mxu0
        %v3376 = vadd.f32 %v711, %v3375
        %v3377 = vpop.f32.mrb[0].mxu0
        %3378 = vmatprep.mubr.f32.mxu0 0.0
        %3379 = vmatmul.mubr.f32.gmra.mrb[0].mxu0 %v1351
        %v3380 = vpop.f32.mrb[0].mxu0
        %v3381 = vadd.f32 %v711, %v3380
        %v3382 = vpop.f32.mrb[0].mxu0
        %3383 = vmatprep.mubr.f32.mxu0 0.0
        %3384 = vmatmul.mubr.f32.gmra.mrb[0].mxu0 %v1354
        %v3385 = vpop.f32.mrb[0].mxu0
        %v3386 = vadd.f32 %v711, %v3385
        %v3387 = vpop.f32.mrb[0].mxu0
        %3388 = vmatprep.mubr.f32.mxu0 0.0
        %3389 = vmatmul.mubr.f32.gmra.mrb[0].mxu0 %v1357
        %v3390 = vpop.f32.mrb[0].mxu0
        %v3391 = vadd.f32 %v711, %v3390
        %v3392 = vpop.f32.mrb[0].mxu0
        %3393 = vmatprep.mubr.f32.mxu0 0.0
        %3394 = vmatmul.mubr.f32.gmra.mrb[0].mxu0 %v1360
        %v3395 = vpop.f32.mrb[0].mxu0
        %v3396 = vadd.f32 %v711, %v3395
        %v3397 = vpop.f32.mrb[0].mxu0
        %3398 = vmatprep.mubr.f32.mxu0 0.0
        %3399 = vmatmul.mubr.f32.gmra.mrb[0].mxu0 %v1363
        %v3400 = vpop.f32.mrb[0].mxu0
        %v3401 = vadd.f32 %v711, %v3400
        %v3402 = vpop.f32.mrb[0].mxu0
        %3403 = vmatprep.mubr.f32.mxu0 0.0
        %3404 = vmatmul.mubr.f32.gmra.mrb[0].mxu0 %v1366
        %v3405 = vpop.f32.mrb[0].mxu0
        %v3406 = vadd.f32 %v711, %v3405
        %v3407 = vpop.f32.mrb[0].mxu0
        %3408 = vmatprep.mubr.f32.mxu0 0.0
        %3409 = vmatmul.mubr.f32.gmra.mrb[0].mxu0 %v1369
        %v3410 = vpop.f32.mrb[0].mxu0
        %v3411 = vadd.f32 %v711, %v3410
        %v3412 = vpop.f32.mrb[0].mxu0
        %3413 = vmatprep.mubr.f32.mxu0 0.0
        %3414 = vmatmul.mubr.f32.gmra.mrb[0].mxu0 %v1372
        %v3415 = vpop.f32.mrb[0].mxu0
        %v3416 = vadd.f32 %v711, %v3415
        %v3417 = vpop.f32.mrb[0].mxu0
        %3418 = vmatprep.mubr.f32.mxu0 0.0
        %3419 = vmatmul.mubr.f32.gmra.mrb[0].mxu0 %v1375
        %v3420 = vpop.f32.mrb[0].mxu0
        %v3421 = vadd.f32 %v711, %v3420
        %v3422 = vpop.f32.mrb[0].mxu0
        %3423 = vmatprep.mubr.f32.mxu0 0.0
        %3424 = vmatmul.mubr.f32.gmra.mrb[0].mxu0 %v1378
        %v3425 = vpop.f32.mrb[0].mxu0
        %v3426 = vadd.f32 %v711, %v3425
        %v3427 = vpop.f32.mrb[0].mxu0
        %3428 = vmatprep.mubr.f32.mxu0 0.0
        %3429 = vmatmul.mubr.f32.gmra.mrb[0].mxu0 %v1381
        %v3430 = vpop.f32.mrb[0].mxu0
        %v3431 = vadd.f32 %v711, %v3430
        %v3432 = vpop.f32.mrb[0].mxu0
        %3433 = vmatprep.mubr.f32.mxu0 0.0
        %3434 = vmatmul.mubr.f32.gmra.mrb[0].mxu0 %v1384
        %v3435 = vpop.f32.mrb[0].mxu0
        %v3436 = vadd.f32 %v711, %v3435
        %v3437 = vpop.f32.mrb[0].mxu0
        %3438 = vmatprep.mubr.f32.mxu0 0.0
        %3439 = vmatmul.mubr.f32.gmra.mrb[0].mxu0 %v1387
        %v3440 = vpop.f32.mrb[0].mxu0
        %v3441 = vadd.f32 %v711, %v3440
        %v3442 = vpop.f32.mrb[0].mxu0
        %3443 = vmatprep.mubr.f32.mxu0 0.0
        %3444 = vmatmul.mubr.f32.gmra.mrb[0].mxu0 %v1390
        %v3445 = vpop.f32.mrb[0].mxu0
        %v3446 = vadd.f32 %v711, %v3445
        %v3447 = vpop.f32.mrb[0].mxu0
        %3448 = vmatprep.mubr.f32.mxu0 0.0
        %3449 = vmatmul.mubr.f32.gmra.mrb[0].mxu0 %v1393
        %v3450 = vpop.f32.mrb[0].mxu0
        %v3451 = vadd.f32 %v711, %v3450
        %v3452 = vpop.f32.mrb[0].mxu0
        %3453 = vmatprep.mubr.f32.mxu0 0.0
        %3454 = vmatmul.mubr.f32.gmra.mrb[0].mxu0 %v1396
        %v3455 = vpop.f32.mrb[0].mxu0
        %v3456 = vadd.f32 %v711, %v3455
        %v3457 = vpop.f32.mrb[0].mxu0
        %3458 = vmatprep.mubr.f32.mxu0 0.0
        %3459 = vmatmul.mubr.f32.gmra.mrb[0].mxu0 %v1399
        %v3460 = vpop.f32.mrb[0].mxu0
        %v3461 = vadd.f32 %v711, %v3460
        %v3462 = vpop.f32.mrb[0].mxu0
        %3463 = vmatprep.mubr.f32.mxu0 0.0
        %3464 = vmatmul.mubr.f32.gmra.mrb[0].mxu0 %v1402
        %v3465 = vpop.f32.mrb[0].mxu0
        %v3466 = vadd.f32 %v711, %v3465
        %v3467 = vpop.f32.mrb[0].mxu0
        %3468 = vmatprep.mubr.f32.mxu0 0.0
        %3469 = vmatmul.mubr.f32.gmra.mrb[0].mxu0 %v1405
        %v3470 = vpop.f32.mrb[0].mxu0
        %v3471 = vadd.f32 %v711, %v3470
        %v3472 = vpop.f32.mrb[0].mxu0
        %3473 = vmatprep.mubr.f32.mxu0 0.0
        %3474 = vmatmul.mubr.f32.gmra.mrb[0].mxu0 %v1408
        %v3475 = vpop.f32.mrb[0].mxu0
        %v3476 = vadd.f32 %v711, %v3475
        %v3477 = vpop.f32.mrb[0].mxu0
        %3478 = vmatprep.mubr.f32.mxu0 0.0
        %3479 = vmatmul.mubr.f32.gmra.mrb[0].mxu0 %v1411
        %v3480 = vpop.f32.mrb[0].mxu0
        %v3481 = vadd.f32 %v711, %v3480
        %v3482 = vpop.f32.mrb[0].mxu0
        %3483 = vmatprep.mubr.f32.mxu0 0.0
        %3484 = vmatmul.mubr.f32.gmra.mrb[0].mxu0 %v1414
        %v3485 = vpop.f32.mrb[0].mxu0
        %v3486 = vadd.f32 %v711, %v3485
        %v3487 = vpop.f32.mrb[0].mxu0
        %3488 = vmatprep.mubr.f32.mxu0 0.0
        %3489 = vmatmul.mubr.f32.gmra.mrb[0].mxu0 %v1417
        %v3490 = vpop.f32.mrb[0].mxu0
        %v3491 = vadd.f32 %v711, %v3490
        %v3492 = vpop.f32.mrb[0].mxu0
        %3493 = vmatprep.mubr.f32.mxu0 0.0
        %3494 = vmatmul.mubr.f32.gmra.mrb[0].mxu0 %v1420
        %v3495 = vpop.f32.mrb[0].mxu0
        %v3496 = vadd.f32 %v711, %v3495
        %v3497 = vpop.f32.mrb[0].mxu0
        %3498 = vmatprep.mubr.f32.mxu0 0.0
        %3499 = vmatmul.mubr.f32.gmra.mrb[0].mxu0 %v1423
        %v3500 = vpop.f32.mrb[0].mxu0
        %v3501 = vadd.f32 %v711, %v3500
        %v3502 = vpop.f32.mrb[0].mxu0
        %3503 = vmatprep.mubr.f32.mxu0 0.0
        %3504 = vmatmul.mubr.f32.gmra.mrb[0].mxu0 %v1426
        %v3505 = vpop.f32.mrb[0].mxu0
        %v3506 = vadd.f32 %v711, %v3505
        %v3507 = vpop.f32.mrb[0].mxu0
        %3508 = vmatprep.mubr.f32.mxu0 0.0
        %3509 = vmatmul.mubr.f32.gmra.mrb[0].mxu0 %v1429
        %v3510 = vpop.f32.mrb[0].mxu0
        %v3511 = vadd.f32 %v711, %v3510
        %v3512 = vpop.f32.mrb[0].mxu0
        %3513 = vmatprep.mubr.f32.mxu0 0.0
        %3514 = vmatmul.mubr.f32.gmra.mrb[0].mxu0 %v1432
        %v3515 = vpop.f32.mrb[0].mxu0
        %v3516 = vadd.f32 %v711, %v3515
        %v3517 = vpop.f32.mrb[0].mxu0
        %3518 = vmatprep.mubr.f32.mxu0 0.0
        %3519 = vmatmul.mubr.f32.gmra.mrb[0].mxu0 %v1435
        %v3520 = vpop.f32.mrb[0].mxu0
        %v3521 = vadd.f32 %v711, %v3520
        %v3522 = vpop.f32.mrb[0].mxu0
        %3523 = vmatprep.mubr.f32.mxu0 0.0
        %3524 = vmatmul.mubr.f32.gmra.mrb[0].mxu0 %v1438
        %v3525 = vpop.f32.mrb[0].mxu0
        %v3526 = vadd.f32 %v711, %v3525
        %v3527 = vpop.f32.mrb[0].mxu0
        %3528 = vmatprep.mubr.f32.mxu0 0.0
        %3529 = vmatmul.mubr.f32.gmra.mrb[0].mxu0 %v1441
        %v3530 = vpop.f32.mrb[0].mxu0
        %v3531 = vadd.f32 %v711, %v3530
        %v3532 = vpop.f32.mrb[0].mxu0
        %3533 = vmatprep.mubr.f32.mxu0 0.0
        %3534 = vmatmul.mubr.f32.gmra.mrb[0].mxu0 %v1444
        %v3535 = vpop.f32.mrb[0].mxu0
        %v3536 = vadd.f32 %v711, %v3535
        %v3537 = vpop.f32.mrb[0].mxu0
        %3538 = vmatprep.mubr.f32.mxu0 0.0
        %3539 = vmatmul.mubr.f32.gmra.mrb[0].mxu0 %v1447
        %v3540 = vpop.f32.mrb[0].mxu0
        %v3541 = vadd.f32 %v711, %v3540
        %v3542 = vpop.f32.mrb[0].mxu0
        %3543 = vmatprep.mubr.f32.mxu0 0.0
        %3544 = vmatmul.mubr.f32.gmra.mrb[0].mxu0 %v1450
        %v3545 = vpop.f32.mrb[0].mxu0
        %v3546 = vadd.f32 %v711, %v3545
        %v3547 = vpop.f32.mrb[0].mxu0
        %3548 = vmatprep.mubr.f32.mxu0 0.0
        %3549 = vmatmul.mubr.f32.gmra.mrb[0].mxu0 %v1453
        %v3550 = vpop.f32.mrb[0].mxu0
        %v3551 = vadd.f32 %v711, %v3550
        %v3552 = vpop.f32.mrb[0].mxu0
        %3553 = vmatprep.mubr.f32.mxu0 0.0
        %3554 = vmatmul.mubr.f32.gmra.mrb[0].mxu0 %v1456
        %v3555 = vpop.f32.mrb[0].mxu0
        %v3556 = vadd.f32 %v711, %v3555
        %v3557 = vpop.f32.mrb[0].mxu0
        %3558 = vmatprep.mubr.f32.mxu0 0.0
        %3559 = vmatmul.mubr.f32.gmra.mrb[0].mxu0 %v1459
        %v3560 = vpop.f32.mrb[0].mxu0
        %v3561 = vadd.f32 %v711, %v3560
        %v3562 = vpop.f32.mrb[0].mxu0
        %3563 = vmatprep.mubr.f32.mxu0 0.0
        %3564 = vmatmul.mubr.f32.gmra.mrb[0].mxu0 %v1462
        %v3565 = vpop.f32.mrb[0].mxu0
        %v3566 = vadd.f32 %v711, %v3565
        %v3567 = vpop.f32.mrb[0].mxu0
        %3568 = vmatprep.mubr.f32.mxu0 0.0
        %3569 = vmatmul.mubr.f32.gmra.mrb[0].mxu0 %v1465
        %v3570 = vpop.f32.mrb[0].mxu0
        %v3571 = vadd.f32 %v711, %v3570
        %v3572 = vpop.f32.mrb[0].mxu0
        %3573 = vmatprep.mubr.f32.mxu0 0.0
        %3574 = vmatmul.mubr.f32.gmra.mrb[0].mxu0 %v1468
        %v3575 = vpop.f32.mrb[0].mxu0
        %v3576 = vadd.f32 %v711, %v3575
        %v3577 = vpop.f32.mrb[0].mxu0
        %3578 = vmatprep.mubr.f32.mxu0 0.0
        %3579 = vmatmul.mubr.f32.gmra.mrb[0].mxu0 %v1471
        %v3580 = vpop.f32.mrb[0].mxu0
        %v3581 = vadd.f32 %v711, %v3580
        %v3582 = vpop.f32.mrb[0].mxu0
        %3583 = vmatprep.mubr.f32.mxu0 0.0
        %3584 = vmatmul.mubr.f32.gmra.mrb[0].mxu0 %v1474
        %v3585 = vpop.f32.mrb[0].mxu0
        %v3586 = vadd.f32 %v711, %v3585
        %v3587 = vpop.f32.mrb[0].mxu0
        %3588 = vmatprep.mubr.f32.mxu0 0.0
        %3589 = vmatmul.mubr.f32.gmra.mrb[0].mxu0 %v1477
        %v3590 = vpop.f32.mrb[0].mxu0
        %v3591 = vadd.f32 %v711, %v3590
        %v3592 = vpop.f32.mrb[0].mxu0
        %3593 = vmatprep.mubr.f32.mxu0 0.0
        %3594 = vmatmul.mubr.f32.gmra.mrb[0].mxu0 %v1480
        %v3595 = vpop.f32.mrb[0].mxu0
        %v3596 = vadd.f32 %v711, %v3595
        %v3597 = vpop.f32.mrb[0].mxu0
        %3598 = vmatprep.mubr.f32.mxu0 0.0
        %3599 = vmatmul.mubr.f32.gmra.mrb[0].mxu0 %v1483
        %v3600 = vpop.f32.mrb[0].mxu0
        %v3601 = vadd.f32 %v711, %v3600
        %v3602 = vpop.f32.mrb[0].mxu0
        %3603 = vmatprep.mubr.f32.mxu0 0.0
        %3604 = vmatmul.mubr.f32.gmra.mrb[0].mxu0 %v1486
        %v3605 = vpop.f32.mrb[0].mxu0
        %v3606 = vadd.f32 %v711, %v3605
        %v3607 = vpop.f32.mrb[0].mxu0
        %3608 = vmatprep.mubr.f32.mxu0 0.0
        %3609 = vmatmul.mubr.f32.gmra.mrb[0].mxu0 %v1489
        %v3610 = vpop.f32.mrb[0].mxu0
        %v3611 = vadd.f32 %v711, %v3610
        %v3612 = vpop.f32.mrb[0].mxu0
        %3613 = vmatprep.mubr.f32.mxu0 0.0
        %3614 = vmatmul.mubr.f32.gmra.mrb[0].mxu0 %v1492
        %v3615 = vpop.f32.mrb[0].mxu0
        %v3616 = vadd.f32 %v711, %v3615
        %v3617 = vpop.f32.mrb[0].mxu0
        %3618 = vmatprep.mubr.f32.mxu0 0.0
        %3619 = vmatmul.mubr.f32.gmra.mrb[0].mxu0 %v1495
        %v3620 = vpop.f32.mrb[0].mxu0
        %v3621 = vadd.f32 %v711, %v3620
        %v3622 = vpop.f32.mrb[0].mxu0
        %3623 = vmatprep.mubr.f32.mxu0 0.0
        %3624 = vmatmul.mubr.f32.gmra.mrb[0].mxu0 %v1498
        %v3625 = vpop.f32.mrb[0].mxu0
        %v3626 = vadd.f32 %v711, %v3625
        %v3627 = vpop.f32.mrb[0].mxu0
        %3628 = vmatprep.mubr.f32.mxu0 0.0
        %3629 = vmatmul.mubr.f32.gmra.mrb[0].mxu0 %v1501
        %v3630 = vpop.f32.mrb[0].mxu0
        %v3631 = vadd.f32 %v711, %v3630
        %v3632 = vpop.f32.mrb[0].mxu0
        %3633 = vmatprep.mubr.f32.mxu0 0.0
        %3634 = vmatmul.mubr.f32.gmra.mrb[0].mxu0 %v1504
        %v3635 = vpop.f32.mrb[0].mxu0
        %v3636 = vadd.f32 %v711, %v3635
        %v3637 = vpop.f32.mrb[0].mxu0
        %3638 = vmatprep.mubr.f32.mxu0 0.0
        %3639 = vmatmul.mubr.f32.gmra.mrb[0].mxu0 %v1507
        %v3640 = vpop.f32.mrb[0].mxu0
        %v3641 = vadd.f32 %v711, %v3640
        %v3642 = vpop.f32.mrb[0].mxu0
        %3643 = vmatprep.mubr.f32.mxu0 0.0
        %3644 = vmatmul.mubr.f32.gmra.mrb[0].mxu0 %v1510
        %v3645 = vpop.f32.mrb[0].mxu0
        %v3646 = vadd.f32 %v711, %v3645
        %v3647 = vpop.f32.mrb[0].mxu0
        %3648 = vmatprep.mubr.f32.mxu0 0.0
        %3649 = vmatmul.mubr.f32.gmra.mrb[0].mxu0 %v1513
        %v3650 = vpop.f32.mrb[0].mxu0
        %v3651 = vadd.f32 %v711, %v3650
        %v3652 = vpop.f32.mrb[0].mxu0
        %3653 = vmatprep.mubr.f32.mxu0 0.0
        %3654 = vmatmul.mubr.f32.gmra.mrb[0].mxu0 %v1516
        %v3655 = vpop.f32.mrb[0].mxu0
        %v3656 = vadd.f32 %v711, %v3655
        %v3657 = vpop.f32.mrb[0].mxu0
        %3658 = vmatprep.mubr.f32.mxu0 0.0
        %3659 = vmatmul.mubr.f32.gmra.mrb[0].mxu0 %v1519
        %v3660 = vpop.f32.mrb[0].mxu0
        %v3661 = vadd.f32 %v711, %v3660
        %v3662 = vpop.f32.mrb[0].mxu0
        %3663 = vmatprep.mubr.f32.mxu0 0.0
        %3664 = vmatmul.mubr.f32.gmra.mrb[0].mxu0 %v1522
        %v3665 = vpop.f32.mrb[0].mxu0
        %v3666 = vadd.f32 %v711, %v3665
        %v3667 = vpop.f32.mrb[0].mxu0
        %3668 = vmatprep.mubr.f32.mxu0 0.0
        %3669 = vmatmul.mubr.f32.gmra.mrb[0].mxu0 %v1525
        %v3670 = vpop.f32.mrb[0].mxu0
        %v3671 = vadd.f32 %v711, %v3670
        %v3672 = vpop.f32.mrb[0].mxu0
        %3673 = vmatprep.mubr.f32.mxu0 0.0
        %3674 = vmatmul.mubr.f32.gmra.mrb[0].mxu0 %v1528
        %v3675 = vpop.f32.mrb[0].mxu0
        %v3676 = vadd.f32 %v711, %v3675
        %v3677 = vpop.f32.mrb[0].mxu0
        %3678 = vmatprep.mubr.f32.mxu0 0.0
        %3679 = vmatmul.mubr.f32.gmra.mrb[0].mxu0 %v1531
        %v3680 = vpop.f32.mrb[0].mxu0
        %v3681 = vadd.f32 %v711, %v3680
        %v3682 = vpop.f32.mrb[0].mxu0
        %3683 = vmatprep.mubr.f32.mxu0 0.0
        %3684 = vmatmul.mubr.f32.gmra.mrb[0].mxu0 %v1534
        %v3685 = vpop.f32.mrb[0].mxu0
        %v3686 = vadd.f32 %v711, %v3685
        %v3687 = vpop.f32.mrb[0].mxu0
        %3688 = vmatprep.mubr.f32.mxu0 0.0
        %3689 = vmatmul.mubr.f32.gmra.mrb[0].mxu0 %v1537
        %v3690 = vpop.f32.mrb[0].mxu0
        %v3691 = vadd.f32 %v711, %v3690
        %v3692 = vpop.f32.mrb[0].mxu0
        %3693 = vmatprep.mubr.f32.mxu0 0.0
        %3694 = vmatmul.mubr.f32.gmra.mrb[0].mxu0 %v1540
        %v3695 = vpop.f32.mrb[0].mxu0
        %v3696 = vadd.f32 %v711, %v3695
        %v3697 = vpop.f32.mrb[0].mxu0
        %3698 = vmatprep.mubr.f32.mxu0 0.0
        %3699 = vmatmul.mubr.f32.gmra.mrb[0].mxu0 %v1543
        %v3700 = vpop.f32.mrb[0].mxu0
        %v3701 = vadd.f32 %v711, %v3700
        %v3702 = vpop.f32.mrb[0].mxu0
        %3703 = vmatprep.mubr.f32.mxu0 0.0
        %3704 = vmatmul.mubr.f32.gmra.mrb[0].mxu0 %v1546
        %v3705 = vpop.f32.mrb[0].mxu0
        %v3706 = vadd.f32 %v711, %v3705
        %v3707 = vpop.f32.mrb[0].mxu0
        %3708 = vmatprep.mubr.f32.mxu0 0.0
        %3709 = vmatmul.mubr.f32.gmra.mrb[0].mxu0 %v1549
        %v3710 = vpop.f32.mrb[0].mxu0
        %v3711 = vadd.f32 %v711, %v3710
        %v3712 = vpop.f32.mrb[0].mxu0
        %3713 = vmatprep.mubr.f32.mxu0 0.0
        %3714 = vmatmul.mubr.f32.gmra.mrb[0].mxu0 %v1552
        %v3715 = vpop.f32.mrb[0].mxu0
        %v3716 = vadd.f32 %v711, %v3715
        %v3717 = vpop.f32.mrb[0].mxu0
        %3718 = vmatprep.mubr.f32.mxu0 0.0
        %3719 = vmatmul.mubr.f32.gmra.mrb[0].mxu0 %v1555
        %v3720 = vpop.f32.mrb[0].mxu0
        %v3721 = vadd.f32 %v711, %v3720
        %v3722 = vpop.f32.mrb[0].mxu0
        %3723 = vmatprep.mubr.f32.mxu0 0.0
        %3724 = vmatmul.mubr.f32.gmra.mrb[0].mxu0 %v1558
        %v3725 = vpop.f32.mrb[0].mxu0
        %v3726 = vadd.f32 %v711, %v3725
        %v3727 = vpop.f32.mrb[0].mxu0
        %3728 = vmatprep.mubr.f32.mxu0 0.0
        %3729 = vmatmul.mubr.f32.gmra.mrb[0].mxu0 %v1561
        %v3730 = vpop.f32.mrb[0].mxu0
        %v3731 = vadd.f32 %v711, %v3730
        %v3732 = vpop.f32.mrb[0].mxu0
        %3733 = vmatprep.mubr.f32.mxu0 0.0
        %3734 = vmatmul.mubr.f32.gmra.mrb[0].mxu0 %v1564
        %v3735 = vpop.f32.mrb[0].mxu0
        %v3736 = vadd.f32 %v711, %v3735
        %v3737 = vpop.f32.mrb[0].mxu0
        %3738 = vmatprep.mubr.f32.mxu0 0.0
        %3739 = vmatmul.mubr.f32.gmra.mrb[0].mxu0 %v1567
        %v3740 = vpop.f32.mrb[0].mxu0
        %v3741 = vadd.f32 %v711, %v3740
        %v3742 = vpop.f32.mrb[0].mxu0
        %3743 = vmatprep.mubr.f32.mxu0 0.0
        %3744 = vmatmul.mubr.f32.gmra.mrb[0].mxu0 %v1570
        %v3745 = vpop.f32.mrb[0].mxu0
        %v3746 = vadd.f32 %v711, %v3745
        %v3747 = vpop.f32.mrb[0].mxu0
        %3748 = vmatprep.mubr.f32.mxu0 0.0
        %3749 = vmatmul.mubr.f32.gmra.mrb[0].mxu0 %v1573
        %v3750 = vpop.f32.mrb[0].mxu0
        %v3751 = vadd.f32 %v711, %v3750
        %v3752 = vpop.f32.mrb[0].mxu0
        %3753 = vmatprep.mubr.f32.mxu0 0.0
        %3754 = vmatmul.mubr.f32.gmra.mrb[0].mxu0 %v1576
        %v3755 = vpop.f32.mrb[0].mxu0
        %v3756 = vadd.f32 %v711, %v3755
        %v3757 = vpop.f32.mrb[0].mxu0
        %3758 = vmatprep.mubr.f32.mxu0 0.0
        %3759 = vmatmul.mubr.f32.gmra.mrb[0].mxu0 %v1579
        %v3760 = vpop.f32.mrb[0].mxu0
        %v3761 = vadd.f32 %v711, %v3760
        %v3762 = vpop.f32.mrb[0].mxu0
        %3763 = vmatprep.mubr.f32.mxu0 0.0
        %3764 = vmatmul.mubr.f32.gmra.mrb[0].mxu0 %v1582
        %v3765 = vpop.f32.mrb[0].mxu0
        %v3766 = vadd.f32 %v711, %v3765
        %v3767 = vpop.f32.mrb[0].mxu0
        %3768 = vmatprep.mubr.f32.mxu0 0.0
        %3769 = vmatmul.mubr.f32.gmra.mrb[0].mxu0 %v1585
        %v3770 = vpop.f32.mrb[0].mxu0
        %v3771 = vadd.f32 %v711, %v3770
        %v3772 = vpop.f32.mrb[0].mxu0
        %3773 = vmatprep.mubr.f32.mxu0 0.0
        %3774 = vmatmul.mubr.f32.gmra.mrb[0].mxu0 %v1588
        %v3775 = vpop.f32.mrb[0].mxu0
        %v3776 = vadd.f32 %v711, %v3775
        %v3777 = vpop.f32.mrb[0].mxu0
        %3778 = vmatprep.mubr.f32.mxu0 0.0
        %3779 = vmatmul.mubr.f32.gmra.mrb[0].mxu0 %v1591
        %v3780 = vpop.f32.mrb[0].mxu0
        %v3781 = vadd.f32 %v711, %v3780
        %v3782 = vpop.f32.mrb[0].mxu0
        %3783 = vmatprep.mubr.f32.mxu0 0.0
        %3784 = vmatmul.mubr.f32.gmra.mrb[0].mxu0 %v1594
        %v3785 = vpop.f32.mrb[0].mxu0
        %v3786 = vadd.f32 %v711, %v3785
        %v3787 = vpop.f32.mrb[0].mxu0
        %3788 = vmatprep.mubr.f32.mxu0 0.0
        %3789 = vmatmul.mubr.f32.gmra.mrb[0].mxu0 %v1597
        %v3790 = vpop.f32.mrb[0].mxu0
        %v3791 = vadd.f32 %v711, %v3790
        %v3792 = vpop.f32.mrb[0].mxu0
        %3793 = vmatprep.mubr.f32.mxu0 0.0
        %3794 = vmatmul.mubr.f32.gmra.mrb[0].mxu0 %v1600
        %v3795 = vpop.f32.mrb[0].mxu0
        %v3796 = vadd.f32 %v711, %v3795
        %v3797 = vpop.f32.mrb[0].mxu0
        %3798 = vmatprep.mubr.f32.mxu0 0.0
        %3799 = vmatmul.mubr.f32.gmra.mrb[0].mxu0 %v1603
        %v3800 = vpop.f32.mrb[0].mxu0
        %v3801 = vadd.f32 %v711, %v3800
        %v3802 = vpop.f32.mrb[0].mxu0
        %3803 = vmatprep.mubr.f32.mxu0 0.0
        %3804 = vmatmul.mubr.f32.gmra.mrb[0].mxu0 %v1606
        %v3805 = vpop.f32.mrb[0].mxu0
        %v3806 = vadd.f32 %v711, %v3805
        %v3807 = vpop.f32.mrb[0].mxu0
        %3808 = vmatprep.mubr.f32.mxu0 0.0
        %3809 = vmatmul.mubr.f32.gmra.mrb[0].mxu0 %v1609
        %v3810 = vpop.f32.mrb[0].mxu0
        %v3811 = vadd.f32 %v711, %v3810
        %v3812 = vpop.f32.mrb[0].mxu0
        %3813 = vmatprep.mubr.f32.mxu0 0.0
        %3814 = vmatmul.mubr.f32.gmra.mrb[0].mxu0 %v1612
        %v3815 = vpop.f32.mrb[0].mxu0
        %v3816 = vadd.f32 %v711, %v3815
        %v3817 = vpop.f32.mrb[0].mxu0
        %3818 = vmatprep.mubr.f32.mxu0 0.0
        %3819 = vmatmul.mubr.f32.gmra.mrb[0].mxu0 %v1615
        %v3820 = vpop.f32.mrb[0].mxu0
        %v3821 = vadd.f32 %v711, %v3820
        %v3822 = vpop.f32.mrb[0].mxu0
        %3823 = vmatprep.mubr.f32.mxu0 0.0
        %3824 = vmatmul.mubr.f32.gmra.mrb[0].mxu0 %v1618
        %v3825 = vpop.f32.mrb[0].mxu0
        %v3826 = vadd.f32 %v711, %v3825
        %v3827 = vpop.f32.mrb[0].mxu0
        %3828 = vmatprep.mubr.f32.mxu0 0.0
        %3829 = vmatmul.mubr.f32.gmra.mrb[0].mxu0 %v1621
        %v3830 = vpop.f32.mrb[0].mxu0
        %v3831 = vadd.f32 %v711, %v3830
        %v3832 = vpop.f32.mrb[0].mxu0
        %3833 = vmatprep.mubr.f32.mxu0 0.0
        %3834 = vmatmul.mubr.f32.gmra.mrb[0].mxu0 %v1624
        %v3835 = vpop.f32.mrb[0].mxu0
        %v3836 = vadd.f32 %v711, %v3835
        %v3837 = vpop.f32.mrb[0].mxu0
        %3838 = vmatprep.mubr.f32.mxu0 0.0
        %3839 = vmatmul.mubr.f32.gmra.mrb[0].mxu0 %v1627
        %v3840 = vpop.f32.mrb[0].mxu0
        %v3841 = vadd.f32 %v711, %v3840
        %v3842 = vpop.f32.mrb[0].mxu0
        %3843 = vmatprep.mubr.f32.mxu0 0.0
        %3844 = vmatmul.mubr.f32.gmra.mrb[0].mxu0 %v1630
        %v3845 = vpop.f32.mrb[0].mxu0
        %v3846 = vadd.f32 %v711, %v3845
        %v3847 = vpop.f32.mrb[0].mxu0
        %3848 = vmatprep.mubr.f32.mxu0 0.0
        %3849 = vmatmul.mubr.f32.gmra.mrb[0].mxu0 %v1633
        %v3850 = vpop.f32.mrb[0].mxu0
        %v3851 = vadd.f32 %v711, %v3850
        %v3852 = vpop.f32.mrb[0].mxu0
        %3853 = vmatprep.mubr.f32.mxu0 0.0
        %3854 = vmatmul.mubr.f32.gmra.mrb[0].mxu0 %v1636
        %v3855 = vpop.f32.mrb[0].mxu0
        %v3856 = vadd.f32 %v711, %v3855
        %v3857 = vpop.f32.mrb[0].mxu0
        %3858 = vmatprep.mubr.f32.mxu0 0.0
        %3859 = vmatmul.mubr.f32.gmra.mrb[0].mxu0 %v1639
        %v3860 = vpop.f32.mrb[0].mxu0
        %v3861 = vadd.f32 %v711, %v3860
        %v3862 = vpop.f32.mrb[0].mxu0
        %3863 = vmatprep.mubr.f32.mxu0 0.0
        %3864 = vmatmul.mubr.f32.gmra.mrb[0].mxu0 %v1642
        %v3865 = vpop.f32.mrb[0].mxu0
        %v3866 = vadd.f32 %v711, %v3865
        %v3867 = vpop.f32.mrb[0].mxu0
        %3868 = vmatprep.mubr.f32.mxu0 0.0
        %3869 = vmatmul.mubr.f32.gmra.mrb[0].mxu0 %v1645
        %v3870 = vpop.f32.mrb[0].mxu0
        %v3871 = vadd.f32 %v711, %v3870
        %v3872 = vpop.f32.mrb[0].mxu0
        %3873 = vmatprep.mubr.f32.mxu0 0.0
        %3874 = vmatmul.mubr.f32.gmra.mrb[0].mxu0 %v1648
        %v3875 = vpop.f32.mrb[0].mxu0
        %v3876 = vadd.f32 %v711, %v3875
        %v3877 = vpop.f32.mrb[0].mxu0
        %3878 = vmatprep.mubr.f32.mxu0 0.0
        %3879 = vmatmul.mubr.f32.gmra.mrb[0].mxu0 %v1651
        %v3880 = vpop.f32.mrb[0].mxu0
        %v3881 = vadd.f32 %v711, %v3880
        %v3882 = vpop.f32.mrb[0].mxu0
        %3883 = vmatprep.mubr.f32.mxu0 0.0
        %3884 = vmatmul.mubr.f32.gmra.mrb[0].mxu0 %v1654
        %v3885 = vpop.f32.mrb[0].mxu0
        %v3886 = vadd.f32 %v711, %v3885
        %v3887 = vpop.f32.mrb[0].mxu0
        %3888 = vmatprep.mubr.f32.mxu0 0.0
        %3889 = vmatmul.mubr.f32.gmra.mrb[0].mxu0 %v1657
        %v3890 = vpop.f32.mrb[0].mxu0
        %v3891 = vadd.f32 %v711, %v3890
        %v3892 = vpop.f32.mrb[0].mxu0
        %3893 = vmatprep.mubr.f32.mxu0 0.0
        %3894 = vmatmul.mubr.f32.gmra.mrb[0].mxu0 %v1660
        %v3895 = vpop.f32.mrb[0].mxu0
        %v3896 = vadd.f32 %v711, %v3895
        %v3897 = vpop.f32.mrb[0].mxu0
        %3898 = vmatprep.mubr.f32.mxu0 0.0
        %3899 = vmatmul.mubr.f32.gmra.mrb[0].mxu0 %v1663
        %v3900 = vpop.f32.mrb[0].mxu0
        %v3901 = vadd.f32 %v711, %v3900
        %v3902 = vpop.f32.mrb[0].mxu0
        %3903 = vmatprep.mubr.f32.mxu0 0.0
        %3904 = vmatmul.mubr.f32.gmra.mrb[0].mxu0 %v1666
        %v3905 = vpop.f32.mrb[0].mxu0
        %v3906 = vadd.f32 %v711, %v3905
        %v3907 = vpop.f32.mrb[0].mxu0
        %3908 = vmatprep.mubr.f32.mxu0 0.0
        %3909 = vmatmul.mubr.f32.gmra.mrb[0].mxu0 %v1669
        %v3910 = vpop.f32.mrb[0].mxu0
        %v3911 = vadd.f32 %v711, %v3910
        %v3912 = vpop.f32.mrb[0].mxu0
        %3913 = vmatprep.mubr.f32.mxu0 0.0
        %3914 = vmatmul.mubr.f32.gmra.mrb[0].mxu0 %v1672
        %v3915 = vpop.f32.mrb[0].mxu0
        %v3916 = vadd.f32 %v711, %v3915
        %v3917 = vpop.f32.mrb[0].mxu0
        %3918 = vmatprep.mubr.f32.mxu0 0.0
        %3919 = vmatmul.mubr.f32.gmra.mrb[0].mxu0 %v1675
        %v3920 = vpop.f32.mrb[0].mxu0
        %v3921 = vadd.f32 %v711, %v3920
        %v3922 = vpop.f32.mrb[0].mxu0
        %3923 = vmatprep.mubr.f32.mxu0 0.0
        %3924 = vmatmul.mubr.f32.gmra.mrb[0].mxu0 %v1678
        %v3925 = vpop.f32.mrb[0].mxu0
        %v3926 = vadd.f32 %v711, %v3925
        %v3927 = vpop.f32.mrb[0].mxu0
        %3928 = vmatprep.mubr.f32.mxu0 0.0
        %3929 = vmatmul.mubr.f32.gmra.mrb[0].mxu0 %v1681
        %v3930 = vpop.f32.mrb[0].mxu0
        %v3931 = vadd.f32 %v711, %v3930
        %v3932 = vpop.f32.mrb[0].mxu0
        %3933 = vmatprep.mubr.f32.mxu0 0.0
        %3934 = vmatmul.mubr.f32.gmra.mrb[0].mxu0 %v1684
        %v3935 = vpop.f32.mrb[0].mxu0
        %v3936 = vadd.f32 %v711, %v3935
        %v3937 = vpop.f32.mrb[0].mxu0
        %3938 = vmatprep.mubr.f32.mxu0 0.0
        %3939 = vmatmul.mubr.f32.gmra.mrb[0].mxu0 %v1687
        %v3940 = vpop.f32.mrb[0].mxu0
        %v3941 = vadd.f32 %v711, %v3940
        %v3942 = vpop.f32.mrb[0].mxu0
        %3943 = vmatprep.mubr.f32.mxu0 0.0
        %3944 = vmatmul.mubr.f32.gmra.mrb[0].mxu0 %v1690
        %v3945 = vpop.f32.mrb[0].mxu0
        %v3946 = vadd.f32 %v711, %v3945
        %v3947 = vpop.f32.mrb[0].mxu0
        %3948 = vmatprep.mubr.f32.mxu0 0.0
        %3949 = vmatmul.mubr.f32.gmra.mrb[0].mxu0 %v1693
        %v3950 = vpop.f32.mrb[0].mxu0
        %v3951 = vadd.f32 %v711, %v3950
        %v3952 = vpop.f32.mrb[0].mxu0
        %3953 = vmatprep.mubr.f32.mxu0 0.0
        %3954 = vmatmul.mubr.f32.gmra.mrb[0].mxu0 %v1696
        %v3955 = vpop.f32.mrb[0].mxu0
        %v3956 = vadd.f32 %v711, %v3955
        %v3957 = vpop.f32.mrb[0].mxu0
        %3958 = vmatprep.mubr.f32.mxu0 0.0
        %3959 = vmatmul.mubr.f32.gmra.mrb[0].mxu0 %v1699
        %v3960 = vpop.f32.mrb[0].mxu0
        %v3961 = vadd.f32 %v711, %v3960
        %v3962 = vpop.f32.mrb[0].mxu0
        %3963 = vmatprep.mubr.f32.mxu0 0.0
        %3964 = vmatmul.mubr.f32.gmra.mrb[0].mxu0 %v1702
        %v3965 = vpop.f32.mrb[0].mxu0
        %v3966 = vadd.f32 %v711, %v3965
        %v3967 = vpop.f32.mrb[0].mxu0
        %3968 = vmatprep.mubr.f32.mxu0 0.0
        %3969 = vmatmul.mubr.f32.gmra.mrb[0].mxu0 %v1705
        %v3970 = vpop.f32.mrb[0].mxu0
        %v3971 = vadd.f32 %v711, %v3970
        %v3972 = vpop.f32.mrb[0].mxu0
        %3973 = vmatprep.mubr.f32.mxu0 0.0
        %3974 = vmatmul.mubr.f32.gmra.mrb[0].mxu0 %v1708
        %v3975 = vpop.f32.mrb[0].mxu0
        %v3976 = vadd.f32 %v711, %v3975
        %v3977 = vpop.f32.mrb[0].mxu0
        %3978 = vmatprep.mubr.f32.mxu0 0.0
        %3979 = vmatmul.mubr.f32.gmra.mrb[0].mxu0 %v1711
        %v3980 = vpop.f32.mrb[0].mxu0
        %v3981 = vadd.f32 %v711, %v3980
        %v3982 = vpop.f32.mrb[0].mxu0
        %3983 = vmatprep.mubr.f32.mxu0 0.0
        %3984 = vmatmul.mubr.f32.gmra.mrb[0].mxu0 %v1714
        %v3985 = vpop.f32.mrb[0].mxu0
        %v3986 = vadd.f32 %v711, %v3985
        %v3987 = vpop.f32.mrb[0].mxu0
        %3988 = vmatprep.mubr.f32.mxu0 0.0
        %3989 = vmatmul.mubr.f32.gmra.mrb[0].mxu0 %v1717
        %v3990 = vpop.f32.mrb[0].mxu0
        %v3991 = vadd.f32 %v711, %v3990
        %v3992 = vpop.f32.mrb[0].mxu0
        %3993 = vmatprep.mubr.f32.mxu0 0.0
        %3994 = vmatmul.mubr.f32.gmra.mrb[0].mxu0 %v1720
        %v3995 = vpop.f32.mrb[0].mxu0
        %v3996 = vadd.f32 %v711, %v3995
        %v3997 = vpop.f32.mrb[0].mxu0
        %3998 = vmatprep.mubr.f32.mxu0 0.0
        %3999 = vmatmul.mubr.f32.gmra.mrb[0].mxu0 %v1723
        %v4000 = vpop.f32.mrb[0].mxu0
        %v4001 = vadd.f32 %v711, %v4000
        %v4002 = vpop.f32.mrb[0].mxu0
        %4003 = vmatprep.mubr.f32.mxu0 0.0
        %4004 = vmatmul.mubr.f32.gmra.mrb[0].mxu0 %v1726
        %v4005 = vpop.f32.mrb[0].mxu0
        %v4006 = vadd.f32 %v711, %v4005
        %v4007 = vpop.f32.mrb[0].mxu0
        %4008 = vmatprep.mubr.f32.mxu0 0.0
        %4009 = vmatmul.mubr.f32.gmra.mrb[0].mxu0 %v1729
        %v4010 = vpop.f32.mrb[0].mxu0
        %v4011 = vadd.f32 %v711, %v4010
        %v4012 = vpop.f32.mrb[0].mxu0
        %4013 = vmatprep.mubr.f32.mxu0 0.0
        %4014 = vmatmul.mubr.f32.gmra.mrb[0].mxu0 %v1732
        %v4015 = vpop.f32.mrb[0].mxu0
        %v4016 = vadd.f32 %v711, %v4015
        %v4017 = vpop.f32.mrb[0].mxu0
        %4018 = vmatprep.mubr.f32.mxu0 0.0
        %4019 = vmatmul.mubr.f32.gmra.mrb[0].mxu0 %v1735
        %v4020 = vpop.f32.mrb[0].mxu0
        %v4021 = vadd.f32 %v711, %v4020
        %v4022 = vpop.f32.mrb[0].mxu0
        %4023 = vmatprep.mubr.f32.mxu0 0.0
        %4024 = vmatmul.mubr.f32.gmra.mrb[0].mxu0 %v1738
        %v4025 = vpop.f32.mrb[0].mxu0
        %v4026 = vadd.f32 %v711, %v4025
        %v4027 = vpop.f32.mrb[0].mxu0
        %4028 = vmatprep.mubr.f32.mxu0 0.0
        %4029 = vmatmul.mubr.f32.gmra.mrb[0].mxu0 %v1741
        %v4030 = vpop.f32.mrb[0].mxu0
        %v4031 = vadd.f32 %v711, %v4030
        %v4032 = vpop.f32.mrb[0].mxu0
        %4033 = vmatprep.mubr.f32.mxu0 0.0
        %4034 = vmatmul.mubr.f32.gmra.mrb[0].mxu0 %v1744
        %v4035 = vpop.f32.mrb[0].mxu0
        %v4036 = vadd.f32 %v711, %v4035
        %v4037 = vpop.f32.mrb[0].mxu0
        %4038 = vmatprep.mubr.f32.mxu0 0.0
        %4039 = vmatmul.mubr.f32.gmra.mrb[0].mxu0 %v1747
        %v4040 = vpop.f32.mrb[0].mxu0
        %v4041 = vadd.f32 %v711, %v4040
        %v4042 = vpop.f32.mrb[0].mxu0
        %4043 = vmatprep.mubr.f32.mxu0 0.0
        %4044 = vmatmul.mubr.f32.gmra.mrb[0].mxu0 %v1750
        %v4045 = vpop.f32.mrb[0].mxu0
        %v4046 = vadd.f32 %v711, %v4045
        %v4047 = vpop.f32.mrb[0].mxu0
        %4048 = vmatprep.mubr.f32.mxu0 0.0
        %4049 = vmatmul.mubr.f32.gmra.mrb[0].mxu0 %v1753
        %v4050 = vpop.f32.mrb[0].mxu0
        %v4051 = vadd.f32 %v711, %v4050
        %v4052 = vpop.f32.mrb[0].mxu0
        %4053 = vmatprep.mubr.f32.mxu0 0.0
        %4054 = vmatmul.mubr.f32.gmra.mrb[0].mxu0 %v1756
        %v4055 = vpop.f32.mrb[0].mxu0
        %v4056 = vadd.f32 %v711, %v4055
        %v4057 = vpop.f32.mrb[0].mxu0
        %4058 = vmatprep.mubr.f32.mxu0 0.0
        %4059 = vmatmul.mubr.f32.gmra.mrb[0].mxu0 %v1759
        %v4060 = vpop.f32.mrb[0].mxu0
        %v4061 = vadd.f32 %v711, %v4060
        %v4062 = vpop.f32.mrb[0].mxu0
        %4063 = vmatprep.mubr.f32.mxu0 0.0
        %4064 = vmatmul.mubr.f32.gmra.mrb[0].mxu0 %v1762
        %v4065 = vpop.f32.mrb[0].mxu0
        %v4066 = vadd.f32 %v711, %v4065
        %v4067 = vpop.f32.mrb[0].mxu0
        %4068 = vmatprep.mubr.f32.mxu0 0.0
        %4069 = vmatmul.mubr.f32.gmra.mrb[0].mxu0 %v1765
        %v4070 = vpop.f32.mrb[0].mxu0
        %v4071 = vadd.f32 %v711, %v4070
        %v4072 = vpop.f32.mrb[0].mxu0
        %4073 = vmatprep.mubr.f32.mxu0 0.0
        %4074 = vmatmul.mubr.f32.gmra.mrb[0].mxu0 %v1768
        %v4075 = vpop.f32.mrb[0].mxu0
        %v4076 = vadd.f32 %v711, %v4075
        %v4077 = vpop.f32.mrb[0].mxu0
        %4078 = vmatprep.mubr.f32.mxu0 0.0
        %4079 = vmatmul.mubr.f32.gmra.mrb[0].mxu0 %v1771
        %v4080 = vpop.f32.mrb[0].mxu0
        %v4081 = vadd.f32 %v711, %v4080
        %v4082 = vpop.f32.mrb[0].mxu0
        %4083 = vmatprep.mubr.f32.mxu0 0.0
        %4084 = vmatmul.mubr.f32.gmra.mrb[0].mxu0 %v1774
        %v4085 = vpop.f32.mrb[0].mxu0
        %v4086 = vadd.f32 %v711, %v4085
        %v4087 = vpop.f32.mrb[0].mxu0
        %4088 = vmatprep.mubr.f32.mxu0 0.0
        %4089 = vmatmul.mubr.f32.gmra.mrb[0].mxu0 %v1777
        %v4090 = vpop.f32.mrb[0].mxu0
        %v4091 = vadd.f32 %v711, %v4090
        %v4092 = vpop.f32.mrb[0].mxu0
        %4093 = vmatprep.mubr.f32.mxu0 0.0
        %4094 = vmatmul.mubr.f32.gmra.mrb[0].mxu0 %v1780
        %v4095 = vpop.f32.mrb[0].mxu0
        %v4096 = vadd.f32 %v711, %v4095
        %v4097 = vpop.f32.mrb[0].mxu0
        %4098 = vmatprep.mubr.f32.mxu0 0.0
        %4099 = vmatmul.mubr.f32.gmra.mrb[0].mxu0 %v1783
        %v4100 = vpop.f32.mrb[0].mxu0
        %v4101 = vadd.f32 %v711, %v4100
        %v4102 = vpop.f32.mrb[0].mxu0
        %4103 = vmatprep.mubr.f32.mxu0 0.0
        %4104 = vmatmul.mubr.f32.gmra.mrb[0].mxu0 %v1786
        %v4105 = vpop.f32.mrb[0].mxu0
        %v4106 = vadd.f32 %v711, %v4105
        %v4107 = vpop.f32.mrb[0].mxu0
        %4108 = vmatprep.mubr.f32.mxu0 0.0
        %4109 = vmatmul.mubr.f32.gmra.mrb[0].mxu0 %v1789
        %v4110 = vpop.f32.mrb[0].mxu0
        %v4111 = vadd.f32 %v711, %v4110
        %v4112 = vpop.f32.mrb[0].mxu0
        %4113 = vmatprep.mubr.f32.mxu0 0.0
        %4114 = vmatmul.mubr.f32.gmra.mrb[0].mxu0 %v1792
        %v4115 = vpop.f32.mrb[0].mxu0
        %v4116 = vadd.f32 %v711, %v4115
        %v4117 = vpop.f32.mrb[0].mxu0
        %4118 = vmatprep.mubr.f32.mxu0 0.0
        %4119 = vmatmul.mubr.f32.gmra.mrb[0].mxu0 %v1795
        %v4120 = vpop.f32.mrb[0].mxu0
        %v4121 = vadd.f32 %v711, %v4120
        %v4122 = vpop.f32.mrb[0].mxu0
        %4123 = vmatprep.mubr.f32.mxu0 0.0
        %4124 = vmatmul.mubr.f32.gmra.mrb[0].mxu0 %v1798
        %v4125 = vpop.f32.mrb[0].mxu0
        %v4126 = vadd.f32 %v711, %v4125
        %v4127 = vpop.f32.mrb[0].mxu0
        %4128 = vmatprep.mubr.f32.mxu0 0.0
        %4129 = vmatmul.mubr.f32.gmra.mrb[0].mxu0 %v1801
        %v4130 = vpop.f32.mrb[0].mxu0
        %v4131 = vadd.f32 %v711, %v4130
        %v4132 = vpop.f32.mrb[0].mxu0
        %4133 = vmatprep.mubr.f32.mxu0 0.0
        %4134 = vmatmul.mubr.f32.gmra.mrb[0].mxu0 %v1804
        %v4135 = vpop.f32.mrb[0].mxu0
        %v4136 = vadd.f32 %v711, %v4135
        %v4137 = vpop.f32.mrb[0].mxu0
        %4138 = vmatprep.mubr.f32.mxu0 0.0
        %4139 = vmatmul.mubr.f32.gmra.mrb[0].mxu0 %v1807
        %v4140 = vpop.f32.mrb[0].mxu0
        %v4141 = vadd.f32 %v711, %v4140
        %v4142 = vpop.f32.mrb[0].mxu0
        %4143 = vmatprep.mubr.f32.mxu0 0.0
        %4144 = vmatmul.mubr.f32.gmra.mrb[0].mxu0 %v1810
        %v4145 = vpop.f32.mrb[0].mxu0
        %v4146 = vadd.f32 %v711, %v4145
        %v4147 = vpop.f32.mrb[0].mxu0
        %4148 = vmatprep.mubr.f32.mxu0 0.0
        %4149 = vmatmul.mubr.f32.gmra.mrb[0].mxu0 %v1813
        %v4150 = vpop.f32.mrb[0].mxu0
        %v4151 = vadd.f32 %v711, %v4150
        %v4152 = vpop.f32.mrb[0].mxu0
        %4153 = vmatprep.mubr.f32.mxu0 0.0
        %4154 = vmatmul.mubr.f32.gmra.mrb[0].mxu0 %v1816
        %v4155 = vpop.f32.mrb[0].mxu0
        %v4156 = vadd.f32 %v711, %v4155
        %v4157 = vpop.f32.mrb[0].mxu0
        %4158 = vmatprep.mubr.f32.mxu0 0.0
        %4159 = vmatmul.mubr.f32.gmra.mrb[0].mxu0 %v1819
        %v4160 = vpop.f32.mrb[0].mxu0
        %v4161 = vadd.f32 %v711, %v4160
        %v4162 = vpop.f32.mrb[0].mxu0
        %4163 = vmatprep.mubr.f32.mxu0 0.0
        %4164 = vmatmul.mubr.f32.gmra.mrb[0].mxu0 %v1822
        %v4165 = vpop.f32.mrb[0].mxu0
        %v4166 = vadd.f32 %v711, %v4165
        %v4167 = vpop.f32.mrb[0].mxu0
        %4168 = vmatprep.mubr.f32.mxu0 0.0
        %4169 = vmatmul.mubr.f32.gmra.mrb[0].mxu0 %v1825
        %v4170 = vpop.f32.mrb[0].mxu0
        %v4171 = vadd.f32 %v711, %v4170
        %v4172 = vpop.f32.mrb[0].mxu0
        %4173 = vmatprep.mubr.f32.mxu0 0.0
        %4174 = vmatmul.mubr.f32.gmra.mrb[0].mxu0 %v1828
        %v4175 = vpop.f32.mrb[0].mxu0
        %v4176 = vadd.f32 %v711, %v4175
        %v4177 = vpop.f32.mrb[0].mxu0
        %4178 = vmatprep.mubr.f32.mxu0 0.0
        %4179 = vmatmul.mubr.f32.gmra.mrb[0].mxu0 %v1831
        %v4180 = vpop.f32.mrb[0].mxu0
        %v4181 = vadd.f32 %v711, %v4180
        %v4182 = vpop.f32.mrb[0].mxu0
        %4183 = vmatprep.mubr.f32.mxu0 0.0
        %4184 = vmatmul.mubr.f32.gmra.mrb[0].mxu0 %v1834
        %v4185 = vpop.f32.mrb[0].mxu0
        %v4186 = vadd.f32 %v711, %v4185
        %v4187 = vpop.f32.mrb[0].mxu0
        %4188 = vmatprep.mubr.f32.mxu0 0.0
        %4189 = vmatmul.mubr.f32.gmra.mrb[0].mxu0 %v1837
        %v4190 = vpop.f32.mrb[0].mxu0
        %v4191 = vadd.f32 %v711, %v4190
        %v4192 = vpop.f32.mrb[0].mxu0
        %4193 = vmatprep.mubr.f32.mxu0 0.0
        %4194 = vmatmul.mubr.f32.gmra.mrb[0].mxu0 %v1840
        %v4195 = vpop.f32.mrb[0].mxu0
        %v4196 = vadd.f32 %v711, %v4195
        %v4197 = vpop.f32.mrb[0].mxu0
        %4198 = vmatprep.mubr.f32.mxu0 0.0
        %4199 = vmatmul.mubr.f32.gmra.mrb[0].mxu0 %v1843
        %v4200 = vpop.f32.mrb[0].mxu0
        %v4201 = vadd.f32 %v711, %v4200
        %v4202 = vpop.f32.mrb[0].mxu0
        %4203 = vmatprep.mubr.f32.mxu0 0.0
        %4204 = vmatmul.mubr.f32.gmra.mrb[0].mxu0 %v1846
        %v4205 = vpop.f32.mrb[0].mxu0
        %v4206 = vadd.f32 %v711, %v4205
        %v4207 = vpop.f32.mrb[0].mxu0
        %4208 = vmatprep.mubr.f32.mxu0 0.0
        %4209 = vmatmul.mubr.f32.gmra.mrb[0].mxu0 %v1849
        %v4210 = vpop.f32.mrb[0].mxu0
        %v4211 = vadd.f32 %v711, %v4210
        %v4212 = vpop.f32.mrb[0].mxu0
        %4213 = vmatprep.mubr.f32.mxu0 0.0
        %4214 = vmatmul.mubr.f32.gmra.mrb[0].mxu0 %v1852
        %v4215 = vpop.f32.mrb[0].mxu0
        %v4216 = vadd.f32 %v711, %v4215
        %v4217 = vpop.f32.mrb[0].mxu0
        %4218 = vmatprep.mubr.f32.mxu0 0.0
        %4219 = vmatmul.mubr.f32.gmra.mrb[0].mxu0 %v1855
        %v4220 = vpop.f32.mrb[0].mxu0
        %v4221 = vadd.f32 %v711, %v4220
        %v4222 = vpop.f32.mrb[0].mxu0
        %4223 = vmatprep.mubr.f32.mxu0 0.0
        %4224 = vmatmul.mubr.f32.gmra.mrb[0].mxu0 %v1858
        %v4225 = vpop.f32.mrb[0].mxu0
        %v4226 = vadd.f32 %v711, %v4225
        %v4227 = vpop.f32.mrb[0].mxu0
        %4228 = vmatprep.mubr.f32.mxu0 0.0
        %4229 = vmatmul.mubr.f32.gmra.mrb[0].mxu0 %v1861
        %v4230 = vpop.f32.mrb[0].mxu0
        %v4231 = vadd.f32 %v711, %v4230
        %v4232 = vpop.f32.mrb[0].mxu0
        %4233 = vmatprep.mubr.f32.mxu0 0.0
        %4234 = vmatmul.mubr.f32.gmra.mrb[0].mxu0 %v1864
        %v4235 = vpop.f32.mrb[0].mxu0
        %v4236 = vadd.f32 %v711, %v4235
        %v4237 = vpop.f32.mrb[0].mxu0
        %4238 = vmatprep.mubr.f32.mxu0 0.0
        %4239 = vmatmul.mubr.f32.gmra.mrb[0].mxu0 %v1867
        %v4240 = vpop.f32.mrb[0].mxu0
        %v4241 = vadd.f32 %v711, %v4240
        %v4242 = vpop.f32.mrb[0].mxu0
        %4243 = vmatprep.mubr.f32.mxu0 0.0
        %4244 = vmatmul.mubr.f32.gmra.mrb[0].mxu0 %v1870
        %v4245 = vpop.f32.mrb[0].mxu0
        %v4246 = vadd.f32 %v711, %v4245
        %v4247 = vpop.f32.mrb[0].mxu0
        %4248 = vmatprep.mubr.f32.mxu0 0.0
        %4249 = vmatmul.mubr.f32.gmra.mrb[0].mxu0 %v1873
        %v4250 = vpop.f32.mrb[0].mxu0
        %v4251 = vadd.f32 %v711, %v4250
        %v4252 = vpop.f32.mrb[0].mxu0
        %4253 = vmatprep.mubr.f32.mxu0 0.0
        %4254 = vmatmul.mubr.f32.gmra.mrb[0].mxu0 %v1876
        %v4255 = vpop.f32.mrb[0].mxu0
        %v4256 = vadd.f32 %v711, %v4255
        %v4257 = vpop.f32.mrb[0].mxu0
        %4258 = vmatprep.mubr.f32.mxu0 0.0
        %4259 = vmatmul.mubr.f32.gmra.mrb[0].mxu0 %v1879
        %v4260 = vpop.f32.mrb[0].mxu0
        %v4261 = vadd.f32 %v711, %v4260
        %v4262 = vpop.f32.mrb[0].mxu0
        %4263 = vmatprep.mubr.f32.mxu0 0.0
        %4264 = vmatmul.mubr.f32.gmra.mrb[0].mxu0 %v1882
        %v4265 = vpop.f32.mrb[0].mxu0
        %v4266 = vadd.f32 %v711, %v4265
        %v4267 = vpop.f32.mrb[0].mxu0
        %4268 = vmatprep.mubr.f32.mxu0 0.0
        %4269 = vmatmul.mubr.f32.gmra.mrb[0].mxu0 %v1885
        %v4270 = vpop.f32.mrb[0].mxu0
        %v4271 = vadd.f32 %v711, %v4270
        %v4272 = vpop.f32.mrb[0].mxu0
        %4273 = vmatprep.mubr.f32.mxu0 0.0
        %4274 = vmatmul.mubr.f32.gmra.mrb[0].mxu0 %v1888
        %v4275 = vpop.f32.mrb[0].mxu0
        %v4276 = vadd.f32 %v711, %v4275
        %v4277 = vpop.f32.mrb[0].mxu0
        %4278 = vmatprep.mubr.f32.mxu0 0.0
        %4279 = vmatmul.mubr.f32.gmra.mrb[0].mxu0 %v1891
        %v4280 = vpop.f32.mrb[0].mxu0
        %v4281 = vadd.f32 %v711, %v4280
        %v4282 = vpop.f32.mrb[0].mxu0
        %4283 = vmatprep.mubr.f32.mxu0 0.0
        %4284 = vmatmul.mubr.f32.gmra.mrb[0].mxu0 %v1894
        %v4285 = vpop.f32.mrb[0].mxu0
        %v4286 = vadd.f32 %v711, %v4285
        %v4287 = vpop.f32.mrb[0].mxu0
        %4288 = vmatprep.mubr.f32.mxu0 0.0
        %4289 = vmatmul.mubr.f32.gmra.mrb[0].mxu0 %v1897
        %v4290 = vpop.f32.mrb[0].mxu0
        %v4291 = vadd.f32 %v711, %v4290
        %v4292 = vpop.f32.mrb[0].mxu0
        %4293 = vmatprep.mubr.f32.mxu0 0.0
        %4294 = vmatmul.mubr.f32.gmra.mrb[0].mxu0 %v1900
        %v4295 = vpop.f32.mrb[0].mxu0
        %v4296 = vadd.f32 %v711, %v4295
        %v4297 = vpop.f32.mrb[0].mxu0
        %4298 = vmatprep.mubr.f32.mxu0 0.0
        %4299 = vmatmul.mubr.f32.gmra.mrb[0].mxu0 %v1903
        %v4300 = vpop.f32.mrb[0].mxu0
        %v4301 = vadd.f32 %v711, %v4300
        %v4302 = vpop.f32.mrb[0].mxu0
        %4303 = vmatprep.mubr.f32.mxu0 0.0
        %4304 = vmatmul.mubr.f32.gmra.mrb[0].mxu0 %v1906
        %v4305 = vpop.f32.mrb[0].mxu0
        %v4306 = vadd.f32 %v711, %v4305
        %v4307 = vpop.f32.mrb[0].mxu0
        %4308 = vmatprep.mubr.f32.mxu0 0.0
        %4309 = vmatmul.mubr.f32.gmra.mrb[0].mxu0 %v1909
        %v4310 = vpop.f32.mrb[0].mxu0
        %v4311 = vadd.f32 %v711, %v4310
        %v4312 = vpop.f32.mrb[0].mxu0
        %4313 = vmatprep.mubr.f32.mxu0 0.0
        %4314 = vmatmul.mubr.f32.gmra.mrb[0].mxu0 %v1912
        %v4315 = vpop.f32.mrb[0].mxu0
        %v4316 = vadd.f32 %v711, %v4315
        %v4317 = vpop.f32.mrb[0].mxu0
        %4318 = vmatprep.mubr.f32.mxu0 0.0
        %4319 = vmatmul.mubr.f32.gmra.mrb[0].mxu0 %v1915
        %v4320 = vpop.f32.mrb[0].mxu0
        %v4321 = vadd.f32 %v711, %v4320
        %v4322 = vpop.f32.mrb[0].mxu0
        %4323 = vmatprep.mubr.f32.mxu0 0.0
        %4324 = vmatmul.mubr.f32.gmra.mrb[0].mxu0 %v1918
        %v4325 = vpop.f32.mrb[0].mxu0
        %v4326 = vadd.f32 %v711, %v4325
        %v4327 = vpop.f32.mrb[0].mxu0
        %4328 = vmatprep.mubr.f32.mxu0 0.0
        %4329 = vmatmul.mubr.f32.gmra.mrb[0].mxu0 %v1921
        %v4330 = vpop.f32.mrb[0].mxu0
        %v4331 = vadd.f32 %v711, %v4330
        %v4332 = vpop.f32.mrb[0].mxu0
        %4333 = vmatprep.mubr.f32.mxu0 0.0
        %4334 = vmatmul.mubr.f32.gmra.mrb[0].mxu0 %v1924
        %v4335 = vpop.f32.mrb[0].mxu0
        %v4336 = vadd.f32 %v711, %v4335
        %v4337 = vpop.f32.mrb[0].mxu0
        %4338 = vmatprep.mubr.f32.mxu0 0.0
        %4339 = vmatmul.mubr.f32.gmra.mrb[0].mxu0 %v1927
        %v4340 = vpop.f32.mrb[0].mxu0
        %v4341 = vadd.f32 %v711, %v4340
        %v4342 = vpop.f32.mrb[0].mxu0
        %4343 = vmatprep.mubr.f32.mxu0 0.0
        %4344 = vmatmul.mubr.f32.gmra.mrb[0].mxu0 %v1930
        %v4345 = vpop.f32.mrb[0].mxu0
        %v4346 = vadd.f32 %v711, %v4345
        %v4347 = vpop.f32.mrb[0].mxu0
        %4348 = vmatprep.mubr.f32.mxu0 0.0
        %4349 = vmatmul.mubr.f32.gmra.mrb[0].mxu0 %v1933
        %v4350 = vpop.f32.mrb[0].mxu0
        %v4351 = vadd.f32 %v711, %v4350
        %v4352 = vpop.f32.mrb[0].mxu0
        %4353 = vmatprep.mubr.f32.mxu0 0.0
        %4354 = vmatmul.mubr.f32.gmra.mrb[0].mxu0 %v1936
        %v4355 = vpop.f32.mrb[0].mxu0
        %v4356 = vadd.f32 %v711, %v4355
        %v4357 = vpop.f32.mrb[0].mxu0
        %4358 = vmatprep.mubr.f32.mxu0 0.0
        %4359 = vmatmul.mubr.f32.gmra.mrb[0].mxu0 %v1939
        %v4360 = vpop.f32.mrb[0].mxu0
        %v4361 = vadd.f32 %v711, %v4360
        %v4362 = vpop.f32.mrb[0].mxu0
        %4363 = vmatprep.mubr.f32.mxu0 0.0
        %4364 = vmatmul.mubr.f32.gmra.mrb[0].mxu0 %v1942
        %v4365 = vpop.f32.mrb[0].mxu0
        %v4366 = vadd.f32 %v711, %v4365
        %v4367 = vpop.f32.mrb[0].mxu0
        %4368 = vmatprep.mubr.f32.mxu0 0.0
        %4369 = vmatmul.mubr.f32.gmra.mrb[0].mxu0 %v1945
        %v4370 = vpop.f32.mrb[0].mxu0
        %v4371 = vadd.f32 %v711, %v4370
        %v4372 = vpop.f32.mrb[0].mxu0
        %4373 = vmatprep.mubr.f32.mxu0 0.0
        %4374 = vmatmul.mubr.f32.gmra.mrb[0].mxu0 %v1948
        %v4375 = vpop.f32.mrb[0].mxu0
        %v4376 = vadd.f32 %v711, %v4375
        %v4377 = vpop.f32.mrb[0].mxu0
        %4378 = vmatprep.mubr.f32.mxu0 0.0
        %4379 = vmatmul.mubr.f32.gmra.mrb[0].mxu0 %v1951
        %v4380 = vpop.f32.mrb[0].mxu0
        %v4381 = vadd.f32 %v711, %v4380
        %v4382 = vpop.f32.mrb[0].mxu0
        %4383 = vmatprep.mubr.f32.mxu0 0.0
        %4384 = vmatmul.mubr.f32.gmra.mrb[0].mxu0 %v1954
        %v4385 = vpop.f32.mrb[0].mxu0
        %v4386 = vadd.f32 %v711, %v4385
        %v4387 = vpop.f32.mrb[0].mxu0
        %4388 = vmatprep.mubr.f32.mxu0 0.0
        %4389 = vmatmul.mubr.f32.gmra.mrb[0].mxu0 %v1957
        %v4390 = vpop.f32.mrb[0].mxu0
        %v4391 = vadd.f32 %v711, %v4390
        %v4392 = vpop.f32.mrb[0].mxu0
        %4393 = vmatprep.mubr.f32.mxu0 0.0
        %4394 = vmatmul.mubr.f32.gmra.mrb[0].mxu0 %v1960
        %v4395 = vpop.f32.mrb[0].mxu0
        %v4396 = vadd.f32 %v711, %v4395
        %v4397 = vpop.f32.mrb[0].mxu0
        %4398 = vmatprep.mubr.f32.mxu0 0.0
        %4399 = vmatmul.mubr.f32.gmra.mrb[0].mxu0 %v1963
        %v4400 = vpop.f32.mrb[0].mxu0
        %v4401 = vadd.f32 %v711, %v4400
        %v4402 = vpop.f32.mrb[0].mxu0
        %4403 = vmatprep.mubr.f32.mxu0 0.0
        %4404 = vmatmul.mubr.f32.gmra.mrb[0].mxu0 %v1966
        %v4405 = vpop.f32.mrb[0].mxu0
        %v4406 = vadd.f32 %v711, %v4405
        %v4407 = vpop.f32.mrb[0].mxu0
        %4408 = vmatprep.mubr.f32.mxu0 0.0
        %4409 = vmatmul.mubr.f32.gmra.mrb[0].mxu0 %v1969
        %v4410 = vpop.f32.mrb[0].mxu0
        %v4411 = vadd.f32 %v711, %v4410
        %v4412 = vpop.f32.mrb[0].mxu0
        %4413 = vmatprep.mubr.f32.mxu0 0.0
        %4414 = vmatmul.mubr.f32.gmra.mrb[0].mxu0 %v1972
        %v4415 = vpop.f32.mrb[0].mxu0
        %v4416 = vadd.f32 %v711, %v4415
        %v4417 = vpop.f32.mrb[0].mxu0
        %4418 = vmatprep.mubr.f32.mxu0 0.0
        %4419 = vmatmul.mubr.f32.gmra.mrb[0].mxu0 %v1975
        %v4420 = vpop.f32.mrb[0].mxu0
        %v4421 = vadd.f32 %v711, %v4420
        %v4422 = vpop.f32.mrb[0].mxu0
        %4423 = vmatprep.mubr.f32.mxu0 0.0
        %4424 = vmatmul.mubr.f32.gmra.mrb[0].mxu0 %v1978
        %v4425 = vpop.f32.mrb[0].mxu0
        %v4426 = vadd.f32 %v711, %v4425
        %v4427 = vpop.f32.mrb[0].mxu0
        %4428 = vmatprep.mubr.f32.mxu0 0.0
        %4429 = vmatmul.mubr.f32.gmra.mrb[0].mxu0 %v1981
        %v4430 = vpop.f32.mrb[0].mxu0
        %v4431 = vadd.f32 %v711, %v4430
        %v4432 = vpop.f32.mrb[0].mxu0
        %4433 = vmatprep.mubr.f32.mxu0 0.0
        %4434 = vmatmul.mubr.f32.gmra.mrb[0].mxu0 %v1984
        %v4435 = vpop.f32.mrb[0].mxu0
        %v4436 = vadd.f32 %v711, %v4435
        %v4437 = vpop.f32.mrb[0].mxu0
        %4438 = vmatprep.mubr.f32.mxu0 0.0
        %4439 = vmatmul.mubr.f32.gmra.mrb[0].mxu0 %v1987
        %v4440 = vpop.f32.mrb[0].mxu0
        %v4441 = vadd.f32 %v711, %v4440
        %v4442 = vpop.f32.mrb[0].mxu0
        %4443 = vmatprep.mubr.f32.mxu0 0.0
        %4444 = vmatmul.mubr.f32.gmra.mrb[0].mxu0 %v1990
        %v4445 = vpop.f32.mrb[0].mxu0
        %v4446 = vadd.f32 %v711, %v4445
        %v4447 = vpop.f32.mrb[0].mxu0
        %4448 = vmatprep.mubr.f32.mxu0 0.0
        %4449 = vmatmul.mubr.f32.gmra.mrb[0].mxu0 %v1993
        %v4450 = vpop.f32.mrb[0].mxu0
        %v4451 = vadd.f32 %v711, %v4450
        %v4452 = vpop.f32.mrb[0].mxu0
        %4453 = vmatprep.mubr.f32.mxu0 0.0
        %4454 = vmatmul.mubr.f32.gmra.mrb[0].mxu0 %v1996
        %v4455 = vpop.f32.mrb[0].mxu0
        %v4456 = vadd.f32 %v711, %v4455
        %v4457 = vpop.f32.mrb[0].mxu0
        %4458 = vmatprep.mubr.f32.mxu0 0.0
        %4459 = vmatmul.mubr.f32.gmra.mrb[0].mxu0 %v1999
        %v4460 = vpop.f32.mrb[0].mxu0
        %v4461 = vadd.f32 %v711, %v4460
        %v4462 = vpop.f32.mrb[0].mxu0
        %4463 = vmatprep.mubr.f32.mxu0 0.0
        %4464 = vmatmul.mubr.f32.gmra.mrb[0].mxu0 %v2002
        %v4465 = vpop.f32.mrb[0].mxu0
        %v4466 = vadd.f32 %v711, %v4465
        %v4467 = vpop.f32.mrb[0].mxu0
        %4468 = vmatprep.mubr.f32.mxu0 0.0
        %4469 = vmatmul.mubr.f32.gmra.mrb[0].mxu0 %v2005
        %v4470 = vpop.f32.mrb[0].mxu0
        %v4471 = vadd.f32 %v711, %v4470
        %v4472 = vpop.f32.mrb[0].mxu0
        %4473 = vmatprep.mubr.f32.mxu0 0.0
        %4474 = vmatmul.mubr.f32.gmra.mrb[0].mxu0 %v2008
        %v4475 = vpop.f32.mrb[0].mxu0
        %v4476 = vadd.f32 %v711, %v4475
        %v4477 = vpop.f32.mrb[0].mxu0
        %4478 = vmatprep.mubr.f32.mxu0 0.0
        %4479 = vmatmul.mubr.f32.gmra.mrb[0].mxu0 %v2011
        %v4480 = vpop.f32.mrb[0].mxu0
        %v4481 = vadd.f32 %v711, %v4480
        %v4482 = vpop.f32.mrb[0].mxu0
        %4483 = vmatprep.mubr.f32.mxu0 0.0
        %4484 = vmatmul.mubr.f32.gmra.mrb[0].mxu0 %v2014
        %v4485 = vpop.f32.mrb[0].mxu0
        %v4486 = vadd.f32 %v711, %v4485
        %v4487 = vpop.f32.mrb[0].mxu0
        %4488 = vmatprep.mubr.f32.mxu0 0.0
        %4489 = vmatmul.mubr.f32.gmra.mrb[0].mxu0 %v2017
        %v4490 = vpop.f32.mrb[0].mxu0
        %v4491 = vadd.f32 %v711, %v4490
        %v4492 = vpop.f32.mrb[0].mxu0
        %4493 = vmatprep.mubr.f32.mxu0 0.0
        %4494 = vmatmul.mubr.f32.gmra.mrb[0].mxu0 %v2020
        %v4495 = vpop.f32.mrb[0].mxu0
        %v4496 = vadd.f32 %v711, %v4495
        %v4497 = vpop.f32.mrb[0].mxu0
        %4498 = vmatprep.mubr.f32.mxu0 0.0
        %4499 = vmatmul.mubr.f32.gmra.mrb[0].mxu0 %v2023
        %v4500 = vpop.f32.mrb[0].mxu0
        %v4501 = vadd.f32 %v711, %v4500
        %v4502 = vpop.f32.mrb[0].mxu0
        %4503 = vmatprep.mubr.f32.mxu0 0.0
        %4504 = vmatmul.mubr.f32.gmra.mrb[0].mxu0 %v2026
        %v4505 = vpop.f32.mrb[0].mxu0
        %v4506 = vadd.f32 %v711, %v4505
        %v4507 = vpop.f32.mrb[0].mxu0
        %4508 = vmatprep.mubr.f32.mxu0 0.0
        %4509 = vmatmul.mubr.f32.gmra.mrb[0].mxu0 %v2029
        %v4510 = vpop.f32.mrb[0].mxu0
        %v4511 = vadd.f32 %v711, %v4510
        %v4512 = vpop.f32.mrb[0].mxu0
        %4513 = vmatprep.mubr.f32.mxu0 0.0
        %4514 = vmatmul.mubr.f32.gmra.mrb[0].mxu0 %v2032
        %v4515 = vpop.f32.mrb[0].mxu0
        %v4516 = vadd.f32 %v711, %v4515
        %v4517 = vpop.f32.mrb[0].mxu0
        %4518 = vmatprep.mubr.f32.mxu0 0.0
        %4519 = vmatmul.mubr.f32.gmra.mrb[0].mxu0 %v2035
        %v4520 = vpop.f32.mrb[0].mxu0
        %v4521 = vadd.f32 %v711, %v4520
        %v4522 = vpop.f32.mrb[0].mxu0
        %4523 = vmatprep.mubr.f32.mxu0 0.0
        %4524 = vmatmul.mubr.f32.gmra.mrb[0].mxu0 %v2038
        %v4525 = vpop.f32.mrb[0].mxu0
        %v4526 = vadd.f32 %v711, %v4525
        %v4527 = vpop.f32.mrb[0].mxu0
        %4528 = vmatprep.mubr.f32.mxu0 0.0
        %4529 = vmatmul.mubr.f32.gmra.mrb[0].mxu0 %v2041
        %v4530 = vpop.f32.mrb[0].mxu0
        %v4531 = vadd.f32 %v711, %v4530
        %v4532 = vpop.f32.mrb[0].mxu0
        %4533 = vmatprep.mubr.f32.mxu0 0.0
        %4534 = vmatmul.mubr.f32.gmra.mrb[0].mxu0 %v2044
        %v4535 = vpop.f32.mrb[0].mxu0
        %v4536 = vadd.f32 %v711, %v4535
        %v4537 = vpop.f32.mrb[0].mxu0
        %4538 = vmatprep.mubr.f32.mxu0 0.0
        %4539 = vmatmul.mubr.f32.gmra.mrb[0].mxu0 %v2047
        %v4540 = vpop.f32.mrb[0].mxu0
        %v4541 = vadd.f32 %v711, %v4540
        %v4542 = vpop.f32.mrb[0].mxu0
        %4543 = vmatprep.mubr.f32.mxu0 0.0
        %4544 = vmatmul.mubr.f32.gmra.mrb[0].mxu0 %v2050
        %v4545 = vpop.f32.mrb[0].mxu0
        %v4546 = vadd.f32 %v711, %v4545
        %v4547 = vpop.f32.mrb[0].mxu0
        %4548 = vmatprep.mubr.f32.mxu0 0.0
        %4549 = vmatmul.mubr.f32.gmra.mrb[0].mxu0 %v2053
        %v4550 = vpop.f32.mrb[0].mxu0
        %v4551 = vadd.f32 %v711, %v4550
        %v4552 = vpop.f32.mrb[0].mxu0
        %4553 = vmatprep.mubr.f32.mxu0 0.0
        %4554 = vmatmul.mubr.f32.gmra.mrb[0].mxu0 %v2056
        %v4555 = vpop.f32.mrb[0].mxu0
        %v4556 = vadd.f32 %v711, %v4555
        %v4557 = vpop.f32.mrb[0].mxu0
        %4558 = vmatprep.mubr.f32.mxu0 0.0
        %4559 = vmatmul.mubr.f32.gmra.mrb[0].mxu0 %v2059
        %v4560 = vpop.f32.mrb[0].mxu0
        %v4561 = vadd.f32 %v711, %v4560
        %v4562 = vpop.f32.mrb[0].mxu0
        %4563 = vmatprep.mubr.f32.mxu0 0.0
        %4564 = vmatmul.mubr.f32.gmra.mrb[0].mxu0 %v2062
        %v4565 = vpop.f32.mrb[0].mxu0
        %v4566 = vadd.f32 %v711, %v4565
        %v4567 = vpop.f32.mrb[0].mxu0
        %4568 = vmatprep.mubr.f32.mxu0 0.0
        %4569 = vmatmul.mubr.f32.gmra.mrb[0].mxu0 %v2065
        %v4570 = vpop.f32.mrb[0].mxu0
        %v4571 = vadd.f32 %v711, %v4570
        %v4572 = vpop.f32.mrb[0].mxu0
        %4573 = vmatprep.mubr.f32.mxu0 0.0
        %4574 = vmatmul.mubr.f32.gmra.mrb[0].mxu0 %v2068
        %v4575 = vpop.f32.mrb[0].mxu0
        %v4576 = vadd.f32 %v711, %v4575
        %v4577 = vpop.f32.mrb[0].mxu0
        %4578 = vmatprep.mubr.f32.mxu0 0.0
        %4579 = vmatmul.mubr.f32.gmra.mrb[0].mxu0 %v2071
        %v4580 = vpop.f32.mrb[0].mxu0
        %v4581 = vadd.f32 %v711, %v4580
        %v4582 = vpop.f32.mrb[0].mxu0
        %4583 = vmatprep.mubr.f32.mxu0 0.0
        %4584 = vmatmul.mubr.f32.gmra.mrb[0].mxu0 %v2074
        %v4585 = vpop.f32.mrb[0].mxu0
        %v4586 = vadd.f32 %v711, %v4585
        %v4587 = vpop.f32.mrb[0].mxu0
        %4588 = vmatprep.mubr.f32.mxu0 0.0
        %4589 = vmatmul.mubr.f32.gmra.mrb[0].mxu0 %v2077
        %v4590 = vpop.f32.mrb[0].mxu0
        %v4591 = vadd.f32 %v711, %v4590
        %v4592 = vpop.f32.mrb[0].mxu0
        %4593 = vmatprep.mubr.f32.mxu0 0.0
        %4594 = vmatmul.mubr.f32.gmra.mrb[0].mxu0 %v2080
        %v4595 = vpop.f32.mrb[0].mxu0
        %v4596 = vadd.f32 %v711, %v4595
        %v4597 = vpop.f32.mrb[0].mxu0
        %4598 = vmatprep.mubr.f32.mxu0 0.0
        %4599 = vmatmul.mubr.f32.gmra.mrb[0].mxu0 %v2083
        %v4600 = vpop.f32.mrb[0].mxu0
        %v4601 = vadd.f32 %v711, %v4600
        %v4602 = vpop.f32.mrb[0].mxu0
        %4603 = vmatprep.mubr.f32.mxu0 0.0
        %4604 = vmatmul.mubr.f32.gmra.mrb[0].mxu0 %v2086
        %v4605 = vpop.f32.mrb[0].mxu0
        %v4606 = vadd.f32 %v711, %v4605
        %v4607 = vpop.f32.mrb[0].mxu0
        %4608 = vmatprep.mubr.f32.mxu0 0.0
        %4609 = vmatmul.mubr.f32.gmra.mrb[0].mxu0 %v2089
        %v4610 = vpop.f32.mrb[0].mxu0
        %v4611 = vadd.f32 %v711, %v4610
        %v4612 = vpop.f32.mrb[0].mxu0
        %4613 = vmatprep.mubr.f32.mxu0 0.0
        %4614 = vmatmul.mubr.f32.gmra.mrb[0].mxu0 %v2092
        %v4615 = vpop.f32.mrb[0].mxu0
        %v4616 = vadd.f32 %v711, %v4615
        %v4617 = vpop.f32.mrb[0].mxu0
        %4618 = vmatprep.mubr.f32.mxu0 0.0
        %4619 = vmatmul.mubr.f32.gmra.mrb[0].mxu0 %v2095
        %v4620 = vpop.f32.mrb[0].mxu0
        %v4621 = vadd.f32 %v711, %v4620
        %v4622 = vpop.f32.mrb[0].mxu0
        %4623 = vmatprep.mubr.f32.mxu0 0.0
        %4624 = vmatmul.mubr.f32.gmra.mrb[0].mxu0 %v2098
        %v4625 = vpop.f32.mrb[0].mxu0
        %v4626 = vadd.f32 %v711, %v4625
        %v4627 = vpop.f32.mrb[0].mxu0
        %4628 = vmatprep.mubr.f32.mxu0 0.0
        %4629 = vmatmul.mubr.f32.gmra.mrb[0].mxu0 %v2101
        %v4630 = vpop.f32.mrb[0].mxu0
        %v4631 = vadd.f32 %v711, %v4630
        %v4632 = vpop.f32.mrb[0].mxu0
        %4633 = vmatprep.mubr.f32.mxu0 0.0
        %4634 = vmatmul.mubr.f32.gmra.mrb[0].mxu0 %v2104
        %v4635 = vpop.f32.mrb[0].mxu0
        %v4636 = vadd.f32 %v711, %v4635
        %v4637 = vpop.f32.mrb[0].mxu0
        %4638 = vmatprep.mubr.f32.mxu0 0.0
        %4639 = vmatmul.mubr.f32.gmra.mrb[0].mxu0 %v2107
        %v4640 = vpop.f32.mrb[0].mxu0
        %v4641 = vadd.f32 %v711, %v4640
        %v4642 = vpop.f32.mrb[0].mxu0
        %4643 = vmatprep.mubr.f32.mxu0 0.0
        %4644 = vmatmul.mubr.f32.gmra.mrb[0].mxu0 %v2110
        %v4645 = vpop.f32.mrb[0].mxu0
        %v4646 = vadd.f32 %v711, %v4645
        %v4647 = vpop.f32.mrb[0].mxu0
        %4648 = vmatprep.mubr.f32.mxu0 0.0
        %4649 = vmatmul.mubr.f32.gmra.mrb[0].mxu0 %v2113
        %v4650 = vpop.f32.mrb[0].mxu0
        %v4651 = vadd.f32 %v711, %v4650
        %v4652 = vpop.f32.mrb[0].mxu0
        %4653 = vmatprep.mubr.f32.mxu0 0.0
        %4654 = vmatmul.mubr.f32.gmra.mrb[0].mxu0 %v2116
        %v4655 = vpop.f32.mrb[0].mxu0
        %v4656 = vadd.f32 %v711, %v4655
        %v4657 = vpop.f32.mrb[0].mxu0
        %4658 = vmatprep.mubr.f32.mxu0 0.0
        %4659 = vmatmul.mubr.f32.gmra.mrb[0].mxu0 %v2119
        %v4660 = vpop.f32.mrb[0].mxu0
        %v4661 = vadd.f32 %v711, %v4660
        %v4662 = vpop.f32.mrb[0].mxu0
        %4663 = vmatprep.mubr.f32.mxu0 0.0
        %4664 = vmatmul.mubr.f32.gmra.mrb[0].mxu0 %v2122
        %v4665 = vpop.f32.mrb[0].mxu0
        %v4666 = vadd.f32 %v711, %v4665
        %v4667 = vpop.f32.mrb[0].mxu0
        %4668 = vmatprep.mubr.f32.mxu0 0.0
        %4669 = vmatmul.mubr.f32.gmra.mrb[0].mxu0 %v2125
        %v4670 = vpop.f32.mrb[0].mxu0
        %v4671 = vadd.f32 %v711, %v4670
        %v4672 = vpop.f32.mrb[0].mxu0
        %4673 = vmatprep.mubr.f32.mxu0 0.0
        %4674 = vmatmul.mubr.f32.gmra.mrb[0].mxu0 %v2128
        %v4675 = vpop.f32.mrb[0].mxu0
        %v4676 = vadd.f32 %v711, %v4675
        %v4677 = vpop.f32.mrb[0].mxu0
        %4678 = vmatprep.mubr.f32.mxu0 0.0
        %4679 = vmatmul.mubr.f32.gmra.mrb[0].mxu0 %v2131
        %v4680 = vpop.f32.mrb[0].mxu0
        %v4681 = vadd.f32 %v711, %v4680
        %v4682 = vpop.f32.mrb[0].mxu0
        %4683 = vmatprep.mubr.f32.mxu0 0.0
        %4684 = vmatmul.mubr.f32.gmra.mrb[0].mxu0 %v2134
        %v4685 = vpop.f32.mrb[0].mxu0
        %v4686 = vadd.f32 %v711, %v4685
        %v4687 = vpop.f32.mrb[0].mxu0
        %4688 = vmatprep.mubr.f32.mxu0 0.0
        %4689 = vmatmul.mubr.f32.gmra.mrb[0].mxu0 %v2137
        %v4690 = vpop.f32.mrb[0].mxu0
        %v4691 = vadd.f32 %v711, %v4690
        %v4692 = vpop.f32.mrb[0].mxu0
        %4693 = vmatprep.mubr.f32.mxu0 0.0
        %4694 = vmatmul.mubr.f32.gmra.mrb[0].mxu0 %v2140
        %v4695 = vpop.f32.mrb[0].mxu0
        %v4696 = vadd.f32 %v711, %v4695
        %v4697 = vpop.f32.mrb[0].mxu0
        %4698 = vmatprep.mubr.f32.mxu0 0.0
        %4699 = vmatmul.mubr.f32.gmra.mrb[0].mxu0 %v2143
        %v4700 = vpop.f32.mrb[0].mxu0
        %v4701 = vadd.f32 %v711, %v4700
        %v4702 = vpop.f32.mrb[0].mxu0
        %4703 = vmatprep.mubr.f32.mxu0 0.0
        %4704 = vmatmul.mubr.f32.gmra.mrb[0].mxu0 %v2146
        %v4705 = vpop.f32.mrb[0].mxu0
        %v4706 = vadd.f32 %v711, %v4705
        %v4707 = vpop.f32.mrb[0].mxu0
        %4708 = vmatprep.mubr.f32.mxu0 0.0
        %4709 = vmatmul.mubr.f32.gmra.mrb[0].mxu0 %v2149
        %v4710 = vpop.f32.mrb[0].mxu0
        %v4711 = vadd.f32 %v711, %v4710
        %v4712 = vpop.f32.mrb[0].mxu0
        %4713 = vmatprep.mubr.f32.mxu0 0.0
        %4714 = vmatmul.mubr.f32.gmra.mrb[0].mxu0 %v2152
        %v4715 = vpop.f32.mrb[0].mxu0
        %v4716 = vadd.f32 %v711, %v4715
        %v4717 = vpop.f32.mrb[0].mxu0
        %4718 = vmatprep.mubr.f32.mxu0 0.0
        %4719 = vmatmul.mubr.f32.gmra.mrb[0].mxu0 %v2155
        %v4720 = vpop.f32.mrb[0].mxu0
        %v4721 = vadd.f32 %v711, %v4720
        %v4722 = vpop.f32.mrb[0].mxu0
        %4723 = vmatprep.mubr.f32.mxu0 0.0
        %4724 = vmatmul.mubr.f32.gmra.mrb[0].mxu0 %v2158
        %v4725 = vpop.f32.mrb[0].mxu0
        %v4726 = vadd.f32 %v711, %v4725
        %v4727 = vpop.f32.mrb[0].mxu0
        %4728 = vmatprep.mubr.f32.mxu0 0.0
        %4729 = vmatmul.mubr.f32.gmra.mrb[0].mxu0 %v2161
        %v4730 = vpop.f32.mrb[0].mxu0
        %v4731 = vadd.f32 %v711, %v4730
        %v4732 = vpop.f32.mrb[0].mxu0
        %4733 = vmatprep.mubr.f32.mxu0 0.0
        %4734 = vmatmul.mubr.f32.gmra.mrb[0].mxu0 %v2164
        %v4735 = vpop.f32.mrb[0].mxu0
        %v4736 = vadd.f32 %v711, %v4735
        %v4737 = vpop.f32.mrb[0].mxu0
        %4738 = vmatprep.mubr.f32.mxu0 0.0
        %4739 = vmatmul.mubr.f32.gmra.mrb[0].mxu0 %v2167
        %v4740 = vpop.f32.mrb[0].mxu0
        %v4741 = vadd.f32 %v711, %v4740
        %v4742 = vpop.f32.mrb[0].mxu0
        %4743 = vmatprep.mubr.f32.mxu0 0.0
        %4744 = vmatmul.mubr.f32.gmra.mrb[0].mxu0 %v2170
        %v4745 = vpop.f32.mrb[0].mxu0
        %v4746 = vadd.f32 %v711, %v4745
        %v4747 = vpop.f32.mrb[0].mxu0
        %4748 = vmatprep.mubr.f32.mxu0 0.0
        %4749 = vmatmul.mubr.f32.gmra.mrb[0].mxu0 %v2173
        %v4750 = vpop.f32.mrb[0].mxu0
        %v4751 = vadd.f32 %v711, %v4750
        %v4752 = vpop.f32.mrb[0].mxu0
        %4753 = vmatprep.mubr.f32.mxu0 0.0
        %4754 = vmatmul.mubr.f32.gmra.mrb[0].mxu0 %v2176
        %v4755 = vpop.f32.mrb[0].mxu0
        %v4756 = vadd.f32 %v711, %v4755
        %v4757 = vpop.f32.mrb[0].mxu0
        %4758 = vmatprep.mubr.f32.mxu0 0.0
        %4759 = vmatmul.mubr.f32.gmra.mrb[0].mxu0 %v2179
        %v4760 = vpop.f32.mrb[0].mxu0
        %v4761 = vadd.f32 %v711, %v4760
        %v4762 = vpop.f32.mrb[0].mxu0
        %4763 = vmatprep.mubr.f32.mxu0 0.0
        %4764 = vmatmul.mubr.f32.gmra.mrb[0].mxu0 %v2182
        %v4765 = vpop.f32.mrb[0].mxu0
        %v4766 = vadd.f32 %v711, %v4765
        %v4767 = vpop.f32.mrb[0].mxu0
        %4768 = vmatprep.mubr.f32.mxu0 0.0
        %4769 = vmatmul.mubr.f32.gmra.mrb[0].mxu0 %v2185
        %v4770 = vpop.f32.mrb[0].mxu0
        %v4771 = vadd.f32 %v711, %v4770
        %v4772 = vpop.f32.mrb[0].mxu0
        %4773 = vmatprep.mubr.f32.mxu0 0.0
        %4774 = vmatmul.mubr.f32.gmra.mrb[0].mxu0 %v2188
        %v4775 = vpop.f32.mrb[0].mxu0
        %v4776 = vadd.f32 %v711, %v4775
        %v4777 = vpop.f32.mrb[0].mxu0
        %4778 = vmatprep.mubr.f32.mxu0 0.0
        %4779 = vmatmul.mubr.f32.gmra.mrb[0].mxu0 %v2191
        %v4780 = vpop.f32.mrb[0].mxu0
        %v4781 = vadd.f32 %v711, %v4780
        %v4782 = vpop.f32.mrb[0].mxu0
        %4783 = vmatprep.mubr.f32.mxu0 0.0
        %4784 = vmatmul.mubr.f32.gmra.mrb[0].mxu0 %v2194
        %v4785 = vpop.f32.mrb[0].mxu0
        %v4786 = vadd.f32 %v711, %v4785
        %v4787 = vpop.f32.mrb[0].mxu0
        %4788 = vmatprep.mubr.f32.mxu0 0.0
        %4789 = vmatmul.mubr.f32.gmra.mrb[0].mxu0 %v2197
        %v4790 = vpop.f32.mrb[0].mxu0
        %v4791 = vadd.f32 %v711, %v4790
        %v4792 = vpop.f32.mrb[0].mxu0
        %4793 = vmatprep.mubr.f32.mxu0 0.0
        %4794 = vmatmul.mubr.f32.gmra.mrb[0].mxu0 %v2200
        %v4795 = vpop.f32.mrb[0].mxu0
        %v4796 = vadd.f32 %v711, %v4795
        %v4797 = vpop.f32.mrb[0].mxu0
        %4798 = vmatprep.mubr.f32.mxu0 0.0
        %4799 = vmatmul.mubr.f32.gmra.mrb[0].mxu0 %v2203
        %v4800 = vpop.f32.mrb[0].mxu0
        %v4801 = vadd.f32 %v711, %v4800
        %v4802 = vpop.f32.mrb[0].mxu0
        %4803 = vmatprep.mubr.f32.mxu0 0.0
        %4804 = vmatmul.mubr.f32.gmra.mrb[0].mxu0 %v2206
        %v4805 = vpop.f32.mrb[0].mxu0
        %v4806 = vadd.f32 %v711, %v4805
        %v4807 = vpop.f32.mrb[0].mxu0
        %4808 = vmatprep.mubr.f32.mxu0 0.0
        %4809 = vmatmul.mubr.f32.gmra.mrb[0].mxu0 %v2209
        %v4810 = vpop.f32.mrb[0].mxu0
        %v4811 = vadd.f32 %v711, %v4810
        %v4812 = vpop.f32.mrb[0].mxu0
        %4813 = vmatprep.mubr.f32.mxu0 0.0
        %4814 = vmatmul.mubr.f32.gmra.mrb[0].mxu0 %v2212
        %v4815 = vpop.f32.mrb[0].mxu0
        %v4816 = vadd.f32 %v711, %v4815
        %v4817 = vpop.f32.mrb[0].mxu0
        %4818 = vmatprep.mubr.f32.mxu0 0.0
        %4819 = vmatmul.mubr.f32.gmra.mrb[0].mxu0 %v2215
        %v4820 = vpop.f32.mrb[0].mxu0
        %v4821 = vadd.f32 %v711, %v4820
        %v4822 = vpop.f32.mrb[0].mxu0
        %4823 = vmatprep.mubr.f32.mxu0 0.0
        %4824 = vmatmul.mubr.f32.gmra.mrb[0].mxu0 %v2218
        %v4825 = vpop.f32.mrb[0].mxu0
        %v4826 = vadd.f32 %v711, %v4825
        %v4827 = vpop.f32.mrb[0].mxu0
        %4828 = vmatprep.mubr.f32.mxu0 0.0
        %4829 = vmatmul.mubr.f32.gmra.mrb[0].mxu0 %v2221
        %v4830 = vpop.f32.mrb[0].mxu0
        %v4831 = vadd.f32 %v711, %v4830
        %v4832 = vpop.f32.mrb[0].mxu0
        %4833 = vmatprep.mubr.f32.mxu0 0.0
        %4834 = vmatmul.mubr.f32.gmra.mrb[0].mxu0 %v2224
        %v4835 = vpop.f32.mrb[0].mxu0
        %v4836 = vadd.f32 %v711, %v4835
        %v4837 = vpop.f32.mrb[0].mxu0
        %4838 = vmatprep.mubr.f32.mxu0 0.0
        %4839 = vmatmul.mubr.f32.gmra.mrb[0].mxu0 %v2227
        %v4840 = vpop.f32.mrb[0].mxu0
        %v4841 = vadd.f32 %v711, %v4840
        %v4842 = vpop.f32.mrb[0].mxu0
        %4843 = vmatprep.mubr.f32.mxu0 0.0
        %4844 = vmatmul.mubr.f32.gmra.mrb[0].mxu0 %v2230
        %v4845 = vpop.f32.mrb[0].mxu0
        %v4846 = vadd.f32 %v711, %v4845
        %v4847 = vpop.f32.mrb[0].mxu0
        %4848 = vmatprep.mubr.f32.mxu0 0.0
        %4849 = vmatmul.mubr.f32.gmra.mrb[0].mxu0 %v2233
        %v4850 = vpop.f32.mrb[0].mxu0
        %v4851 = vadd.f32 %v711, %v4850
        %v4852 = vpop.f32.mrb[0].mxu0
        %4853 = vmatprep.mubr.f32.mxu0 0.0
        %4854 = vmatmul.mubr.f32.gmra.mrb[0].mxu0 %v2236
        %v4855 = vpop.f32.mrb[0].mxu0
        %v4856 = vadd.f32 %v711, %v4855
        %v4857 = vpop.f32.mrb[0].mxu0
        %4858 = vmatprep.mubr.f32.mxu0 0.0
        %4859 = vmatmul.mubr.f32.gmra.mrb[0].mxu0 %v2239
        %v4860 = vpop.f32.mrb[0].mxu0
        %v4861 = vadd.f32 %v711, %v4860
        %v4862 = vpop.f32.mrb[0].mxu0
        %4863 = vmatprep.mubr.f32.mxu0 0.0
        %4864 = vmatmul.mubr.f32.gmra.mrb[0].mxu0 %v2242
        %v4865 = vpop.f32.mrb[0].mxu0
        %v4866 = vadd.f32 %v711, %v4865
        %v4867 = vpop.f32.mrb[0].mxu0
        %4868 = vmatprep.mubr.f32.mxu0 0.0
        %4869 = vmatmul.mubr.f32.gmra.mrb[0].mxu0 %v2245
        %v4870 = vpop.f32.mrb[0].mxu0
        %v4871 = vadd.f32 %v711, %v4870
        %v4872 = vpop.f32.mrb[0].mxu0
        %4873 = vmatprep.mubr.f32.mxu0 0.0
        %4874 = vmatmul.mubr.f32.gmra.mrb[0].mxu0 %v2248
        %v4875 = vpop.f32.mrb[0].mxu0
        %v4876 = vadd.f32 %v711, %v4875
        %v4877 = vpop.f32.mrb[0].mxu0
        %4878 = vdwg.mxu0
        %v4879 = vmax.f32 %v2321, 0.0
        %v4880 = vmax.f32 %v2326, 0.0
        %v4881 = vmax.f32 %v2331, 0.0
        %v4882 = vmax.f32 %v2336, 0.0
        %v4883 = vmax.f32 %v2341, 0.0
        %v4884 = vmax.f32 %v2346, 0.0
        %v4885 = vmax.f32 %v2351, 0.0
        %v4886 = vmax.f32 %v2356, 0.0
        %v4887 = vmax.f32 %v2361, 0.0
        %v4888 = vmax.f32 %v2366, 0.0
        %v4889 = vmax.f32 %v2371, 0.0
        %v4890 = vmax.f32 %v2376, 0.0
        %v4891 = vmax.f32 %v2381, 0.0
        %v4892 = vmax.f32 %v2386, 0.0
        %v4893 = vmax.f32 %v2391, 0.0
        %v4894 = vmax.f32 %v2396, 0.0
        %v4895 = vmax.f32 %v2401, 0.0
        %v4896 = vmax.f32 %v2406, 0.0
        %v4897 = vmax.f32 %v2411, 0.0
        %v4898 = vmax.f32 %v2416, 0.0
        %v4899 = vmax.f32 %v2421, 0.0
        %v4900 = vmax.f32 %v2426, 0.0
        %v4901 = vmax.f32 %v2431, 0.0
        %v4902 = vmax.f32 %v2436, 0.0
        %v4903 = vmax.f32 %v2441, 0.0
        %v4904 = vmax.f32 %v2446, 0.0
        %v4905 = vmax.f32 %v2451, 0.0
        %v4906 = vmax.f32 %v2456, 0.0
        %v4907 = vmax.f32 %v2461, 0.0
        %v4908 = vmax.f32 %v2466, 0.0
        %v4909 = vmax.f32 %v2471, 0.0
        %v4910 = vmax.f32 %v2476, 0.0
        %v4911 = vmax.f32 %v2481, 0.0
        %v4912 = vmax.f32 %v2486, 0.0
        %v4913 = vmax.f32 %v2491, 0.0
        %v4914 = vmax.f32 %v2496, 0.0
        %v4915 = vmax.f32 %v2501, 0.0
        %v4916 = vmax.f32 %v2506, 0.0
        %v4917 = vmax.f32 %v2511, 0.0
        %v4918 = vmax.f32 %v2516, 0.0
        %v4919 = vmax.f32 %v2521, 0.0
        %v4920 = vmax.f32 %v2526, 0.0
        %v4921 = vmax.f32 %v2531, 0.0
        %v4922 = vmax.f32 %v2536, 0.0
        %v4923 = vmax.f32 %v2541, 0.0
        %v4924 = vmax.f32 %v2546, 0.0
        %v4925 = vmax.f32 %v2551, 0.0
        %v4926 = vmax.f32 %v2556, 0.0
        %v4927 = vmax.f32 %v2561, 0.0
        %v4928 = vmax.f32 %v2566, 0.0
        %v4929 = vmax.f32 %v2571, 0.0
        %v4930 = vmax.f32 %v2576, 0.0
        %v4931 = vmax.f32 %v2581, 0.0
        %v4932 = vmax.f32 %v2586, 0.0
        %v4933 = vmax.f32 %v2591, 0.0
        %v4934 = vmax.f32 %v2596, 0.0
        %v4935 = vmax.f32 %v2601, 0.0
        %v4936 = vmax.f32 %v2606, 0.0
        %v4937 = vmax.f32 %v2611, 0.0
        %v4938 = vmax.f32 %v2616, 0.0
        %v4939 = vmax.f32 %v2621, 0.0
        %v4940 = vmax.f32 %v2626, 0.0
        %v4941 = vmax.f32 %v2631, 0.0
        %v4942 = vmax.f32 %v2636, 0.0
        %v4943 = vmax.f32 %v2641, 0.0
        %v4944 = vmax.f32 %v2646, 0.0
        %v4945 = vmax.f32 %v2651, 0.0
        %v4946 = vmax.f32 %v2656, 0.0
        %v4947 = vmax.f32 %v2661, 0.0
        %v4948 = vmax.f32 %v2666, 0.0
        %v4949 = vmax.f32 %v2671, 0.0
        %v4950 = vmax.f32 %v2676, 0.0
        %v4951 = vmax.f32 %v2681, 0.0
        %v4952 = vmax.f32 %v2686, 0.0
        %v4953 = vmax.f32 %v2691, 0.0
        %v4954 = vmax.f32 %v2696, 0.0
        %v4955 = vmax.f32 %v2701, 0.0
        %v4956 = vmax.f32 %v2706, 0.0
        %v4957 = vmax.f32 %v2711, 0.0
        %v4958 = vmax.f32 %v2716, 0.0
        %v4959 = vmax.f32 %v2721, 0.0
        %v4960 = vmax.f32 %v2726, 0.0
        %v4961 = vmax.f32 %v2731, 0.0
        %v4962 = vmax.f32 %v2736, 0.0
        %v4963 = vmax.f32 %v2741, 0.0
        %v4964 = vmax.f32 %v2746, 0.0
        %v4965 = vmax.f32 %v2751, 0.0
        %v4966 = vmax.f32 %v2756, 0.0
        %v4967 = vmax.f32 %v2761, 0.0
        %v4968 = vmax.f32 %v2766, 0.0
        %v4969 = vmax.f32 %v2771, 0.0
        %v4970 = vmax.f32 %v2776, 0.0
        %v4971 = vmax.f32 %v2781, 0.0
        %v4972 = vmax.f32 %v2786, 0.0
        %v4973 = vmax.f32 %v2791, 0.0
        %v4974 = vmax.f32 %v2796, 0.0
        %v4975 = vmax.f32 %v2801, 0.0
        %v4976 = vmax.f32 %v2806, 0.0
        %v4977 = vmax.f32 %v2811, 0.0
        %v4978 = vmax.f32 %v2816, 0.0
        %v4979 = vmax.f32 %v2821, 0.0
        %v4980 = vmax.f32 %v2826, 0.0
        %v4981 = vmax.f32 %v2831, 0.0
        %v4982 = vmax.f32 %v2836, 0.0
        %v4983 = vmax.f32 %v2841, 0.0
        %v4984 = vmax.f32 %v2846, 0.0
        %v4985 = vmax.f32 %v2851, 0.0
        %v4986 = vmax.f32 %v2856, 0.0
        %v4987 = vmax.f32 %v2861, 0.0
        %v4988 = vmax.f32 %v2866, 0.0
        %v4989 = vmax.f32 %v2871, 0.0
        %v4990 = vmax.f32 %v2876, 0.0
        %v4991 = vmax.f32 %v2881, 0.0
        %v4992 = vmax.f32 %v2886, 0.0
        %v4993 = vmax.f32 %v2891, 0.0
        %v4994 = vmax.f32 %v2896, 0.0
        %v4995 = vmax.f32 %v2901, 0.0
        %v4996 = vmax.f32 %v2906, 0.0
        %v4997 = vmax.f32 %v2911, 0.0
        %v4998 = vmax.f32 %v2916, 0.0
        %v4999 = vmax.f32 %v2921, 0.0
        %v5000 = vmax.f32 %v2926, 0.0
        %v5001 = vmax.f32 %v2931, 0.0
        %v5002 = vmax.f32 %v2936, 0.0
        %v5003 = vmax.f32 %v2941, 0.0
        %v5004 = vmax.f32 %v2946, 0.0
        %v5005 = vmax.f32 %v2951, 0.0
        %v5006 = vmax.f32 %v2956, 0.0
        %v5007 = vmax.f32 %v2961, 0.0
        %v5008 = vmax.f32 %v2966, 0.0
        %v5009 = vmax.f32 %v2971, 0.0
        %v5010 = vmax.f32 %v2976, 0.0
        %v5011 = vmax.f32 %v2981, 0.0
        %v5012 = vmax.f32 %v2986, 0.0
        %v5013 = vmax.f32 %v2991, 0.0
        %v5014 = vmax.f32 %v2996, 0.0
        %v5015 = vmax.f32 %v3001, 0.0
        %v5016 = vmax.f32 %v3006, 0.0
        %v5017 = vmax.f32 %v3011, 0.0
        %v5018 = vmax.f32 %v3016, 0.0
        %v5019 = vmax.f32 %v3021, 0.0
        %v5020 = vmax.f32 %v3026, 0.0
        %v5021 = vmax.f32 %v3031, 0.0
        %v5022 = vmax.f32 %v3036, 0.0
        %v5023 = vmax.f32 %v3041, 0.0
        %v5024 = vmax.f32 %v3046, 0.0
        %v5025 = vmax.f32 %v3051, 0.0
        %v5026 = vmax.f32 %v3056, 0.0
        %v5027 = vmax.f32 %v3061, 0.0
        %v5028 = vmax.f32 %v3066, 0.0
        %v5029 = vmax.f32 %v3071, 0.0
        %v5030 = vmax.f32 %v3076, 0.0
        %v5031 = vmax.f32 %v3081, 0.0
        %v5032 = vmax.f32 %v3086, 0.0
        %v5033 = vmax.f32 %v3091, 0.0
        %v5034 = vmax.f32 %v3096, 0.0
        %v5035 = vmax.f32 %v3101, 0.0
        %v5036 = vmax.f32 %v3106, 0.0
        %v5037 = vmax.f32 %v3111, 0.0
        %v5038 = vmax.f32 %v3116, 0.0
        %v5039 = vmax.f32 %v3121, 0.0
        %v5040 = vmax.f32 %v3126, 0.0
        %v5041 = vmax.f32 %v3131, 0.0
        %v5042 = vmax.f32 %v3136, 0.0
        %v5043 = vmax.f32 %v3141, 0.0
        %v5044 = vmax.f32 %v3146, 0.0
        %v5045 = vmax.f32 %v3151, 0.0
        %v5046 = vmax.f32 %v3156, 0.0
        %v5047 = vmax.f32 %v3161, 0.0
        %v5048 = vmax.f32 %v3166, 0.0
        %v5049 = vmax.f32 %v3171, 0.0
        %v5050 = vmax.f32 %v3176, 0.0
        %v5051 = vmax.f32 %v3181, 0.0
        %v5052 = vmax.f32 %v3186, 0.0
        %v5053 = vmax.f32 %v3191, 0.0
        %v5054 = vmax.f32 %v3196, 0.0
        %v5055 = vmax.f32 %v3201, 0.0
        %v5056 = vmax.f32 %v3206, 0.0
        %v5057 = vmax.f32 %v3211, 0.0
        %v5058 = vmax.f32 %v3216, 0.0
        %v5059 = vmax.f32 %v3221, 0.0
        %v5060 = vmax.f32 %v3226, 0.0
        %v5061 = vmax.f32 %v3231, 0.0
        %v5062 = vmax.f32 %v3236, 0.0
        %v5063 = vmax.f32 %v3241, 0.0
        %v5064 = vmax.f32 %v3246, 0.0
        %v5065 = vmax.f32 %v3251, 0.0
        %v5066 = vmax.f32 %v3256, 0.0
        %v5067 = vmax.f32 %v3261, 0.0
        %v5068 = vmax.f32 %v3266, 0.0
        %v5069 = vmax.f32 %v3271, 0.0
        %v5070 = vmax.f32 %v3276, 0.0
        %v5071 = vmax.f32 %v3281, 0.0
        %v5072 = vmax.f32 %v3286, 0.0
        %v5073 = vmax.f32 %v3291, 0.0
        %v5074 = vmax.f32 %v3296, 0.0
        %v5075 = vmax.f32 %v3301, 0.0
        %v5076 = vmax.f32 %v3306, 0.0
        %v5077 = vmax.f32 %v3311, 0.0
        %v5078 = vmax.f32 %v3316, 0.0
        %v5079 = vmax.f32 %v3321, 0.0
        %v5080 = vmax.f32 %v3326, 0.0
        %v5081 = vmax.f32 %v3331, 0.0
        %v5082 = vmax.f32 %v3336, 0.0
        %v5083 = vmax.f32 %v3341, 0.0
        %v5084 = vmax.f32 %v3346, 0.0
        %v5085 = vmax.f32 %v3351, 0.0
        %v5086 = vmax.f32 %v3356, 0.0
        %v5087 = vmax.f32 %v3361, 0.0
        %v5088 = vmax.f32 %v3366, 0.0
        %v5089 = vmax.f32 %v3371, 0.0
        %v5090 = vmax.f32 %v3376, 0.0
        %v5091 = vmax.f32 %v3381, 0.0
        %v5092 = vmax.f32 %v3386, 0.0
        %v5093 = vmax.f32 %v3391, 0.0
        %v5094 = vmax.f32 %v3396, 0.0
        %v5095 = vmax.f32 %v3401, 0.0
        %v5096 = vmax.f32 %v3406, 0.0
        %v5097 = vmax.f32 %v3411, 0.0
        %v5098 = vmax.f32 %v3416, 0.0
        %v5099 = vmax.f32 %v3421, 0.0
        %v5100 = vmax.f32 %v3426, 0.0
        %v5101 = vmax.f32 %v3431, 0.0
        %v5102 = vmax.f32 %v3436, 0.0
        %v5103 = vmax.f32 %v3441, 0.0
        %v5104 = vmax.f32 %v3446, 0.0
        %v5105 = vmax.f32 %v3451, 0.0
        %v5106 = vmax.f32 %v3456, 0.0
        %v5107 = vmax.f32 %v3461, 0.0
        %v5108 = vmax.f32 %v3466, 0.0
        %v5109 = vmax.f32 %v3471, 0.0
        %v5110 = vmax.f32 %v3476, 0.0
        %v5111 = vmax.f32 %v3481, 0.0
        %v5112 = vmax.f32 %v3486, 0.0
        %v5113 = vmax.f32 %v3491, 0.0
        %v5114 = vmax.f32 %v3496, 0.0
        %v5115 = vmax.f32 %v3501, 0.0
        %v5116 = vmax.f32 %v3506, 0.0
        %v5117 = vmax.f32 %v3511, 0.0
        %v5118 = vmax.f32 %v3516, 0.0
        %v5119 = vmax.f32 %v3521, 0.0
        %v5120 = vmax.f32 %v3526, 0.0
        %v5121 = vmax.f32 %v3531, 0.0
        %v5122 = vmax.f32 %v3536, 0.0
        %v5123 = vmax.f32 %v3541, 0.0
        %v5124 = vmax.f32 %v3546, 0.0
        %v5125 = vmax.f32 %v3551, 0.0
        %v5126 = vmax.f32 %v3556, 0.0
        %v5127 = vmax.f32 %v3561, 0.0
        %v5128 = vmax.f32 %v3566, 0.0
        %v5129 = vmax.f32 %v3571, 0.0
        %v5130 = vmax.f32 %v3576, 0.0
        %v5131 = vmax.f32 %v3581, 0.0
        %v5132 = vmax.f32 %v3586, 0.0
        %v5133 = vmax.f32 %v3591, 0.0
        %v5134 = vmax.f32 %v3596, 0.0
        %v5135 = vmax.f32 %v3601, 0.0
        %v5136 = vmax.f32 %v3606, 0.0
        %v5137 = vmax.f32 %v3611, 0.0
        %v5138 = vmax.f32 %v3616, 0.0
        %v5139 = vmax.f32 %v3621, 0.0
        %v5140 = vmax.f32 %v3626, 0.0
        %v5141 = vmax.f32 %v3631, 0.0
        %v5142 = vmax.f32 %v3636, 0.0
        %v5143 = vmax.f32 %v3641, 0.0
        %v5144 = vmax.f32 %v3646, 0.0
        %v5145 = vmax.f32 %v3651, 0.0
        %v5146 = vmax.f32 %v3656, 0.0
        %v5147 = vmax.f32 %v3661, 0.0
        %v5148 = vmax.f32 %v3666, 0.0
        %v5149 = vmax.f32 %v3671, 0.0
        %v5150 = vmax.f32 %v3676, 0.0
        %v5151 = vmax.f32 %v3681, 0.0
        %v5152 = vmax.f32 %v3686, 0.0
        %v5153 = vmax.f32 %v3691, 0.0
        %v5154 = vmax.f32 %v3696, 0.0
        %v5155 = vmax.f32 %v3701, 0.0
        %v5156 = vmax.f32 %v3706, 0.0
        %v5157 = vmax.f32 %v3711, 0.0
        %v5158 = vmax.f32 %v3716, 0.0
        %v5159 = vmax.f32 %v3721, 0.0
        %v5160 = vmax.f32 %v3726, 0.0
        %v5161 = vmax.f32 %v3731, 0.0
        %v5162 = vmax.f32 %v3736, 0.0
        %v5163 = vmax.f32 %v3741, 0.0
        %v5164 = vmax.f32 %v3746, 0.0
        %v5165 = vmax.f32 %v3751, 0.0
        %v5166 = vmax.f32 %v3756, 0.0
        %v5167 = vmax.f32 %v3761, 0.0
        %v5168 = vmax.f32 %v3766, 0.0
        %v5169 = vmax.f32 %v3771, 0.0
        %v5170 = vmax.f32 %v3776, 0.0
        %v5171 = vmax.f32 %v3781, 0.0
        %v5172 = vmax.f32 %v3786, 0.0
        %v5173 = vmax.f32 %v3791, 0.0
        %v5174 = vmax.f32 %v3796, 0.0
        %v5175 = vmax.f32 %v3801, 0.0
        %v5176 = vmax.f32 %v3806, 0.0
        %v5177 = vmax.f32 %v3811, 0.0
        %v5178 = vmax.f32 %v3816, 0.0
        %v5179 = vmax.f32 %v3821, 0.0
        %v5180 = vmax.f32 %v3826, 0.0
        %v5181 = vmax.f32 %v3831, 0.0
        %v5182 = vmax.f32 %v3836, 0.0
        %v5183 = vmax.f32 %v3841, 0.0
        %v5184 = vmax.f32 %v3846, 0.0
        %v5185 = vmax.f32 %v3851, 0.0
        %v5186 = vmax.f32 %v3856, 0.0
        %v5187 = vmax.f32 %v3861, 0.0
        %v5188 = vmax.f32 %v3866, 0.0
        %v5189 = vmax.f32 %v3871, 0.0
        %v5190 = vmax.f32 %v3876, 0.0
        %v5191 = vmax.f32 %v3881, 0.0
        %v5192 = vmax.f32 %v3886, 0.0
        %v5193 = vmax.f32 %v3891, 0.0
        %v5194 = vmax.f32 %v3896, 0.0
        %v5195 = vmax.f32 %v3901, 0.0
        %v5196 = vmax.f32 %v3906, 0.0
        %v5197 = vmax.f32 %v3911, 0.0
        %v5198 = vmax.f32 %v3916, 0.0
        %v5199 = vmax.f32 %v3921, 0.0
        %v5200 = vmax.f32 %v3926, 0.0
        %v5201 = vmax.f32 %v3931, 0.0
        %v5202 = vmax.f32 %v3936, 0.0
        %v5203 = vmax.f32 %v3941, 0.0
        %v5204 = vmax.f32 %v3946, 0.0
        %v5205 = vmax.f32 %v3951, 0.0
        %v5206 = vmax.f32 %v3956, 0.0
        %v5207 = vmax.f32 %v3961, 0.0
        %v5208 = vmax.f32 %v3966, 0.0
        %v5209 = vmax.f32 %v3971, 0.0
        %v5210 = vmax.f32 %v3976, 0.0
        %v5211 = vmax.f32 %v3981, 0.0
        %v5212 = vmax.f32 %v3986, 0.0
        %v5213 = vmax.f32 %v3991, 0.0
        %v5214 = vmax.f32 %v3996, 0.0
        %v5215 = vmax.f32 %v4001, 0.0
        %v5216 = vmax.f32 %v4006, 0.0
        %v5217 = vmax.f32 %v4011, 0.0
        %v5218 = vmax.f32 %v4016, 0.0
        %v5219 = vmax.f32 %v4021, 0.0
        %v5220 = vmax.f32 %v4026, 0.0
        %v5221 = vmax.f32 %v4031, 0.0
        %v5222 = vmax.f32 %v4036, 0.0
        %v5223 = vmax.f32 %v4041, 0.0
        %v5224 = vmax.f32 %v4046, 0.0
        %v5225 = vmax.f32 %v4051, 0.0
        %v5226 = vmax.f32 %v4056, 0.0
        %v5227 = vmax.f32 %v4061, 0.0
        %v5228 = vmax.f32 %v4066, 0.0
        %v5229 = vmax.f32 %v4071, 0.0
        %v5230 = vmax.f32 %v4076, 0.0
        %v5231 = vmax.f32 %v4081, 0.0
        %v5232 = vmax.f32 %v4086, 0.0
        %v5233 = vmax.f32 %v4091, 0.0
        %v5234 = vmax.f32 %v4096, 0.0
        %v5235 = vmax.f32 %v4101, 0.0
        %v5236 = vmax.f32 %v4106, 0.0
        %v5237 = vmax.f32 %v4111, 0.0
        %v5238 = vmax.f32 %v4116, 0.0
        %v5239 = vmax.f32 %v4121, 0.0
        %v5240 = vmax.f32 %v4126, 0.0
        %v5241 = vmax.f32 %v4131, 0.0
        %v5242 = vmax.f32 %v4136, 0.0
        %v5243 = vmax.f32 %v4141, 0.0
        %v5244 = vmax.f32 %v4146, 0.0
        %v5245 = vmax.f32 %v4151, 0.0
        %v5246 = vmax.f32 %v4156, 0.0
        %v5247 = vmax.f32 %v4161, 0.0
        %v5248 = vmax.f32 %v4166, 0.0
        %v5249 = vmax.f32 %v4171, 0.0
        %v5250 = vmax.f32 %v4176, 0.0
        %v5251 = vmax.f32 %v4181, 0.0
        %v5252 = vmax.f32 %v4186, 0.0
        %v5253 = vmax.f32 %v4191, 0.0
        %v5254 = vmax.f32 %v4196, 0.0
        %v5255 = vmax.f32 %v4201, 0.0
        %v5256 = vmax.f32 %v4206, 0.0
        %v5257 = vmax.f32 %v4211, 0.0
        %v5258 = vmax.f32 %v4216, 0.0
        %v5259 = vmax.f32 %v4221, 0.0
        %v5260 = vmax.f32 %v4226, 0.0
        %v5261 = vmax.f32 %v4231, 0.0
        %v5262 = vmax.f32 %v4236, 0.0
        %v5263 = vmax.f32 %v4241, 0.0
        %v5264 = vmax.f32 %v4246, 0.0
        %v5265 = vmax.f32 %v4251, 0.0
        %v5266 = vmax.f32 %v4256, 0.0
        %v5267 = vmax.f32 %v4261, 0.0
        %v5268 = vmax.f32 %v4266, 0.0
        %v5269 = vmax.f32 %v4271, 0.0
        %v5270 = vmax.f32 %v4276, 0.0
        %v5271 = vmax.f32 %v4281, 0.0
        %v5272 = vmax.f32 %v4286, 0.0
        %v5273 = vmax.f32 %v4291, 0.0
        %v5274 = vmax.f32 %v4296, 0.0
        %v5275 = vmax.f32 %v4301, 0.0
        %v5276 = vmax.f32 %v4306, 0.0
        %v5277 = vmax.f32 %v4311, 0.0
        %v5278 = vmax.f32 %v4316, 0.0
        %v5279 = vmax.f32 %v4321, 0.0
        %v5280 = vmax.f32 %v4326, 0.0
        %v5281 = vmax.f32 %v4331, 0.0
        %v5282 = vmax.f32 %v4336, 0.0
        %v5283 = vmax.f32 %v4341, 0.0
        %v5284 = vmax.f32 %v4346, 0.0
        %v5285 = vmax.f32 %v4351, 0.0
        %v5286 = vmax.f32 %v4356, 0.0
        %v5287 = vmax.f32 %v4361, 0.0
        %v5288 = vmax.f32 %v4366, 0.0
        %v5289 = vmax.f32 %v4371, 0.0
        %v5290 = vmax.f32 %v4376, 0.0
        %v5291 = vmax.f32 %v4381, 0.0
        %v5292 = vmax.f32 %v4386, 0.0
        %v5293 = vmax.f32 %v4391, 0.0
        %v5294 = vmax.f32 %v4396, 0.0
        %v5295 = vmax.f32 %v4401, 0.0
        %v5296 = vmax.f32 %v4406, 0.0
        %v5297 = vmax.f32 %v4411, 0.0
        %v5298 = vmax.f32 %v4416, 0.0
        %v5299 = vmax.f32 %v4421, 0.0
        %v5300 = vmax.f32 %v4426, 0.0
        %v5301 = vmax.f32 %v4431, 0.0
        %v5302 = vmax.f32 %v4436, 0.0
        %v5303 = vmax.f32 %v4441, 0.0
        %v5304 = vmax.f32 %v4446, 0.0
        %v5305 = vmax.f32 %v4451, 0.0
        %v5306 = vmax.f32 %v4456, 0.0
        %v5307 = vmax.f32 %v4461, 0.0
        %v5308 = vmax.f32 %v4466, 0.0
        %v5309 = vmax.f32 %v4471, 0.0
        %v5310 = vmax.f32 %v4476, 0.0
        %v5311 = vmax.f32 %v4481, 0.0
        %v5312 = vmax.f32 %v4486, 0.0
        %v5313 = vmax.f32 %v4491, 0.0
        %v5314 = vmax.f32 %v4496, 0.0
        %v5315 = vmax.f32 %v4501, 0.0
        %v5316 = vmax.f32 %v4506, 0.0
        %v5317 = vmax.f32 %v4511, 0.0
        %v5318 = vmax.f32 %v4516, 0.0
        %v5319 = vmax.f32 %v4521, 0.0
        %v5320 = vmax.f32 %v4526, 0.0
        %v5321 = vmax.f32 %v4531, 0.0
        %v5322 = vmax.f32 %v4536, 0.0
        %v5323 = vmax.f32 %v4541, 0.0
        %v5324 = vmax.f32 %v4546, 0.0
        %v5325 = vmax.f32 %v4551, 0.0
        %v5326 = vmax.f32 %v4556, 0.0
        %v5327 = vmax.f32 %v4561, 0.0
        %v5328 = vmax.f32 %v4566, 0.0
        %v5329 = vmax.f32 %v4571, 0.0
        %v5330 = vmax.f32 %v4576, 0.0
        %v5331 = vmax.f32 %v4581, 0.0
        %v5332 = vmax.f32 %v4586, 0.0
        %v5333 = vmax.f32 %v4591, 0.0
        %v5334 = vmax.f32 %v4596, 0.0
        %v5335 = vmax.f32 %v4601, 0.0
        %v5336 = vmax.f32 %v4606, 0.0
        %v5337 = vmax.f32 %v4611, 0.0
        %v5338 = vmax.f32 %v4616, 0.0
        %v5339 = vmax.f32 %v4621, 0.0
        %v5340 = vmax.f32 %v4626, 0.0
        %v5341 = vmax.f32 %v4631, 0.0
        %v5342 = vmax.f32 %v4636, 0.0
        %v5343 = vmax.f32 %v4641, 0.0
        %v5344 = vmax.f32 %v4646, 0.0
        %v5345 = vmax.f32 %v4651, 0.0
        %v5346 = vmax.f32 %v4656, 0.0
        %v5347 = vmax.f32 %v4661, 0.0
        %v5348 = vmax.f32 %v4666, 0.0
        %v5349 = vmax.f32 %v4671, 0.0
        %v5350 = vmax.f32 %v4676, 0.0
        %v5351 = vmax.f32 %v4681, 0.0
        %v5352 = vmax.f32 %v4686, 0.0
        %v5353 = vmax.f32 %v4691, 0.0
        %v5354 = vmax.f32 %v4696, 0.0
        %v5355 = vmax.f32 %v4701, 0.0
        %v5356 = vmax.f32 %v4706, 0.0
        %v5357 = vmax.f32 %v4711, 0.0
        %v5358 = vmax.f32 %v4716, 0.0
        %v5359 = vmax.f32 %v4721, 0.0
        %v5360 = vmax.f32 %v4726, 0.0
        %v5361 = vmax.f32 %v4731, 0.0
        %v5362 = vmax.f32 %v4736, 0.0
        %v5363 = vmax.f32 %v4741, 0.0
        %v5364 = vmax.f32 %v4746, 0.0
        %v5365 = vmax.f32 %v4751, 0.0
        %v5366 = vmax.f32 %v4756, 0.0
        %v5367 = vmax.f32 %v4761, 0.0
        %v5368 = vmax.f32 %v4766, 0.0
        %v5369 = vmax.f32 %v4771, 0.0
        %v5370 = vmax.f32 %v4776, 0.0
        %v5371 = vmax.f32 %v4781, 0.0
        %v5372 = vmax.f32 %v4786, 0.0
        %v5373 = vmax.f32 %v4791, 0.0
        %v5374 = vmax.f32 %v4796, 0.0
        %v5375 = vmax.f32 %v4801, 0.0
        %v5376 = vmax.f32 %v4806, 0.0
        %v5377 = vmax.f32 %v4811, 0.0
        %v5378 = vmax.f32 %v4816, 0.0
        %v5379 = vmax.f32 %v4821, 0.0
        %v5380 = vmax.f32 %v4826, 0.0
        %v5381 = vmax.f32 %v4831, 0.0
        %v5382 = vmax.f32 %v4836, 0.0
        %v5383 = vmax.f32 %v4841, 0.0
        %v5384 = vmax.f32 %v4846, 0.0
        %v5385 = vmax.f32 %v4851, 0.0
        %v5386 = vmax.f32 %v4856, 0.0
        %v5387 = vmax.f32 %v4861, 0.0
        %v5388 = vmax.f32 %v4866, 0.0
        %v5389 = vmax.f32 %v4871, 0.0
        %v5390 = vmax.f32 %v4876, 0.0
        %5391 = vst [vmem:[%s172] sm:$0xff] %v4879
        %5392 = vst [vmem:[%s172 + $0x8] sm:$0xff] %v4880
        %5393 = vst [vmem:[%s172 + $0x10] sm:$0xff] %v4881
        %5394 = vst [vmem:[%s172 + $0x18] sm:$0xff] %v4882
        %5395 = vst [vmem:[%s172 + $0x20] sm:$0xff] %v4883
        %5396 = vst [vmem:[%s172 + $0x28] sm:$0xff] %v4884
        %5397 = vst [vmem:[%s172 + $0x30] sm:$0xff] %v4885
        %5398 = vst [vmem:[%s172 + $0x38] sm:$0xff] %v4886
        %5399 = vst [vmem:[%s172 + $0x40] sm:$0xff] %v4887
        %5400 = vst [vmem:[%s172 + $0x48] sm:$0xff] %v4888
        %5401 = vst [vmem:[%s172 + $0x50] sm:$0xff] %v4889
        %5402 = vst [vmem:[%s172 + $0x58] sm:$0xff] %v4890
        %5403 = vst [vmem:[%s172 + $0x60] sm:$0xff] %v4891
        %5404 = vst [vmem:[%s172 + $0x68] sm:$0xff] %v4892
        %5405 = vst [vmem:[%s172 + $0x70] sm:$0xff] %v4893
        %5406 = vst [vmem:[%s172 + $0x78] sm:$0xff] %v4894
        %5407 = vst [vmem:[%s172 + $0x80] sm:$0xff] %v4895
        %5408 = vst [vmem:[%s172 + $0x88] sm:$0xff] %v4896
        %5409 = vst [vmem:[%s172 + $0x90] sm:$0xff] %v4897
        %5410 = vst [vmem:[%s172 + $0x98] sm:$0xff] %v4898
        %5411 = vst [vmem:[%s172 + $0xa0] sm:$0xff] %v4899
        %5412 = vst [vmem:[%s172 + $0xa8] sm:$0xff] %v4900
        %5413 = vst [vmem:[%s172 + $0xb0] sm:$0xff] %v4901
        %5414 = vst [vmem:[%s172 + $0xb8] sm:$0xff] %v4902
        %5415 = vst [vmem:[%s172 + $0xc0] sm:$0xff] %v4903
        %5416 = vst [vmem:[%s172 + $0xc8] sm:$0xff] %v4904
        %5417 = vst [vmem:[%s172 + $0xd0] sm:$0xff] %v4905
        %5418 = vst [vmem:[%s172 + $0xd8] sm:$0xff] %v4906
        %5419 = vst [vmem:[%s172 + $0xe0] sm:$0xff] %v4907
        %5420 = vst [vmem:[%s172 + $0xe8] sm:$0xff] %v4908
        %5421 = vst [vmem:[%s172 + $0xf0] sm:$0xff] %v4909
        %5422 = vst [vmem:[%s172 + $0xf8] sm:$0xff] %v4910
        %5423 = vst [vmem:[%s172 + $0x100] sm:$0xff] %v4911
        %5424 = vst [vmem:[%s172 + $0x108] sm:$0xff] %v4912
        %5425 = vst [vmem:[%s172 + $0x110] sm:$0xff] %v4913
        %5426 = vst [vmem:[%s172 + $0x118] sm:$0xff] %v4914
        %5427 = vst [vmem:[%s172 + $0x120] sm:$0xff] %v4915
        %5428 = vst [vmem:[%s172 + $0x128] sm:$0xff] %v4916
        %5429 = vst [vmem:[%s172 + $0x130] sm:$0xff] %v4917
        %5430 = vst [vmem:[%s172 + $0x138] sm:$0xff] %v4918
        %5431 = vst [vmem:[%s172 + $0x140] sm:$0xff] %v4919
        %5432 = vst [vmem:[%s172 + $0x148] sm:$0xff] %v4920
        %5433 = vst [vmem:[%s172 + $0x150] sm:$0xff] %v4921
        %5434 = vst [vmem:[%s172 + $0x158] sm:$0xff] %v4922
        %5435 = vst [vmem:[%s172 + $0x160] sm:$0xff] %v4923
        %5436 = vst [vmem:[%s172 + $0x168] sm:$0xff] %v4924
        %5437 = vst [vmem:[%s172 + $0x170] sm:$0xff] %v4925
        %5438 = vst [vmem:[%s172 + $0x178] sm:$0xff] %v4926
        %5439 = vst [vmem:[%s172 + $0x180] sm:$0xff] %v4927
        %5440 = vst [vmem:[%s172 + $0x188] sm:$0xff] %v4928
        %5441 = vst [vmem:[%s172 + $0x190] sm:$0xff] %v4929
        %5442 = vst [vmem:[%s172 + $0x198] sm:$0xff] %v4930
        %5443 = vst [vmem:[%s172 + $0x1a0] sm:$0xff] %v4931
        %5444 = vst [vmem:[%s172 + $0x1a8] sm:$0xff] %v4932
        %5445 = vst [vmem:[%s172 + $0x1b0] sm:$0xff] %v4933
        %5446 = vst [vmem:[%s172 + $0x1b8] sm:$0xff] %v4934
        %5447 = vst [vmem:[%s172 + $0x1c0] sm:$0xff] %v4935
        %5448 = vst [vmem:[%s172 + $0x1c8] sm:$0xff] %v4936
        %5449 = vst [vmem:[%s172 + $0x1d0] sm:$0xff] %v4937
        %5450 = vst [vmem:[%s172 + $0x1d8] sm:$0xff] %v4938
        %5451 = vst [vmem:[%s172 + $0x1e0] sm:$0xff] %v4939
        %5452 = vst [vmem:[%s172 + $0x1e8] sm:$0xff] %v4940
        %5453 = vst [vmem:[%s172 + $0x1f0] sm:$0xff] %v4941
        %5454 = vst [vmem:[%s172 + $0x1f8] sm:$0xff] %v4942
        %5455 = vst [vmem:[%s172 + $0x200] sm:$0xff] %v4943
        %5456 = vst [vmem:[%s172 + $0x208] sm:$0xff] %v4944
        %5457 = vst [vmem:[%s172 + $0x210] sm:$0xff] %v4945
        %5458 = vst [vmem:[%s172 + $0x218] sm:$0xff] %v4946
        %5459 = vst [vmem:[%s172 + $0x220] sm:$0xff] %v4947
        %5460 = vst [vmem:[%s172 + $0x228] sm:$0xff] %v4948
        %5461 = vst [vmem:[%s172 + $0x230] sm:$0xff] %v4949
        %5462 = vst [vmem:[%s172 + $0x238] sm:$0xff] %v4950
        %5463 = vst [vmem:[%s172 + $0x240] sm:$0xff] %v4951
        %5464 = vst [vmem:[%s172 + $0x248] sm:$0xff] %v4952
        %5465 = vst [vmem:[%s172 + $0x250] sm:$0xff] %v4953
        %5466 = vst [vmem:[%s172 + $0x258] sm:$0xff] %v4954
        %5467 = vst [vmem:[%s172 + $0x260] sm:$0xff] %v4955
        %5468 = vst [vmem:[%s172 + $0x268] sm:$0xff] %v4956
        %5469 = vst [vmem:[%s172 + $0x270] sm:$0xff] %v4957
        %5470 = vst [vmem:[%s172 + $0x278] sm:$0xff] %v4958
        %5471 = vst [vmem:[%s172 + $0x280] sm:$0xff] %v4959
        %5472 = vst [vmem:[%s172 + $0x288] sm:$0xff] %v4960
        %5473 = vst [vmem:[%s172 + $0x290] sm:$0xff] %v4961
        %5474 = vst [vmem:[%s172 + $0x298] sm:$0xff] %v4962
        %5475 = vst [vmem:[%s172 + $0x2a0] sm:$0xff] %v4963
        %5476 = vst [vmem:[%s172 + $0x2a8] sm:$0xff] %v4964
        %5477 = vst [vmem:[%s172 + $0x2b0] sm:$0xff] %v4965
        %5478 = vst [vmem:[%s172 + $0x2b8] sm:$0xff] %v4966
        %5479 = vst [vmem:[%s172 + $0x2c0] sm:$0xff] %v4967
        %5480 = vst [vmem:[%s172 + $0x2c8] sm:$0xff] %v4968
        %5481 = vst [vmem:[%s172 + $0x2d0] sm:$0xff] %v4969
        %5482 = vst [vmem:[%s172 + $0x2d8] sm:$0xff] %v4970
        %5483 = vst [vmem:[%s172 + $0x2e0] sm:$0xff] %v4971
        %5484 = vst [vmem:[%s172 + $0x2e8] sm:$0xff] %v4972
        %5485 = vst [vmem:[%s172 + $0x2f0] sm:$0xff] %v4973
        %5486 = vst [vmem:[%s172 + $0x2f8] sm:$0xff] %v4974
        %5487 = vst [vmem:[%s172 + $0x300] sm:$0xff] %v4975
        %5488 = vst [vmem:[%s172 + $0x308] sm:$0xff] %v4976
        %5489 = vst [vmem:[%s172 + $0x310] sm:$0xff] %v4977
        %5490 = vst [vmem:[%s172 + $0x318] sm:$0xff] %v4978
        %5491 = vst [vmem:[%s172 + $0x320] sm:$0xff] %v4979
        %5492 = vst [vmem:[%s172 + $0x328] sm:$0xff] %v4980
        %5493 = vst [vmem:[%s172 + $0x330] sm:$0xff] %v4981
        %5494 = vst [vmem:[%s172 + $0x338] sm:$0xff] %v4982
        %5495 = vst [vmem:[%s172 + $0x340] sm:$0xff] %v4983
        %5496 = vst [vmem:[%s172 + $0x348] sm:$0xff] %v4984
        %5497 = vst [vmem:[%s172 + $0x350] sm:$0xff] %v4985
        %5498 = vst [vmem:[%s172 + $0x358] sm:$0xff] %v4986
        %5499 = vst [vmem:[%s172 + $0x360] sm:$0xff] %v4987
        %5500 = vst [vmem:[%s172 + $0x368] sm:$0xff] %v4988
        %5501 = vst [vmem:[%s172 + $0x370] sm:$0xff] %v4989
        %5502 = vst [vmem:[%s172 + $0x378] sm:$0xff] %v4990
        %5503 = vst [vmem:[%s172 + $0x380] sm:$0xff] %v4991
        %5504 = vst [vmem:[%s172 + $0x388] sm:$0xff] %v4992
        %5505 = vst [vmem:[%s172 + $0x390] sm:$0xff] %v4993
        %5506 = vst [vmem:[%s172 + $0x398] sm:$0xff] %v4994
        %5507 = vst [vmem:[%s172 + $0x3a0] sm:$0xff] %v4995
        %5508 = vst [vmem:[%s172 + $0x3a8] sm:$0xff] %v4996
        %5509 = vst [vmem:[%s172 + $0x3b0] sm:$0xff] %v4997
        %5510 = vst [vmem:[%s172 + $0x3b8] sm:$0xff] %v4998
        %5511 = vst [vmem:[%s172 + $0x3c0] sm:$0xff] %v4999
        %5512 = vst [vmem:[%s172 + $0x3c8] sm:$0xff] %v5000
        %5513 = vst [vmem:[%s172 + $0x3d0] sm:$0xff] %v5001
        %5514 = vst [vmem:[%s172 + $0x3d8] sm:$0xff] %v5002
        %5515 = vst [vmem:[%s172 + $0x3e0] sm:$0xff] %v5003
        %5516 = vst [vmem:[%s172 + $0x3e8] sm:$0xff] %v5004
        %5517 = vst [vmem:[%s172 + $0x3f0] sm:$0xff] %v5005
        %5518 = vst [vmem:[%s172 + $0x3f8] sm:$0xff] %v5006
        %5519 = vst [vmem:[%s172 + $0x400] sm:$0xff] %v5007
        %5520 = vst [vmem:[%s172 + $0x408] sm:$0xff] %v5008
        %5521 = vst [vmem:[%s172 + $0x410] sm:$0xff] %v5009
        %5522 = vst [vmem:[%s172 + $0x418] sm:$0xff] %v5010
        %5523 = vst [vmem:[%s172 + $0x420] sm:$0xff] %v5011
        %5524 = vst [vmem:[%s172 + $0x428] sm:$0xff] %v5012
        %5525 = vst [vmem:[%s172 + $0x430] sm:$0xff] %v5013
        %5526 = vst [vmem:[%s172 + $0x438] sm:$0xff] %v5014
        %5527 = vst [vmem:[%s172 + $0x440] sm:$0xff] %v5015
        %5528 = vst [vmem:[%s172 + $0x448] sm:$0xff] %v5016
        %5529 = vst [vmem:[%s172 + $0x450] sm:$0xff] %v5017
        %5530 = vst [vmem:[%s172 + $0x458] sm:$0xff] %v5018
        %5531 = vst [vmem:[%s172 + $0x460] sm:$0xff] %v5019
        %5532 = vst [vmem:[%s172 + $0x468] sm:$0xff] %v5020
        %5533 = vst [vmem:[%s172 + $0x470] sm:$0xff] %v5021
        %5534 = vst [vmem:[%s172 + $0x478] sm:$0xff] %v5022
        %5535 = vst [vmem:[%s172 + $0x480] sm:$0xff] %v5023
        %5536 = vst [vmem:[%s172 + $0x488] sm:$0xff] %v5024
        %5537 = vst [vmem:[%s172 + $0x490] sm:$0xff] %v5025
        %5538 = vst [vmem:[%s172 + $0x498] sm:$0xff] %v5026
        %5539 = vst [vmem:[%s172 + $0x4a0] sm:$0xff] %v5027
        %5540 = vst [vmem:[%s172 + $0x4a8] sm:$0xff] %v5028
        %5541 = vst [vmem:[%s172 + $0x4b0] sm:$0xff] %v5029
        %5542 = vst [vmem:[%s172 + $0x4b8] sm:$0xff] %v5030
        %5543 = vst [vmem:[%s172 + $0x4c0] sm:$0xff] %v5031
        %5544 = vst [vmem:[%s172 + $0x4c8] sm:$0xff] %v5032
        %5545 = vst [vmem:[%s172 + $0x4d0] sm:$0xff] %v5033
        %5546 = vst [vmem:[%s172 + $0x4d8] sm:$0xff] %v5034
        %5547 = vst [vmem:[%s172 + $0x4e0] sm:$0xff] %v5035
        %5548 = vst [vmem:[%s172 + $0x4e8] sm:$0xff] %v5036
        %5549 = vst [vmem:[%s172 + $0x4f0] sm:$0xff] %v5037
        %5550 = vst [vmem:[%s172 + $0x4f8] sm:$0xff] %v5038
        %5551 = vst [vmem:[%s172 + $0x500] sm:$0xff] %v5039
        %5552 = vst [vmem:[%s172 + $0x508] sm:$0xff] %v5040
        %5553 = vst [vmem:[%s172 + $0x510] sm:$0xff] %v5041
        %5554 = vst [vmem:[%s172 + $0x518] sm:$0xff] %v5042
        %5555 = vst [vmem:[%s172 + $0x520] sm:$0xff] %v5043
        %5556 = vst [vmem:[%s172 + $0x528] sm:$0xff] %v5044
        %5557 = vst [vmem:[%s172 + $0x530] sm:$0xff] %v5045
        %5558 = vst [vmem:[%s172 + $0x538] sm:$0xff] %v5046
        %5559 = vst [vmem:[%s172 + $0x540] sm:$0xff] %v5047
        %5560 = vst [vmem:[%s172 + $0x548] sm:$0xff] %v5048
        %5561 = vst [vmem:[%s172 + $0x550] sm:$0xff] %v5049
        %5562 = vst [vmem:[%s172 + $0x558] sm:$0xff] %v5050
        %5563 = vst [vmem:[%s172 + $0x560] sm:$0xff] %v5051
        %5564 = vst [vmem:[%s172 + $0x568] sm:$0xff] %v5052
        %5565 = vst [vmem:[%s172 + $0x570] sm:$0xff] %v5053
        %5566 = vst [vmem:[%s172 + $0x578] sm:$0xff] %v5054
        %5567 = vst [vmem:[%s172 + $0x580] sm:$0xff] %v5055
        %5568 = vst [vmem:[%s172 + $0x588] sm:$0xff] %v5056
        %5569 = vst [vmem:[%s172 + $0x590] sm:$0xff] %v5057
        %5570 = vst [vmem:[%s172 + $0x598] sm:$0xff] %v5058
        %5571 = vst [vmem:[%s172 + $0x5a0] sm:$0xff] %v5059
        %5572 = vst [vmem:[%s172 + $0x5a8] sm:$0xff] %v5060
        %5573 = vst [vmem:[%s172 + $0x5b0] sm:$0xff] %v5061
        %5574 = vst [vmem:[%s172 + $0x5b8] sm:$0xff] %v5062
        %5575 = vst [vmem:[%s172 + $0x5c0] sm:$0xff] %v5063
        %5576 = vst [vmem:[%s172 + $0x5c8] sm:$0xff] %v5064
        %5577 = vst [vmem:[%s172 + $0x5d0] sm:$0xff] %v5065
        %5578 = vst [vmem:[%s172 + $0x5d8] sm:$0xff] %v5066
        %5579 = vst [vmem:[%s172 + $0x5e0] sm:$0xff] %v5067
        %5580 = vst [vmem:[%s172 + $0x5e8] sm:$0xff] %v5068
        %5581 = vst [vmem:[%s172 + $0x5f0] sm:$0xff] %v5069
        %5582 = vst [vmem:[%s172 + $0x5f8] sm:$0xff] %v5070
        %5583 = vst [vmem:[%s172 + $0x600] sm:$0xff] %v5071
        %5584 = vst [vmem:[%s172 + $0x608] sm:$0xff] %v5072
        %5585 = vst [vmem:[%s172 + $0x610] sm:$0xff] %v5073
        %5586 = vst [vmem:[%s172 + $0x618] sm:$0xff] %v5074
        %5587 = vst [vmem:[%s172 + $0x620] sm:$0xff] %v5075
        %5588 = vst [vmem:[%s172 + $0x628] sm:$0xff] %v5076
        %5589 = vst [vmem:[%s172 + $0x630] sm:$0xff] %v5077
        %5590 = vst [vmem:[%s172 + $0x638] sm:$0xff] %v5078
        %5591 = vst [vmem:[%s172 + $0x640] sm:$0xff] %v5079
        %5592 = vst [vmem:[%s172 + $0x648] sm:$0xff] %v5080
        %5593 = vst [vmem:[%s172 + $0x650] sm:$0xff] %v5081
        %5594 = vst [vmem:[%s172 + $0x658] sm:$0xff] %v5082
        %5595 = vst [vmem:[%s172 + $0x660] sm:$0xff] %v5083
        %5596 = vst [vmem:[%s172 + $0x668] sm:$0xff] %v5084
        %5597 = vst [vmem:[%s172 + $0x670] sm:$0xff] %v5085
        %5598 = vst [vmem:[%s172 + $0x678] sm:$0xff] %v5086
        %5599 = vst [vmem:[%s172 + $0x680] sm:$0xff] %v5087
        %5600 = vst [vmem:[%s172 + $0x688] sm:$0xff] %v5088
        %5601 = vst [vmem:[%s172 + $0x690] sm:$0xff] %v5089
        %5602 = vst [vmem:[%s172 + $0x698] sm:$0xff] %v5090
        %5603 = vst [vmem:[%s172 + $0x6a0] sm:$0xff] %v5091
        %5604 = vst [vmem:[%s172 + $0x6a8] sm:$0xff] %v5092
        %5605 = vst [vmem:[%s172 + $0x6b0] sm:$0xff] %v5093
        %5606 = vst [vmem:[%s172 + $0x6b8] sm:$0xff] %v5094
        %5607 = vst [vmem:[%s172 + $0x6c0] sm:$0xff] %v5095
        %5608 = vst [vmem:[%s172 + $0x6c8] sm:$0xff] %v5096
        %5609 = vst [vmem:[%s172 + $0x6d0] sm:$0xff] %v5097
        %5610 = vst [vmem:[%s172 + $0x6d8] sm:$0xff] %v5098
        %5611 = vst [vmem:[%s172 + $0x6e0] sm:$0xff] %v5099
        %5612 = vst [vmem:[%s172 + $0x6e8] sm:$0xff] %v5100
        %5613 = vst [vmem:[%s172 + $0x6f0] sm:$0xff] %v5101
        %5614 = vst [vmem:[%s172 + $0x6f8] sm:$0xff] %v5102
        %5615 = vst [vmem:[%s172 + $0x700] sm:$0xff] %v5103
        %5616 = vst [vmem:[%s172 + $0x708] sm:$0xff] %v5104
        %5617 = vst [vmem:[%s172 + $0x710] sm:$0xff] %v5105
        %5618 = vst [vmem:[%s172 + $0x718] sm:$0xff] %v5106
        %5619 = vst [vmem:[%s172 + $0x720] sm:$0xff] %v5107
        %5620 = vst [vmem:[%s172 + $0x728] sm:$0xff] %v5108
        %5621 = vst [vmem:[%s172 + $0x730] sm:$0xff] %v5109
        %5622 = vst [vmem:[%s172 + $0x738] sm:$0xff] %v5110
        %5623 = vst [vmem:[%s172 + $0x740] sm:$0xff] %v5111
        %5624 = vst [vmem:[%s172 + $0x748] sm:$0xff] %v5112
        %5625 = vst [vmem:[%s172 + $0x750] sm:$0xff] %v5113
        %5626 = vst [vmem:[%s172 + $0x758] sm:$0xff] %v5114
        %5627 = vst [vmem:[%s172 + $0x760] sm:$0xff] %v5115
        %5628 = vst [vmem:[%s172 + $0x768] sm:$0xff] %v5116
        %5629 = vst [vmem:[%s172 + $0x770] sm:$0xff] %v5117
        %5630 = vst [vmem:[%s172 + $0x778] sm:$0xff] %v5118
        %5631 = vst [vmem:[%s172 + $0x780] sm:$0xff] %v5119
        %5632 = vst [vmem:[%s172 + $0x788] sm:$0xff] %v5120
        %5633 = vst [vmem:[%s172 + $0x790] sm:$0xff] %v5121
        %5634 = vst [vmem:[%s172 + $0x798] sm:$0xff] %v5122
        %5635 = vst [vmem:[%s172 + $0x7a0] sm:$0xff] %v5123
        %5636 = vst [vmem:[%s172 + $0x7a8] sm:$0xff] %v5124
        %5637 = vst [vmem:[%s172 + $0x7b0] sm:$0xff] %v5125
        %5638 = vst [vmem:[%s172 + $0x7b8] sm:$0xff] %v5126
        %5639 = vst [vmem:[%s172 + $0x7c0] sm:$0xff] %v5127
        %5640 = vst [vmem:[%s172 + $0x7c8] sm:$0xff] %v5128
        %5641 = vst [vmem:[%s172 + $0x7d0] sm:$0xff] %v5129
        %5642 = vst [vmem:[%s172 + $0x7d8] sm:$0xff] %v5130
        %5643 = vst [vmem:[%s172 + $0x7e0] sm:$0xff] %v5131
        %5644 = vst [vmem:[%s172 + $0x7e8] sm:$0xff] %v5132
        %5645 = vst [vmem:[%s172 + $0x7f0] sm:$0xff] %v5133
        %5646 = vst [vmem:[%s172 + $0x7f8] sm:$0xff] %v5134
        %5647 = vst [vmem:[%s172 + $0x800] sm:$0xff] %v5135
        %5648 = vst [vmem:[%s172 + $0x808] sm:$0xff] %v5136
        %5649 = vst [vmem:[%s172 + $0x810] sm:$0xff] %v5137
        %5650 = vst [vmem:[%s172 + $0x818] sm:$0xff] %v5138
        %5651 = vst [vmem:[%s172 + $0x820] sm:$0xff] %v5139
        %5652 = vst [vmem:[%s172 + $0x828] sm:$0xff] %v5140
        %5653 = vst [vmem:[%s172 + $0x830] sm:$0xff] %v5141
        %5654 = vst [vmem:[%s172 + $0x838] sm:$0xff] %v5142
        %5655 = vst [vmem:[%s172 + $0x840] sm:$0xff] %v5143
        %5656 = vst [vmem:[%s172 + $0x848] sm:$0xff] %v5144
        %5657 = vst [vmem:[%s172 + $0x850] sm:$0xff] %v5145
        %5658 = vst [vmem:[%s172 + $0x858] sm:$0xff] %v5146
        %5659 = vst [vmem:[%s172 + $0x860] sm:$0xff] %v5147
        %5660 = vst [vmem:[%s172 + $0x868] sm:$0xff] %v5148
        %5661 = vst [vmem:[%s172 + $0x870] sm:$0xff] %v5149
        %5662 = vst [vmem:[%s172 + $0x878] sm:$0xff] %v5150
        %5663 = vst [vmem:[%s172 + $0x880] sm:$0xff] %v5151
        %5664 = vst [vmem:[%s172 + $0x888] sm:$0xff] %v5152
        %5665 = vst [vmem:[%s172 + $0x890] sm:$0xff] %v5153
        %5666 = vst [vmem:[%s172 + $0x898] sm:$0xff] %v5154
        %5667 = vst [vmem:[%s172 + $0x8a0] sm:$0xff] %v5155
        %5668 = vst [vmem:[%s172 + $0x8a8] sm:$0xff] %v5156
        %5669 = vst [vmem:[%s172 + $0x8b0] sm:$0xff] %v5157
        %5670 = vst [vmem:[%s172 + $0x8b8] sm:$0xff] %v5158
        %5671 = vst [vmem:[%s172 + $0x8c0] sm:$0xff] %v5159
        %5672 = vst [vmem:[%s172 + $0x8c8] sm:$0xff] %v5160
        %5673 = vst [vmem:[%s172 + $0x8d0] sm:$0xff] %v5161
        %5674 = vst [vmem:[%s172 + $0x8d8] sm:$0xff] %v5162
        %5675 = vst [vmem:[%s172 + $0x8e0] sm:$0xff] %v5163
        %5676 = vst [vmem:[%s172 + $0x8e8] sm:$0xff] %v5164
        %5677 = vst [vmem:[%s172 + $0x8f0] sm:$0xff] %v5165
        %5678 = vst [vmem:[%s172 + $0x8f8] sm:$0xff] %v5166
        %5679 = vst [vmem:[%s172 + $0x900] sm:$0xff] %v5167
        %5680 = vst [vmem:[%s172 + $0x908] sm:$0xff] %v5168
        %5681 = vst [vmem:[%s172 + $0x910] sm:$0xff] %v5169
        %5682 = vst [vmem:[%s172 + $0x918] sm:$0xff] %v5170
        %5683 = vst [vmem:[%s172 + $0x920] sm:$0xff] %v5171
        %5684 = vst [vmem:[%s172 + $0x928] sm:$0xff] %v5172
        %5685 = vst [vmem:[%s172 + $0x930] sm:$0xff] %v5173
        %5686 = vst [vmem:[%s172 + $0x938] sm:$0xff] %v5174
        %5687 = vst [vmem:[%s172 + $0x940] sm:$0xff] %v5175
        %5688 = vst [vmem:[%s172 + $0x948] sm:$0xff] %v5176
        %5689 = vst [vmem:[%s172 + $0x950] sm:$0xff] %v5177
        %5690 = vst [vmem:[%s172 + $0x958] sm:$0xff] %v5178
        %5691 = vst [vmem:[%s172 + $0x960] sm:$0xff] %v5179
        %5692 = vst [vmem:[%s172 + $0x968] sm:$0xff] %v5180
        %5693 = vst [vmem:[%s172 + $0x970] sm:$0xff] %v5181
        %5694 = vst [vmem:[%s172 + $0x978] sm:$0xff] %v5182
        %5695 = vst [vmem:[%s172 + $0x980] sm:$0xff] %v5183
        %5696 = vst [vmem:[%s172 + $0x988] sm:$0xff] %v5184
        %5697 = vst [vmem:[%s172 + $0x990] sm:$0xff] %v5185
        %5698 = vst [vmem:[%s172 + $0x998] sm:$0xff] %v5186
        %5699 = vst [vmem:[%s172 + $0x9a0] sm:$0xff] %v5187
        %5700 = vst [vmem:[%s172 + $0x9a8] sm:$0xff] %v5188
        %5701 = vst [vmem:[%s172 + $0x9b0] sm:$0xff] %v5189
        %5702 = vst [vmem:[%s172 + $0x9b8] sm:$0xff] %v5190
        %5703 = vst [vmem:[%s172 + $0x9c0] sm:$0xff] %v5191
        %5704 = vst [vmem:[%s172 + $0x9c8] sm:$0xff] %v5192
        %5705 = vst [vmem:[%s172 + $0x9d0] sm:$0xff] %v5193
        %5706 = vst [vmem:[%s172 + $0x9d8] sm:$0xff] %v5194
        %5707 = vst [vmem:[%s172 + $0x9e0] sm:$0xff] %v5195
        %5708 = vst [vmem:[%s172 + $0x9e8] sm:$0xff] %v5196
        %5709 = vst [vmem:[%s172 + $0x9f0] sm:$0xff] %v5197
        %5710 = vst [vmem:[%s172 + $0x9f8] sm:$0xff] %v5198
        %5711 = vst [vmem:[%s172 + $0xa00] sm:$0xff] %v5199
        %5712 = vst [vmem:[%s172 + $0xa08] sm:$0xff] %v5200
        %5713 = vst [vmem:[%s172 + $0xa10] sm:$0xff] %v5201
        %5714 = vst [vmem:[%s172 + $0xa18] sm:$0xff] %v5202
        %5715 = vst [vmem:[%s172 + $0xa20] sm:$0xff] %v5203
        %5716 = vst [vmem:[%s172 + $0xa28] sm:$0xff] %v5204
        %5717 = vst [vmem:[%s172 + $0xa30] sm:$0xff] %v5205
        %5718 = vst [vmem:[%s172 + $0xa38] sm:$0xff] %v5206
        %5719 = vst [vmem:[%s172 + $0xa40] sm:$0xff] %v5207
        %5720 = vst [vmem:[%s172 + $0xa48] sm:$0xff] %v5208
        %5721 = vst [vmem:[%s172 + $0xa50] sm:$0xff] %v5209
        %5722 = vst [vmem:[%s172 + $0xa58] sm:$0xff] %v5210
        %5723 = vst [vmem:[%s172 + $0xa60] sm:$0xff] %v5211
        %5724 = vst [vmem:[%s172 + $0xa68] sm:$0xff] %v5212
        %5725 = vst [vmem:[%s172 + $0xa70] sm:$0xff] %v5213
        %5726 = vst [vmem:[%s172 + $0xa78] sm:$0xff] %v5214
        %5727 = vst [vmem:[%s172 + $0xa80] sm:$0xff] %v5215
        %5728 = vst [vmem:[%s172 + $0xa88] sm:$0xff] %v5216
        %5729 = vst [vmem:[%s172 + $0xa90] sm:$0xff] %v5217
        %5730 = vst [vmem:[%s172 + $0xa98] sm:$0xff] %v5218
        %5731 = vst [vmem:[%s172 + $0xaa0] sm:$0xff] %v5219
        %5732 = vst [vmem:[%s172 + $0xaa8] sm:$0xff] %v5220
        %5733 = vst [vmem:[%s172 + $0xab0] sm:$0xff] %v5221
        %5734 = vst [vmem:[%s172 + $0xab8] sm:$0xff] %v5222
        %5735 = vst [vmem:[%s172 + $0xac0] sm:$0xff] %v5223
        %5736 = vst [vmem:[%s172 + $0xac8] sm:$0xff] %v5224
        %5737 = vst [vmem:[%s172 + $0xad0] sm:$0xff] %v5225
        %5738 = vst [vmem:[%s172 + $0xad8] sm:$0xff] %v5226
        %5739 = vst [vmem:[%s172 + $0xae0] sm:$0xff] %v5227
        %5740 = vst [vmem:[%s172 + $0xae8] sm:$0xff] %v5228
        %5741 = vst [vmem:[%s172 + $0xaf0] sm:$0xff] %v5229
        %5742 = vst [vmem:[%s172 + $0xaf8] sm:$0xff] %v5230
        %5743 = vst [vmem:[%s172 + $0xb00] sm:$0xff] %v5231
        %5744 = vst [vmem:[%s172 + $0xb08] sm:$0xff] %v5232
        %5745 = vst [vmem:[%s172 + $0xb10] sm:$0xff] %v5233
        %5746 = vst [vmem:[%s172 + $0xb18] sm:$0xff] %v5234
        %5747 = vst [vmem:[%s172 + $0xb20] sm:$0xff] %v5235
        %5748 = vst [vmem:[%s172 + $0xb28] sm:$0xff] %v5236
        %5749 = vst [vmem:[%s172 + $0xb30] sm:$0xff] %v5237
        %5750 = vst [vmem:[%s172 + $0xb38] sm:$0xff] %v5238
        %5751 = vst [vmem:[%s172 + $0xb40] sm:$0xff] %v5239
        %5752 = vst [vmem:[%s172 + $0xb48] sm:$0xff] %v5240
        %5753 = vst [vmem:[%s172 + $0xb50] sm:$0xff] %v5241
        %5754 = vst [vmem:[%s172 + $0xb58] sm:$0xff] %v5242
        %5755 = vst [vmem:[%s172 + $0xb60] sm:$0xff] %v5243
        %5756 = vst [vmem:[%s172 + $0xb68] sm:$0xff] %v5244
        %5757 = vst [vmem:[%s172 + $0xb70] sm:$0xff] %v5245
        %5758 = vst [vmem:[%s172 + $0xb78] sm:$0xff] %v5246
        %5759 = vst [vmem:[%s172 + $0xb80] sm:$0xff] %v5247
        %5760 = vst [vmem:[%s172 + $0xb88] sm:$0xff] %v5248
        %5761 = vst [vmem:[%s172 + $0xb90] sm:$0xff] %v5249
        %5762 = vst [vmem:[%s172 + $0xb98] sm:$0xff] %v5250
        %5763 = vst [vmem:[%s172 + $0xba0] sm:$0xff] %v5251
        %5764 = vst [vmem:[%s172 + $0xba8] sm:$0xff] %v5252
        %5765 = vst [vmem:[%s172 + $0xbb0] sm:$0xff] %v5253
        %5766 = vst [vmem:[%s172 + $0xbb8] sm:$0xff] %v5254
        %5767 = vst [vmem:[%s172 + $0xbc0] sm:$0xff] %v5255
        %5768 = vst [vmem:[%s172 + $0xbc8] sm:$0xff] %v5256
        %5769 = vst [vmem:[%s172 + $0xbd0] sm:$0xff] %v5257
        %5770 = vst [vmem:[%s172 + $0xbd8] sm:$0xff] %v5258
        %5771 = vst [vmem:[%s172 + $0xbe0] sm:$0xff] %v5259
        %5772 = vst [vmem:[%s172 + $0xbe8] sm:$0xff] %v5260
        %5773 = vst [vmem:[%s172 + $0xbf0] sm:$0xff] %v5261
        %5774 = vst [vmem:[%s172 + $0xbf8] sm:$0xff] %v5262
        %5775 = vst [vmem:[%s172 + $0xc00] sm:$0xff] %v5263
        %5776 = vst [vmem:[%s172 + $0xc08] sm:$0xff] %v5264
        %5777 = vst [vmem:[%s172 + $0xc10] sm:$0xff] %v5265
        %5778 = vst [vmem:[%s172 + $0xc18] sm:$0xff] %v5266
        %5779 = vst [vmem:[%s172 + $0xc20] sm:$0xff] %v5267
        %5780 = vst [vmem:[%s172 + $0xc28] sm:$0xff] %v5268
        %5781 = vst [vmem:[%s172 + $0xc30] sm:$0xff] %v5269
        %5782 = vst [vmem:[%s172 + $0xc38] sm:$0xff] %v5270
        %5783 = vst [vmem:[%s172 + $0xc40] sm:$0xff] %v5271
        %5784 = vst [vmem:[%s172 + $0xc48] sm:$0xff] %v5272
        %5785 = vst [vmem:[%s172 + $0xc50] sm:$0xff] %v5273
        %5786 = vst [vmem:[%s172 + $0xc58] sm:$0xff] %v5274
        %5787 = vst [vmem:[%s172 + $0xc60] sm:$0xff] %v5275
        %5788 = vst [vmem:[%s172 + $0xc68] sm:$0xff] %v5276
        %5789 = vst [vmem:[%s172 + $0xc70] sm:$0xff] %v5277
        %5790 = vst [vmem:[%s172 + $0xc78] sm:$0xff] %v5278
        %5791 = vst [vmem:[%s172 + $0xc80] sm:$0xff] %v5279
        %5792 = vst [vmem:[%s172 + $0xc88] sm:$0xff] %v5280
        %5793 = vst [vmem:[%s172 + $0xc90] sm:$0xff] %v5281
        %5794 = vst [vmem:[%s172 + $0xc98] sm:$0xff] %v5282
        %5795 = vst [vmem:[%s172 + $0xca0] sm:$0xff] %v5283
        %5796 = vst [vmem:[%s172 + $0xca8] sm:$0xff] %v5284
        %5797 = vst [vmem:[%s172 + $0xcb0] sm:$0xff] %v5285
        %5798 = vst [vmem:[%s172 + $0xcb8] sm:$0xff] %v5286
        %5799 = vst [vmem:[%s172 + $0xcc0] sm:$0xff] %v5287
        %5800 = vst [vmem:[%s172 + $0xcc8] sm:$0xff] %v5288
        %5801 = vst [vmem:[%s172 + $0xcd0] sm:$0xff] %v5289
        %5802 = vst [vmem:[%s172 + $0xcd8] sm:$0xff] %v5290
        %5803 = vst [vmem:[%s172 + $0xce0] sm:$0xff] %v5291
        %5804 = vst [vmem:[%s172 + $0xce8] sm:$0xff] %v5292
        %5805 = vst [vmem:[%s172 + $0xcf0] sm:$0xff] %v5293
        %5806 = vst [vmem:[%s172 + $0xcf8] sm:$0xff] %v5294
        %5807 = vst [vmem:[%s172 + $0xd00] sm:$0xff] %v5295
        %5808 = vst [vmem:[%s172 + $0xd08] sm:$0xff] %v5296
        %5809 = vst [vmem:[%s172 + $0xd10] sm:$0xff] %v5297
        %5810 = vst [vmem:[%s172 + $0xd18] sm:$0xff] %v5298
        %5811 = vst [vmem:[%s172 + $0xd20] sm:$0xff] %v5299
        %5812 = vst [vmem:[%s172 + $0xd28] sm:$0xff] %v5300
        %5813 = vst [vmem:[%s172 + $0xd30] sm:$0xff] %v5301
        %5814 = vst [vmem:[%s172 + $0xd38] sm:$0xff] %v5302
        %5815 = vst [vmem:[%s172 + $0xd40] sm:$0xff] %v5303
        %5816 = vst [vmem:[%s172 + $0xd48] sm:$0xff] %v5304
        %5817 = vst [vmem:[%s172 + $0xd50] sm:$0xff] %v5305
        %5818 = vst [vmem:[%s172 + $0xd58] sm:$0xff] %v5306
        %5819 = vst [vmem:[%s172 + $0xd60] sm:$0xff] %v5307
        %5820 = vst [vmem:[%s172 + $0xd68] sm:$0xff] %v5308
        %5821 = vst [vmem:[%s172 + $0xd70] sm:$0xff] %v5309
        %5822 = vst [vmem:[%s172 + $0xd78] sm:$0xff] %v5310
        %5823 = vst [vmem:[%s172 + $0xd80] sm:$0xff] %v5311
        %5824 = vst [vmem:[%s172 + $0xd88] sm:$0xff] %v5312
        %5825 = vst [vmem:[%s172 + $0xd90] sm:$0xff] %v5313
        %5826 = vst [vmem:[%s172 + $0xd98] sm:$0xff] %v5314
        %5827 = vst [vmem:[%s172 + $0xda0] sm:$0xff] %v5315
        %5828 = vst [vmem:[%s172 + $0xda8] sm:$0xff] %v5316
        %5829 = vst [vmem:[%s172 + $0xdb0] sm:$0xff] %v5317
        %5830 = vst [vmem:[%s172 + $0xdb8] sm:$0xff] %v5318
        %5831 = vst [vmem:[%s172 + $0xdc0] sm:$0xff] %v5319
        %5832 = vst [vmem:[%s172 + $0xdc8] sm:$0xff] %v5320
        %5833 = vst [vmem:[%s172 + $0xdd0] sm:$0xff] %v5321
        %5834 = vst [vmem:[%s172 + $0xdd8] sm:$0xff] %v5322
        %5835 = vst [vmem:[%s172 + $0xde0] sm:$0xff] %v5323
        %5836 = vst [vmem:[%s172 + $0xde8] sm:$0xff] %v5324
        %5837 = vst [vmem:[%s172 + $0xdf0] sm:$0xff] %v5325
        %5838 = vst [vmem:[%s172 + $0xdf8] sm:$0xff] %v5326
        %5839 = vst [vmem:[%s172 + $0xe00] sm:$0xff] %v5327
        %5840 = vst [vmem:[%s172 + $0xe08] sm:$0xff] %v5328
        %5841 = vst [vmem:[%s172 + $0xe10] sm:$0xff] %v5329
        %5842 = vst [vmem:[%s172 + $0xe18] sm:$0xff] %v5330
        %5843 = vst [vmem:[%s172 + $0xe20] sm:$0xff] %v5331
        %5844 = vst [vmem:[%s172 + $0xe28] sm:$0xff] %v5332
        %5845 = vst [vmem:[%s172 + $0xe30] sm:$0xff] %v5333
        %5846 = vst [vmem:[%s172 + $0xe38] sm:$0xff] %v5334
        %5847 = vst [vmem:[%s172 + $0xe40] sm:$0xff] %v5335
        %5848 = vst [vmem:[%s172 + $0xe48] sm:$0xff] %v5336
        %5849 = vst [vmem:[%s172 + $0xe50] sm:$0xff] %v5337
        %5850 = vst [vmem:[%s172 + $0xe58] sm:$0xff] %v5338
        %5851 = vst [vmem:[%s172 + $0xe60] sm:$0xff] %v5339
        %5852 = vst [vmem:[%s172 + $0xe68] sm:$0xff] %v5340
        %5853 = vst [vmem:[%s172 + $0xe70] sm:$0xff] %v5341
        %5854 = vst [vmem:[%s172 + $0xe78] sm:$0xff] %v5342
        %5855 = vst [vmem:[%s172 + $0xe80] sm:$0xff] %v5343
        %5856 = vst [vmem:[%s172 + $0xe88] sm:$0xff] %v5344
        %5857 = vst [vmem:[%s172 + $0xe90] sm:$0xff] %v5345
        %5858 = vst [vmem:[%s172 + $0xe98] sm:$0xff] %v5346
        %5859 = vst [vmem:[%s172 + $0xea0] sm:$0xff] %v5347
        %5860 = vst [vmem:[%s172 + $0xea8] sm:$0xff] %v5348
        %5861 = vst [vmem:[%s172 + $0xeb0] sm:$0xff] %v5349
        %5862 = vst [vmem:[%s172 + $0xeb8] sm:$0xff] %v5350
        %5863 = vst [vmem:[%s172 + $0xec0] sm:$0xff] %v5351
        %5864 = vst [vmem:[%s172 + $0xec8] sm:$0xff] %v5352
        %5865 = vst [vmem:[%s172 + $0xed0] sm:$0xff] %v5353
        %5866 = vst [vmem:[%s172 + $0xed8] sm:$0xff] %v5354
        %5867 = vst [vmem:[%s172 + $0xee0] sm:$0xff] %v5355
        %5868 = vst [vmem:[%s172 + $0xee8] sm:$0xff] %v5356
        %5869 = vst [vmem:[%s172 + $0xef0] sm:$0xff] %v5357
        %5870 = vst [vmem:[%s172 + $0xef8] sm:$0xff] %v5358
        %5871 = vst [vmem:[%s172 + $0xf00] sm:$0xff] %v5359
        %5872 = vst [vmem:[%s172 + $0xf08] sm:$0xff] %v5360
        %5873 = vst [vmem:[%s172 + $0xf10] sm:$0xff] %v5361
        %5874 = vst [vmem:[%s172 + $0xf18] sm:$0xff] %v5362
        %5875 = vst [vmem:[%s172 + $0xf20] sm:$0xff] %v5363
        %5876 = vst [vmem:[%s172 + $0xf28] sm:$0xff] %v5364
        %5877 = vst [vmem:[%s172 + $0xf30] sm:$0xff] %v5365
        %5878 = vst [vmem:[%s172 + $0xf38] sm:$0xff] %v5366
        %5879 = vst [vmem:[%s172 + $0xf40] sm:$0xff] %v5367
        %5880 = vst [vmem:[%s172 + $0xf48] sm:$0xff] %v5368
        %5881 = vst [vmem:[%s172 + $0xf50] sm:$0xff] %v5369
        %5882 = vst [vmem:[%s172 + $0xf58] sm:$0xff] %v5370
        %5883 = vst [vmem:[%s172 + $0xf60] sm:$0xff] %v5371
        %5884 = vst [vmem:[%s172 + $0xf68] sm:$0xff] %v5372
        %5885 = vst [vmem:[%s172 + $0xf70] sm:$0xff] %v5373
        %5886 = vst [vmem:[%s172 + $0xf78] sm:$0xff] %v5374
        %5887 = vst [vmem:[%s172 + $0xf80] sm:$0xff] %v5375
        %5888 = vst [vmem:[%s172 + $0xf88] sm:$0xff] %v5376
        %5889 = vst [vmem:[%s172 + $0xf90] sm:$0xff] %v5377
        %5890 = vst [vmem:[%s172 + $0xf98] sm:$0xff] %v5378
        %5891 = vst [vmem:[%s172 + $0xfa0] sm:$0xff] %v5379
        %5892 = vst [vmem:[%s172 + $0xfa8] sm:$0xff] %v5380
        %5893 = vst [vmem:[%s172 + $0xfb0] sm:$0xff] %v5381
        %5894 = vst [vmem:[%s172 + $0xfb8] sm:$0xff] %v5382
        %5895 = vst [vmem:[%s172 + $0xfc0] sm:$0xff] %v5383
        %5896 = vst [vmem:[%s172 + $0xfc8] sm:$0xff] %v5384
        %5897 = vst [vmem:[%s172 + $0xfd0] sm:$0xff] %v5385
        %5898 = vst [vmem:[%s172 + $0xfd8] sm:$0xff] %v5386
        %5899 = vst [vmem:[%s172 + $0xfe0] sm:$0xff] %v5387
        %5900 = vst [vmem:[%s172 + $0xfe8] sm:$0xff] %v5388
        %5901 = vst [vmem:[%s172 + $0xff0] sm:$0xff] %v5389
        %5902 = vst [vmem:[%s172 + $0xff8] sm:$0xff] %v5390
        %s5903 = sand.u32 %s90, 1
        %s5904 = sand.u32 %s90, 1
        %s5905 = smul.addr %s5904, 4096
        %s5906 = scalar_lea.vmem [#allocation2], %s5905
        // Predicated region
        $region33: #{nn2dmel_forward.3} parent=31 // pred_check
          %p5907 = pneg %p100
        $region34: #{nn2dmel_forward.3} parent=31 // pred_check_branch
          %5909 = sbr.rel (%p5907) target = $region36
        $region35: #{nn2dmel_forward.3} parent=31 // pred_region
          %s5910 = smul.u32 512, %s14
          %s5911 = ssub.s32 1209, %s5910
          %p5912 = scmp.lt.s32.totalorder %s5911, 512
          %s5913 = scalar_select %p5912, %s5911, 512
          %s5914 = smul.u32 128, %s5913
          %p5915 = scmp.ne.s32.totalorder 0, %s5914
          %s5916 = smul.addr %s5910, 8
          %s5917 = scalar_lea.vmem %s3, %s5916
          // Predicated region
          $region37: #{nn2dmel_forward.3} parent=35 // pred_check
            %p5918 = pneg %p5915
          $region38: #{nn2dmel_forward.3} parent=35 // pred_check_branch
            %5920 = sbr.rel (%p5918) target = $region40
          $region39: #{nn2dmel_forward.3} parent=35 // pred_region
            // Predicated region
            $region41: #{nn2dmel_forward.3} parent=39 // pred_check
              _
            $region42: #{nn2dmel_forward.3} parent=39 // pred_check_branch
              %5922 = sbr.rel (0) target = $region44
            $region43: #{nn2dmel_forward.3} parent=39 // pred_region
              // Predicated region
              $region63: #{nn2dmel_forward.3} parent=43 // pred_check
                _
              $region64: #{nn2dmel_forward.3} parent=43 // pred_check_branch
                %6097 = sbr.rel (0) target = $region66
              $region65: #{nn2dmel_forward.3} parent=43 // pred_region
                %s6098 = sshrl.u32 %s5913, 6
                // While loop
                $region67: #{nn2dmel_forward.3} parent=65 // loop_pre_header
                  _
                $region68: #{nn2dmel_forward.3} parent=65 // loop_header
                  %s6100 = sphi 0, %s6102
                  %p6101 = scmp.ge.s32.totalorder %s6100, %s6098
                  %s6105 = sphi 0, %s6238
                  %s6106 = sphi %s5906, %s6241
                  %s6107 = sphi %s5917, %s6242
                $region69: #{nn2dmel_forward.3} parent=65 // loop_header_branch
                  %6104 = sbr.rel (%p6101) target = $region73
                $region70: #{nn2dmel_forward.3} parent=65 // loop_body
                  %v6108 = vld [vmem:[%s6106] sm:$0xff]
                  %6109 = vst [vmem:[%s6107] sm:$0xff] %v6108
                  %v6110 = vld [vmem:[%s6106 + $0x8] sm:$0xff]
                  %6111 = vst [vmem:[%s6107 + $0x8] sm:$0xff] %v6110
                  %v6112 = vld [vmem:[%s6106 + $0x10] sm:$0xff]
                  %6113 = vst [vmem:[%s6107 + $0x10] sm:$0xff] %v6112
                  %v6114 = vld [vmem:[%s6106 + $0x18] sm:$0xff]
                  %6115 = vst [vmem:[%s6107 + $0x18] sm:$0xff] %v6114
                  %v6116 = vld [vmem:[%s6106 + $0x20] sm:$0xff]
                  %6117 = vst [vmem:[%s6107 + $0x20] sm:$0xff] %v6116
                  %v6118 = vld [vmem:[%s6106 + $0x28] sm:$0xff]
                  %6119 = vst [vmem:[%s6107 + $0x28] sm:$0xff] %v6118
                  %v6120 = vld [vmem:[%s6106 + $0x30] sm:$0xff]
                  %6121 = vst [vmem:[%s6107 + $0x30] sm:$0xff] %v6120
                  %v6122 = vld [vmem:[%s6106 + $0x38] sm:$0xff]
                  %6123 = vst [vmem:[%s6107 + $0x38] sm:$0xff] %v6122
                  %v6124 = vld [vmem:[%s6106 + $0x40] sm:$0xff]
                  %6125 = vst [vmem:[%s6107 + $0x40] sm:$0xff] %v6124
                  %v6126 = vld [vmem:[%s6106 + $0x48] sm:$0xff]
                  %6127 = vst [vmem:[%s6107 + $0x48] sm:$0xff] %v6126
                  %v6128 = vld [vmem:[%s6106 + $0x50] sm:$0xff]
                  %6129 = vst [vmem:[%s6107 + $0x50] sm:$0xff] %v6128
                  %v6130 = vld [vmem:[%s6106 + $0x58] sm:$0xff]
                  %6131 = vst [vmem:[%s6107 + $0x58] sm:$0xff] %v6130
                  %v6132 = vld [vmem:[%s6106 + $0x60] sm:$0xff]
                  %6133 = vst [vmem:[%s6107 + $0x60] sm:$0xff] %v6132
                  %v6134 = vld [vmem:[%s6106 + $0x68] sm:$0xff]
                  %6135 = vst [vmem:[%s6107 + $0x68] sm:$0xff] %v6134
                  %v6136 = vld [vmem:[%s6106 + $0x70] sm:$0xff]
                  %6137 = vst [vmem:[%s6107 + $0x70] sm:$0xff] %v6136
                  %v6138 = vld [vmem:[%s6106 + $0x78] sm:$0xff]
                  %6139 = vst [vmem:[%s6107 + $0x78] sm:$0xff] %v6138
                  %v6140 = vld [vmem:[%s6106 + $0x80] sm:$0xff]
                  %6141 = vst [vmem:[%s6107 + $0x80] sm:$0xff] %v6140
                  %v6142 = vld [vmem:[%s6106 + $0x88] sm:$0xff]
                  %6143 = vst [vmem:[%s6107 + $0x88] sm:$0xff] %v6142
                  %v6144 = vld [vmem:[%s6106 + $0x90] sm:$0xff]
                  %6145 = vst [vmem:[%s6107 + $0x90] sm:$0xff] %v6144
                  %v6146 = vld [vmem:[%s6106 + $0x98] sm:$0xff]
                  %6147 = vst [vmem:[%s6107 + $0x98] sm:$0xff] %v6146
                  %v6148 = vld [vmem:[%s6106 + $0xa0] sm:$0xff]
                  %6149 = vst [vmem:[%s6107 + $0xa0] sm:$0xff] %v6148
                  %v6150 = vld [vmem:[%s6106 + $0xa8] sm:$0xff]
                  %6151 = vst [vmem:[%s6107 + $0xa8] sm:$0xff] %v6150
                  %v6152 = vld [vmem:[%s6106 + $0xb0] sm:$0xff]
                  %6153 = vst [vmem:[%s6107 + $0xb0] sm:$0xff] %v6152
                  %v6154 = vld [vmem:[%s6106 + $0xb8] sm:$0xff]
                  %6155 = vst [vmem:[%s6107 + $0xb8] sm:$0xff] %v6154
                  %v6156 = vld [vmem:[%s6106 + $0xc0] sm:$0xff]
                  %6157 = vst [vmem:[%s6107 + $0xc0] sm:$0xff] %v6156
                  %v6158 = vld [vmem:[%s6106 + $0xc8] sm:$0xff]
                  %6159 = vst [vmem:[%s6107 + $0xc8] sm:$0xff] %v6158
                  %v6160 = vld [vmem:[%s6106 + $0xd0] sm:$0xff]
                  %6161 = vst [vmem:[%s6107 + $0xd0] sm:$0xff] %v6160
                  %v6162 = vld [vmem:[%s6106 + $0xd8] sm:$0xff]
                  %6163 = vst [vmem:[%s6107 + $0xd8] sm:$0xff] %v6162
                  %v6164 = vld [vmem:[%s6106 + $0xe0] sm:$0xff]
                  %6165 = vst [vmem:[%s6107 + $0xe0] sm:$0xff] %v6164
                  %v6166 = vld [vmem:[%s6106 + $0xe8] sm:$0xff]
                  %6167 = vst [vmem:[%s6107 + $0xe8] sm:$0xff] %v6166
                  %v6168 = vld [vmem:[%s6106 + $0xf0] sm:$0xff]
                  %6169 = vst [vmem:[%s6107 + $0xf0] sm:$0xff] %v6168
                  %v6170 = vld [vmem:[%s6106 + $0xf8] sm:$0xff]
                  %6171 = vst [vmem:[%s6107 + $0xf8] sm:$0xff] %v6170
                  %v6172 = vld [vmem:[%s6106 + $0x100] sm:$0xff]
                  %6173 = vst [vmem:[%s6107 + $0x100] sm:$0xff] %v6172
                  %v6174 = vld [vmem:[%s6106 + $0x108] sm:$0xff]
                  %6175 = vst [vmem:[%s6107 + $0x108] sm:$0xff] %v6174
                  %v6176 = vld [vmem:[%s6106 + $0x110] sm:$0xff]
                  %6177 = vst [vmem:[%s6107 + $0x110] sm:$0xff] %v6176
                  %v6178 = vld [vmem:[%s6106 + $0x118] sm:$0xff]
                  %6179 = vst [vmem:[%s6107 + $0x118] sm:$0xff] %v6178
                  %v6180 = vld [vmem:[%s6106 + $0x120] sm:$0xff]
                  %6181 = vst [vmem:[%s6107 + $0x120] sm:$0xff] %v6180
                  %v6182 = vld [vmem:[%s6106 + $0x128] sm:$0xff]
                  %6183 = vst [vmem:[%s6107 + $0x128] sm:$0xff] %v6182
                  %v6184 = vld [vmem:[%s6106 + $0x130] sm:$0xff]
                  %6185 = vst [vmem:[%s6107 + $0x130] sm:$0xff] %v6184
                  %v6186 = vld [vmem:[%s6106 + $0x138] sm:$0xff]
                  %6187 = vst [vmem:[%s6107 + $0x138] sm:$0xff] %v6186
                  %v6188 = vld [vmem:[%s6106 + $0x140] sm:$0xff]
                  %6189 = vst [vmem:[%s6107 + $0x140] sm:$0xff] %v6188
                  %v6190 = vld [vmem:[%s6106 + $0x148] sm:$0xff]
                  %6191 = vst [vmem:[%s6107 + $0x148] sm:$0xff] %v6190
                  %v6192 = vld [vmem:[%s6106 + $0x150] sm:$0xff]
                  %6193 = vst [vmem:[%s6107 + $0x150] sm:$0xff] %v6192
                  %v6194 = vld [vmem:[%s6106 + $0x158] sm:$0xff]
                  %6195 = vst [vmem:[%s6107 + $0x158] sm:$0xff] %v6194
                  %v6196 = vld [vmem:[%s6106 + $0x160] sm:$0xff]
                  %6197 = vst [vmem:[%s6107 + $0x160] sm:$0xff] %v6196
                  %v6198 = vld [vmem:[%s6106 + $0x168] sm:$0xff]
                  %6199 = vst [vmem:[%s6107 + $0x168] sm:$0xff] %v6198
                  %v6200 = vld [vmem:[%s6106 + $0x170] sm:$0xff]
                  %6201 = vst [vmem:[%s6107 + $0x170] sm:$0xff] %v6200
                  %v6202 = vld [vmem:[%s6106 + $0x178] sm:$0xff]
                  %6203 = vst [vmem:[%s6107 + $0x178] sm:$0xff] %v6202
                  %v6204 = vld [vmem:[%s6106 + $0x180] sm:$0xff]
                  %6205 = vst [vmem:[%s6107 + $0x180] sm:$0xff] %v6204
                  %v6206 = vld [vmem:[%s6106 + $0x188] sm:$0xff]
                  %6207 = vst [vmem:[%s6107 + $0x188] sm:$0xff] %v6206
                  %v6208 = vld [vmem:[%s6106 + $0x190] sm:$0xff]
                  %6209 = vst [vmem:[%s6107 + $0x190] sm:$0xff] %v6208
                  %v6210 = vld [vmem:[%s6106 + $0x198] sm:$0xff]
                  %6211 = vst [vmem:[%s6107 + $0x198] sm:$0xff] %v6210
                  %v6212 = vld [vmem:[%s6106 + $0x1a0] sm:$0xff]
                  %6213 = vst [vmem:[%s6107 + $0x1a0] sm:$0xff] %v6212
                  %v6214 = vld [vmem:[%s6106 + $0x1a8] sm:$0xff]
                  %6215 = vst [vmem:[%s6107 + $0x1a8] sm:$0xff] %v6214
                  %v6216 = vld [vmem:[%s6106 + $0x1b0] sm:$0xff]
                  %6217 = vst [vmem:[%s6107 + $0x1b0] sm:$0xff] %v6216
                  %v6218 = vld [vmem:[%s6106 + $0x1b8] sm:$0xff]
                  %6219 = vst [vmem:[%s6107 + $0x1b8] sm:$0xff] %v6218
                  %v6220 = vld [vmem:[%s6106 + $0x1c0] sm:$0xff]
                  %6221 = vst [vmem:[%s6107 + $0x1c0] sm:$0xff] %v6220
                  %v6222 = vld [vmem:[%s6106 + $0x1c8] sm:$0xff]
                  %6223 = vst [vmem:[%s6107 + $0x1c8] sm:$0xff] %v6222
                  %v6224 = vld [vmem:[%s6106 + $0x1d0] sm:$0xff]
                  %6225 = vst [vmem:[%s6107 + $0x1d0] sm:$0xff] %v6224
                  %v6226 = vld [vmem:[%s6106 + $0x1d8] sm:$0xff]
                  %6227 = vst [vmem:[%s6107 + $0x1d8] sm:$0xff] %v6226
                  %v6228 = vld [vmem:[%s6106 + $0x1e0] sm:$0xff]
                  %6229 = vst [vmem:[%s6107 + $0x1e0] sm:$0xff] %v6228
                  %v6230 = vld [vmem:[%s6106 + $0x1e8] sm:$0xff]
                  %6231 = vst [vmem:[%s6107 + $0x1e8] sm:$0xff] %v6230
                  %v6232 = vld [vmem:[%s6106 + $0x1f0] sm:$0xff]
                  %6233 = vst [vmem:[%s6107 + $0x1f0] sm:$0xff] %v6232
                  %v6234 = vld [vmem:[%s6106 + $0x1f8] sm:$0xff]
                  %6235 = vst [vmem:[%s6107 + $0x1f8] sm:$0xff] %v6234
                  %s6236 = sadd.s32 1, %s6105
                  %p6237 = scmp.ge.s32.totalorder %s6236, %s6098
                  %s6238 = scalar_select %p6237, 0, %s6236
                  %s6239 = smul.u32 %s6238, 512
                  %s6240 = smul.u32 %s6238, 512
                  %s6241 = scalar_lea.vmem %s5906, %s6239 [#allocation2]
                  %s6242 = scalar_lea.vmem %s5917, %s6240
                $region71: #{nn2dmel_forward.3} parent=65 // loop_footer
                  %s6102 = sadd.s32 %s6100, 1
                $region72: #{nn2dmel_forward.3} parent=65 // loop_footer_branch
                  %6099 = sbr.rel target = $region68
                $region73: #{nn2dmel_forward.3} parent=65 // loop_exit
                  _
                %s6243 = sshrl.u32 %s5913, 6
                %s6244 = sand.u32 %s5913, 63
                %s6245 = smul.u32 %s6243, 64
                %s6246 = smul.u32 8, %s6245
                %s6247 = scalar_lea.vmem %s5906, %s6246 [#allocation2]
                %s6248 = smul.u32 8, %s6245
                %s6249 = scalar_lea.vmem %s5917, %s6248
                // While loop
                $region74: #{nn2dmel_forward.3} parent=65 // loop_pre_header
                  _
                $region75: #{nn2dmel_forward.3} parent=65 // loop_header
                  %s6251 = sphi 0, %s6253
                  %p6252 = scmp.ge.s32.totalorder %s6251, %s6244
                  %s6256 = sphi 0, %s6263
                  %s6257 = sphi %s6247, %s6266
                  %s6258 = sphi %s6249, %s6267
                $region76: #{nn2dmel_forward.3} parent=65 // loop_header_branch
                  %6255 = sbr.rel (%p6252) target = $region80
                $region77: #{nn2dmel_forward.3} parent=65 // loop_body
                  %v6259 = vld [vmem:[%s6257] sm:$0xff]
                  %6260 = vst [vmem:[%s6258] sm:$0xff] %v6259
                  %s6261 = sadd.s32 1, %s6256
                  %p6262 = scmp.ge.s32.totalorder %s6261, %s6244
                  %s6263 = scalar_select %p6262, 0, %s6261
                  %s6264 = smul.u32 %s6263, 8
                  %s6265 = smul.u32 %s6263, 8
                  %s6266 = scalar_lea.vmem %s6247, %s6264 [#allocation2]
                  %s6267 = scalar_lea.vmem %s6249, %s6265
                $region78: #{nn2dmel_forward.3} parent=65 // loop_footer
                  %s6253 = sadd.s32 %s6251, 1
                $region79: #{nn2dmel_forward.3} parent=65 // loop_footer_branch
                  %6250 = sbr.rel target = $region75
                $region80: #{nn2dmel_forward.3} parent=65 // loop_exit
                  _
              $region66: #{nn2dmel_forward.3} parent=43 // pred_fallthru
                _
              // Predicated region
              $region81: #{nn2dmel_forward.3} parent=43 // pred_check
                _
              $region82: #{nn2dmel_forward.3} parent=43 // pred_check_branch
                %6269 = sbr.rel target = $region84
              $region83: #{nn2dmel_forward.3} parent=43 // pred_region
                _
              $region84: #{nn2dmel_forward.3} parent=43 // pred_fallthru
                _
            $region44: #{nn2dmel_forward.3} parent=39 // pred_fallthru
              _
            // Predicated region
            $region45: #{nn2dmel_forward.3} parent=39 // pred_check
              _
            $region46: #{nn2dmel_forward.3} parent=39 // pred_check_branch
              %5924 = sbr.rel target = $region48
            $region47: #{nn2dmel_forward.3} parent=39 // pred_region
              %s5926 = sshrl.u32 %s5913, 6
              // While loop
              $region49: #{nn2dmel_forward.3} parent=47 // loop_pre_header
                _
              $region50: #{nn2dmel_forward.3} parent=47 // loop_header
                %s5928 = sphi 0, %s5930
                %p5929 = scmp.ge.s32.totalorder %s5928, %s5926
                %s5933 = sphi 0, %s6066
                %s5934 = sphi %s5906, %s6069
                %s5935 = sphi %s5917, %s6070
              $region51: #{nn2dmel_forward.3} parent=47 // loop_header_branch
                %5932 = sbr.rel (%p5929) target = $region55
              $region52: #{nn2dmel_forward.3} parent=47 // loop_body
                %v5936 = vld [vmem:[%s5934] sm:$0xff]
                %5937 = vst [vmem:[%s5935] sm:$0xff] %v5936
                %v5938 = vld [vmem:[%s5934 + $0x8] sm:$0xff]
                %5939 = vst [vmem:[%s5935 + $0x8] sm:$0xff] %v5938
                %v5940 = vld [vmem:[%s5934 + $0x10] sm:$0xff]
                %5941 = vst [vmem:[%s5935 + $0x10] sm:$0xff] %v5940
                %v5942 = vld [vmem:[%s5934 + $0x18] sm:$0xff]
                %5943 = vst [vmem:[%s5935 + $0x18] sm:$0xff] %v5942
                %v5944 = vld [vmem:[%s5934 + $0x20] sm:$0xff]
                %5945 = vst [vmem:[%s5935 + $0x20] sm:$0xff] %v5944
                %v5946 = vld [vmem:[%s5934 + $0x28] sm:$0xff]
                %5947 = vst [vmem:[%s5935 + $0x28] sm:$0xff] %v5946
                %v5948 = vld [vmem:[%s5934 + $0x30] sm:$0xff]
                %5949 = vst [vmem:[%s5935 + $0x30] sm:$0xff] %v5948
                %v5950 = vld [vmem:[%s5934 + $0x38] sm:$0xff]
                %5951 = vst [vmem:[%s5935 + $0x38] sm:$0xff] %v5950
                %v5952 = vld [vmem:[%s5934 + $0x40] sm:$0xff]
                %5953 = vst [vmem:[%s5935 + $0x40] sm:$0xff] %v5952
                %v5954 = vld [vmem:[%s5934 + $0x48] sm:$0xff]
                %5955 = vst [vmem:[%s5935 + $0x48] sm:$0xff] %v5954
                %v5956 = vld [vmem:[%s5934 + $0x50] sm:$0xff]
                %5957 = vst [vmem:[%s5935 + $0x50] sm:$0xff] %v5956
                %v5958 = vld [vmem:[%s5934 + $0x58] sm:$0xff]
                %5959 = vst [vmem:[%s5935 + $0x58] sm:$0xff] %v5958
                %v5960 = vld [vmem:[%s5934 + $0x60] sm:$0xff]
                %5961 = vst [vmem:[%s5935 + $0x60] sm:$0xff] %v5960
                %v5962 = vld [vmem:[%s5934 + $0x68] sm:$0xff]
                %5963 = vst [vmem:[%s5935 + $0x68] sm:$0xff] %v5962
                %v5964 = vld [vmem:[%s5934 + $0x70] sm:$0xff]
                %5965 = vst [vmem:[%s5935 + $0x70] sm:$0xff] %v5964
                %v5966 = vld [vmem:[%s5934 + $0x78] sm:$0xff]
                %5967 = vst [vmem:[%s5935 + $0x78] sm:$0xff] %v5966
                %v5968 = vld [vmem:[%s5934 + $0x80] sm:$0xff]
                %5969 = vst [vmem:[%s5935 + $0x80] sm:$0xff] %v5968
                %v5970 = vld [vmem:[%s5934 + $0x88] sm:$0xff]
                %5971 = vst [vmem:[%s5935 + $0x88] sm:$0xff] %v5970
                %v5972 = vld [vmem:[%s5934 + $0x90] sm:$0xff]
                %5973 = vst [vmem:[%s5935 + $0x90] sm:$0xff] %v5972
                %v5974 = vld [vmem:[%s5934 + $0x98] sm:$0xff]
                %5975 = vst [vmem:[%s5935 + $0x98] sm:$0xff] %v5974
                %v5976 = vld [vmem:[%s5934 + $0xa0] sm:$0xff]
                %5977 = vst [vmem:[%s5935 + $0xa0] sm:$0xff] %v5976
                %v5978 = vld [vmem:[%s5934 + $0xa8] sm:$0xff]
                %5979 = vst [vmem:[%s5935 + $0xa8] sm:$0xff] %v5978
                %v5980 = vld [vmem:[%s5934 + $0xb0] sm:$0xff]
                %5981 = vst [vmem:[%s5935 + $0xb0] sm:$0xff] %v5980
                %v5982 = vld [vmem:[%s5934 + $0xb8] sm:$0xff]
                %5983 = vst [vmem:[%s5935 + $0xb8] sm:$0xff] %v5982
                %v5984 = vld [vmem:[%s5934 + $0xc0] sm:$0xff]
                %5985 = vst [vmem:[%s5935 + $0xc0] sm:$0xff] %v5984
                %v5986 = vld [vmem:[%s5934 + $0xc8] sm:$0xff]
                %5987 = vst [vmem:[%s5935 + $0xc8] sm:$0xff] %v5986
                %v5988 = vld [vmem:[%s5934 + $0xd0] sm:$0xff]
                %5989 = vst [vmem:[%s5935 + $0xd0] sm:$0xff] %v5988
                %v5990 = vld [vmem:[%s5934 + $0xd8] sm:$0xff]
                %5991 = vst [vmem:[%s5935 + $0xd8] sm:$0xff] %v5990
                %v5992 = vld [vmem:[%s5934 + $0xe0] sm:$0xff]
                %5993 = vst [vmem:[%s5935 + $0xe0] sm:$0xff] %v5992
                %v5994 = vld [vmem:[%s5934 + $0xe8] sm:$0xff]
                %5995 = vst [vmem:[%s5935 + $0xe8] sm:$0xff] %v5994
                %v5996 = vld [vmem:[%s5934 + $0xf0] sm:$0xff]
                %5997 = vst [vmem:[%s5935 + $0xf0] sm:$0xff] %v5996
                %v5998 = vld [vmem:[%s5934 + $0xf8] sm:$0xff]
                %5999 = vst [vmem:[%s5935 + $0xf8] sm:$0xff] %v5998
                %v6000 = vld [vmem:[%s5934 + $0x100] sm:$0xff]
                %6001 = vst [vmem:[%s5935 + $0x100] sm:$0xff] %v6000
                %v6002 = vld [vmem:[%s5934 + $0x108] sm:$0xff]
                %6003 = vst [vmem:[%s5935 + $0x108] sm:$0xff] %v6002
                %v6004 = vld [vmem:[%s5934 + $0x110] sm:$0xff]
                %6005 = vst [vmem:[%s5935 + $0x110] sm:$0xff] %v6004
                %v6006 = vld [vmem:[%s5934 + $0x118] sm:$0xff]
                %6007 = vst [vmem:[%s5935 + $0x118] sm:$0xff] %v6006
                %v6008 = vld [vmem:[%s5934 + $0x120] sm:$0xff]
                %6009 = vst [vmem:[%s5935 + $0x120] sm:$0xff] %v6008
                %v6010 = vld [vmem:[%s5934 + $0x128] sm:$0xff]
                %6011 = vst [vmem:[%s5935 + $0x128] sm:$0xff] %v6010
                %v6012 = vld [vmem:[%s5934 + $0x130] sm:$0xff]
                %6013 = vst [vmem:[%s5935 + $0x130] sm:$0xff] %v6012
                %v6014 = vld [vmem:[%s5934 + $0x138] sm:$0xff]
                %6015 = vst [vmem:[%s5935 + $0x138] sm:$0xff] %v6014
                %v6016 = vld [vmem:[%s5934 + $0x140] sm:$0xff]
                %6017 = vst [vmem:[%s5935 + $0x140] sm:$0xff] %v6016
                %v6018 = vld [vmem:[%s5934 + $0x148] sm:$0xff]
                %6019 = vst [vmem:[%s5935 + $0x148] sm:$0xff] %v6018
                %v6020 = vld [vmem:[%s5934 + $0x150] sm:$0xff]
                %6021 = vst [vmem:[%s5935 + $0x150] sm:$0xff] %v6020
                %v6022 = vld [vmem:[%s5934 + $0x158] sm:$0xff]
                %6023 = vst [vmem:[%s5935 + $0x158] sm:$0xff] %v6022
                %v6024 = vld [vmem:[%s5934 + $0x160] sm:$0xff]
                %6025 = vst [vmem:[%s5935 + $0x160] sm:$0xff] %v6024
                %v6026 = vld [vmem:[%s5934 + $0x168] sm:$0xff]
                %6027 = vst [vmem:[%s5935 + $0x168] sm:$0xff] %v6026
                %v6028 = vld [vmem:[%s5934 + $0x170] sm:$0xff]
                %6029 = vst [vmem:[%s5935 + $0x170] sm:$0xff] %v6028
                %v6030 = vld [vmem:[%s5934 + $0x178] sm:$0xff]
                %6031 = vst [vmem:[%s5935 + $0x178] sm:$0xff] %v6030
                %v6032 = vld [vmem:[%s5934 + $0x180] sm:$0xff]
                %6033 = vst [vmem:[%s5935 + $0x180] sm:$0xff] %v6032
                %v6034 = vld [vmem:[%s5934 + $0x188] sm:$0xff]
                %6035 = vst [vmem:[%s5935 + $0x188] sm:$0xff] %v6034
                %v6036 = vld [vmem:[%s5934 + $0x190] sm:$0xff]
                %6037 = vst [vmem:[%s5935 + $0x190] sm:$0xff] %v6036
                %v6038 = vld [vmem:[%s5934 + $0x198] sm:$0xff]
                %6039 = vst [vmem:[%s5935 + $0x198] sm:$0xff] %v6038
                %v6040 = vld [vmem:[%s5934 + $0x1a0] sm:$0xff]
                %6041 = vst [vmem:[%s5935 + $0x1a0] sm:$0xff] %v6040
                %v6042 = vld [vmem:[%s5934 + $0x1a8] sm:$0xff]
                %6043 = vst [vmem:[%s5935 + $0x1a8] sm:$0xff] %v6042
                %v6044 = vld [vmem:[%s5934 + $0x1b0] sm:$0xff]
                %6045 = vst [vmem:[%s5935 + $0x1b0] sm:$0xff] %v6044
                %v6046 = vld [vmem:[%s5934 + $0x1b8] sm:$0xff]
                %6047 = vst [vmem:[%s5935 + $0x1b8] sm:$0xff] %v6046
                %v6048 = vld [vmem:[%s5934 + $0x1c0] sm:$0xff]
                %6049 = vst [vmem:[%s5935 + $0x1c0] sm:$0xff] %v6048
                %v6050 = vld [vmem:[%s5934 + $0x1c8] sm:$0xff]
                %6051 = vst [vmem:[%s5935 + $0x1c8] sm:$0xff] %v6050
                %v6052 = vld [vmem:[%s5934 + $0x1d0] sm:$0xff]
                %6053 = vst [vmem:[%s5935 + $0x1d0] sm:$0xff] %v6052
                %v6054 = vld [vmem:[%s5934 + $0x1d8] sm:$0xff]
                %6055 = vst [vmem:[%s5935 + $0x1d8] sm:$0xff] %v6054
                %v6056 = vld [vmem:[%s5934 + $0x1e0] sm:$0xff]
                %6057 = vst [vmem:[%s5935 + $0x1e0] sm:$0xff] %v6056
                %v6058 = vld [vmem:[%s5934 + $0x1e8] sm:$0xff]
                %6059 = vst [vmem:[%s5935 + $0x1e8] sm:$0xff] %v6058
                %v6060 = vld [vmem:[%s5934 + $0x1f0] sm:$0xff]
                %6061 = vst [vmem:[%s5935 + $0x1f0] sm:$0xff] %v6060
                %v6062 = vld [vmem:[%s5934 + $0x1f8] sm:$0xff]
                %6063 = vst [vmem:[%s5935 + $0x1f8] sm:$0xff] %v6062
                %s6064 = sadd.s32 1, %s5933
                %p6065 = scmp.ge.s32.totalorder %s6064, %s5926
                %s6066 = scalar_select %p6065, 0, %s6064
                %s6067 = smul.u32 %s6066, 512
                %s6068 = smul.u32 %s6066, 512
                %s6069 = scalar_lea.vmem %s5906, %s6067 [#allocation2]
                %s6070 = scalar_lea.vmem %s5917, %s6068
              $region53: #{nn2dmel_forward.3} parent=47 // loop_footer
                %s5930 = sadd.s32 %s5928, 1
              $region54: #{nn2dmel_forward.3} parent=47 // loop_footer_branch
                %5927 = sbr.rel target = $region50
              $region55: #{nn2dmel_forward.3} parent=47 // loop_exit
                _
              %s6071 = sshrl.u32 %s5913, 6
              %s6072 = sand.u32 %s5913, 63
              %s6073 = smul.u32 %s6071, 64
              %s6074 = smul.u32 8, %s6073
              %s6075 = scalar_lea.vmem %s5906, %s6074 [#allocation2]
              %s6076 = smul.u32 8, %s6073
              %s6077 = scalar_lea.vmem %s5917, %s6076
              // While loop
              $region56: #{nn2dmel_forward.3} parent=47 // loop_pre_header
                _
              $region57: #{nn2dmel_forward.3} parent=47 // loop_header
                %s6079 = sphi 0, %s6081
                %p6080 = scmp.ge.s32.totalorder %s6079, %s6072
                %s6084 = sphi 0, %s6091
                %s6085 = sphi %s6075, %s6094
                %s6086 = sphi %s6077, %s6095
              $region58: #{nn2dmel_forward.3} parent=47 // loop_header_branch
                %6083 = sbr.rel (%p6080) target = $region62
              $region59: #{nn2dmel_forward.3} parent=47 // loop_body
                %v6087 = vld [vmem:[%s6085] sm:$0xff]
                %6088 = vst [vmem:[%s6086] sm:$0xff] %v6087
                %s6089 = sadd.s32 1, %s6084
                %p6090 = scmp.ge.s32.totalorder %s6089, %s6072
                %s6091 = scalar_select %p6090, 0, %s6089
                %s6092 = smul.u32 %s6091, 8
                %s6093 = smul.u32 %s6091, 8
                %s6094 = scalar_lea.vmem %s6075, %s6092 [#allocation2]
                %s6095 = scalar_lea.vmem %s6077, %s6093
              $region60: #{nn2dmel_forward.3} parent=47 // loop_footer
                %s6081 = sadd.s32 %s6079, 1
              $region61: #{nn2dmel_forward.3} parent=47 // loop_footer_branch
                %6078 = sbr.rel target = $region57
              $region62: #{nn2dmel_forward.3} parent=47 // loop_exit
                _
            $region48: #{nn2dmel_forward.3} parent=39 // pred_fallthru
              _
          $region40: #{nn2dmel_forward.3} parent=35 // pred_fallthru
            _
          %6270 = vnop
        $region36: #{nn2dmel_forward.3} parent=31 // pred_fallthru
          _
      $region32: #{nn2dmel_forward.3} parent=5 // pred_fallthru
        _
      %p6271 = scmp.le.s32.totalorder 2, %s9
      // Predicated region
      $region85: #{nn2dmel_forward.3} parent=5 // pred_check
        %p6272 = pneg %p6271
      $region86: #{nn2dmel_forward.3} parent=5 // pred_check_branch
        %6274 = sbr.rel (%p6272) target = $region88
      $region87: #{nn2dmel_forward.3} parent=5 // pred_region
        %s6275 = ssub.s32 %s9, 2
        // Predicated region
        $region89: #{nn2dmel_forward.3} parent=87 // pred_check
          %p6276 = pneg %p106
        $region90: #{nn2dmel_forward.3} parent=87 // pred_check_branch
          %6278 = sbr.rel (%p6276) target = $region92
        $region91: #{nn2dmel_forward.3} parent=87 // pred_region
          %s6279 = sand.u32 %s91, 1
          %s6280 = sand.u32 %s91, 1
          %s6281 = smul.addr %s6280, 4096
          %s6282 = scalar_lea.vmem [#allocation2], %s6281
        $region92: #{nn2dmel_forward.3} parent=87 // pred_fallthru
          _
      $region88: #{nn2dmel_forward.3} parent=5 // pred_fallthru
        _
    $region6: #{nn2dmel_forward.3} parent=1 // loop_footer
      %s13 = sadd.s32 1, %s9
    $region7: #{nn2dmel_forward.3} parent=1 // loop_footer_branch
      %8 = sbr.rel target = $region3
    $region8: #{nn2dmel_forward.3} parent=1 // loop_exit
      _

// kernel: nn2dmel_forward.4
$region0: #{nn2dmel_forward.4}
  #allocation0 [shape = 'u32[]', space=smem, size = 0x4, offset = 0x4, fixed_abs, tag = 'smem constant byte address 0x4 - core index']
  #allocation1 [shape = 'u32[144,128]{1,0:T(1,128)}', space=vmem, size = 0x12000, scoped, tag = 'internal scratch']
  %s0 = inlined_call_operand.vmem [shape: f32[864,72], index: 0, kind: input, shape index: {}]
  %s1 = inlined_call_operand.vmem [shape: f32[72,128], index: 1, kind: input, shape index: {}]
  %s2 = inlined_call_operand.vmem [shape: f32[1,128], index: 2, kind: input, shape index: {}]
  %s3 = inlined_call_operand.vmem [shape: f32[864,128], index: 3, kind: output, shape index: {}]
  %s4 = sld [smem:[#allocation0]]
  $region22: #{nn2dmel_forward.4} parent=0
    _
  %s6 = ssub.s32 1, %s4
  %s7 = scalar_select 0, %s6, %s4
  // Predicated region
  $region2: #{nn2dmel_forward.4} parent=0 // pred_check
    _
  $region3: #{nn2dmel_forward.4} parent=0 // pred_check_branch
    %9 = sbr.rel (0) target = $region5
  $region4: #{nn2dmel_forward.4} parent=0 // pred_region
    _
  $region5: #{nn2dmel_forward.4} parent=0 // pred_fallthru
    _
  // Predicated region
  $region6: #{nn2dmel_forward.4} parent=0 // pred_check
    _
  $region7: #{nn2dmel_forward.4} parent=0 // pred_check_branch
    %11 = sbr.rel (0) target = $region9
  $region8: #{nn2dmel_forward.4} parent=0 // pred_region
    _
  $region9: #{nn2dmel_forward.4} parent=0 // pred_fallthru
    _
  // Predicated region
  $region10: #{nn2dmel_forward.4} parent=0 // pred_check
    _
  $region11: #{nn2dmel_forward.4} parent=0 // pred_check_branch
    %13 = sbr.rel (0) target = $region13
  $region12: #{nn2dmel_forward.4} parent=0 // pred_region
    _
  $region13: #{nn2dmel_forward.4} parent=0 // pred_fallthru
    _
  %v14 = vld [vmem:[%s0] sm:$0xff]
  %v15 = vld [vmem:[%s0 + $0x8] sm:$0xff]
  %v16 = vld [vmem:[%s0 + $0x10] sm:$0xff]
  %v17 = vld [vmem:[%s0 + $0x18] sm:$0xff]
  %v18 = vld [vmem:[%s0 + $0x20] sm:$0xff]
  %v19 = vld [vmem:[%s0 + $0x28] sm:$0xff]
  %v20 = vld [vmem:[%s0 + $0x30] sm:$0xff]
  %v21 = vld [vmem:[%s0 + $0x38] sm:$0xff]
  %v22 = vld [vmem:[%s0 + $0x40] sm:$0xff]
  %v23 = vld [vmem:[%s0 + $0x48] sm:$0xff]
  %v24 = vld [vmem:[%s0 + $0x50] sm:$0xff]
  %v25 = vld [vmem:[%s0 + $0x58] sm:$0xff]
  %v26 = vld [vmem:[%s0 + $0x60] sm:$0xff]
  %v27 = vld [vmem:[%s0 + $0x68] sm:$0xff]
  %v28 = vld [vmem:[%s0 + $0x70] sm:$0xff]
  %v29 = vld [vmem:[%s0 + $0x78] sm:$0xff]
  %v30 = vld [vmem:[%s0 + $0x80] sm:$0xff]
  %v31 = vld [vmem:[%s0 + $0x88] sm:$0xff]
  %v32 = vld [vmem:[%s0 + $0x90] sm:$0xff]
  %v33 = vld [vmem:[%s0 + $0x98] sm:$0xff]
  %v34 = vld [vmem:[%s0 + $0xa0] sm:$0xff]
  %v35 = vld [vmem:[%s0 + $0xa8] sm:$0xff]
  %v36 = vld [vmem:[%s0 + $0xb0] sm:$0xff]
  %v37 = vld [vmem:[%s0 + $0xb8] sm:$0xff]
  %v38 = vld [vmem:[%s0 + $0xc0] sm:$0xff]
  %v39 = vld [vmem:[%s0 + $0xc8] sm:$0xff]
  %v40 = vld [vmem:[%s0 + $0xd0] sm:$0xff]
  %v41 = vld [vmem:[%s0 + $0xd8] sm:$0xff]
  %v42 = vld [vmem:[%s0 + $0xe0] sm:$0xff]
  %v43 = vld [vmem:[%s0 + $0xe8] sm:$0xff]
  %v44 = vld [vmem:[%s0 + $0xf0] sm:$0xff]
  %v45 = vld [vmem:[%s0 + $0xf8] sm:$0xff]
  %v46 = vld [vmem:[%s0 + $0x100] sm:$0xff]
  %v47 = vld [vmem:[%s0 + $0x108] sm:$0xff]
  %v48 = vld [vmem:[%s0 + $0x110] sm:$0xff]
  %v49 = vld [vmem:[%s0 + $0x118] sm:$0xff]
  %v50 = vld [vmem:[%s0 + $0x120] sm:$0xff]
  %v51 = vld [vmem:[%s0 + $0x128] sm:$0xff]
  %v52 = vld [vmem:[%s0 + $0x130] sm:$0xff]
  %v53 = vld [vmem:[%s0 + $0x138] sm:$0xff]
  %v54 = vld [vmem:[%s0 + $0x140] sm:$0xff]
  %v55 = vld [vmem:[%s0 + $0x148] sm:$0xff]
  %v56 = vld [vmem:[%s0 + $0x150] sm:$0xff]
  %v57 = vld [vmem:[%s0 + $0x158] sm:$0xff]
  %v58 = vld [vmem:[%s0 + $0x160] sm:$0xff]
  %v59 = vld [vmem:[%s0 + $0x168] sm:$0xff]
  %v60 = vld [vmem:[%s0 + $0x170] sm:$0xff]
  %v61 = vld [vmem:[%s0 + $0x178] sm:$0xff]
  %v62 = vld [vmem:[%s0 + $0x180] sm:$0xff]
  %v63 = vld [vmem:[%s0 + $0x188] sm:$0xff]
  %v64 = vld [vmem:[%s0 + $0x190] sm:$0xff]
  %v65 = vld [vmem:[%s0 + $0x198] sm:$0xff]
  %v66 = vld [vmem:[%s0 + $0x1a0] sm:$0xff]
  %v67 = vld [vmem:[%s0 + $0x1a8] sm:$0xff]
  %v68 = vld [vmem:[%s0 + $0x1b0] sm:$0xff]
  %v69 = vld [vmem:[%s0 + $0x1b8] sm:$0xff]
  %v70 = vld [vmem:[%s0 + $0x1c0] sm:$0xff]
  %v71 = vld [vmem:[%s0 + $0x1c8] sm:$0xff]
  %v72 = vld [vmem:[%s0 + $0x1d0] sm:$0xff]
  %v73 = vld [vmem:[%s0 + $0x1d8] sm:$0xff]
  %v74 = vld [vmem:[%s0 + $0x1e0] sm:$0xff]
  %v75 = vld [vmem:[%s0 + $0x1e8] sm:$0xff]
  %v76 = vld [vmem:[%s0 + $0x1f0] sm:$0xff]
  %v77 = vld [vmem:[%s0 + $0x1f8] sm:$0xff]
  %v78 = vld [vmem:[%s0 + $0x200] sm:$0xff]
  %v79 = vld [vmem:[%s0 + $0x208] sm:$0xff]
  %v80 = vld [vmem:[%s0 + $0x210] sm:$0xff]
  %v81 = vld [vmem:[%s0 + $0x218] sm:$0xff]
  %v82 = vld [vmem:[%s0 + $0x220] sm:$0xff]
  %v83 = vld [vmem:[%s0 + $0x228] sm:$0xff]
  %v84 = vld [vmem:[%s0 + $0x230] sm:$0xff]
  %v85 = vld [vmem:[%s0 + $0x238] sm:$0xff]
  %v86 = vld [vmem:[%s0 + $0x240] sm:$0xff]
  %v87 = vld [vmem:[%s0 + $0x248] sm:$0xff]
  %v88 = vld [vmem:[%s0 + $0x250] sm:$0xff]
  %v89 = vld [vmem:[%s0 + $0x258] sm:$0xff]
  %v90 = vld [vmem:[%s0 + $0x260] sm:$0xff]
  %v91 = vld [vmem:[%s0 + $0x268] sm:$0xff]
  %v92 = vld [vmem:[%s0 + $0x270] sm:$0xff]
  %v93 = vld [vmem:[%s0 + $0x278] sm:$0xff]
  %v94 = vld [vmem:[%s0 + $0x280] sm:$0xff]
  %v95 = vld [vmem:[%s0 + $0x288] sm:$0xff]
  %v96 = vld [vmem:[%s0 + $0x290] sm:$0xff]
  %v97 = vld [vmem:[%s0 + $0x298] sm:$0xff]
  %v98 = vld [vmem:[%s0 + $0x2a0] sm:$0xff]
  %v99 = vld [vmem:[%s0 + $0x2a8] sm:$0xff]
  %v100 = vld [vmem:[%s0 + $0x2b0] sm:$0xff]
  %v101 = vld [vmem:[%s0 + $0x2b8] sm:$0xff]
  %v102 = vld [vmem:[%s0 + $0x2c0] sm:$0xff]
  %v103 = vld [vmem:[%s0 + $0x2c8] sm:$0xff]
  %v104 = vld [vmem:[%s0 + $0x2d0] sm:$0xff]
  %v105 = vld [vmem:[%s0 + $0x2d8] sm:$0xff]
  %v106 = vld [vmem:[%s0 + $0x2e0] sm:$0xff]
  %v107 = vld [vmem:[%s0 + $0x2e8] sm:$0xff]
  %v108 = vld [vmem:[%s0 + $0x2f0] sm:$0xff]
  %v109 = vld [vmem:[%s0 + $0x2f8] sm:$0xff]
  %v110 = vld [vmem:[%s0 + $0x300] sm:$0xff]
  %v111 = vld [vmem:[%s0 + $0x308] sm:$0xff]
  %v112 = vld [vmem:[%s0 + $0x310] sm:$0xff]
  %v113 = vld [vmem:[%s0 + $0x318] sm:$0xff]
  %v114 = vld [vmem:[%s0 + $0x320] sm:$0xff]
  %v115 = vld [vmem:[%s0 + $0x328] sm:$0xff]
  %v116 = vld [vmem:[%s0 + $0x330] sm:$0xff]
  %v117 = vld [vmem:[%s0 + $0x338] sm:$0xff]
  %v118 = vld [vmem:[%s0 + $0x340] sm:$0xff]
  %v119 = vld [vmem:[%s0 + $0x348] sm:$0xff]
  %v120 = vld [vmem:[%s0 + $0x350] sm:$0xff]
  %v121 = vld [vmem:[%s0 + $0x358] sm:$0xff]
  %v122 = vld [vmem:[%s1] sm:$0xff]
  %v123 = vld [vmem:[%s1 + $0x8] sm:$0xff]
  %v124 = vld [vmem:[%s1 + $0x10] sm:$0xff]
  %v125 = vld [vmem:[%s1 + $0x18] sm:$0xff]
  %v126 = vld [vmem:[%s1 + $0x20] sm:$0xff]
  %v127 = vld [vmem:[%s1 + $0x28] sm:$0xff]
  %v128 = vld [vmem:[%s1 + $0x30] sm:$0xff]
  %v129 = vld [vmem:[%s1 + $0x38] sm:$0xff]
  %v130 = vld [vmem:[%s1 + $0x40] sm:$0xff]
  %v131 = vld [vmem:[%s2] sm:$0x1]
  %v133 = vlaneseq
  %v134 = vshrl.u32 %v133, 7
  %v135 = vsub.s32 0, %v134
  %v136 = vrot.slane %v131, %v135
  %vm138 = vcmask 588800
  %v140 = vsel %vm138, %v14, 0
  %v143 = vsel %vm138, %v15, 0
  %v146 = vsel %vm138, %v16, 0
  %v149 = vsel %vm138, %v17, 0
  %v152 = vsel %vm138, %v18, 0
  %v155 = vsel %vm138, %v19, 0
  %v158 = vsel %vm138, %v20, 0
  %v161 = vsel %vm138, %v21, 0
  %v164 = vsel %vm138, %v22, 0
  %v167 = vsel %vm138, %v23, 0
  %v170 = vsel %vm138, %v24, 0
  %v173 = vsel %vm138, %v25, 0
  %v176 = vsel %vm138, %v26, 0
  %v179 = vsel %vm138, %v27, 0
  %v182 = vsel %vm138, %v28, 0
  %v185 = vsel %vm138, %v29, 0
  %v188 = vsel %vm138, %v30, 0
  %v191 = vsel %vm138, %v31, 0
  %v194 = vsel %vm138, %v32, 0
  %v197 = vsel %vm138, %v33, 0
  %v200 = vsel %vm138, %v34, 0
  %v203 = vsel %vm138, %v35, 0
  %v206 = vsel %vm138, %v36, 0
  %v209 = vsel %vm138, %v37, 0
  %v212 = vsel %vm138, %v38, 0
  %v215 = vsel %vm138, %v39, 0
  %v218 = vsel %vm138, %v40, 0
  %v221 = vsel %vm138, %v41, 0
  %v224 = vsel %vm138, %v42, 0
  %v227 = vsel %vm138, %v43, 0
  %v230 = vsel %vm138, %v44, 0
  %v233 = vsel %vm138, %v45, 0
  %v236 = vsel %vm138, %v46, 0
  %v239 = vsel %vm138, %v47, 0
  %v242 = vsel %vm138, %v48, 0
  %v245 = vsel %vm138, %v49, 0
  %v248 = vsel %vm138, %v50, 0
  %v251 = vsel %vm138, %v51, 0
  %v254 = vsel %vm138, %v52, 0
  %v257 = vsel %vm138, %v53, 0
  %v260 = vsel %vm138, %v54, 0
  %v263 = vsel %vm138, %v55, 0
  %v266 = vsel %vm138, %v56, 0
  %v269 = vsel %vm138, %v57, 0
  %v272 = vsel %vm138, %v58, 0
  %v275 = vsel %vm138, %v59, 0
  %v278 = vsel %vm138, %v60, 0
  %v281 = vsel %vm138, %v61, 0
  %v284 = vsel %vm138, %v62, 0
  %v287 = vsel %vm138, %v63, 0
  %v290 = vsel %vm138, %v64, 0
  %v293 = vsel %vm138, %v65, 0
  %v296 = vsel %vm138, %v66, 0
  %v299 = vsel %vm138, %v67, 0
  %v302 = vsel %vm138, %v68, 0
  %v305 = vsel %vm138, %v69, 0
  %v308 = vsel %vm138, %v70, 0
  %v311 = vsel %vm138, %v71, 0
  %v314 = vsel %vm138, %v72, 0
  %v317 = vsel %vm138, %v73, 0
  %v320 = vsel %vm138, %v74, 0
  %v323 = vsel %vm138, %v75, 0
  %v326 = vsel %vm138, %v76, 0
  %v329 = vsel %vm138, %v77, 0
  %v332 = vsel %vm138, %v78, 0
  %v335 = vsel %vm138, %v79, 0
  %v338 = vsel %vm138, %v80, 0
  %v341 = vsel %vm138, %v81, 0
  %v344 = vsel %vm138, %v82, 0
  %v347 = vsel %vm138, %v83, 0
  %v350 = vsel %vm138, %v84, 0
  %v353 = vsel %vm138, %v85, 0
  %v356 = vsel %vm138, %v86, 0
  %v359 = vsel %vm138, %v87, 0
  %v362 = vsel %vm138, %v88, 0
  %v365 = vsel %vm138, %v89, 0
  %v368 = vsel %vm138, %v90, 0
  %v371 = vsel %vm138, %v91, 0
  %v374 = vsel %vm138, %v92, 0
  %v377 = vsel %vm138, %v93, 0
  %v380 = vsel %vm138, %v94, 0
  %v383 = vsel %vm138, %v95, 0
  %v386 = vsel %vm138, %v96, 0
  %v389 = vsel %vm138, %v97, 0
  %v392 = vsel %vm138, %v98, 0
  %v395 = vsel %vm138, %v99, 0
  %v398 = vsel %vm138, %v100, 0
  %v401 = vsel %vm138, %v101, 0
  %v404 = vsel %vm138, %v102, 0
  %v407 = vsel %vm138, %v103, 0
  %v410 = vsel %vm138, %v104, 0
  %v413 = vsel %vm138, %v105, 0
  %v416 = vsel %vm138, %v106, 0
  %v419 = vsel %vm138, %v107, 0
  %v422 = vsel %vm138, %v108, 0
  %v425 = vsel %vm138, %v109, 0
  %v428 = vsel %vm138, %v110, 0
  %v431 = vsel %vm138, %v111, 0
  %v434 = vsel %vm138, %v112, 0
  %v437 = vsel %vm138, %v113, 0
  %v440 = vsel %vm138, %v114, 0
  %v443 = vsel %vm138, %v115, 0
  %v446 = vsel %vm138, %v116, 0
  %v449 = vsel %vm138, %v117, 0
  %v452 = vsel %vm138, %v118, 0
  %v455 = vsel %vm138, %v119, 0
  %v458 = vsel %vm138, %v120, 0
  %v461 = vsel %vm138, %v121, 0
  %463 = vmatprep.subr.mxu0 0.0
  %464 = vmatpush1.msra.mxu0 %v122
  %465 = vmatprep.subr.mxu0 0.0
  %466 = vmatpush1.msra.mxu0 %v123
  %467 = vmatprep.subr.mxu0 0.0
  %468 = vmatpush1.msra.mxu0 %v124
  %469 = vmatprep.subr.mxu0 0.0
  %470 = vmatpush1.msra.mxu0 %v125
  %471 = vmatprep.subr.mxu0 0.0
  %472 = vmatpush1.msra.mxu0 %v126
  %473 = vmatprep.subr.mxu0 0.0
  %474 = vmatpush1.msra.mxu0 %v127
  %475 = vmatprep.subr.mxu0 0.0
  %476 = vmatpush1.msra.mxu0 %v128
  %477 = vmatprep.subr.mxu0 0.0
  %478 = vmatpush1.msra.mxu0 %v129
  %479 = vmatprep.subr.mxu0 0.0
  %480 = vmatpush1.msra.mxu0 %v130
  %481 = vmatprep.subr.mxu0 0.0
  %482 = vmatpush1.msra.mxu0 0.0
  %483 = vmatprep.subr.mxu0 0.0
  %484 = vmatpush1.msra.mxu0 0.0
  %485 = vmatprep.subr.mxu0 0.0
  %486 = vmatpush1.msra.mxu0 0.0
  %487 = vmatprep.subr.mxu0 0.0
  %488 = vmatpush1.msra.mxu0 0.0
  %489 = vmatprep.subr.mxu0 0.0
  %490 = vmatpush1.msra.mxu0 0.0
  %491 = vmatprep.subr.mxu0 0.0
  %492 = vmatpush1.msra.mxu0 0.0
  %493 = vmatprep.subr.mxu0 0.0
  %494 = vmatpush1.msra.mxu0 0.0
  %495 = vmatprep.subr.mxu0 0.0
  %496 = vmatpush1.msra.mxu0 0.0
  %497 = vmatprep.subr.mxu0 0.0
  %498 = vmatpush1.msra.mxu0 0.0
  %499 = vmatprep.subr.mxu0 0.0
  %500 = vmatpush1.msra.mxu0 0.0
  %501 = vmatprep.subr.mxu0 0.0
  %502 = vmatpush1.msra.mxu0 0.0
  %503 = vmatprep.subr.mxu0 0.0
  %504 = vmatpush1.msra.mxu0 0.0
  %505 = vmatprep.subr.mxu0 0.0
  %506 = vmatpush1.msra.mxu0 0.0
  %507 = vmatprep.subr.mxu0 0.0
  %508 = vmatpush1.msra.mxu0 0.0
  %509 = vmatprep.subr.mxu0 0.0
  %510 = vmatpush1.msra.mxu0 0.0
  %511 = vmatprep.subr.mxu0 0.0
  %512 = vmatpush1.msra.mxu0 0.0
  %513 = vmatprep.subr.mxu0 0.0
  %514 = vmatpush1.msra.mxu0 0.0
  %515 = vmatprep.subr.mxu0 0.0
  %516 = vmatpush1.msra.mxu0 0.0
  %517 = vmatprep.subr.mxu0 0.0
  %518 = vmatpush1.msra.mxu0 0.0
  %519 = vmatprep.subr.mxu0 0.0
  %520 = vmatpush1.msra.mxu0 0.0
  %521 = vmatprep.subr.mxu0 0.0
  %522 = vmatpush1.msra.mxu0 0.0
  %523 = vmatprep.subr.mxu0 0.0
  %524 = vmatpush1.msra.mxu0 0.0
  %525 = vmatprep.subr.mxu0 0.0
  %526 = vmatpush1.msra.mxu0 0.0
  %527 = vmatprep.mubr.f32.mxu0 0.0
  %528 = vmatmul.mubr.f32.gmra.mrb[0].mxu0 %v140
  %v529 = vpop.f32.mrb[0].mxu0
  %v530 = vadd.f32 %v136, %v529
  %v531 = vpop.f32.mrb[0].mxu0
  %532 = vmatprep.mubr.f32.mxu0 0.0
  %533 = vmatmul.mubr.f32.gmra.mrb[0].mxu0 %v143
  %v534 = vpop.f32.mrb[0].mxu0
  %v535 = vadd.f32 %v136, %v534
  %v536 = vpop.f32.mrb[0].mxu0
  %537 = vmatprep.mubr.f32.mxu0 0.0
  %538 = vmatmul.mubr.f32.gmra.mrb[0].mxu0 %v146
  %v539 = vpop.f32.mrb[0].mxu0
  %v540 = vadd.f32 %v136, %v539
  %v541 = vpop.f32.mrb[0].mxu0
  %542 = vmatprep.mubr.f32.mxu0 0.0
  %543 = vmatmul.mubr.f32.gmra.mrb[0].mxu0 %v149
  %v544 = vpop.f32.mrb[0].mxu0
  %v545 = vadd.f32 %v136, %v544
  %v546 = vpop.f32.mrb[0].mxu0
  %547 = vmatprep.mubr.f32.mxu0 0.0
  %548 = vmatmul.mubr.f32.gmra.mrb[0].mxu0 %v152
  %v549 = vpop.f32.mrb[0].mxu0
  %v550 = vadd.f32 %v136, %v549
  %v551 = vpop.f32.mrb[0].mxu0
  %552 = vmatprep.mubr.f32.mxu0 0.0
  %553 = vmatmul.mubr.f32.gmra.mrb[0].mxu0 %v155
  %v554 = vpop.f32.mrb[0].mxu0
  %v555 = vadd.f32 %v136, %v554
  %v556 = vpop.f32.mrb[0].mxu0
  %557 = vmatprep.mubr.f32.mxu0 0.0
  %558 = vmatmul.mubr.f32.gmra.mrb[0].mxu0 %v158
  %v559 = vpop.f32.mrb[0].mxu0
  %v560 = vadd.f32 %v136, %v559
  %v561 = vpop.f32.mrb[0].mxu0
  %562 = vmatprep.mubr.f32.mxu0 0.0
  %563 = vmatmul.mubr.f32.gmra.mrb[0].mxu0 %v161
  %v564 = vpop.f32.mrb[0].mxu0
  %v565 = vadd.f32 %v136, %v564
  %v566 = vpop.f32.mrb[0].mxu0
  %567 = vmatprep.mubr.f32.mxu0 0.0
  %568 = vmatmul.mubr.f32.gmra.mrb[0].mxu0 %v164
  %v569 = vpop.f32.mrb[0].mxu0
  %v570 = vadd.f32 %v136, %v569
  %v571 = vpop.f32.mrb[0].mxu0
  %572 = vmatprep.mubr.f32.mxu0 0.0
  %573 = vmatmul.mubr.f32.gmra.mrb[0].mxu0 %v167
  %v574 = vpop.f32.mrb[0].mxu0
  %v575 = vadd.f32 %v136, %v574
  %v576 = vpop.f32.mrb[0].mxu0
  %577 = vmatprep.mubr.f32.mxu0 0.0
  %578 = vmatmul.mubr.f32.gmra.mrb[0].mxu0 %v170
  %v579 = vpop.f32.mrb[0].mxu0
  %v580 = vadd.f32 %v136, %v579
  %v581 = vpop.f32.mrb[0].mxu0
  %582 = vmatprep.mubr.f32.mxu0 0.0
  %583 = vmatmul.mubr.f32.gmra.mrb[0].mxu0 %v173
  %v584 = vpop.f32.mrb[0].mxu0
  %v585 = vadd.f32 %v136, %v584
  %v586 = vpop.f32.mrb[0].mxu0
  %587 = vmatprep.mubr.f32.mxu0 0.0
  %588 = vmatmul.mubr.f32.gmra.mrb[0].mxu0 %v176
  %v589 = vpop.f32.mrb[0].mxu0
  %v590 = vadd.f32 %v136, %v589
  %v591 = vpop.f32.mrb[0].mxu0
  %592 = vmatprep.mubr.f32.mxu0 0.0
  %593 = vmatmul.mubr.f32.gmra.mrb[0].mxu0 %v179
  %v594 = vpop.f32.mrb[0].mxu0
  %v595 = vadd.f32 %v136, %v594
  %v596 = vpop.f32.mrb[0].mxu0
  %597 = vmatprep.mubr.f32.mxu0 0.0
  %598 = vmatmul.mubr.f32.gmra.mrb[0].mxu0 %v182
  %v599 = vpop.f32.mrb[0].mxu0
  %v600 = vadd.f32 %v136, %v599
  %v601 = vpop.f32.mrb[0].mxu0
  %602 = vmatprep.mubr.f32.mxu0 0.0
  %603 = vmatmul.mubr.f32.gmra.mrb[0].mxu0 %v185
  %v604 = vpop.f32.mrb[0].mxu0
  %v605 = vadd.f32 %v136, %v604
  %v606 = vpop.f32.mrb[0].mxu0
  %607 = vmatprep.mubr.f32.mxu0 0.0
  %608 = vmatmul.mubr.f32.gmra.mrb[0].mxu0 %v188
  %v609 = vpop.f32.mrb[0].mxu0
  %v610 = vadd.f32 %v136, %v609
  %v611 = vpop.f32.mrb[0].mxu0
  %612 = vmatprep.mubr.f32.mxu0 0.0
  %613 = vmatmul.mubr.f32.gmra.mrb[0].mxu0 %v191
  %v614 = vpop.f32.mrb[0].mxu0
  %v615 = vadd.f32 %v136, %v614
  %v616 = vpop.f32.mrb[0].mxu0
  %617 = vmatprep.mubr.f32.mxu0 0.0
  %618 = vmatmul.mubr.f32.gmra.mrb[0].mxu0 %v194
  %v619 = vpop.f32.mrb[0].mxu0
  %v620 = vadd.f32 %v136, %v619
  %v621 = vpop.f32.mrb[0].mxu0
  %622 = vmatprep.mubr.f32.mxu0 0.0
  %623 = vmatmul.mubr.f32.gmra.mrb[0].mxu0 %v197
  %v624 = vpop.f32.mrb[0].mxu0
  %v625 = vadd.f32 %v136, %v624
  %v626 = vpop.f32.mrb[0].mxu0
  %627 = vmatprep.mubr.f32.mxu0 0.0
  %628 = vmatmul.mubr.f32.gmra.mrb[0].mxu0 %v200
  %v629 = vpop.f32.mrb[0].mxu0
  %v630 = vadd.f32 %v136, %v629
  %v631 = vpop.f32.mrb[0].mxu0
  %632 = vmatprep.mubr.f32.mxu0 0.0
  %633 = vmatmul.mubr.f32.gmra.mrb[0].mxu0 %v203
  %v634 = vpop.f32.mrb[0].mxu0
  %v635 = vadd.f32 %v136, %v634
  %v636 = vpop.f32.mrb[0].mxu0
  %637 = vmatprep.mubr.f32.mxu0 0.0
  %638 = vmatmul.mubr.f32.gmra.mrb[0].mxu0 %v206
  %v639 = vpop.f32.mrb[0].mxu0
  %v640 = vadd.f32 %v136, %v639
  %v641 = vpop.f32.mrb[0].mxu0
  %642 = vmatprep.mubr.f32.mxu0 0.0
  %643 = vmatmul.mubr.f32.gmra.mrb[0].mxu0 %v209
  %v644 = vpop.f32.mrb[0].mxu0
  %v645 = vadd.f32 %v136, %v644
  %v646 = vpop.f32.mrb[0].mxu0
  %647 = vmatprep.mubr.f32.mxu0 0.0
  %648 = vmatmul.mubr.f32.gmra.mrb[0].mxu0 %v212
  %v649 = vpop.f32.mrb[0].mxu0
  %v650 = vadd.f32 %v136, %v649
  %v651 = vpop.f32.mrb[0].mxu0
  %652 = vmatprep.mubr.f32.mxu0 0.0
  %653 = vmatmul.mubr.f32.gmra.mrb[0].mxu0 %v215
  %v654 = vpop.f32.mrb[0].mxu0
  %v655 = vadd.f32 %v136, %v654
  %v656 = vpop.f32.mrb[0].mxu0
  %657 = vmatprep.mubr.f32.mxu0 0.0
  %658 = vmatmul.mubr.f32.gmra.mrb[0].mxu0 %v218
  %v659 = vpop.f32.mrb[0].mxu0
  %v660 = vadd.f32 %v136, %v659
  %v661 = vpop.f32.mrb[0].mxu0
  %662 = vmatprep.mubr.f32.mxu0 0.0
  %663 = vmatmul.mubr.f32.gmra.mrb[0].mxu0 %v221
  %v664 = vpop.f32.mrb[0].mxu0
  %v665 = vadd.f32 %v136, %v664
  %v666 = vpop.f32.mrb[0].mxu0
  %667 = vmatprep.mubr.f32.mxu0 0.0
  %668 = vmatmul.mubr.f32.gmra.mrb[0].mxu0 %v224
  %v669 = vpop.f32.mrb[0].mxu0
  %v670 = vadd.f32 %v136, %v669
  %v671 = vpop.f32.mrb[0].mxu0
  %672 = vmatprep.mubr.f32.mxu0 0.0
  %673 = vmatmul.mubr.f32.gmra.mrb[0].mxu0 %v227
  %v674 = vpop.f32.mrb[0].mxu0
  %v675 = vadd.f32 %v136, %v674
  %v676 = vpop.f32.mrb[0].mxu0
  %677 = vmatprep.mubr.f32.mxu0 0.0
  %678 = vmatmul.mubr.f32.gmra.mrb[0].mxu0 %v230
  %v679 = vpop.f32.mrb[0].mxu0
  %v680 = vadd.f32 %v136, %v679
  %v681 = vpop.f32.mrb[0].mxu0
  %682 = vmatprep.mubr.f32.mxu0 0.0
  %683 = vmatmul.mubr.f32.gmra.mrb[0].mxu0 %v233
  %v684 = vpop.f32.mrb[0].mxu0
  %v685 = vadd.f32 %v136, %v684
  %v686 = vpop.f32.mrb[0].mxu0
  %687 = vmatprep.mubr.f32.mxu0 0.0
  %688 = vmatmul.mubr.f32.gmra.mrb[0].mxu0 %v236
  %v689 = vpop.f32.mrb[0].mxu0
  %v690 = vadd.f32 %v136, %v689
  %v691 = vpop.f32.mrb[0].mxu0
  %692 = vmatprep.mubr.f32.mxu0 0.0
  %693 = vmatmul.mubr.f32.gmra.mrb[0].mxu0 %v239
  %v694 = vpop.f32.mrb[0].mxu0
  %v695 = vadd.f32 %v136, %v694
  %v696 = vpop.f32.mrb[0].mxu0
  %697 = vmatprep.mubr.f32.mxu0 0.0
  %698 = vmatmul.mubr.f32.gmra.mrb[0].mxu0 %v242
  %v699 = vpop.f32.mrb[0].mxu0
  %v700 = vadd.f32 %v136, %v699
  %v701 = vpop.f32.mrb[0].mxu0
  %702 = vmatprep.mubr.f32.mxu0 0.0
  %703 = vmatmul.mubr.f32.gmra.mrb[0].mxu0 %v245
  %v704 = vpop.f32.mrb[0].mxu0
  %v705 = vadd.f32 %v136, %v704
  %v706 = vpop.f32.mrb[0].mxu0
  %707 = vmatprep.mubr.f32.mxu0 0.0
  %708 = vmatmul.mubr.f32.gmra.mrb[0].mxu0 %v248
  %v709 = vpop.f32.mrb[0].mxu0
  %v710 = vadd.f32 %v136, %v709
  %v711 = vpop.f32.mrb[0].mxu0
  %712 = vmatprep.mubr.f32.mxu0 0.0
  %713 = vmatmul.mubr.f32.gmra.mrb[0].mxu0 %v251
  %v714 = vpop.f32.mrb[0].mxu0
  %v715 = vadd.f32 %v136, %v714
  %v716 = vpop.f32.mrb[0].mxu0
  %717 = vmatprep.mubr.f32.mxu0 0.0
  %718 = vmatmul.mubr.f32.gmra.mrb[0].mxu0 %v254
  %v719 = vpop.f32.mrb[0].mxu0
  %v720 = vadd.f32 %v136, %v719
  %v721 = vpop.f32.mrb[0].mxu0
  %722 = vmatprep.mubr.f32.mxu0 0.0
  %723 = vmatmul.mubr.f32.gmra.mrb[0].mxu0 %v257
  %v724 = vpop.f32.mrb[0].mxu0
  %v725 = vadd.f32 %v136, %v724
  %v726 = vpop.f32.mrb[0].mxu0
  %727 = vmatprep.mubr.f32.mxu0 0.0
  %728 = vmatmul.mubr.f32.gmra.mrb[0].mxu0 %v260
  %v729 = vpop.f32.mrb[0].mxu0
  %v730 = vadd.f32 %v136, %v729
  %v731 = vpop.f32.mrb[0].mxu0
  %732 = vmatprep.mubr.f32.mxu0 0.0
  %733 = vmatmul.mubr.f32.gmra.mrb[0].mxu0 %v263
  %v734 = vpop.f32.mrb[0].mxu0
  %v735 = vadd.f32 %v136, %v734
  %v736 = vpop.f32.mrb[0].mxu0
  %737 = vmatprep.mubr.f32.mxu0 0.0
  %738 = vmatmul.mubr.f32.gmra.mrb[0].mxu0 %v266
  %v739 = vpop.f32.mrb[0].mxu0
  %v740 = vadd.f32 %v136, %v739
  %v741 = vpop.f32.mrb[0].mxu0
  %742 = vmatprep.mubr.f32.mxu0 0.0
  %743 = vmatmul.mubr.f32.gmra.mrb[0].mxu0 %v269
  %v744 = vpop.f32.mrb[0].mxu0
  %v745 = vadd.f32 %v136, %v744
  %v746 = vpop.f32.mrb[0].mxu0
  %747 = vmatprep.mubr.f32.mxu0 0.0
  %748 = vmatmul.mubr.f32.gmra.mrb[0].mxu0 %v272
  %v749 = vpop.f32.mrb[0].mxu0
  %v750 = vadd.f32 %v136, %v749
  %v751 = vpop.f32.mrb[0].mxu0
  %752 = vmatprep.mubr.f32.mxu0 0.0
  %753 = vmatmul.mubr.f32.gmra.mrb[0].mxu0 %v275
  %v754 = vpop.f32.mrb[0].mxu0
  %v755 = vadd.f32 %v136, %v754
  %v756 = vpop.f32.mrb[0].mxu0
  %757 = vmatprep.mubr.f32.mxu0 0.0
  %758 = vmatmul.mubr.f32.gmra.mrb[0].mxu0 %v278
  %v759 = vpop.f32.mrb[0].mxu0
  %v760 = vadd.f32 %v136, %v759
  %v761 = vpop.f32.mrb[0].mxu0
  %762 = vmatprep.mubr.f32.mxu0 0.0
  %763 = vmatmul.mubr.f32.gmra.mrb[0].mxu0 %v281
  %v764 = vpop.f32.mrb[0].mxu0
  %v765 = vadd.f32 %v136, %v764
  %v766 = vpop.f32.mrb[0].mxu0
  %767 = vmatprep.mubr.f32.mxu0 0.0
  %768 = vmatmul.mubr.f32.gmra.mrb[0].mxu0 %v284
  %v769 = vpop.f32.mrb[0].mxu0
  %v770 = vadd.f32 %v136, %v769
  %v771 = vpop.f32.mrb[0].mxu0
  %772 = vmatprep.mubr.f32.mxu0 0.0
  %773 = vmatmul.mubr.f32.gmra.mrb[0].mxu0 %v287
  %v774 = vpop.f32.mrb[0].mxu0
  %v775 = vadd.f32 %v136, %v774
  %v776 = vpop.f32.mrb[0].mxu0
  %777 = vmatprep.mubr.f32.mxu0 0.0
  %778 = vmatmul.mubr.f32.gmra.mrb[0].mxu0 %v290
  %v779 = vpop.f32.mrb[0].mxu0
  %v780 = vadd.f32 %v136, %v779
  %v781 = vpop.f32.mrb[0].mxu0
  %782 = vmatprep.mubr.f32.mxu0 0.0
  %783 = vmatmul.mubr.f32.gmra.mrb[0].mxu0 %v293
  %v784 = vpop.f32.mrb[0].mxu0
  %v785 = vadd.f32 %v136, %v784
  %v786 = vpop.f32.mrb[0].mxu0
  %787 = vmatprep.mubr.f32.mxu0 0.0
  %788 = vmatmul.mubr.f32.gmra.mrb[0].mxu0 %v296
  %v789 = vpop.f32.mrb[0].mxu0
  %v790 = vadd.f32 %v136, %v789
  %v791 = vpop.f32.mrb[0].mxu0
  %792 = vmatprep.mubr.f32.mxu0 0.0
  %793 = vmatmul.mubr.f32.gmra.mrb[0].mxu0 %v299
  %v794 = vpop.f32.mrb[0].mxu0
  %v795 = vadd.f32 %v136, %v794
  %v796 = vpop.f32.mrb[0].mxu0
  %797 = vmatprep.mubr.f32.mxu0 0.0
  %798 = vmatmul.mubr.f32.gmra.mrb[0].mxu0 %v302
  %v799 = vpop.f32.mrb[0].mxu0
  %v800 = vadd.f32 %v136, %v799
  %v801 = vpop.f32.mrb[0].mxu0
  %802 = vmatprep.mubr.f32.mxu0 0.0
  %803 = vmatmul.mubr.f32.gmra.mrb[0].mxu0 %v305
  %v804 = vpop.f32.mrb[0].mxu0
  %v805 = vadd.f32 %v136, %v804
  %v806 = vpop.f32.mrb[0].mxu0
  %807 = vmatprep.mubr.f32.mxu0 0.0
  %808 = vmatmul.mubr.f32.gmra.mrb[0].mxu0 %v308
  %v809 = vpop.f32.mrb[0].mxu0
  %v810 = vadd.f32 %v136, %v809
  %v811 = vpop.f32.mrb[0].mxu0
  %812 = vmatprep.mubr.f32.mxu0 0.0
  %813 = vmatmul.mubr.f32.gmra.mrb[0].mxu0 %v311
  %v814 = vpop.f32.mrb[0].mxu0
  %v815 = vadd.f32 %v136, %v814
  %v816 = vpop.f32.mrb[0].mxu0
  %817 = vmatprep.mubr.f32.mxu0 0.0
  %818 = vmatmul.mubr.f32.gmra.mrb[0].mxu0 %v314
  %v819 = vpop.f32.mrb[0].mxu0
  %v820 = vadd.f32 %v136, %v819
  %v821 = vpop.f32.mrb[0].mxu0
  %822 = vmatprep.mubr.f32.mxu0 0.0
  %823 = vmatmul.mubr.f32.gmra.mrb[0].mxu0 %v317
  %v824 = vpop.f32.mrb[0].mxu0
  %v825 = vadd.f32 %v136, %v824
  %v826 = vpop.f32.mrb[0].mxu0
  %827 = vmatprep.mubr.f32.mxu0 0.0
  %828 = vmatmul.mubr.f32.gmra.mrb[0].mxu0 %v320
  %v829 = vpop.f32.mrb[0].mxu0
  %v830 = vadd.f32 %v136, %v829
  %v831 = vpop.f32.mrb[0].mxu0
  %832 = vmatprep.mubr.f32.mxu0 0.0
  %833 = vmatmul.mubr.f32.gmra.mrb[0].mxu0 %v323
  %v834 = vpop.f32.mrb[0].mxu0
  %v835 = vadd.f32 %v136, %v834
  %v836 = vpop.f32.mrb[0].mxu0
  %837 = vmatprep.mubr.f32.mxu0 0.0
  %838 = vmatmul.mubr.f32.gmra.mrb[0].mxu0 %v326
  %v839 = vpop.f32.mrb[0].mxu0
  %v840 = vadd.f32 %v136, %v839
  %v841 = vpop.f32.mrb[0].mxu0
  %842 = vmatprep.mubr.f32.mxu0 0.0
  %843 = vmatmul.mubr.f32.gmra.mrb[0].mxu0 %v329
  %v844 = vpop.f32.mrb[0].mxu0
  %v845 = vadd.f32 %v136, %v844
  %v846 = vpop.f32.mrb[0].mxu0
  %847 = vmatprep.mubr.f32.mxu0 0.0
  %848 = vmatmul.mubr.f32.gmra.mrb[0].mxu0 %v332
  %v849 = vpop.f32.mrb[0].mxu0
  %v850 = vadd.f32 %v136, %v849
  %v851 = vpop.f32.mrb[0].mxu0
  %852 = vmatprep.mubr.f32.mxu0 0.0
  %853 = vmatmul.mubr.f32.gmra.mrb[0].mxu0 %v335
  %v854 = vpop.f32.mrb[0].mxu0
  %v855 = vadd.f32 %v136, %v854
  %v856 = vpop.f32.mrb[0].mxu0
  %857 = vmatprep.mubr.f32.mxu0 0.0
  %858 = vmatmul.mubr.f32.gmra.mrb[0].mxu0 %v338
  %v859 = vpop.f32.mrb[0].mxu0
  %v860 = vadd.f32 %v136, %v859
  %v861 = vpop.f32.mrb[0].mxu0
  %862 = vmatprep.mubr.f32.mxu0 0.0
  %863 = vmatmul.mubr.f32.gmra.mrb[0].mxu0 %v341
  %v864 = vpop.f32.mrb[0].mxu0
  %v865 = vadd.f32 %v136, %v864
  %v866 = vpop.f32.mrb[0].mxu0
  %867 = vmatprep.mubr.f32.mxu0 0.0
  %868 = vmatmul.mubr.f32.gmra.mrb[0].mxu0 %v344
  %v869 = vpop.f32.mrb[0].mxu0
  %v870 = vadd.f32 %v136, %v869
  %v871 = vpop.f32.mrb[0].mxu0
  %872 = vmatprep.mubr.f32.mxu0 0.0
  %873 = vmatmul.mubr.f32.gmra.mrb[0].mxu0 %v347
  %v874 = vpop.f32.mrb[0].mxu0
  %v875 = vadd.f32 %v136, %v874
  %v876 = vpop.f32.mrb[0].mxu0
  %877 = vmatprep.mubr.f32.mxu0 0.0
  %878 = vmatmul.mubr.f32.gmra.mrb[0].mxu0 %v350
  %v879 = vpop.f32.mrb[0].mxu0
  %v880 = vadd.f32 %v136, %v879
  %v881 = vpop.f32.mrb[0].mxu0
  %882 = vmatprep.mubr.f32.mxu0 0.0
  %883 = vmatmul.mubr.f32.gmra.mrb[0].mxu0 %v353
  %v884 = vpop.f32.mrb[0].mxu0
  %v885 = vadd.f32 %v136, %v884
  %v886 = vpop.f32.mrb[0].mxu0
  %887 = vmatprep.mubr.f32.mxu0 0.0
  %888 = vmatmul.mubr.f32.gmra.mrb[0].mxu0 %v356
  %v889 = vpop.f32.mrb[0].mxu0
  %v890 = vadd.f32 %v136, %v889
  %v891 = vpop.f32.mrb[0].mxu0
  %892 = vmatprep.mubr.f32.mxu0 0.0
  %893 = vmatmul.mubr.f32.gmra.mrb[0].mxu0 %v359
  %v894 = vpop.f32.mrb[0].mxu0
  %v895 = vadd.f32 %v136, %v894
  %v896 = vpop.f32.mrb[0].mxu0
  %897 = vmatprep.mubr.f32.mxu0 0.0
  %898 = vmatmul.mubr.f32.gmra.mrb[0].mxu0 %v362
  %v899 = vpop.f32.mrb[0].mxu0
  %v900 = vadd.f32 %v136, %v899
  %v901 = vpop.f32.mrb[0].mxu0
  %902 = vmatprep.mubr.f32.mxu0 0.0
  %903 = vmatmul.mubr.f32.gmra.mrb[0].mxu0 %v365
  %v904 = vpop.f32.mrb[0].mxu0
  %v905 = vadd.f32 %v136, %v904
  %v906 = vpop.f32.mrb[0].mxu0
  %907 = vmatprep.mubr.f32.mxu0 0.0
  %908 = vmatmul.mubr.f32.gmra.mrb[0].mxu0 %v368
  %v909 = vpop.f32.mrb[0].mxu0
  %v910 = vadd.f32 %v136, %v909
  %v911 = vpop.f32.mrb[0].mxu0
  %912 = vmatprep.mubr.f32.mxu0 0.0
  %913 = vmatmul.mubr.f32.gmra.mrb[0].mxu0 %v371
  %v914 = vpop.f32.mrb[0].mxu0
  %v915 = vadd.f32 %v136, %v914
  %v916 = vpop.f32.mrb[0].mxu0
  %917 = vmatprep.mubr.f32.mxu0 0.0
  %918 = vmatmul.mubr.f32.gmra.mrb[0].mxu0 %v374
  %v919 = vpop.f32.mrb[0].mxu0
  %v920 = vadd.f32 %v136, %v919
  %v921 = vpop.f32.mrb[0].mxu0
  %922 = vmatprep.mubr.f32.mxu0 0.0
  %923 = vmatmul.mubr.f32.gmra.mrb[0].mxu0 %v377
  %v924 = vpop.f32.mrb[0].mxu0
  %v925 = vadd.f32 %v136, %v924
  %v926 = vpop.f32.mrb[0].mxu0
  %927 = vmatprep.mubr.f32.mxu0 0.0
  %928 = vmatmul.mubr.f32.gmra.mrb[0].mxu0 %v380
  %v929 = vpop.f32.mrb[0].mxu0
  %v930 = vadd.f32 %v136, %v929
  %v931 = vpop.f32.mrb[0].mxu0
  %932 = vmatprep.mubr.f32.mxu0 0.0
  %933 = vmatmul.mubr.f32.gmra.mrb[0].mxu0 %v383
  %v934 = vpop.f32.mrb[0].mxu0
  %v935 = vadd.f32 %v136, %v934
  %v936 = vpop.f32.mrb[0].mxu0
  %937 = vmatprep.mubr.f32.mxu0 0.0
  %938 = vmatmul.mubr.f32.gmra.mrb[0].mxu0 %v386
  %v939 = vpop.f32.mrb[0].mxu0
  %v940 = vadd.f32 %v136, %v939
  %v941 = vpop.f32.mrb[0].mxu0
  %942 = vmatprep.mubr.f32.mxu0 0.0
  %943 = vmatmul.mubr.f32.gmra.mrb[0].mxu0 %v389
  %v944 = vpop.f32.mrb[0].mxu0
  %v945 = vadd.f32 %v136, %v944
  %v946 = vpop.f32.mrb[0].mxu0
  %947 = vmatprep.mubr.f32.mxu0 0.0
  %948 = vmatmul.mubr.f32.gmra.mrb[0].mxu0 %v392
  %v949 = vpop.f32.mrb[0].mxu0
  %v950 = vadd.f32 %v136, %v949
  %v951 = vpop.f32.mrb[0].mxu0
  %952 = vmatprep.mubr.f32.mxu0 0.0
  %953 = vmatmul.mubr.f32.gmra.mrb[0].mxu0 %v395
  %v954 = vpop.f32.mrb[0].mxu0
  %v955 = vadd.f32 %v136, %v954
  %v956 = vpop.f32.mrb[0].mxu0
  %957 = vmatprep.mubr.f32.mxu0 0.0
  %958 = vmatmul.mubr.f32.gmra.mrb[0].mxu0 %v398
  %v959 = vpop.f32.mrb[0].mxu0
  %v960 = vadd.f32 %v136, %v959
  %v961 = vpop.f32.mrb[0].mxu0
  %962 = vmatprep.mubr.f32.mxu0 0.0
  %963 = vmatmul.mubr.f32.gmra.mrb[0].mxu0 %v401
  %v964 = vpop.f32.mrb[0].mxu0
  %v965 = vadd.f32 %v136, %v964
  %v966 = vpop.f32.mrb[0].mxu0
  %967 = vmatprep.mubr.f32.mxu0 0.0
  %968 = vmatmul.mubr.f32.gmra.mrb[0].mxu0 %v404
  %v969 = vpop.f32.mrb[0].mxu0
  %v970 = vadd.f32 %v136, %v969
  %v971 = vpop.f32.mrb[0].mxu0
  %972 = vmatprep.mubr.f32.mxu0 0.0
  %973 = vmatmul.mubr.f32.gmra.mrb[0].mxu0 %v407
  %v974 = vpop.f32.mrb[0].mxu0
  %v975 = vadd.f32 %v136, %v974
  %v976 = vpop.f32.mrb[0].mxu0
  %977 = vmatprep.mubr.f32.mxu0 0.0
  %978 = vmatmul.mubr.f32.gmra.mrb[0].mxu0 %v410
  %v979 = vpop.f32.mrb[0].mxu0
  %v980 = vadd.f32 %v136, %v979
  %v981 = vpop.f32.mrb[0].mxu0
  %982 = vmatprep.mubr.f32.mxu0 0.0
  %983 = vmatmul.mubr.f32.gmra.mrb[0].mxu0 %v413
  %v984 = vpop.f32.mrb[0].mxu0
  %v985 = vadd.f32 %v136, %v984
  %v986 = vpop.f32.mrb[0].mxu0
  %987 = vmatprep.mubr.f32.mxu0 0.0
  %988 = vmatmul.mubr.f32.gmra.mrb[0].mxu0 %v416
  %v989 = vpop.f32.mrb[0].mxu0
  %v990 = vadd.f32 %v136, %v989
  %v991 = vpop.f32.mrb[0].mxu0
  %992 = vmatprep.mubr.f32.mxu0 0.0
  %993 = vmatmul.mubr.f32.gmra.mrb[0].mxu0 %v419
  %v994 = vpop.f32.mrb[0].mxu0
  %v995 = vadd.f32 %v136, %v994
  %v996 = vpop.f32.mrb[0].mxu0
  %997 = vmatprep.mubr.f32.mxu0 0.0
  %998 = vmatmul.mubr.f32.gmra.mrb[0].mxu0 %v422
  %v999 = vpop.f32.mrb[0].mxu0
  %v1000 = vadd.f32 %v136, %v999
  %v1001 = vpop.f32.mrb[0].mxu0
  %1002 = vmatprep.mubr.f32.mxu0 0.0
  %1003 = vmatmul.mubr.f32.gmra.mrb[0].mxu0 %v425
  %v1004 = vpop.f32.mrb[0].mxu0
  %v1005 = vadd.f32 %v136, %v1004
  %v1006 = vpop.f32.mrb[0].mxu0
  %1007 = vmatprep.mubr.f32.mxu0 0.0
  %1008 = vmatmul.mubr.f32.gmra.mrb[0].mxu0 %v428
  %v1009 = vpop.f32.mrb[0].mxu0
  %v1010 = vadd.f32 %v136, %v1009
  %v1011 = vpop.f32.mrb[0].mxu0
  %1012 = vmatprep.mubr.f32.mxu0 0.0
  %1013 = vmatmul.mubr.f32.gmra.mrb[0].mxu0 %v431
  %v1014 = vpop.f32.mrb[0].mxu0
  %v1015 = vadd.f32 %v136, %v1014
  %v1016 = vpop.f32.mrb[0].mxu0
  %1017 = vmatprep.mubr.f32.mxu0 0.0
  %1018 = vmatmul.mubr.f32.gmra.mrb[0].mxu0 %v434
  %v1019 = vpop.f32.mrb[0].mxu0
  %v1020 = vadd.f32 %v136, %v1019
  %v1021 = vpop.f32.mrb[0].mxu0
  %1022 = vmatprep.mubr.f32.mxu0 0.0
  %1023 = vmatmul.mubr.f32.gmra.mrb[0].mxu0 %v437
  %v1024 = vpop.f32.mrb[0].mxu0
  %v1025 = vadd.f32 %v136, %v1024
  %v1026 = vpop.f32.mrb[0].mxu0
  %1027 = vmatprep.mubr.f32.mxu0 0.0
  %1028 = vmatmul.mubr.f32.gmra.mrb[0].mxu0 %v440
  %v1029 = vpop.f32.mrb[0].mxu0
  %v1030 = vadd.f32 %v136, %v1029
  %v1031 = vpop.f32.mrb[0].mxu0
  %1032 = vmatprep.mubr.f32.mxu0 0.0
  %1033 = vmatmul.mubr.f32.gmra.mrb[0].mxu0 %v443
  %v1034 = vpop.f32.mrb[0].mxu0
  %v1035 = vadd.f32 %v136, %v1034
  %v1036 = vpop.f32.mrb[0].mxu0
  %1037 = vmatprep.mubr.f32.mxu0 0.0
  %1038 = vmatmul.mubr.f32.gmra.mrb[0].mxu0 %v446
  %v1039 = vpop.f32.mrb[0].mxu0
  %v1040 = vadd.f32 %v136, %v1039
  %v1041 = vpop.f32.mrb[0].mxu0
  %1042 = vmatprep.mubr.f32.mxu0 0.0
  %1043 = vmatmul.mubr.f32.gmra.mrb[0].mxu0 %v449
  %v1044 = vpop.f32.mrb[0].mxu0
  %v1045 = vadd.f32 %v136, %v1044
  %v1046 = vpop.f32.mrb[0].mxu0
  %1047 = vmatprep.mubr.f32.mxu0 0.0
  %1048 = vmatmul.mubr.f32.gmra.mrb[0].mxu0 %v452
  %v1049 = vpop.f32.mrb[0].mxu0
  %v1050 = vadd.f32 %v136, %v1049
  %v1051 = vpop.f32.mrb[0].mxu0
  %1052 = vmatprep.mubr.f32.mxu0 0.0
  %1053 = vmatmul.mubr.f32.gmra.mrb[0].mxu0 %v455
  %v1054 = vpop.f32.mrb[0].mxu0
  %v1055 = vadd.f32 %v136, %v1054
  %v1056 = vpop.f32.mrb[0].mxu0
  %1057 = vmatprep.mubr.f32.mxu0 0.0
  %1058 = vmatmul.mubr.f32.gmra.mrb[0].mxu0 %v458
  %v1059 = vpop.f32.mrb[0].mxu0
  %v1060 = vadd.f32 %v136, %v1059
  %v1061 = vpop.f32.mrb[0].mxu0
  %1062 = vmatprep.mubr.f32.mxu0 0.0
  %1063 = vmatmul.mubr.f32.gmra.mrb[0].mxu0 %v461
  %v1064 = vpop.f32.mrb[0].mxu0
  %v1065 = vadd.f32 %v136, %v1064
  %v1066 = vpop.f32.mrb[0].mxu0
  %1067 = vdwg.mxu0
  %v1068 = vmax.f32 %v530, 0.0
  %v1069 = vmax.f32 %v535, 0.0
  %v1070 = vmax.f32 %v540, 0.0
  %v1071 = vmax.f32 %v545, 0.0
  %v1072 = vmax.f32 %v550, 0.0
  %v1073 = vmax.f32 %v555, 0.0
  %v1074 = vmax.f32 %v560, 0.0
  %v1075 = vmax.f32 %v565, 0.0
  %v1076 = vmax.f32 %v570, 0.0
  %v1077 = vmax.f32 %v575, 0.0
  %v1078 = vmax.f32 %v580, 0.0
  %v1079 = vmax.f32 %v585, 0.0
  %v1080 = vmax.f32 %v590, 0.0
  %v1081 = vmax.f32 %v595, 0.0
  %v1082 = vmax.f32 %v600, 0.0
  %v1083 = vmax.f32 %v605, 0.0
  %v1084 = vmax.f32 %v610, 0.0
  %v1085 = vmax.f32 %v615, 0.0
  %v1086 = vmax.f32 %v620, 0.0
  %v1087 = vmax.f32 %v625, 0.0
  %v1088 = vmax.f32 %v630, 0.0
  %v1089 = vmax.f32 %v635, 0.0
  %v1090 = vmax.f32 %v640, 0.0
  %v1091 = vmax.f32 %v645, 0.0
  %v1092 = vmax.f32 %v650, 0.0
  %v1093 = vmax.f32 %v655, 0.0
  %v1094 = vmax.f32 %v660, 0.0
  %v1095 = vmax.f32 %v665, 0.0
  %v1096 = vmax.f32 %v670, 0.0
  %v1097 = vmax.f32 %v675, 0.0
  %v1098 = vmax.f32 %v680, 0.0
  %v1099 = vmax.f32 %v685, 0.0
  %v1100 = vmax.f32 %v690, 0.0
  %v1101 = vmax.f32 %v695, 0.0
  %v1102 = vmax.f32 %v700, 0.0
  %v1103 = vmax.f32 %v705, 0.0
  %v1104 = vmax.f32 %v710, 0.0
  %v1105 = vmax.f32 %v715, 0.0
  %v1106 = vmax.f32 %v720, 0.0
  %v1107 = vmax.f32 %v725, 0.0
  %v1108 = vmax.f32 %v730, 0.0
  %v1109 = vmax.f32 %v735, 0.0
  %v1110 = vmax.f32 %v740, 0.0
  %v1111 = vmax.f32 %v745, 0.0
  %v1112 = vmax.f32 %v750, 0.0
  %v1113 = vmax.f32 %v755, 0.0
  %v1114 = vmax.f32 %v760, 0.0
  %v1115 = vmax.f32 %v765, 0.0
  %v1116 = vmax.f32 %v770, 0.0
  %v1117 = vmax.f32 %v775, 0.0
  %v1118 = vmax.f32 %v780, 0.0
  %v1119 = vmax.f32 %v785, 0.0
  %v1120 = vmax.f32 %v790, 0.0
  %v1121 = vmax.f32 %v795, 0.0
  %v1122 = vmax.f32 %v800, 0.0
  %v1123 = vmax.f32 %v805, 0.0
  %v1124 = vmax.f32 %v810, 0.0
  %v1125 = vmax.f32 %v815, 0.0
  %v1126 = vmax.f32 %v820, 0.0
  %v1127 = vmax.f32 %v825, 0.0
  %v1128 = vmax.f32 %v830, 0.0
  %v1129 = vmax.f32 %v835, 0.0
  %v1130 = vmax.f32 %v840, 0.0
  %v1131 = vmax.f32 %v845, 0.0
  %v1132 = vmax.f32 %v850, 0.0
  %v1133 = vmax.f32 %v855, 0.0
  %v1134 = vmax.f32 %v860, 0.0
  %v1135 = vmax.f32 %v865, 0.0
  %v1136 = vmax.f32 %v870, 0.0
  %v1137 = vmax.f32 %v875, 0.0
  %v1138 = vmax.f32 %v880, 0.0
  %v1139 = vmax.f32 %v885, 0.0
  %v1140 = vmax.f32 %v890, 0.0
  %v1141 = vmax.f32 %v895, 0.0
  %v1142 = vmax.f32 %v900, 0.0
  %v1143 = vmax.f32 %v905, 0.0
  %v1144 = vmax.f32 %v910, 0.0
  %v1145 = vmax.f32 %v915, 0.0
  %v1146 = vmax.f32 %v920, 0.0
  %v1147 = vmax.f32 %v925, 0.0
  %v1148 = vmax.f32 %v930, 0.0
  %v1149 = vmax.f32 %v935, 0.0
  %v1150 = vmax.f32 %v940, 0.0
  %v1151 = vmax.f32 %v945, 0.0
  %v1152 = vmax.f32 %v950, 0.0
  %v1153 = vmax.f32 %v955, 0.0
  %v1154 = vmax.f32 %v960, 0.0
  %v1155 = vmax.f32 %v965, 0.0
  %v1156 = vmax.f32 %v970, 0.0
  %v1157 = vmax.f32 %v975, 0.0
  %v1158 = vmax.f32 %v980, 0.0
  %v1159 = vmax.f32 %v985, 0.0
  %v1160 = vmax.f32 %v990, 0.0
  %v1161 = vmax.f32 %v995, 0.0
  %v1162 = vmax.f32 %v1000, 0.0
  %v1163 = vmax.f32 %v1005, 0.0
  %v1164 = vmax.f32 %v1010, 0.0
  %v1165 = vmax.f32 %v1015, 0.0
  %v1166 = vmax.f32 %v1020, 0.0
  %v1167 = vmax.f32 %v1025, 0.0
  %v1168 = vmax.f32 %v1030, 0.0
  %v1169 = vmax.f32 %v1035, 0.0
  %v1170 = vmax.f32 %v1040, 0.0
  %v1171 = vmax.f32 %v1045, 0.0
  %v1172 = vmax.f32 %v1050, 0.0
  %v1173 = vmax.f32 %v1055, 0.0
  %v1174 = vmax.f32 %v1060, 0.0
  %v1175 = vmax.f32 %v1065, 0.0
  %1176 = vst [vmem:[%s3] sm:$0xff] %v1068
  %1177 = vst [vmem:[%s3 + $0x8] sm:$0xff] %v1069
  %1178 = vst [vmem:[%s3 + $0x10] sm:$0xff] %v1070
  %1179 = vst [vmem:[%s3 + $0x18] sm:$0xff] %v1071
  %1180 = vst [vmem:[%s3 + $0x20] sm:$0xff] %v1072
  %1181 = vst [vmem:[%s3 + $0x28] sm:$0xff] %v1073
  %1182 = vst [vmem:[%s3 + $0x30] sm:$0xff] %v1074
  %1183 = vst [vmem:[%s3 + $0x38] sm:$0xff] %v1075
  %1184 = vst [vmem:[%s3 + $0x40] sm:$0xff] %v1076
  %1185 = vst [vmem:[%s3 + $0x48] sm:$0xff] %v1077
  %1186 = vst [vmem:[%s3 + $0x50] sm:$0xff] %v1078
  %1187 = vst [vmem:[%s3 + $0x58] sm:$0xff] %v1079
  %1188 = vst [vmem:[%s3 + $0x60] sm:$0xff] %v1080
  %1189 = vst [vmem:[%s3 + $0x68] sm:$0xff] %v1081
  %1190 = vst [vmem:[%s3 + $0x70] sm:$0xff] %v1082
  %1191 = vst [vmem:[%s3 + $0x78] sm:$0xff] %v1083
  %1192 = vst [vmem:[%s3 + $0x80] sm:$0xff] %v1084
  %1193 = vst [vmem:[%s3 + $0x88] sm:$0xff] %v1085
  %1194 = vst [vmem:[%s3 + $0x90] sm:$0xff] %v1086
  %1195 = vst [vmem:[%s3 + $0x98] sm:$0xff] %v1087
  %1196 = vst [vmem:[%s3 + $0xa0] sm:$0xff] %v1088
  %1197 = vst [vmem:[%s3 + $0xa8] sm:$0xff] %v1089
  %1198 = vst [vmem:[%s3 + $0xb0] sm:$0xff] %v1090
  %1199 = vst [vmem:[%s3 + $0xb8] sm:$0xff] %v1091
  %1200 = vst [vmem:[%s3 + $0xc0] sm:$0xff] %v1092
  %1201 = vst [vmem:[%s3 + $0xc8] sm:$0xff] %v1093
  %1202 = vst [vmem:[%s3 + $0xd0] sm:$0xff] %v1094
  %1203 = vst [vmem:[%s3 + $0xd8] sm:$0xff] %v1095
  %1204 = vst [vmem:[%s3 + $0xe0] sm:$0xff] %v1096
  %1205 = vst [vmem:[%s3 + $0xe8] sm:$0xff] %v1097
  %1206 = vst [vmem:[%s3 + $0xf0] sm:$0xff] %v1098
  %1207 = vst [vmem:[%s3 + $0xf8] sm:$0xff] %v1099
  %1208 = vst [vmem:[%s3 + $0x100] sm:$0xff] %v1100
  %1209 = vst [vmem:[%s3 + $0x108] sm:$0xff] %v1101
  %1210 = vst [vmem:[%s3 + $0x110] sm:$0xff] %v1102
  %1211 = vst [vmem:[%s3 + $0x118] sm:$0xff] %v1103
  %1212 = vst [vmem:[%s3 + $0x120] sm:$0xff] %v1104
  %1213 = vst [vmem:[%s3 + $0x128] sm:$0xff] %v1105
  %1214 = vst [vmem:[%s3 + $0x130] sm:$0xff] %v1106
  %1215 = vst [vmem:[%s3 + $0x138] sm:$0xff] %v1107
  %1216 = vst [vmem:[%s3 + $0x140] sm:$0xff] %v1108
  %1217 = vst [vmem:[%s3 + $0x148] sm:$0xff] %v1109
  %1218 = vst [vmem:[%s3 + $0x150] sm:$0xff] %v1110
  %1219 = vst [vmem:[%s3 + $0x158] sm:$0xff] %v1111
  %1220 = vst [vmem:[%s3 + $0x160] sm:$0xff] %v1112
  %1221 = vst [vmem:[%s3 + $0x168] sm:$0xff] %v1113
  %1222 = vst [vmem:[%s3 + $0x170] sm:$0xff] %v1114
  %1223 = vst [vmem:[%s3 + $0x178] sm:$0xff] %v1115
  %1224 = vst [vmem:[%s3 + $0x180] sm:$0xff] %v1116
  %1225 = vst [vmem:[%s3 + $0x188] sm:$0xff] %v1117
  %1226 = vst [vmem:[%s3 + $0x190] sm:$0xff] %v1118
  %1227 = vst [vmem:[%s3 + $0x198] sm:$0xff] %v1119
  %1228 = vst [vmem:[%s3 + $0x1a0] sm:$0xff] %v1120
  %1229 = vst [vmem:[%s3 + $0x1a8] sm:$0xff] %v1121
  %1230 = vst [vmem:[%s3 + $0x1b0] sm:$0xff] %v1122
  %1231 = vst [vmem:[%s3 + $0x1b8] sm:$0xff] %v1123
  %1232 = vst [vmem:[%s3 + $0x1c0] sm:$0xff] %v1124
  %1233 = vst [vmem:[%s3 + $0x1c8] sm:$0xff] %v1125
  %1234 = vst [vmem:[%s3 + $0x1d0] sm:$0xff] %v1126
  %1235 = vst [vmem:[%s3 + $0x1d8] sm:$0xff] %v1127
  %1236 = vst [vmem:[%s3 + $0x1e0] sm:$0xff] %v1128
  %1237 = vst [vmem:[%s3 + $0x1e8] sm:$0xff] %v1129
  %1238 = vst [vmem:[%s3 + $0x1f0] sm:$0xff] %v1130
  %1239 = vst [vmem:[%s3 + $0x1f8] sm:$0xff] %v1131
  %1240 = vst [vmem:[%s3 + $0x200] sm:$0xff] %v1132
  %1241 = vst [vmem:[%s3 + $0x208] sm:$0xff] %v1133
  %1242 = vst [vmem:[%s3 + $0x210] sm:$0xff] %v1134
  %1243 = vst [vmem:[%s3 + $0x218] sm:$0xff] %v1135
  %1244 = vst [vmem:[%s3 + $0x220] sm:$0xff] %v1136
  %1245 = vst [vmem:[%s3 + $0x228] sm:$0xff] %v1137
  %1246 = vst [vmem:[%s3 + $0x230] sm:$0xff] %v1138
  %1247 = vst [vmem:[%s3 + $0x238] sm:$0xff] %v1139
  %1248 = vst [vmem:[%s3 + $0x240] sm:$0xff] %v1140
  %1249 = vst [vmem:[%s3 + $0x248] sm:$0xff] %v1141
  %1250 = vst [vmem:[%s3 + $0x250] sm:$0xff] %v1142
  %1251 = vst [vmem:[%s3 + $0x258] sm:$0xff] %v1143
  %1252 = vst [vmem:[%s3 + $0x260] sm:$0xff] %v1144
  %1253 = vst [vmem:[%s3 + $0x268] sm:$0xff] %v1145
  %1254 = vst [vmem:[%s3 + $0x270] sm:$0xff] %v1146
  %1255 = vst [vmem:[%s3 + $0x278] sm:$0xff] %v1147
  %1256 = vst [vmem:[%s3 + $0x280] sm:$0xff] %v1148
  %1257 = vst [vmem:[%s3 + $0x288] sm:$0xff] %v1149
  %1258 = vst [vmem:[%s3 + $0x290] sm:$0xff] %v1150
  %1259 = vst [vmem:[%s3 + $0x298] sm:$0xff] %v1151
  %1260 = vst [vmem:[%s3 + $0x2a0] sm:$0xff] %v1152
  %1261 = vst [vmem:[%s3 + $0x2a8] sm:$0xff] %v1153
  %1262 = vst [vmem:[%s3 + $0x2b0] sm:$0xff] %v1154
  %1263 = vst [vmem:[%s3 + $0x2b8] sm:$0xff] %v1155
  %1264 = vst [vmem:[%s3 + $0x2c0] sm:$0xff] %v1156
  %1265 = vst [vmem:[%s3 + $0x2c8] sm:$0xff] %v1157
  %1266 = vst [vmem:[%s3 + $0x2d0] sm:$0xff] %v1158
  %1267 = vst [vmem:[%s3 + $0x2d8] sm:$0xff] %v1159
  %1268 = vst [vmem:[%s3 + $0x2e0] sm:$0xff] %v1160
  %1269 = vst [vmem:[%s3 + $0x2e8] sm:$0xff] %v1161
  %1270 = vst [vmem:[%s3 + $0x2f0] sm:$0xff] %v1162
  %1271 = vst [vmem:[%s3 + $0x2f8] sm:$0xff] %v1163
  %1272 = vst [vmem:[%s3 + $0x300] sm:$0xff] %v1164
  %1273 = vst [vmem:[%s3 + $0x308] sm:$0xff] %v1165
  %1274 = vst [vmem:[%s3 + $0x310] sm:$0xff] %v1166
  %1275 = vst [vmem:[%s3 + $0x318] sm:$0xff] %v1167
  %1276 = vst [vmem:[%s3 + $0x320] sm:$0xff] %v1168
  %1277 = vst [vmem:[%s3 + $0x328] sm:$0xff] %v1169
  %1278 = vst [vmem:[%s3 + $0x330] sm:$0xff] %v1170
  %1279 = vst [vmem:[%s3 + $0x338] sm:$0xff] %v1171
  %1280 = vst [vmem:[%s3 + $0x340] sm:$0xff] %v1172
  %1281 = vst [vmem:[%s3 + $0x348] sm:$0xff] %v1173
  %1282 = vst [vmem:[%s3 + $0x350] sm:$0xff] %v1174
  %1283 = vst [vmem:[%s3 + $0x358] sm:$0xff] %v1175
  // Predicated region
  $region14: #{nn2dmel_forward.4} parent=0 // pred_check
    _
  $region15: #{nn2dmel_forward.4} parent=0 // pred_check_branch
    %1285 = sbr.rel (0) target = $region17
  $region16: #{nn2dmel_forward.4} parent=0 // pred_region
    _
  $region17: #{nn2dmel_forward.4} parent=0 // pred_fallthru
    _
  // Predicated region
  $region18: #{nn2dmel_forward.4} parent=0 // pred_check
    _
  $region19: #{nn2dmel_forward.4} parent=0 // pred_check_branch
    %1287 = sbr.rel (0) target = $region21
  $region20: #{nn2dmel_forward.4} parent=0 // pred_region
    _
  $region21: #{nn2dmel_forward.4} parent=0 // pred_fallthru
    _

// kernel: nn2dmel_forward.5
$region0: #{nn2dmel_forward.5}
  #allocation0 [shape = 'u32[]', space=smem, size = 0x4, offset = 0x4, fixed_abs, tag = 'smem constant byte address 0x4 - core index']
  #allocation1 [shape = 'u32[144,128]{1,0:T(1,128)}', space=vmem, size = 0x12000, scoped, tag = 'internal scratch']
  %s0 = inlined_call_operand.vmem [shape: f32[2,768], index: 0, kind: input, shape index: {}]
  %s1 = inlined_call_operand.vmem [shape: f32[768,2048], index: 1, kind: input, shape index: {}]
  %s2 = inlined_call_operand.vmem [shape: f32[1,2048], index: 2, kind: input, shape index: {}]
  %s3 = inlined_call_operand.vmem [shape: f32[2048,128], index: 3, kind: input, shape index: {}]
  %s4 = inlined_call_operand.vmem [shape: f32[1,128], index: 4, kind: input, shape index: {}]
  %s5 = inlined_call_operand.vmem [shape: f32[128,128], index: 5, kind: input, shape index: {}]
  %s6 = inlined_call_operand.vmem [shape: f32[1,128], index: 6, kind: input, shape index: {}]
  %s7 = inlined_call_operand.hbm [shape: f32[2,128], index: 7, kind: output, shape index: {}]
  %s8 = sld [smem:[#allocation0]]
  $region38: #{nn2dmel_forward.5} parent=0
    _
  %s10 = ssub.s32 1, %s8
  %s11 = scalar_select 0, %s10, %s8
  $region1: #{nn2dmel_forward.5} parent=0
    #allocation2 [shape = 'u8[1024]{0}', space=vmem, size = 0x400, scoped, tag = 'output window, operand 0, single buffered']
    #allocation3 [shape = 's32[1]{0}', space=sflag, size = 0x4, scoped, tag = 'scoped memory for nn2dmel_forward.5']
    %12 = vsyncpa [#allocation3], 0
    // Predicated region
    $region2: #{nn2dmel_forward.5} parent=1 // pred_check
      _
    $region3: #{nn2dmel_forward.5} parent=1 // pred_check_branch
      %14 = sbr.rel (0) target = $region5
    $region4: #{nn2dmel_forward.5} parent=1 // pred_region
      _
    $region5: #{nn2dmel_forward.5} parent=1 // pred_fallthru
      _
    // Predicated region
    $region6: #{nn2dmel_forward.5} parent=1 // pred_check
      _
    $region7: #{nn2dmel_forward.5} parent=1 // pred_check_branch
      %16 = sbr.rel (0) target = $region9
    $region8: #{nn2dmel_forward.5} parent=1 // pred_region
      _
    $region9: #{nn2dmel_forward.5} parent=1 // pred_fallthru
      _
    // Predicated region
    $region10: #{nn2dmel_forward.5} parent=1 // pred_check
      _
    $region11: #{nn2dmel_forward.5} parent=1 // pred_check_branch
      %18 = sbr.rel (0) target = $region13
    $region12: #{nn2dmel_forward.5} parent=1 // pred_region
      _
    $region13: #{nn2dmel_forward.5} parent=1 // pred_fallthru
      _
    // Predicated region
    $region14: #{nn2dmel_forward.5} parent=1 // pred_check
      _
    $region15: #{nn2dmel_forward.5} parent=1 // pred_check_branch
      %20 = sbr.rel (0) target = $region17
    $region16: #{nn2dmel_forward.5} parent=1 // pred_region
      _
    $region17: #{nn2dmel_forward.5} parent=1 // pred_fallthru
      _
    // Predicated region
    $region18: #{nn2dmel_forward.5} parent=1 // pred_check
      _
    $region19: #{nn2dmel_forward.5} parent=1 // pred_check_branch
      %22 = sbr.rel (0) target = $region21
    $region20: #{nn2dmel_forward.5} parent=1 // pred_region
      _
    $region21: #{nn2dmel_forward.5} parent=1 // pred_fallthru
      _
    // Predicated region
    $region22: #{nn2dmel_forward.5} parent=1 // pred_check
      _
    $region23: #{nn2dmel_forward.5} parent=1 // pred_check_branch
      %24 = sbr.rel (0) target = $region25
    $region24: #{nn2dmel_forward.5} parent=1 // pred_region
      _
    $region25: #{nn2dmel_forward.5} parent=1 // pred_fallthru
      _
    // Predicated region
    $region26: #{nn2dmel_forward.5} parent=1 // pred_check
      _
    $region27: #{nn2dmel_forward.5} parent=1 // pred_check_branch
      %26 = sbr.rel (0) target = $region29
    $region28: #{nn2dmel_forward.5} parent=1 // pred_region
      _
    $region29: #{nn2dmel_forward.5} parent=1 // pred_fallthru
      _
    %v27 = vld [vmem:[%s0] sm:$0xff]
    %v28 = vld [vmem:[%s0 + $0x8] sm:$0xf]
    %v29 = vld [vmem:[%s1] sm:$0xff]
    %v30 = vld [vmem:[%s1 + $0x8] sm:$0xff]
    %v31 = vld [vmem:[%s1 + $0x10] sm:$0xff]
    %v32 = vld [vmem:[%s1 + $0x18] sm:$0xff]
    %v33 = vld [vmem:[%s1 + $0x20] sm:$0xff]
    %v34 = vld [vmem:[%s1 + $0x28] sm:$0xff]
    %v35 = vld [vmem:[%s1 + $0x30] sm:$0xff]
    %v36 = vld [vmem:[%s1 + $0x38] sm:$0xff]
    %v37 = vld [vmem:[%s1 + $0x40] sm:$0xff]
    %v38 = vld [vmem:[%s1 + $0x48] sm:$0xff]
    %v39 = vld [vmem:[%s1 + $0x50] sm:$0xff]
    %v40 = vld [vmem:[%s1 + $0x58] sm:$0xff]
    %v41 = vld [vmem:[%s1 + $0x60] sm:$0xff]
    %v42 = vld [vmem:[%s1 + $0x68] sm:$0xff]
    %v43 = vld [vmem:[%s1 + $0x70] sm:$0xff]
    %v44 = vld [vmem:[%s1 + $0x78] sm:$0xff]
    %v45 = vld [vmem:[%s1 + $0x80] sm:$0xff]
    %v46 = vld [vmem:[%s1 + $0x88] sm:$0xff]
    %v47 = vld [vmem:[%s1 + $0x90] sm:$0xff]
    %v48 = vld [vmem:[%s1 + $0x98] sm:$0xff]
    %v49 = vld [vmem:[%s1 + $0xa0] sm:$0xff]
    %v50 = vld [vmem:[%s1 + $0xa8] sm:$0xff]
    %v51 = vld [vmem:[%s1 + $0xb0] sm:$0xff]
    %v52 = vld [vmem:[%s1 + $0xb8] sm:$0xff]
    %v53 = vld [vmem:[%s1 + $0xc0] sm:$0xff]
    %v54 = vld [vmem:[%s1 + $0xc8] sm:$0xff]
    %v55 = vld [vmem:[%s1 + $0xd0] sm:$0xff]
    %v56 = vld [vmem:[%s1 + $0xd8] sm:$0xff]
    %v57 = vld [vmem:[%s1 + $0xe0] sm:$0xff]
    %v58 = vld [vmem:[%s1 + $0xe8] sm:$0xff]
    %v59 = vld [vmem:[%s1 + $0xf0] sm:$0xff]
    %v60 = vld [vmem:[%s1 + $0xf8] sm:$0xff]
    %v61 = vld [vmem:[%s1 + $0x100] sm:$0xff]
    %v62 = vld [vmem:[%s1 + $0x108] sm:$0xff]
    %v63 = vld [vmem:[%s1 + $0x110] sm:$0xff]
    %v64 = vld [vmem:[%s1 + $0x118] sm:$0xff]
    %v65 = vld [vmem:[%s1 + $0x120] sm:$0xff]
    %v66 = vld [vmem:[%s1 + $0x128] sm:$0xff]
    %v67 = vld [vmem:[%s1 + $0x130] sm:$0xff]
    %v68 = vld [vmem:[%s1 + $0x138] sm:$0xff]
    %v69 = vld [vmem:[%s1 + $0x140] sm:$0xff]
    %v70 = vld [vmem:[%s1 + $0x148] sm:$0xff]
    %v71 = vld [vmem:[%s1 + $0x150] sm:$0xff]
    %v72 = vld [vmem:[%s1 + $0x158] sm:$0xff]
    %v73 = vld [vmem:[%s1 + $0x160] sm:$0xff]
    %v74 = vld [vmem:[%s1 + $0x168] sm:$0xff]
    %v75 = vld [vmem:[%s1 + $0x170] sm:$0xff]
    %v76 = vld [vmem:[%s1 + $0x178] sm:$0xff]
    %v77 = vld [vmem:[%s1 + $0x180] sm:$0xff]
    %v78 = vld [vmem:[%s1 + $0x188] sm:$0xff]
    %v79 = vld [vmem:[%s1 + $0x190] sm:$0xff]
    %v80 = vld [vmem:[%s1 + $0x198] sm:$0xff]
    %v81 = vld [vmem:[%s1 + $0x1a0] sm:$0xff]
    %v82 = vld [vmem:[%s1 + $0x1a8] sm:$0xff]
    %v83 = vld [vmem:[%s1 + $0x1b0] sm:$0xff]
    %v84 = vld [vmem:[%s1 + $0x1b8] sm:$0xff]
    %v85 = vld [vmem:[%s1 + $0x1c0] sm:$0xff]
    %v86 = vld [vmem:[%s1 + $0x1c8] sm:$0xff]
    %v87 = vld [vmem:[%s1 + $0x1d0] sm:$0xff]
    %v88 = vld [vmem:[%s1 + $0x1d8] sm:$0xff]
    %v89 = vld [vmem:[%s1 + $0x1e0] sm:$0xff]
    %v90 = vld [vmem:[%s1 + $0x1e8] sm:$0xff]
    %v91 = vld [vmem:[%s1 + $0x1f0] sm:$0xff]
    %v92 = vld [vmem:[%s1 + $0x1f8] sm:$0xff]
    %v93 = vld [vmem:[%s1 + $0x200] sm:$0xff]
    %v94 = vld [vmem:[%s1 + $0x208] sm:$0xff]
    %v95 = vld [vmem:[%s1 + $0x210] sm:$0xff]
    %v96 = vld [vmem:[%s1 + $0x218] sm:$0xff]
    %v97 = vld [vmem:[%s1 + $0x220] sm:$0xff]
    %v98 = vld [vmem:[%s1 + $0x228] sm:$0xff]
    %v99 = vld [vmem:[%s1 + $0x230] sm:$0xff]
    %v100 = vld [vmem:[%s1 + $0x238] sm:$0xff]
    %v101 = vld [vmem:[%s1 + $0x240] sm:$0xff]
    %v102 = vld [vmem:[%s1 + $0x248] sm:$0xff]
    %v103 = vld [vmem:[%s1 + $0x250] sm:$0xff]
    %v104 = vld [vmem:[%s1 + $0x258] sm:$0xff]
    %v105 = vld [vmem:[%s1 + $0x260] sm:$0xff]
    %v106 = vld [vmem:[%s1 + $0x268] sm:$0xff]
    %v107 = vld [vmem:[%s1 + $0x270] sm:$0xff]
    %v108 = vld [vmem:[%s1 + $0x278] sm:$0xff]
    %v109 = vld [vmem:[%s1 + $0x280] sm:$0xff]
    %v110 = vld [vmem:[%s1 + $0x288] sm:$0xff]
    %v111 = vld [vmem:[%s1 + $0x290] sm:$0xff]
    %v112 = vld [vmem:[%s1 + $0x298] sm:$0xff]
    %v113 = vld [vmem:[%s1 + $0x2a0] sm:$0xff]
    %v114 = vld [vmem:[%s1 + $0x2a8] sm:$0xff]
    %v115 = vld [vmem:[%s1 + $0x2b0] sm:$0xff]
    %v116 = vld [vmem:[%s1 + $0x2b8] sm:$0xff]
    %v117 = vld [vmem:[%s1 + $0x2c0] sm:$0xff]
    %v118 = vld [vmem:[%s1 + $0x2c8] sm:$0xff]
    %v119 = vld [vmem:[%s1 + $0x2d0] sm:$0xff]
    %v120 = vld [vmem:[%s1 + $0x2d8] sm:$0xff]
    %v121 = vld [vmem:[%s1 + $0x2e0] sm:$0xff]
    %v122 = vld [vmem:[%s1 + $0x2e8] sm:$0xff]
    %v123 = vld [vmem:[%s1 + $0x2f0] sm:$0xff]
    %v124 = vld [vmem:[%s1 + $0x2f8] sm:$0xff]
    %v125 = vld [vmem:[%s1 + $0x300] sm:$0xff]
    %v126 = vld [vmem:[%s1 + $0x308] sm:$0xff]
    %v127 = vld [vmem:[%s1 + $0x310] sm:$0xff]
    %v128 = vld [vmem:[%s1 + $0x318] sm:$0xff]
    %v129 = vld [vmem:[%s1 + $0x320] sm:$0xff]
    %v130 = vld [vmem:[%s1 + $0x328] sm:$0xff]
    %v131 = vld [vmem:[%s1 + $0x330] sm:$0xff]
    %v132 = vld [vmem:[%s1 + $0x338] sm:$0xff]
    %v133 = vld [vmem:[%s1 + $0x340] sm:$0xff]
    %v134 = vld [vmem:[%s1 + $0x348] sm:$0xff]
    %v135 = vld [vmem:[%s1 + $0x350] sm:$0xff]
    %v136 = vld [vmem:[%s1 + $0x358] sm:$0xff]
    %v137 = vld [vmem:[%s1 + $0x360] sm:$0xff]
    %v138 = vld [vmem:[%s1 + $0x368] sm:$0xff]
    %v139 = vld [vmem:[%s1 + $0x370] sm:$0xff]
    %v140 = vld [vmem:[%s1 + $0x378] sm:$0xff]
    %v141 = vld [vmem:[%s1 + $0x380] sm:$0xff]
    %v142 = vld [vmem:[%s1 + $0x388] sm:$0xff]
    %v143 = vld [vmem:[%s1 + $0x390] sm:$0xff]
    %v144 = vld [vmem:[%s1 + $0x398] sm:$0xff]
    %v145 = vld [vmem:[%s1 + $0x3a0] sm:$0xff]
    %v146 = vld [vmem:[%s1 + $0x3a8] sm:$0xff]
    %v147 = vld [vmem:[%s1 + $0x3b0] sm:$0xff]
    %v148 = vld [vmem:[%s1 + $0x3b8] sm:$0xff]
    %v149 = vld [vmem:[%s1 + $0x3c0] sm:$0xff]
    %v150 = vld [vmem:[%s1 + $0x3c8] sm:$0xff]
    %v151 = vld [vmem:[%s1 + $0x3d0] sm:$0xff]
    %v152 = vld [vmem:[%s1 + $0x3d8] sm:$0xff]
    %v153 = vld [vmem:[%s1 + $0x3e0] sm:$0xff]
    %v154 = vld [vmem:[%s1 + $0x3e8] sm:$0xff]
    %v155 = vld [vmem:[%s1 + $0x3f0] sm:$0xff]
    %v156 = vld [vmem:[%s1 + $0x3f8] sm:$0xff]
    %v157 = vld [vmem:[%s1 + $0x400] sm:$0xff]
    %v158 = vld [vmem:[%s1 + $0x408] sm:$0xff]
    %v159 = vld [vmem:[%s1 + $0x410] sm:$0xff]
    %v160 = vld [vmem:[%s1 + $0x418] sm:$0xff]
    %v161 = vld [vmem:[%s1 + $0x420] sm:$0xff]
    %v162 = vld [vmem:[%s1 + $0x428] sm:$0xff]
    %v163 = vld [vmem:[%s1 + $0x430] sm:$0xff]
    %v164 = vld [vmem:[%s1 + $0x438] sm:$0xff]
    %v165 = vld [vmem:[%s1 + $0x440] sm:$0xff]
    %v166 = vld [vmem:[%s1 + $0x448] sm:$0xff]
    %v167 = vld [vmem:[%s1 + $0x450] sm:$0xff]
    %v168 = vld [vmem:[%s1 + $0x458] sm:$0xff]
    %v169 = vld [vmem:[%s1 + $0x460] sm:$0xff]
    %v170 = vld [vmem:[%s1 + $0x468] sm:$0xff]
    %v171 = vld [vmem:[%s1 + $0x470] sm:$0xff]
    %v172 = vld [vmem:[%s1 + $0x478] sm:$0xff]
    %v173 = vld [vmem:[%s1 + $0x480] sm:$0xff]
    %v174 = vld [vmem:[%s1 + $0x488] sm:$0xff]
    %v175 = vld [vmem:[%s1 + $0x490] sm:$0xff]
    %v176 = vld [vmem:[%s1 + $0x498] sm:$0xff]
    %v177 = vld [vmem:[%s1 + $0x4a0] sm:$0xff]
    %v178 = vld [vmem:[%s1 + $0x4a8] sm:$0xff]
    %v179 = vld [vmem:[%s1 + $0x4b0] sm:$0xff]
    %v180 = vld [vmem:[%s1 + $0x4b8] sm:$0xff]
    %v181 = vld [vmem:[%s1 + $0x4c0] sm:$0xff]
    %v182 = vld [vmem:[%s1 + $0x4c8] sm:$0xff]
    %v183 = vld [vmem:[%s1 + $0x4d0] sm:$0xff]
    %v184 = vld [vmem:[%s1 + $0x4d8] sm:$0xff]
    %v185 = vld [vmem:[%s1 + $0x4e0] sm:$0xff]
    %v186 = vld [vmem:[%s1 + $0x4e8] sm:$0xff]
    %v187 = vld [vmem:[%s1 + $0x4f0] sm:$0xff]
    %v188 = vld [vmem:[%s1 + $0x4f8] sm:$0xff]
    %v189 = vld [vmem:[%s1 + $0x500] sm:$0xff]
    %v190 = vld [vmem:[%s1 + $0x508] sm:$0xff]
    %v191 = vld [vmem:[%s1 + $0x510] sm:$0xff]
    %v192 = vld [vmem:[%s1 + $0x518] sm:$0xff]
    %v193 = vld [vmem:[%s1 + $0x520] sm:$0xff]
    %v194 = vld [vmem:[%s1 + $0x528] sm:$0xff]
    %v195 = vld [vmem:[%s1 + $0x530] sm:$0xff]
    %v196 = vld [vmem:[%s1 + $0x538] sm:$0xff]
    %v197 = vld [vmem:[%s1 + $0x540] sm:$0xff]
    %v198 = vld [vmem:[%s1 + $0x548] sm:$0xff]
    %v199 = vld [vmem:[%s1 + $0x550] sm:$0xff]
    %v200 = vld [vmem:[%s1 + $0x558] sm:$0xff]
    %v201 = vld [vmem:[%s1 + $0x560] sm:$0xff]
    %v202 = vld [vmem:[%s1 + $0x568] sm:$0xff]
    %v203 = vld [vmem:[%s1 + $0x570] sm:$0xff]
    %v204 = vld [vmem:[%s1 + $0x578] sm:$0xff]
    %v205 = vld [vmem:[%s1 + $0x580] sm:$0xff]
    %v206 = vld [vmem:[%s1 + $0x588] sm:$0xff]
    %v207 = vld [vmem:[%s1 + $0x590] sm:$0xff]
    %v208 = vld [vmem:[%s1 + $0x598] sm:$0xff]
    %v209 = vld [vmem:[%s1 + $0x5a0] sm:$0xff]
    %v210 = vld [vmem:[%s1 + $0x5a8] sm:$0xff]
    %v211 = vld [vmem:[%s1 + $0x5b0] sm:$0xff]
    %v212 = vld [vmem:[%s1 + $0x5b8] sm:$0xff]
    %v213 = vld [vmem:[%s1 + $0x5c0] sm:$0xff]
    %v214 = vld [vmem:[%s1 + $0x5c8] sm:$0xff]
    %v215 = vld [vmem:[%s1 + $0x5d0] sm:$0xff]
    %v216 = vld [vmem:[%s1 + $0x5d8] sm:$0xff]
    %v217 = vld [vmem:[%s1 + $0x5e0] sm:$0xff]
    %v218 = vld [vmem:[%s1 + $0x5e8] sm:$0xff]
    %v219 = vld [vmem:[%s1 + $0x5f0] sm:$0xff]
    %v220 = vld [vmem:[%s1 + $0x5f8] sm:$0xff]
    %v221 = vld [vmem:[%s1 + $0x600] sm:$0xff]
    %v222 = vld [vmem:[%s1 + $0x608] sm:$0xff]
    %v223 = vld [vmem:[%s1 + $0x610] sm:$0xff]
    %v224 = vld [vmem:[%s1 + $0x618] sm:$0xff]
    %v225 = vld [vmem:[%s1 + $0x620] sm:$0xff]
    %v226 = vld [vmem:[%s1 + $0x628] sm:$0xff]
    %v227 = vld [vmem:[%s1 + $0x630] sm:$0xff]
    %v228 = vld [vmem:[%s1 + $0x638] sm:$0xff]
    %v229 = vld [vmem:[%s1 + $0x640] sm:$0xff]
    %v230 = vld [vmem:[%s1 + $0x648] sm:$0xff]
    %v231 = vld [vmem:[%s1 + $0x650] sm:$0xff]
    %v232 = vld [vmem:[%s1 + $0x658] sm:$0xff]
    %v233 = vld [vmem:[%s1 + $0x660] sm:$0xff]
    %v234 = vld [vmem:[%s1 + $0x668] sm:$0xff]
    %v235 = vld [vmem:[%s1 + $0x670] sm:$0xff]
    %v236 = vld [vmem:[%s1 + $0x678] sm:$0xff]
    %v237 = vld [vmem:[%s1 + $0x680] sm:$0xff]
    %v238 = vld [vmem:[%s1 + $0x688] sm:$0xff]
    %v239 = vld [vmem:[%s1 + $0x690] sm:$0xff]
    %v240 = vld [vmem:[%s1 + $0x698] sm:$0xff]
    %v241 = vld [vmem:[%s1 + $0x6a0] sm:$0xff]
    %v242 = vld [vmem:[%s1 + $0x6a8] sm:$0xff]
    %v243 = vld [vmem:[%s1 + $0x6b0] sm:$0xff]
    %v244 = vld [vmem:[%s1 + $0x6b8] sm:$0xff]
    %v245 = vld [vmem:[%s1 + $0x6c0] sm:$0xff]
    %v246 = vld [vmem:[%s1 + $0x6c8] sm:$0xff]
    %v247 = vld [vmem:[%s1 + $0x6d0] sm:$0xff]
    %v248 = vld [vmem:[%s1 + $0x6d8] sm:$0xff]
    %v249 = vld [vmem:[%s1 + $0x6e0] sm:$0xff]
    %v250 = vld [vmem:[%s1 + $0x6e8] sm:$0xff]
    %v251 = vld [vmem:[%s1 + $0x6f0] sm:$0xff]
    %v252 = vld [vmem:[%s1 + $0x6f8] sm:$0xff]
    %v253 = vld [vmem:[%s1 + $0x700] sm:$0xff]
    %v254 = vld [vmem:[%s1 + $0x708] sm:$0xff]
    %v255 = vld [vmem:[%s1 + $0x710] sm:$0xff]
    %v256 = vld [vmem:[%s1 + $0x718] sm:$0xff]
    %v257 = vld [vmem:[%s1 + $0x720] sm:$0xff]
    %v258 = vld [vmem:[%s1 + $0x728] sm:$0xff]
    %v259 = vld [vmem:[%s1 + $0x730] sm:$0xff]
    %v260 = vld [vmem:[%s1 + $0x738] sm:$0xff]
    %v261 = vld [vmem:[%s1 + $0x740] sm:$0xff]
    %v262 = vld [vmem:[%s1 + $0x748] sm:$0xff]
    %v263 = vld [vmem:[%s1 + $0x750] sm:$0xff]
    %v264 = vld [vmem:[%s1 + $0x758] sm:$0xff]
    %v265 = vld [vmem:[%s1 + $0x760] sm:$0xff]
    %v266 = vld [vmem:[%s1 + $0x768] sm:$0xff]
    %v267 = vld [vmem:[%s1 + $0x770] sm:$0xff]
    %v268 = vld [vmem:[%s1 + $0x778] sm:$0xff]
    %v269 = vld [vmem:[%s1 + $0x780] sm:$0xff]
    %v270 = vld [vmem:[%s1 + $0x788] sm:$0xff]
    %v271 = vld [vmem:[%s1 + $0x790] sm:$0xff]
    %v272 = vld [vmem:[%s1 + $0x798] sm:$0xff]
    %v273 = vld [vmem:[%s1 + $0x7a0] sm:$0xff]
    %v274 = vld [vmem:[%s1 + $0x7a8] sm:$0xff]
    %v275 = vld [vmem:[%s1 + $0x7b0] sm:$0xff]
    %v276 = vld [vmem:[%s1 + $0x7b8] sm:$0xff]
    %v277 = vld [vmem:[%s1 + $0x7c0] sm:$0xff]
    %v278 = vld [vmem:[%s1 + $0x7c8] sm:$0xff]
    %v279 = vld [vmem:[%s1 + $0x7d0] sm:$0xff]
    %v280 = vld [vmem:[%s1 + $0x7d8] sm:$0xff]
    %v281 = vld [vmem:[%s1 + $0x7e0] sm:$0xff]
    %v282 = vld [vmem:[%s1 + $0x7e8] sm:$0xff]
    %v283 = vld [vmem:[%s1 + $0x7f0] sm:$0xff]
    %v284 = vld [vmem:[%s1 + $0x7f8] sm:$0xff]
    %v285 = vld [vmem:[%s1 + $0x800] sm:$0xff]
    %v286 = vld [vmem:[%s1 + $0x808] sm:$0xff]
    %v287 = vld [vmem:[%s1 + $0x810] sm:$0xff]
    %v288 = vld [vmem:[%s1 + $0x818] sm:$0xff]
    %v289 = vld [vmem:[%s1 + $0x820] sm:$0xff]
    %v290 = vld [vmem:[%s1 + $0x828] sm:$0xff]
    %v291 = vld [vmem:[%s1 + $0x830] sm:$0xff]
    %v292 = vld [vmem:[%s1 + $0x838] sm:$0xff]
    %v293 = vld [vmem:[%s1 + $0x840] sm:$0xff]
    %v294 = vld [vmem:[%s1 + $0x848] sm:$0xff]
    %v295 = vld [vmem:[%s1 + $0x850] sm:$0xff]
    %v296 = vld [vmem:[%s1 + $0x858] sm:$0xff]
    %v297 = vld [vmem:[%s1 + $0x860] sm:$0xff]
    %v298 = vld [vmem:[%s1 + $0x868] sm:$0xff]
    %v299 = vld [vmem:[%s1 + $0x870] sm:$0xff]
    %v300 = vld [vmem:[%s1 + $0x878] sm:$0xff]
    %v301 = vld [vmem:[%s1 + $0x880] sm:$0xff]
    %v302 = vld [vmem:[%s1 + $0x888] sm:$0xff]
    %v303 = vld [vmem:[%s1 + $0x890] sm:$0xff]
    %v304 = vld [vmem:[%s1 + $0x898] sm:$0xff]
    %v305 = vld [vmem:[%s1 + $0x8a0] sm:$0xff]
    %v306 = vld [vmem:[%s1 + $0x8a8] sm:$0xff]
    %v307 = vld [vmem:[%s1 + $0x8b0] sm:$0xff]
    %v308 = vld [vmem:[%s1 + $0x8b8] sm:$0xff]
    %v309 = vld [vmem:[%s1 + $0x8c0] sm:$0xff]
    %v310 = vld [vmem:[%s1 + $0x8c8] sm:$0xff]
    %v311 = vld [vmem:[%s1 + $0x8d0] sm:$0xff]
    %v312 = vld [vmem:[%s1 + $0x8d8] sm:$0xff]
    %v313 = vld [vmem:[%s1 + $0x8e0] sm:$0xff]
    %v314 = vld [vmem:[%s1 + $0x8e8] sm:$0xff]
    %v315 = vld [vmem:[%s1 + $0x8f0] sm:$0xff]
    %v316 = vld [vmem:[%s1 + $0x8f8] sm:$0xff]
    %v317 = vld [vmem:[%s1 + $0x900] sm:$0xff]
    %v318 = vld [vmem:[%s1 + $0x908] sm:$0xff]
    %v319 = vld [vmem:[%s1 + $0x910] sm:$0xff]
    %v320 = vld [vmem:[%s1 + $0x918] sm:$0xff]
    %v321 = vld [vmem:[%s1 + $0x920] sm:$0xff]
    %v322 = vld [vmem:[%s1 + $0x928] sm:$0xff]
    %v323 = vld [vmem:[%s1 + $0x930] sm:$0xff]
    %v324 = vld [vmem:[%s1 + $0x938] sm:$0xff]
    %v325 = vld [vmem:[%s1 + $0x940] sm:$0xff]
    %v326 = vld [vmem:[%s1 + $0x948] sm:$0xff]
    %v327 = vld [vmem:[%s1 + $0x950] sm:$0xff]
    %v328 = vld [vmem:[%s1 + $0x958] sm:$0xff]
    %v329 = vld [vmem:[%s1 + $0x960] sm:$0xff]
    %v330 = vld [vmem:[%s1 + $0x968] sm:$0xff]
    %v331 = vld [vmem:[%s1 + $0x970] sm:$0xff]
    %v332 = vld [vmem:[%s1 + $0x978] sm:$0xff]
    %v333 = vld [vmem:[%s1 + $0x980] sm:$0xff]
    %v334 = vld [vmem:[%s1 + $0x988] sm:$0xff]
    %v335 = vld [vmem:[%s1 + $0x990] sm:$0xff]
    %v336 = vld [vmem:[%s1 + $0x998] sm:$0xff]
    %v337 = vld [vmem:[%s1 + $0x9a0] sm:$0xff]
    %v338 = vld [vmem:[%s1 + $0x9a8] sm:$0xff]
    %v339 = vld [vmem:[%s1 + $0x9b0] sm:$0xff]
    %v340 = vld [vmem:[%s1 + $0x9b8] sm:$0xff]
    %v341 = vld [vmem:[%s1 + $0x9c0] sm:$0xff]
    %v342 = vld [vmem:[%s1 + $0x9c8] sm:$0xff]
    %v343 = vld [vmem:[%s1 + $0x9d0] sm:$0xff]
    %v344 = vld [vmem:[%s1 + $0x9d8] sm:$0xff]
    %v345 = vld [vmem:[%s1 + $0x9e0] sm:$0xff]
    %v346 = vld [vmem:[%s1 + $0x9e8] sm:$0xff]
    %v347 = vld [vmem:[%s1 + $0x9f0] sm:$0xff]
    %v348 = vld [vmem:[%s1 + $0x9f8] sm:$0xff]
    %v349 = vld [vmem:[%s1 + $0xa00] sm:$0xff]
    %v350 = vld [vmem:[%s1 + $0xa08] sm:$0xff]
    %v351 = vld [vmem:[%s1 + $0xa10] sm:$0xff]
    %v352 = vld [vmem:[%s1 + $0xa18] sm:$0xff]
    %v353 = vld [vmem:[%s1 + $0xa20] sm:$0xff]
    %v354 = vld [vmem:[%s1 + $0xa28] sm:$0xff]
    %v355 = vld [vmem:[%s1 + $0xa30] sm:$0xff]
    %v356 = vld [vmem:[%s1 + $0xa38] sm:$0xff]
    %v357 = vld [vmem:[%s1 + $0xa40] sm:$0xff]
    %v358 = vld [vmem:[%s1 + $0xa48] sm:$0xff]
    %v359 = vld [vmem:[%s1 + $0xa50] sm:$0xff]
    %v360 = vld [vmem:[%s1 + $0xa58] sm:$0xff]
    %v361 = vld [vmem:[%s1 + $0xa60] sm:$0xff]
    %v362 = vld [vmem:[%s1 + $0xa68] sm:$0xff]
    %v363 = vld [vmem:[%s1 + $0xa70] sm:$0xff]
    %v364 = vld [vmem:[%s1 + $0xa78] sm:$0xff]
    %v365 = vld [vmem:[%s1 + $0xa80] sm:$0xff]
    %v366 = vld [vmem:[%s1 + $0xa88] sm:$0xff]
    %v367 = vld [vmem:[%s1 + $0xa90] sm:$0xff]
    %v368 = vld [vmem:[%s1 + $0xa98] sm:$0xff]
    %v369 = vld [vmem:[%s1 + $0xaa0] sm:$0xff]
    %v370 = vld [vmem:[%s1 + $0xaa8] sm:$0xff]
    %v371 = vld [vmem:[%s1 + $0xab0] sm:$0xff]
    %v372 = vld [vmem:[%s1 + $0xab8] sm:$0xff]
    %v373 = vld [vmem:[%s1 + $0xac0] sm:$0xff]
    %v374 = vld [vmem:[%s1 + $0xac8] sm:$0xff]
    %v375 = vld [vmem:[%s1 + $0xad0] sm:$0xff]
    %v376 = vld [vmem:[%s1 + $0xad8] sm:$0xff]
    %v377 = vld [vmem:[%s1 + $0xae0] sm:$0xff]
    %v378 = vld [vmem:[%s1 + $0xae8] sm:$0xff]
    %v379 = vld [vmem:[%s1 + $0xaf0] sm:$0xff]
    %v380 = vld [vmem:[%s1 + $0xaf8] sm:$0xff]
    %v381 = vld [vmem:[%s1 + $0xb00] sm:$0xff]
    %v382 = vld [vmem:[%s1 + $0xb08] sm:$0xff]
    %v383 = vld [vmem:[%s1 + $0xb10] sm:$0xff]
    %v384 = vld [vmem:[%s1 + $0xb18] sm:$0xff]
    %v385 = vld [vmem:[%s1 + $0xb20] sm:$0xff]
    %v386 = vld [vmem:[%s1 + $0xb28] sm:$0xff]
    %v387 = vld [vmem:[%s1 + $0xb30] sm:$0xff]
    %v388 = vld [vmem:[%s1 + $0xb38] sm:$0xff]
    %v389 = vld [vmem:[%s1 + $0xb40] sm:$0xff]
    %v390 = vld [vmem:[%s1 + $0xb48] sm:$0xff]
    %v391 = vld [vmem:[%s1 + $0xb50] sm:$0xff]
    %v392 = vld [vmem:[%s1 + $0xb58] sm:$0xff]
    %v393 = vld [vmem:[%s1 + $0xb60] sm:$0xff]
    %v394 = vld [vmem:[%s1 + $0xb68] sm:$0xff]
    %v395 = vld [vmem:[%s1 + $0xb70] sm:$0xff]
    %v396 = vld [vmem:[%s1 + $0xb78] sm:$0xff]
    %v397 = vld [vmem:[%s1 + $0xb80] sm:$0xff]
    %v398 = vld [vmem:[%s1 + $0xb88] sm:$0xff]
    %v399 = vld [vmem:[%s1 + $0xb90] sm:$0xff]
    %v400 = vld [vmem:[%s1 + $0xb98] sm:$0xff]
    %v401 = vld [vmem:[%s1 + $0xba0] sm:$0xff]
    %v402 = vld [vmem:[%s1 + $0xba8] sm:$0xff]
    %v403 = vld [vmem:[%s1 + $0xbb0] sm:$0xff]
    %v404 = vld [vmem:[%s1 + $0xbb8] sm:$0xff]
    %v405 = vld [vmem:[%s1 + $0xbc0] sm:$0xff]
    %v406 = vld [vmem:[%s1 + $0xbc8] sm:$0xff]
    %v407 = vld [vmem:[%s1 + $0xbd0] sm:$0xff]
    %v408 = vld [vmem:[%s1 + $0xbd8] sm:$0xff]
    %v409 = vld [vmem:[%s1 + $0xbe0] sm:$0xff]
    %v410 = vld [vmem:[%s1 + $0xbe8] sm:$0xff]
    %v411 = vld [vmem:[%s1 + $0xbf0] sm:$0xff]
    %v412 = vld [vmem:[%s1 + $0xbf8] sm:$0xff]
    %v413 = vld [vmem:[%s1 + $0xc00] sm:$0xff]
    %v414 = vld [vmem:[%s1 + $0xc08] sm:$0xff]
    %v415 = vld [vmem:[%s1 + $0xc10] sm:$0xff]
    %v416 = vld [vmem:[%s1 + $0xc18] sm:$0xff]
    %v417 = vld [vmem:[%s1 + $0xc20] sm:$0xff]
    %v418 = vld [vmem:[%s1 + $0xc28] sm:$0xff]
    %v419 = vld [vmem:[%s1 + $0xc30] sm:$0xff]
    %v420 = vld [vmem:[%s1 + $0xc38] sm:$0xff]
    %v421 = vld [vmem:[%s1 + $0xc40] sm:$0xff]
    %v422 = vld [vmem:[%s1 + $0xc48] sm:$0xff]
    %v423 = vld [vmem:[%s1 + $0xc50] sm:$0xff]
    %v424 = vld [vmem:[%s1 + $0xc58] sm:$0xff]
    %v425 = vld [vmem:[%s1 + $0xc60] sm:$0xff]
    %v426 = vld [vmem:[%s1 + $0xc68] sm:$0xff]
    %v427 = vld [vmem:[%s1 + $0xc70] sm:$0xff]
    %v428 = vld [vmem:[%s1 + $0xc78] sm:$0xff]
    %v429 = vld [vmem:[%s1 + $0xc80] sm:$0xff]
    %v430 = vld [vmem:[%s1 + $0xc88] sm:$0xff]
    %v431 = vld [vmem:[%s1 + $0xc90] sm:$0xff]
    %v432 = vld [vmem:[%s1 + $0xc98] sm:$0xff]
    %v433 = vld [vmem:[%s1 + $0xca0] sm:$0xff]
    %v434 = vld [vmem:[%s1 + $0xca8] sm:$0xff]
    %v435 = vld [vmem:[%s1 + $0xcb0] sm:$0xff]
    %v436 = vld [vmem:[%s1 + $0xcb8] sm:$0xff]
    %v437 = vld [vmem:[%s1 + $0xcc0] sm:$0xff]
    %v438 = vld [vmem:[%s1 + $0xcc8] sm:$0xff]
    %v439 = vld [vmem:[%s1 + $0xcd0] sm:$0xff]
    %v440 = vld [vmem:[%s1 + $0xcd8] sm:$0xff]
    %v441 = vld [vmem:[%s1 + $0xce0] sm:$0xff]
    %v442 = vld [vmem:[%s1 + $0xce8] sm:$0xff]
    %v443 = vld [vmem:[%s1 + $0xcf0] sm:$0xff]
    %v444 = vld [vmem:[%s1 + $0xcf8] sm:$0xff]
    %v445 = vld [vmem:[%s1 + $0xd00] sm:$0xff]
    %v446 = vld [vmem:[%s1 + $0xd08] sm:$0xff]
    %v447 = vld [vmem:[%s1 + $0xd10] sm:$0xff]
    %v448 = vld [vmem:[%s1 + $0xd18] sm:$0xff]
    %v449 = vld [vmem:[%s1 + $0xd20] sm:$0xff]
    %v450 = vld [vmem:[%s1 + $0xd28] sm:$0xff]
    %v451 = vld [vmem:[%s1 + $0xd30] sm:$0xff]
    %v452 = vld [vmem:[%s1 + $0xd38] sm:$0xff]
    %v453 = vld [vmem:[%s1 + $0xd40] sm:$0xff]
    %v454 = vld [vmem:[%s1 + $0xd48] sm:$0xff]
    %v455 = vld [vmem:[%s1 + $0xd50] sm:$0xff]
    %v456 = vld [vmem:[%s1 + $0xd58] sm:$0xff]
    %v457 = vld [vmem:[%s1 + $0xd60] sm:$0xff]
    %v458 = vld [vmem:[%s1 + $0xd68] sm:$0xff]
    %v459 = vld [vmem:[%s1 + $0xd70] sm:$0xff]
    %v460 = vld [vmem:[%s1 + $0xd78] sm:$0xff]
    %v461 = vld [vmem:[%s1 + $0xd80] sm:$0xff]
    %v462 = vld [vmem:[%s1 + $0xd88] sm:$0xff]
    %v463 = vld [vmem:[%s1 + $0xd90] sm:$0xff]
    %v464 = vld [vmem:[%s1 + $0xd98] sm:$0xff]
    %v465 = vld [vmem:[%s1 + $0xda0] sm:$0xff]
    %v466 = vld [vmem:[%s1 + $0xda8] sm:$0xff]
    %v467 = vld [vmem:[%s1 + $0xdb0] sm:$0xff]
    %v468 = vld [vmem:[%s1 + $0xdb8] sm:$0xff]
    %v469 = vld [vmem:[%s1 + $0xdc0] sm:$0xff]
    %v470 = vld [vmem:[%s1 + $0xdc8] sm:$0xff]
    %v471 = vld [vmem:[%s1 + $0xdd0] sm:$0xff]
    %v472 = vld [vmem:[%s1 + $0xdd8] sm:$0xff]
    %v473 = vld [vmem:[%s1 + $0xde0] sm:$0xff]
    %v474 = vld [vmem:[%s1 + $0xde8] sm:$0xff]
    %v475 = vld [vmem:[%s1 + $0xdf0] sm:$0xff]
    %v476 = vld [vmem:[%s1 + $0xdf8] sm:$0xff]
    %v477 = vld [vmem:[%s1 + $0xe00] sm:$0xff]
    %v478 = vld [vmem:[%s1 + $0xe08] sm:$0xff]
    %v479 = vld [vmem:[%s1 + $0xe10] sm:$0xff]
    %v480 = vld [vmem:[%s1 + $0xe18] sm:$0xff]
    %v481 = vld [vmem:[%s1 + $0xe20] sm:$0xff]
    %v482 = vld [vmem:[%s1 + $0xe28] sm:$0xff]
    %v483 = vld [vmem:[%s1 + $0xe30] sm:$0xff]
    %v484 = vld [vmem:[%s1 + $0xe38] sm:$0xff]
    %v485 = vld [vmem:[%s1 + $0xe40] sm:$0xff]
    %v486 = vld [vmem:[%s1 + $0xe48] sm:$0xff]
    %v487 = vld [vmem:[%s1 + $0xe50] sm:$0xff]
    %v488 = vld [vmem:[%s1 + $0xe58] sm:$0xff]
    %v489 = vld [vmem:[%s1 + $0xe60] sm:$0xff]
    %v490 = vld [vmem:[%s1 + $0xe68] sm:$0xff]
    %v491 = vld [vmem:[%s1 + $0xe70] sm:$0xff]
    %v492 = vld [vmem:[%s1 + $0xe78] sm:$0xff]
    %v493 = vld [vmem:[%s1 + $0xe80] sm:$0xff]
    %v494 = vld [vmem:[%s1 + $0xe88] sm:$0xff]
    %v495 = vld [vmem:[%s1 + $0xe90] sm:$0xff]
    %v496 = vld [vmem:[%s1 + $0xe98] sm:$0xff]
    %v497 = vld [vmem:[%s1 + $0xea0] sm:$0xff]
    %v498 = vld [vmem:[%s1 + $0xea8] sm:$0xff]
    %v499 = vld [vmem:[%s1 + $0xeb0] sm:$0xff]
    %v500 = vld [vmem:[%s1 + $0xeb8] sm:$0xff]
    %v501 = vld [vmem:[%s1 + $0xec0] sm:$0xff]
    %v502 = vld [vmem:[%s1 + $0xec8] sm:$0xff]
    %v503 = vld [vmem:[%s1 + $0xed0] sm:$0xff]
    %v504 = vld [vmem:[%s1 + $0xed8] sm:$0xff]
    %v505 = vld [vmem:[%s1 + $0xee0] sm:$0xff]
    %v506 = vld [vmem:[%s1 + $0xee8] sm:$0xff]
    %v507 = vld [vmem:[%s1 + $0xef0] sm:$0xff]
    %v508 = vld [vmem:[%s1 + $0xef8] sm:$0xff]
    %v509 = vld [vmem:[%s1 + $0xf00] sm:$0xff]
    %v510 = vld [vmem:[%s1 + $0xf08] sm:$0xff]
    %v511 = vld [vmem:[%s1 + $0xf10] sm:$0xff]
    %v512 = vld [vmem:[%s1 + $0xf18] sm:$0xff]
    %v513 = vld [vmem:[%s1 + $0xf20] sm:$0xff]
    %v514 = vld [vmem:[%s1 + $0xf28] sm:$0xff]
    %v515 = vld [vmem:[%s1 + $0xf30] sm:$0xff]
    %v516 = vld [vmem:[%s1 + $0xf38] sm:$0xff]
    %v517 = vld [vmem:[%s1 + $0xf40] sm:$0xff]
    %v518 = vld [vmem:[%s1 + $0xf48] sm:$0xff]
    %v519 = vld [vmem:[%s1 + $0xf50] sm:$0xff]
    %v520 = vld [vmem:[%s1 + $0xf58] sm:$0xff]
    %v521 = vld [vmem:[%s1 + $0xf60] sm:$0xff]
    %v522 = vld [vmem:[%s1 + $0xf68] sm:$0xff]
    %v523 = vld [vmem:[%s1 + $0xf70] sm:$0xff]
    %v524 = vld [vmem:[%s1 + $0xf78] sm:$0xff]
    %v525 = vld [vmem:[%s1 + $0xf80] sm:$0xff]
    %v526 = vld [vmem:[%s1 + $0xf88] sm:$0xff]
    %v527 = vld [vmem:[%s1 + $0xf90] sm:$0xff]
    %v528 = vld [vmem:[%s1 + $0xf98] sm:$0xff]
    %v529 = vld [vmem:[%s1 + $0xfa0] sm:$0xff]
    %v530 = vld [vmem:[%s1 + $0xfa8] sm:$0xff]
    %v531 = vld [vmem:[%s1 + $0xfb0] sm:$0xff]
    %v532 = vld [vmem:[%s1 + $0xfb8] sm:$0xff]
    %v533 = vld [vmem:[%s1 + $0xfc0] sm:$0xff]
    %v534 = vld [vmem:[%s1 + $0xfc8] sm:$0xff]
    %v535 = vld [vmem:[%s1 + $0xfd0] sm:$0xff]
    %v536 = vld [vmem:[%s1 + $0xfd8] sm:$0xff]
    %v537 = vld [vmem:[%s1 + $0xfe0] sm:$0xff]
    %v538 = vld [vmem:[%s1 + $0xfe8] sm:$0xff]
    %v539 = vld [vmem:[%s1 + $0xff0] sm:$0xff]
    %v540 = vld [vmem:[%s1 + $0xff8] sm:$0xff]
    %v541 = vld [vmem:[%s1 + $0x1000] sm:$0xff]
    %v542 = vld [vmem:[%s1 + $0x1008] sm:$0xff]
    %v543 = vld [vmem:[%s1 + $0x1010] sm:$0xff]
    %v544 = vld [vmem:[%s1 + $0x1018] sm:$0xff]
    %v545 = vld [vmem:[%s1 + $0x1020] sm:$0xff]
    %v546 = vld [vmem:[%s1 + $0x1028] sm:$0xff]
    %v547 = vld [vmem:[%s1 + $0x1030] sm:$0xff]
    %v548 = vld [vmem:[%s1 + $0x1038] sm:$0xff]
    %v549 = vld [vmem:[%s1 + $0x1040] sm:$0xff]
    %v550 = vld [vmem:[%s1 + $0x1048] sm:$0xff]
    %v551 = vld [vmem:[%s1 + $0x1050] sm:$0xff]
    %v552 = vld [vmem:[%s1 + $0x1058] sm:$0xff]
    %v553 = vld [vmem:[%s1 + $0x1060] sm:$0xff]
    %v554 = vld [vmem:[%s1 + $0x1068] sm:$0xff]
    %v555 = vld [vmem:[%s1 + $0x1070] sm:$0xff]
    %v556 = vld [vmem:[%s1 + $0x1078] sm:$0xff]
    %v557 = vld [vmem:[%s1 + $0x1080] sm:$0xff]
    %v558 = vld [vmem:[%s1 + $0x1088] sm:$0xff]
    %v559 = vld [vmem:[%s1 + $0x1090] sm:$0xff]
    %v560 = vld [vmem:[%s1 + $0x1098] sm:$0xff]
    %v561 = vld [vmem:[%s1 + $0x10a0] sm:$0xff]
    %v562 = vld [vmem:[%s1 + $0x10a8] sm:$0xff]
    %v563 = vld [vmem:[%s1 + $0x10b0] sm:$0xff]
    %v564 = vld [vmem:[%s1 + $0x10b8] sm:$0xff]
    %v565 = vld [vmem:[%s1 + $0x10c0] sm:$0xff]
    %v566 = vld [vmem:[%s1 + $0x10c8] sm:$0xff]
    %v567 = vld [vmem:[%s1 + $0x10d0] sm:$0xff]
    %v568 = vld [vmem:[%s1 + $0x10d8] sm:$0xff]
    %v569 = vld [vmem:[%s1 + $0x10e0] sm:$0xff]
    %v570 = vld [vmem:[%s1 + $0x10e8] sm:$0xff]
    %v571 = vld [vmem:[%s1 + $0x10f0] sm:$0xff]
    %v572 = vld [vmem:[%s1 + $0x10f8] sm:$0xff]
    %v573 = vld [vmem:[%s1 + $0x1100] sm:$0xff]
    %v574 = vld [vmem:[%s1 + $0x1108] sm:$0xff]
    %v575 = vld [vmem:[%s1 + $0x1110] sm:$0xff]
    %v576 = vld [vmem:[%s1 + $0x1118] sm:$0xff]
    %v577 = vld [vmem:[%s1 + $0x1120] sm:$0xff]
    %v578 = vld [vmem:[%s1 + $0x1128] sm:$0xff]
    %v579 = vld [vmem:[%s1 + $0x1130] sm:$0xff]
    %v580 = vld [vmem:[%s1 + $0x1138] sm:$0xff]
    %v581 = vld [vmem:[%s1 + $0x1140] sm:$0xff]
    %v582 = vld [vmem:[%s1 + $0x1148] sm:$0xff]
    %v583 = vld [vmem:[%s1 + $0x1150] sm:$0xff]
    %v584 = vld [vmem:[%s1 + $0x1158] sm:$0xff]
    %v585 = vld [vmem:[%s1 + $0x1160] sm:$0xff]
    %v586 = vld [vmem:[%s1 + $0x1168] sm:$0xff]
    %v587 = vld [vmem:[%s1 + $0x1170] sm:$0xff]
    %v588 = vld [vmem:[%s1 + $0x1178] sm:$0xff]
    %v589 = vld [vmem:[%s1 + $0x1180] sm:$0xff]
    %v590 = vld [vmem:[%s1 + $0x1188] sm:$0xff]
    %v591 = vld [vmem:[%s1 + $0x1190] sm:$0xff]
    %v592 = vld [vmem:[%s1 + $0x1198] sm:$0xff]
    %v593 = vld [vmem:[%s1 + $0x11a0] sm:$0xff]
    %v594 = vld [vmem:[%s1 + $0x11a8] sm:$0xff]
    %v595 = vld [vmem:[%s1 + $0x11b0] sm:$0xff]
    %v596 = vld [vmem:[%s1 + $0x11b8] sm:$0xff]
    %v597 = vld [vmem:[%s1 + $0x11c0] sm:$0xff]
    %v598 = vld [vmem:[%s1 + $0x11c8] sm:$0xff]
    %v599 = vld [vmem:[%s1 + $0x11d0] sm:$0xff]
    %v600 = vld [vmem:[%s1 + $0x11d8] sm:$0xff]
    %v601 = vld [vmem:[%s1 + $0x11e0] sm:$0xff]
    %v602 = vld [vmem:[%s1 + $0x11e8] sm:$0xff]
    %v603 = vld [vmem:[%s1 + $0x11f0] sm:$0xff]
    %v604 = vld [vmem:[%s1 + $0x11f8] sm:$0xff]
    %v605 = vld [vmem:[%s1 + $0x1200] sm:$0xff]
    %v606 = vld [vmem:[%s1 + $0x1208] sm:$0xff]
    %v607 = vld [vmem:[%s1 + $0x1210] sm:$0xff]
    %v608 = vld [vmem:[%s1 + $0x1218] sm:$0xff]
    %v609 = vld [vmem:[%s1 + $0x1220] sm:$0xff]
    %v610 = vld [vmem:[%s1 + $0x1228] sm:$0xff]
    %v611 = vld [vmem:[%s1 + $0x1230] sm:$0xff]
    %v612 = vld [vmem:[%s1 + $0x1238] sm:$0xff]
    %v613 = vld [vmem:[%s1 + $0x1240] sm:$0xff]
    %v614 = vld [vmem:[%s1 + $0x1248] sm:$0xff]
    %v615 = vld [vmem:[%s1 + $0x1250] sm:$0xff]
    %v616 = vld [vmem:[%s1 + $0x1258] sm:$0xff]
    %v617 = vld [vmem:[%s1 + $0x1260] sm:$0xff]
    %v618 = vld [vmem:[%s1 + $0x1268] sm:$0xff]
    %v619 = vld [vmem:[%s1 + $0x1270] sm:$0xff]
    %v620 = vld [vmem:[%s1 + $0x1278] sm:$0xff]
    %v621 = vld [vmem:[%s1 + $0x1280] sm:$0xff]
    %v622 = vld [vmem:[%s1 + $0x1288] sm:$0xff]
    %v623 = vld [vmem:[%s1 + $0x1290] sm:$0xff]
    %v624 = vld [vmem:[%s1 + $0x1298] sm:$0xff]
    %v625 = vld [vmem:[%s1 + $0x12a0] sm:$0xff]
    %v626 = vld [vmem:[%s1 + $0x12a8] sm:$0xff]
    %v627 = vld [vmem:[%s1 + $0x12b0] sm:$0xff]
    %v628 = vld [vmem:[%s1 + $0x12b8] sm:$0xff]
    %v629 = vld [vmem:[%s1 + $0x12c0] sm:$0xff]
    %v630 = vld [vmem:[%s1 + $0x12c8] sm:$0xff]
    %v631 = vld [vmem:[%s1 + $0x12d0] sm:$0xff]
    %v632 = vld [vmem:[%s1 + $0x12d8] sm:$0xff]
    %v633 = vld [vmem:[%s1 + $0x12e0] sm:$0xff]
    %v634 = vld [vmem:[%s1 + $0x12e8] sm:$0xff]
    %v635 = vld [vmem:[%s1 + $0x12f0] sm:$0xff]
    %v636 = vld [vmem:[%s1 + $0x12f8] sm:$0xff]
    %v637 = vld [vmem:[%s1 + $0x1300] sm:$0xff]
    %v638 = vld [vmem:[%s1 + $0x1308] sm:$0xff]
    %v639 = vld [vmem:[%s1 + $0x1310] sm:$0xff]
    %v640 = vld [vmem:[%s1 + $0x1318] sm:$0xff]
    %v641 = vld [vmem:[%s1 + $0x1320] sm:$0xff]
    %v642 = vld [vmem:[%s1 + $0x1328] sm:$0xff]
    %v643 = vld [vmem:[%s1 + $0x1330] sm:$0xff]
    %v644 = vld [vmem:[%s1 + $0x1338] sm:$0xff]
    %v645 = vld [vmem:[%s1 + $0x1340] sm:$0xff]
    %v646 = vld [vmem:[%s1 + $0x1348] sm:$0xff]
    %v647 = vld [vmem:[%s1 + $0x1350] sm:$0xff]
    %v648 = vld [vmem:[%s1 + $0x1358] sm:$0xff]
    %v649 = vld [vmem:[%s1 + $0x1360] sm:$0xff]
    %v650 = vld [vmem:[%s1 + $0x1368] sm:$0xff]
    %v651 = vld [vmem:[%s1 + $0x1370] sm:$0xff]
    %v652 = vld [vmem:[%s1 + $0x1378] sm:$0xff]
    %v653 = vld [vmem:[%s1 + $0x1380] sm:$0xff]
    %v654 = vld [vmem:[%s1 + $0x1388] sm:$0xff]
    %v655 = vld [vmem:[%s1 + $0x1390] sm:$0xff]
    %v656 = vld [vmem:[%s1 + $0x1398] sm:$0xff]
    %v657 = vld [vmem:[%s1 + $0x13a0] sm:$0xff]
    %v658 = vld [vmem:[%s1 + $0x13a8] sm:$0xff]
    %v659 = vld [vmem:[%s1 + $0x13b0] sm:$0xff]
    %v660 = vld [vmem:[%s1 + $0x13b8] sm:$0xff]
    %v661 = vld [vmem:[%s1 + $0x13c0] sm:$0xff]
    %v662 = vld [vmem:[%s1 + $0x13c8] sm:$0xff]
    %v663 = vld [vmem:[%s1 + $0x13d0] sm:$0xff]
    %v664 = vld [vmem:[%s1 + $0x13d8] sm:$0xff]
    %v665 = vld [vmem:[%s1 + $0x13e0] sm:$0xff]
    %v666 = vld [vmem:[%s1 + $0x13e8] sm:$0xff]
    %v667 = vld [vmem:[%s1 + $0x13f0] sm:$0xff]
    %v668 = vld [vmem:[%s1 + $0x13f8] sm:$0xff]
    %v669 = vld [vmem:[%s1 + $0x1400] sm:$0xff]
    %v670 = vld [vmem:[%s1 + $0x1408] sm:$0xff]
    %v671 = vld [vmem:[%s1 + $0x1410] sm:$0xff]
    %v672 = vld [vmem:[%s1 + $0x1418] sm:$0xff]
    %v673 = vld [vmem:[%s1 + $0x1420] sm:$0xff]
    %v674 = vld [vmem:[%s1 + $0x1428] sm:$0xff]
    %v675 = vld [vmem:[%s1 + $0x1430] sm:$0xff]
    %v676 = vld [vmem:[%s1 + $0x1438] sm:$0xff]
    %v677 = vld [vmem:[%s1 + $0x1440] sm:$0xff]
    %v678 = vld [vmem:[%s1 + $0x1448] sm:$0xff]
    %v679 = vld [vmem:[%s1 + $0x1450] sm:$0xff]
    %v680 = vld [vmem:[%s1 + $0x1458] sm:$0xff]
    %v681 = vld [vmem:[%s1 + $0x1460] sm:$0xff]
    %v682 = vld [vmem:[%s1 + $0x1468] sm:$0xff]
    %v683 = vld [vmem:[%s1 + $0x1470] sm:$0xff]
    %v684 = vld [vmem:[%s1 + $0x1478] sm:$0xff]
    %v685 = vld [vmem:[%s1 + $0x1480] sm:$0xff]
    %v686 = vld [vmem:[%s1 + $0x1488] sm:$0xff]
    %v687 = vld [vmem:[%s1 + $0x1490] sm:$0xff]
    %v688 = vld [vmem:[%s1 + $0x1498] sm:$0xff]
    %v689 = vld [vmem:[%s1 + $0x14a0] sm:$0xff]
    %v690 = vld [vmem:[%s1 + $0x14a8] sm:$0xff]
    %v691 = vld [vmem:[%s1 + $0x14b0] sm:$0xff]
    %v692 = vld [vmem:[%s1 + $0x14b8] sm:$0xff]
    %v693 = vld [vmem:[%s1 + $0x14c0] sm:$0xff]
    %v694 = vld [vmem:[%s1 + $0x14c8] sm:$0xff]
    %v695 = vld [vmem:[%s1 + $0x14d0] sm:$0xff]
    %v696 = vld [vmem:[%s1 + $0x14d8] sm:$0xff]
    %v697 = vld [vmem:[%s1 + $0x14e0] sm:$0xff]
    %v698 = vld [vmem:[%s1 + $0x14e8] sm:$0xff]
    %v699 = vld [vmem:[%s1 + $0x14f0] sm:$0xff]
    %v700 = vld [vmem:[%s1 + $0x14f8] sm:$0xff]
    %v701 = vld [vmem:[%s1 + $0x1500] sm:$0xff]
    %v702 = vld [vmem:[%s1 + $0x1508] sm:$0xff]
    %v703 = vld [vmem:[%s1 + $0x1510] sm:$0xff]
    %v704 = vld [vmem:[%s1 + $0x1518] sm:$0xff]
    %v705 = vld [vmem:[%s1 + $0x1520] sm:$0xff]
    %v706 = vld [vmem:[%s1 + $0x1528] sm:$0xff]
    %v707 = vld [vmem:[%s1 + $0x1530] sm:$0xff]
    %v708 = vld [vmem:[%s1 + $0x1538] sm:$0xff]
    %v709 = vld [vmem:[%s1 + $0x1540] sm:$0xff]
    %v710 = vld [vmem:[%s1 + $0x1548] sm:$0xff]
    %v711 = vld [vmem:[%s1 + $0x1550] sm:$0xff]
    %v712 = vld [vmem:[%s1 + $0x1558] sm:$0xff]
    %v713 = vld [vmem:[%s1 + $0x1560] sm:$0xff]
    %v714 = vld [vmem:[%s1 + $0x1568] sm:$0xff]
    %v715 = vld [vmem:[%s1 + $0x1570] sm:$0xff]
    %v716 = vld [vmem:[%s1 + $0x1578] sm:$0xff]
    %v717 = vld [vmem:[%s1 + $0x1580] sm:$0xff]
    %v718 = vld [vmem:[%s1 + $0x1588] sm:$0xff]
    %v719 = vld [vmem:[%s1 + $0x1590] sm:$0xff]
    %v720 = vld [vmem:[%s1 + $0x1598] sm:$0xff]
    %v721 = vld [vmem:[%s1 + $0x15a0] sm:$0xff]
    %v722 = vld [vmem:[%s1 + $0x15a8] sm:$0xff]
    %v723 = vld [vmem:[%s1 + $0x15b0] sm:$0xff]
    %v724 = vld [vmem:[%s1 + $0x15b8] sm:$0xff]
    %v725 = vld [vmem:[%s1 + $0x15c0] sm:$0xff]
    %v726 = vld [vmem:[%s1 + $0x15c8] sm:$0xff]
    %v727 = vld [vmem:[%s1 + $0x15d0] sm:$0xff]
    %v728 = vld [vmem:[%s1 + $0x15d8] sm:$0xff]
    %v729 = vld [vmem:[%s1 + $0x15e0] sm:$0xff]
    %v730 = vld [vmem:[%s1 + $0x15e8] sm:$0xff]
    %v731 = vld [vmem:[%s1 + $0x15f0] sm:$0xff]
    %v732 = vld [vmem:[%s1 + $0x15f8] sm:$0xff]
    %v733 = vld [vmem:[%s1 + $0x1600] sm:$0xff]
    %v734 = vld [vmem:[%s1 + $0x1608] sm:$0xff]
    %v735 = vld [vmem:[%s1 + $0x1610] sm:$0xff]
    %v736 = vld [vmem:[%s1 + $0x1618] sm:$0xff]
    %v737 = vld [vmem:[%s1 + $0x1620] sm:$0xff]
    %v738 = vld [vmem:[%s1 + $0x1628] sm:$0xff]
    %v739 = vld [vmem:[%s1 + $0x1630] sm:$0xff]
    %v740 = vld [vmem:[%s1 + $0x1638] sm:$0xff]
    %v741 = vld [vmem:[%s1 + $0x1640] sm:$0xff]
    %v742 = vld [vmem:[%s1 + $0x1648] sm:$0xff]
    %v743 = vld [vmem:[%s1 + $0x1650] sm:$0xff]
    %v744 = vld [vmem:[%s1 + $0x1658] sm:$0xff]
    %v745 = vld [vmem:[%s1 + $0x1660] sm:$0xff]
    %v746 = vld [vmem:[%s1 + $0x1668] sm:$0xff]
    %v747 = vld [vmem:[%s1 + $0x1670] sm:$0xff]
    %v748 = vld [vmem:[%s1 + $0x1678] sm:$0xff]
    %v749 = vld [vmem:[%s1 + $0x1680] sm:$0xff]
    %v750 = vld [vmem:[%s1 + $0x1688] sm:$0xff]
    %v751 = vld [vmem:[%s1 + $0x1690] sm:$0xff]
    %v752 = vld [vmem:[%s1 + $0x1698] sm:$0xff]
    %v753 = vld [vmem:[%s1 + $0x16a0] sm:$0xff]
    %v754 = vld [vmem:[%s1 + $0x16a8] sm:$0xff]
    %v755 = vld [vmem:[%s1 + $0x16b0] sm:$0xff]
    %v756 = vld [vmem:[%s1 + $0x16b8] sm:$0xff]
    %v757 = vld [vmem:[%s1 + $0x16c0] sm:$0xff]
    %v758 = vld [vmem:[%s1 + $0x16c8] sm:$0xff]
    %v759 = vld [vmem:[%s1 + $0x16d0] sm:$0xff]
    %v760 = vld [vmem:[%s1 + $0x16d8] sm:$0xff]
    %v761 = vld [vmem:[%s1 + $0x16e0] sm:$0xff]
    %v762 = vld [vmem:[%s1 + $0x16e8] sm:$0xff]
    %v763 = vld [vmem:[%s1 + $0x16f0] sm:$0xff]
    %v764 = vld [vmem:[%s1 + $0x16f8] sm:$0xff]
    %v765 = vld [vmem:[%s1 + $0x1700] sm:$0xff]
    %v766 = vld [vmem:[%s1 + $0x1708] sm:$0xff]
    %v767 = vld [vmem:[%s1 + $0x1710] sm:$0xff]
    %v768 = vld [vmem:[%s1 + $0x1718] sm:$0xff]
    %v769 = vld [vmem:[%s1 + $0x1720] sm:$0xff]
    %v770 = vld [vmem:[%s1 + $0x1728] sm:$0xff]
    %v771 = vld [vmem:[%s1 + $0x1730] sm:$0xff]
    %v772 = vld [vmem:[%s1 + $0x1738] sm:$0xff]
    %v773 = vld [vmem:[%s1 + $0x1740] sm:$0xff]
    %v774 = vld [vmem:[%s1 + $0x1748] sm:$0xff]
    %v775 = vld [vmem:[%s1 + $0x1750] sm:$0xff]
    %v776 = vld [vmem:[%s1 + $0x1758] sm:$0xff]
    %v777 = vld [vmem:[%s1 + $0x1760] sm:$0xff]
    %v778 = vld [vmem:[%s1 + $0x1768] sm:$0xff]
    %v779 = vld [vmem:[%s1 + $0x1770] sm:$0xff]
    %v780 = vld [vmem:[%s1 + $0x1778] sm:$0xff]
    %v781 = vld [vmem:[%s1 + $0x1780] sm:$0xff]
    %v782 = vld [vmem:[%s1 + $0x1788] sm:$0xff]
    %v783 = vld [vmem:[%s1 + $0x1790] sm:$0xff]
    %v784 = vld [vmem:[%s1 + $0x1798] sm:$0xff]
    %v785 = vld [vmem:[%s1 + $0x17a0] sm:$0xff]
    %v786 = vld [vmem:[%s1 + $0x17a8] sm:$0xff]
    %v787 = vld [vmem:[%s1 + $0x17b0] sm:$0xff]
    %v788 = vld [vmem:[%s1 + $0x17b8] sm:$0xff]
    %v789 = vld [vmem:[%s1 + $0x17c0] sm:$0xff]
    %v790 = vld [vmem:[%s1 + $0x17c8] sm:$0xff]
    %v791 = vld [vmem:[%s1 + $0x17d0] sm:$0xff]
    %v792 = vld [vmem:[%s1 + $0x17d8] sm:$0xff]
    %v793 = vld [vmem:[%s1 + $0x17e0] sm:$0xff]
    %v794 = vld [vmem:[%s1 + $0x17e8] sm:$0xff]
    %v795 = vld [vmem:[%s1 + $0x17f0] sm:$0xff]
    %v796 = vld [vmem:[%s1 + $0x17f8] sm:$0xff]
    %v797 = vld [vmem:[%s1 + $0x1800] sm:$0xff]
    %v798 = vld [vmem:[%s1 + $0x1808] sm:$0xff]
    %v799 = vld [vmem:[%s1 + $0x1810] sm:$0xff]
    %v800 = vld [vmem:[%s1 + $0x1818] sm:$0xff]
    %v801 = vld [vmem:[%s1 + $0x1820] sm:$0xff]
    %v802 = vld [vmem:[%s1 + $0x1828] sm:$0xff]
    %v803 = vld [vmem:[%s1 + $0x1830] sm:$0xff]
    %v804 = vld [vmem:[%s1 + $0x1838] sm:$0xff]
    %v805 = vld [vmem:[%s1 + $0x1840] sm:$0xff]
    %v806 = vld [vmem:[%s1 + $0x1848] sm:$0xff]
    %v807 = vld [vmem:[%s1 + $0x1850] sm:$0xff]
    %v808 = vld [vmem:[%s1 + $0x1858] sm:$0xff]
    %v809 = vld [vmem:[%s1 + $0x1860] sm:$0xff]
    %v810 = vld [vmem:[%s1 + $0x1868] sm:$0xff]
    %v811 = vld [vmem:[%s1 + $0x1870] sm:$0xff]
    %v812 = vld [vmem:[%s1 + $0x1878] sm:$0xff]
    %v813 = vld [vmem:[%s1 + $0x1880] sm:$0xff]
    %v814 = vld [vmem:[%s1 + $0x1888] sm:$0xff]
    %v815 = vld [vmem:[%s1 + $0x1890] sm:$0xff]
    %v816 = vld [vmem:[%s1 + $0x1898] sm:$0xff]
    %v817 = vld [vmem:[%s1 + $0x18a0] sm:$0xff]
    %v818 = vld [vmem:[%s1 + $0x18a8] sm:$0xff]
    %v819 = vld [vmem:[%s1 + $0x18b0] sm:$0xff]
    %v820 = vld [vmem:[%s1 + $0x18b8] sm:$0xff]
    %v821 = vld [vmem:[%s1 + $0x18c0] sm:$0xff]
    %v822 = vld [vmem:[%s1 + $0x18c8] sm:$0xff]
    %v823 = vld [vmem:[%s1 + $0x18d0] sm:$0xff]
    %v824 = vld [vmem:[%s1 + $0x18d8] sm:$0xff]
    %v825 = vld [vmem:[%s1 + $0x18e0] sm:$0xff]
    %v826 = vld [vmem:[%s1 + $0x18e8] sm:$0xff]
    %v827 = vld [vmem:[%s1 + $0x18f0] sm:$0xff]
    %v828 = vld [vmem:[%s1 + $0x18f8] sm:$0xff]
    %v829 = vld [vmem:[%s1 + $0x1900] sm:$0xff]
    %v830 = vld [vmem:[%s1 + $0x1908] sm:$0xff]
    %v831 = vld [vmem:[%s1 + $0x1910] sm:$0xff]
    %v832 = vld [vmem:[%s1 + $0x1918] sm:$0xff]
    %v833 = vld [vmem:[%s1 + $0x1920] sm:$0xff]
    %v834 = vld [vmem:[%s1 + $0x1928] sm:$0xff]
    %v835 = vld [vmem:[%s1 + $0x1930] sm:$0xff]
    %v836 = vld [vmem:[%s1 + $0x1938] sm:$0xff]
    %v837 = vld [vmem:[%s1 + $0x1940] sm:$0xff]
    %v838 = vld [vmem:[%s1 + $0x1948] sm:$0xff]
    %v839 = vld [vmem:[%s1 + $0x1950] sm:$0xff]
    %v840 = vld [vmem:[%s1 + $0x1958] sm:$0xff]
    %v841 = vld [vmem:[%s1 + $0x1960] sm:$0xff]
    %v842 = vld [vmem:[%s1 + $0x1968] sm:$0xff]
    %v843 = vld [vmem:[%s1 + $0x1970] sm:$0xff]
    %v844 = vld [vmem:[%s1 + $0x1978] sm:$0xff]
    %v845 = vld [vmem:[%s1 + $0x1980] sm:$0xff]
    %v846 = vld [vmem:[%s1 + $0x1988] sm:$0xff]
    %v847 = vld [vmem:[%s1 + $0x1990] sm:$0xff]
    %v848 = vld [vmem:[%s1 + $0x1998] sm:$0xff]
    %v849 = vld [vmem:[%s1 + $0x19a0] sm:$0xff]
    %v850 = vld [vmem:[%s1 + $0x19a8] sm:$0xff]
    %v851 = vld [vmem:[%s1 + $0x19b0] sm:$0xff]
    %v852 = vld [vmem:[%s1 + $0x19b8] sm:$0xff]
    %v853 = vld [vmem:[%s1 + $0x19c0] sm:$0xff]
    %v854 = vld [vmem:[%s1 + $0x19c8] sm:$0xff]
    %v855 = vld [vmem:[%s1 + $0x19d0] sm:$0xff]
    %v856 = vld [vmem:[%s1 + $0x19d8] sm:$0xff]
    %v857 = vld [vmem:[%s1 + $0x19e0] sm:$0xff]
    %v858 = vld [vmem:[%s1 + $0x19e8] sm:$0xff]
    %v859 = vld [vmem:[%s1 + $0x19f0] sm:$0xff]
    %v860 = vld [vmem:[%s1 + $0x19f8] sm:$0xff]
    %v861 = vld [vmem:[%s1 + $0x1a00] sm:$0xff]
    %v862 = vld [vmem:[%s1 + $0x1a08] sm:$0xff]
    %v863 = vld [vmem:[%s1 + $0x1a10] sm:$0xff]
    %v864 = vld [vmem:[%s1 + $0x1a18] sm:$0xff]
    %v865 = vld [vmem:[%s1 + $0x1a20] sm:$0xff]
    %v866 = vld [vmem:[%s1 + $0x1a28] sm:$0xff]
    %v867 = vld [vmem:[%s1 + $0x1a30] sm:$0xff]
    %v868 = vld [vmem:[%s1 + $0x1a38] sm:$0xff]
    %v869 = vld [vmem:[%s1 + $0x1a40] sm:$0xff]
    %v870 = vld [vmem:[%s1 + $0x1a48] sm:$0xff]
    %v871 = vld [vmem:[%s1 + $0x1a50] sm:$0xff]
    %v872 = vld [vmem:[%s1 + $0x1a58] sm:$0xff]
    %v873 = vld [vmem:[%s1 + $0x1a60] sm:$0xff]
    %v874 = vld [vmem:[%s1 + $0x1a68] sm:$0xff]
    %v875 = vld [vmem:[%s1 + $0x1a70] sm:$0xff]
    %v876 = vld [vmem:[%s1 + $0x1a78] sm:$0xff]
    %v877 = vld [vmem:[%s1 + $0x1a80] sm:$0xff]
    %v878 = vld [vmem:[%s1 + $0x1a88] sm:$0xff]
    %v879 = vld [vmem:[%s1 + $0x1a90] sm:$0xff]
    %v880 = vld [vmem:[%s1 + $0x1a98] sm:$0xff]
    %v881 = vld [vmem:[%s1 + $0x1aa0] sm:$0xff]
    %v882 = vld [vmem:[%s1 + $0x1aa8] sm:$0xff]
    %v883 = vld [vmem:[%s1 + $0x1ab0] sm:$0xff]
    %v884 = vld [vmem:[%s1 + $0x1ab8] sm:$0xff]
    %v885 = vld [vmem:[%s1 + $0x1ac0] sm:$0xff]
    %v886 = vld [vmem:[%s1 + $0x1ac8] sm:$0xff]
    %v887 = vld [vmem:[%s1 + $0x1ad0] sm:$0xff]
    %v888 = vld [vmem:[%s1 + $0x1ad8] sm:$0xff]
    %v889 = vld [vmem:[%s1 + $0x1ae0] sm:$0xff]
    %v890 = vld [vmem:[%s1 + $0x1ae8] sm:$0xff]
    %v891 = vld [vmem:[%s1 + $0x1af0] sm:$0xff]
    %v892 = vld [vmem:[%s1 + $0x1af8] sm:$0xff]
    %v893 = vld [vmem:[%s1 + $0x1b00] sm:$0xff]
    %v894 = vld [vmem:[%s1 + $0x1b08] sm:$0xff]
    %v895 = vld [vmem:[%s1 + $0x1b10] sm:$0xff]
    %v896 = vld [vmem:[%s1 + $0x1b18] sm:$0xff]
    %v897 = vld [vmem:[%s1 + $0x1b20] sm:$0xff]
    %v898 = vld [vmem:[%s1 + $0x1b28] sm:$0xff]
    %v899 = vld [vmem:[%s1 + $0x1b30] sm:$0xff]
    %v900 = vld [vmem:[%s1 + $0x1b38] sm:$0xff]
    %v901 = vld [vmem:[%s1 + $0x1b40] sm:$0xff]
    %v902 = vld [vmem:[%s1 + $0x1b48] sm:$0xff]
    %v903 = vld [vmem:[%s1 + $0x1b50] sm:$0xff]
    %v904 = vld [vmem:[%s1 + $0x1b58] sm:$0xff]
    %v905 = vld [vmem:[%s1 + $0x1b60] sm:$0xff]
    %v906 = vld [vmem:[%s1 + $0x1b68] sm:$0xff]
    %v907 = vld [vmem:[%s1 + $0x1b70] sm:$0xff]
    %v908 = vld [vmem:[%s1 + $0x1b78] sm:$0xff]
    %v909 = vld [vmem:[%s1 + $0x1b80] sm:$0xff]
    %v910 = vld [vmem:[%s1 + $0x1b88] sm:$0xff]
    %v911 = vld [vmem:[%s1 + $0x1b90] sm:$0xff]
    %v912 = vld [vmem:[%s1 + $0x1b98] sm:$0xff]
    %v913 = vld [vmem:[%s1 + $0x1ba0] sm:$0xff]
    %v914 = vld [vmem:[%s1 + $0x1ba8] sm:$0xff]
    %v915 = vld [vmem:[%s1 + $0x1bb0] sm:$0xff]
    %v916 = vld [vmem:[%s1 + $0x1bb8] sm:$0xff]
    %v917 = vld [vmem:[%s1 + $0x1bc0] sm:$0xff]
    %v918 = vld [vmem:[%s1 + $0x1bc8] sm:$0xff]
    %v919 = vld [vmem:[%s1 + $0x1bd0] sm:$0xff]
    %v920 = vld [vmem:[%s1 + $0x1bd8] sm:$0xff]
    %v921 = vld [vmem:[%s1 + $0x1be0] sm:$0xff]
    %v922 = vld [vmem:[%s1 + $0x1be8] sm:$0xff]
    %v923 = vld [vmem:[%s1 + $0x1bf0] sm:$0xff]
    %v924 = vld [vmem:[%s1 + $0x1bf8] sm:$0xff]
    %v925 = vld [vmem:[%s1 + $0x1c00] sm:$0xff]
    %v926 = vld [vmem:[%s1 + $0x1c08] sm:$0xff]
    %v927 = vld [vmem:[%s1 + $0x1c10] sm:$0xff]
    %v928 = vld [vmem:[%s1 + $0x1c18] sm:$0xff]
    %v929 = vld [vmem:[%s1 + $0x1c20] sm:$0xff]
    %v930 = vld [vmem:[%s1 + $0x1c28] sm:$0xff]
    %v931 = vld [vmem:[%s1 + $0x1c30] sm:$0xff]
    %v932 = vld [vmem:[%s1 + $0x1c38] sm:$0xff]
    %v933 = vld [vmem:[%s1 + $0x1c40] sm:$0xff]
    %v934 = vld [vmem:[%s1 + $0x1c48] sm:$0xff]
    %v935 = vld [vmem:[%s1 + $0x1c50] sm:$0xff]
    %v936 = vld [vmem:[%s1 + $0x1c58] sm:$0xff]
    %v937 = vld [vmem:[%s1 + $0x1c60] sm:$0xff]
    %v938 = vld [vmem:[%s1 + $0x1c68] sm:$0xff]
    %v939 = vld [vmem:[%s1 + $0x1c70] sm:$0xff]
    %v940 = vld [vmem:[%s1 + $0x1c78] sm:$0xff]
    %v941 = vld [vmem:[%s1 + $0x1c80] sm:$0xff]
    %v942 = vld [vmem:[%s1 + $0x1c88] sm:$0xff]
    %v943 = vld [vmem:[%s1 + $0x1c90] sm:$0xff]
    %v944 = vld [vmem:[%s1 + $0x1c98] sm:$0xff]
    %v945 = vld [vmem:[%s1 + $0x1ca0] sm:$0xff]
    %v946 = vld [vmem:[%s1 + $0x1ca8] sm:$0xff]
    %v947 = vld [vmem:[%s1 + $0x1cb0] sm:$0xff]
    %v948 = vld [vmem:[%s1 + $0x1cb8] sm:$0xff]
    %v949 = vld [vmem:[%s1 + $0x1cc0] sm:$0xff]
    %v950 = vld [vmem:[%s1 + $0x1cc8] sm:$0xff]
    %v951 = vld [vmem:[%s1 + $0x1cd0] sm:$0xff]
    %v952 = vld [vmem:[%s1 + $0x1cd8] sm:$0xff]
    %v953 = vld [vmem:[%s1 + $0x1ce0] sm:$0xff]
    %v954 = vld [vmem:[%s1 + $0x1ce8] sm:$0xff]
    %v955 = vld [vmem:[%s1 + $0x1cf0] sm:$0xff]
    %v956 = vld [vmem:[%s1 + $0x1cf8] sm:$0xff]
    %v957 = vld [vmem:[%s1 + $0x1d00] sm:$0xff]
    %v958 = vld [vmem:[%s1 + $0x1d08] sm:$0xff]
    %v959 = vld [vmem:[%s1 + $0x1d10] sm:$0xff]
    %v960 = vld [vmem:[%s1 + $0x1d18] sm:$0xff]
    %v961 = vld [vmem:[%s1 + $0x1d20] sm:$0xff]
    %v962 = vld [vmem:[%s1 + $0x1d28] sm:$0xff]
    %v963 = vld [vmem:[%s1 + $0x1d30] sm:$0xff]
    %v964 = vld [vmem:[%s1 + $0x1d38] sm:$0xff]
    %v965 = vld [vmem:[%s1 + $0x1d40] sm:$0xff]
    %v966 = vld [vmem:[%s1 + $0x1d48] sm:$0xff]
    %v967 = vld [vmem:[%s1 + $0x1d50] sm:$0xff]
    %v968 = vld [vmem:[%s1 + $0x1d58] sm:$0xff]
    %v969 = vld [vmem:[%s1 + $0x1d60] sm:$0xff]
    %v970 = vld [vmem:[%s1 + $0x1d68] sm:$0xff]
    %v971 = vld [vmem:[%s1 + $0x1d70] sm:$0xff]
    %v972 = vld [vmem:[%s1 + $0x1d78] sm:$0xff]
    %v973 = vld [vmem:[%s1 + $0x1d80] sm:$0xff]
    %v974 = vld [vmem:[%s1 + $0x1d88] sm:$0xff]
    %v975 = vld [vmem:[%s1 + $0x1d90] sm:$0xff]
    %v976 = vld [vmem:[%s1 + $0x1d98] sm:$0xff]
    %v977 = vld [vmem:[%s1 + $0x1da0] sm:$0xff]
    %v978 = vld [vmem:[%s1 + $0x1da8] sm:$0xff]
    %v979 = vld [vmem:[%s1 + $0x1db0] sm:$0xff]
    %v980 = vld [vmem:[%s1 + $0x1db8] sm:$0xff]
    %v981 = vld [vmem:[%s1 + $0x1dc0] sm:$0xff]
    %v982 = vld [vmem:[%s1 + $0x1dc8] sm:$0xff]
    %v983 = vld [vmem:[%s1 + $0x1dd0] sm:$0xff]
    %v984 = vld [vmem:[%s1 + $0x1dd8] sm:$0xff]
    %v985 = vld [vmem:[%s1 + $0x1de0] sm:$0xff]
    %v986 = vld [vmem:[%s1 + $0x1de8] sm:$0xff]
    %v987 = vld [vmem:[%s1 + $0x1df0] sm:$0xff]
    %v988 = vld [vmem:[%s1 + $0x1df8] sm:$0xff]
    %v989 = vld [vmem:[%s1 + $0x1e00] sm:$0xff]
    %v990 = vld [vmem:[%s1 + $0x1e08] sm:$0xff]
    %v991 = vld [vmem:[%s1 + $0x1e10] sm:$0xff]
    %v992 = vld [vmem:[%s1 + $0x1e18] sm:$0xff]
    %v993 = vld [vmem:[%s1 + $0x1e20] sm:$0xff]
    %v994 = vld [vmem:[%s1 + $0x1e28] sm:$0xff]
    %v995 = vld [vmem:[%s1 + $0x1e30] sm:$0xff]
    %v996 = vld [vmem:[%s1 + $0x1e38] sm:$0xff]
    %v997 = vld [vmem:[%s1 + $0x1e40] sm:$0xff]
    %v998 = vld [vmem:[%s1 + $0x1e48] sm:$0xff]
    %v999 = vld [vmem:[%s1 + $0x1e50] sm:$0xff]
    %v1000 = vld [vmem:[%s1 + $0x1e58] sm:$0xff]
    %v1001 = vld [vmem:[%s1 + $0x1e60] sm:$0xff]
    %v1002 = vld [vmem:[%s1 + $0x1e68] sm:$0xff]
    %v1003 = vld [vmem:[%s1 + $0x1e70] sm:$0xff]
    %v1004 = vld [vmem:[%s1 + $0x1e78] sm:$0xff]
    %v1005 = vld [vmem:[%s1 + $0x1e80] sm:$0xff]
    %v1006 = vld [vmem:[%s1 + $0x1e88] sm:$0xff]
    %v1007 = vld [vmem:[%s1 + $0x1e90] sm:$0xff]
    %v1008 = vld [vmem:[%s1 + $0x1e98] sm:$0xff]
    %v1009 = vld [vmem:[%s1 + $0x1ea0] sm:$0xff]
    %v1010 = vld [vmem:[%s1 + $0x1ea8] sm:$0xff]
    %v1011 = vld [vmem:[%s1 + $0x1eb0] sm:$0xff]
    %v1012 = vld [vmem:[%s1 + $0x1eb8] sm:$0xff]
    %v1013 = vld [vmem:[%s1 + $0x1ec0] sm:$0xff]
    %v1014 = vld [vmem:[%s1 + $0x1ec8] sm:$0xff]
    %v1015 = vld [vmem:[%s1 + $0x1ed0] sm:$0xff]
    %v1016 = vld [vmem:[%s1 + $0x1ed8] sm:$0xff]
    %v1017 = vld [vmem:[%s1 + $0x1ee0] sm:$0xff]
    %v1018 = vld [vmem:[%s1 + $0x1ee8] sm:$0xff]
    %v1019 = vld [vmem:[%s1 + $0x1ef0] sm:$0xff]
    %v1020 = vld [vmem:[%s1 + $0x1ef8] sm:$0xff]
    %v1021 = vld [vmem:[%s1 + $0x1f00] sm:$0xff]
    %v1022 = vld [vmem:[%s1 + $0x1f08] sm:$0xff]
    %v1023 = vld [vmem:[%s1 + $0x1f10] sm:$0xff]
    %v1024 = vld [vmem:[%s1 + $0x1f18] sm:$0xff]
    %v1025 = vld [vmem:[%s1 + $0x1f20] sm:$0xff]
    %v1026 = vld [vmem:[%s1 + $0x1f28] sm:$0xff]
    %v1027 = vld [vmem:[%s1 + $0x1f30] sm:$0xff]
    %v1028 = vld [vmem:[%s1 + $0x1f38] sm:$0xff]
    %v1029 = vld [vmem:[%s1 + $0x1f40] sm:$0xff]
    %v1030 = vld [vmem:[%s1 + $0x1f48] sm:$0xff]
    %v1031 = vld [vmem:[%s1 + $0x1f50] sm:$0xff]
    %v1032 = vld [vmem:[%s1 + $0x1f58] sm:$0xff]
    %v1033 = vld [vmem:[%s1 + $0x1f60] sm:$0xff]
    %v1034 = vld [vmem:[%s1 + $0x1f68] sm:$0xff]
    %v1035 = vld [vmem:[%s1 + $0x1f70] sm:$0xff]
    %v1036 = vld [vmem:[%s1 + $0x1f78] sm:$0xff]
    %v1037 = vld [vmem:[%s1 + $0x1f80] sm:$0xff]
    %v1038 = vld [vmem:[%s1 + $0x1f88] sm:$0xff]
    %v1039 = vld [vmem:[%s1 + $0x1f90] sm:$0xff]
    %v1040 = vld [vmem:[%s1 + $0x1f98] sm:$0xff]
    %v1041 = vld [vmem:[%s1 + $0x1fa0] sm:$0xff]
    %v1042 = vld [vmem:[%s1 + $0x1fa8] sm:$0xff]
    %v1043 = vld [vmem:[%s1 + $0x1fb0] sm:$0xff]
    %v1044 = vld [vmem:[%s1 + $0x1fb8] sm:$0xff]
    %v1045 = vld [vmem:[%s1 + $0x1fc0] sm:$0xff]
    %v1046 = vld [vmem:[%s1 + $0x1fc8] sm:$0xff]
    %v1047 = vld [vmem:[%s1 + $0x1fd0] sm:$0xff]
    %v1048 = vld [vmem:[%s1 + $0x1fd8] sm:$0xff]
    %v1049 = vld [vmem:[%s1 + $0x1fe0] sm:$0xff]
    %v1050 = vld [vmem:[%s1 + $0x1fe8] sm:$0xff]
    %v1051 = vld [vmem:[%s1 + $0x1ff0] sm:$0xff]
    %v1052 = vld [vmem:[%s1 + $0x1ff8] sm:$0xff]
    %v1053 = vld [vmem:[%s1 + $0x2000] sm:$0xff]
    %v1054 = vld [vmem:[%s1 + $0x2008] sm:$0xff]
    %v1055 = vld [vmem:[%s1 + $0x2010] sm:$0xff]
    %v1056 = vld [vmem:[%s1 + $0x2018] sm:$0xff]
    %v1057 = vld [vmem:[%s1 + $0x2020] sm:$0xff]
    %v1058 = vld [vmem:[%s1 + $0x2028] sm:$0xff]
    %v1059 = vld [vmem:[%s1 + $0x2030] sm:$0xff]
    %v1060 = vld [vmem:[%s1 + $0x2038] sm:$0xff]
    %v1061 = vld [vmem:[%s1 + $0x2040] sm:$0xff]
    %v1062 = vld [vmem:[%s1 + $0x2048] sm:$0xff]
    %v1063 = vld [vmem:[%s1 + $0x2050] sm:$0xff]
    %v1064 = vld [vmem:[%s1 + $0x2058] sm:$0xff]
    %v1065 = vld [vmem:[%s1 + $0x2060] sm:$0xff]
    %v1066 = vld [vmem:[%s1 + $0x2068] sm:$0xff]
    %v1067 = vld [vmem:[%s1 + $0x2070] sm:$0xff]
    %v1068 = vld [vmem:[%s1 + $0x2078] sm:$0xff]
    %v1069 = vld [vmem:[%s1 + $0x2080] sm:$0xff]
    %v1070 = vld [vmem:[%s1 + $0x2088] sm:$0xff]
    %v1071 = vld [vmem:[%s1 + $0x2090] sm:$0xff]
    %v1072 = vld [vmem:[%s1 + $0x2098] sm:$0xff]
    %v1073 = vld [vmem:[%s1 + $0x20a0] sm:$0xff]
    %v1074 = vld [vmem:[%s1 + $0x20a8] sm:$0xff]
    %v1075 = vld [vmem:[%s1 + $0x20b0] sm:$0xff]
    %v1076 = vld [vmem:[%s1 + $0x20b8] sm:$0xff]
    %v1077 = vld [vmem:[%s1 + $0x20c0] sm:$0xff]
    %v1078 = vld [vmem:[%s1 + $0x20c8] sm:$0xff]
    %v1079 = vld [vmem:[%s1 + $0x20d0] sm:$0xff]
    %v1080 = vld [vmem:[%s1 + $0x20d8] sm:$0xff]
    %v1081 = vld [vmem:[%s1 + $0x20e0] sm:$0xff]
    %v1082 = vld [vmem:[%s1 + $0x20e8] sm:$0xff]
    %v1083 = vld [vmem:[%s1 + $0x20f0] sm:$0xff]
    %v1084 = vld [vmem:[%s1 + $0x20f8] sm:$0xff]
    %v1085 = vld [vmem:[%s1 + $0x2100] sm:$0xff]
    %v1086 = vld [vmem:[%s1 + $0x2108] sm:$0xff]
    %v1087 = vld [vmem:[%s1 + $0x2110] sm:$0xff]
    %v1088 = vld [vmem:[%s1 + $0x2118] sm:$0xff]
    %v1089 = vld [vmem:[%s1 + $0x2120] sm:$0xff]
    %v1090 = vld [vmem:[%s1 + $0x2128] sm:$0xff]
    %v1091 = vld [vmem:[%s1 + $0x2130] sm:$0xff]
    %v1092 = vld [vmem:[%s1 + $0x2138] sm:$0xff]
    %v1093 = vld [vmem:[%s1 + $0x2140] sm:$0xff]
    %v1094 = vld [vmem:[%s1 + $0x2148] sm:$0xff]
    %v1095 = vld [vmem:[%s1 + $0x2150] sm:$0xff]
    %v1096 = vld [vmem:[%s1 + $0x2158] sm:$0xff]
    %v1097 = vld [vmem:[%s1 + $0x2160] sm:$0xff]
    %v1098 = vld [vmem:[%s1 + $0x2168] sm:$0xff]
    %v1099 = vld [vmem:[%s1 + $0x2170] sm:$0xff]
    %v1100 = vld [vmem:[%s1 + $0x2178] sm:$0xff]
    %v1101 = vld [vmem:[%s1 + $0x2180] sm:$0xff]
    %v1102 = vld [vmem:[%s1 + $0x2188] sm:$0xff]
    %v1103 = vld [vmem:[%s1 + $0x2190] sm:$0xff]
    %v1104 = vld [vmem:[%s1 + $0x2198] sm:$0xff]
    %v1105 = vld [vmem:[%s1 + $0x21a0] sm:$0xff]
    %v1106 = vld [vmem:[%s1 + $0x21a8] sm:$0xff]
    %v1107 = vld [vmem:[%s1 + $0x21b0] sm:$0xff]
    %v1108 = vld [vmem:[%s1 + $0x21b8] sm:$0xff]
    %v1109 = vld [vmem:[%s1 + $0x21c0] sm:$0xff]
    %v1110 = vld [vmem:[%s1 + $0x21c8] sm:$0xff]
    %v1111 = vld [vmem:[%s1 + $0x21d0] sm:$0xff]
    %v1112 = vld [vmem:[%s1 + $0x21d8] sm:$0xff]
    %v1113 = vld [vmem:[%s1 + $0x21e0] sm:$0xff]
    %v1114 = vld [vmem:[%s1 + $0x21e8] sm:$0xff]
    %v1115 = vld [vmem:[%s1 + $0x21f0] sm:$0xff]
    %v1116 = vld [vmem:[%s1 + $0x21f8] sm:$0xff]
    %v1117 = vld [vmem:[%s1 + $0x2200] sm:$0xff]
    %v1118 = vld [vmem:[%s1 + $0x2208] sm:$0xff]
    %v1119 = vld [vmem:[%s1 + $0x2210] sm:$0xff]
    %v1120 = vld [vmem:[%s1 + $0x2218] sm:$0xff]
    %v1121 = vld [vmem:[%s1 + $0x2220] sm:$0xff]
    %v1122 = vld [vmem:[%s1 + $0x2228] sm:$0xff]
    %v1123 = vld [vmem:[%s1 + $0x2230] sm:$0xff]
    %v1124 = vld [vmem:[%s1 + $0x2238] sm:$0xff]
    %v1125 = vld [vmem:[%s1 + $0x2240] sm:$0xff]
    %v1126 = vld [vmem:[%s1 + $0x2248] sm:$0xff]
    %v1127 = vld [vmem:[%s1 + $0x2250] sm:$0xff]
    %v1128 = vld [vmem:[%s1 + $0x2258] sm:$0xff]
    %v1129 = vld [vmem:[%s1 + $0x2260] sm:$0xff]
    %v1130 = vld [vmem:[%s1 + $0x2268] sm:$0xff]
    %v1131 = vld [vmem:[%s1 + $0x2270] sm:$0xff]
    %v1132 = vld [vmem:[%s1 + $0x2278] sm:$0xff]
    %v1133 = vld [vmem:[%s1 + $0x2280] sm:$0xff]
    %v1134 = vld [vmem:[%s1 + $0x2288] sm:$0xff]
    %v1135 = vld [vmem:[%s1 + $0x2290] sm:$0xff]
    %v1136 = vld [vmem:[%s1 + $0x2298] sm:$0xff]
    %v1137 = vld [vmem:[%s1 + $0x22a0] sm:$0xff]
    %v1138 = vld [vmem:[%s1 + $0x22a8] sm:$0xff]
    %v1139 = vld [vmem:[%s1 + $0x22b0] sm:$0xff]
    %v1140 = vld [vmem:[%s1 + $0x22b8] sm:$0xff]
    %v1141 = vld [vmem:[%s1 + $0x22c0] sm:$0xff]
    %v1142 = vld [vmem:[%s1 + $0x22c8] sm:$0xff]
    %v1143 = vld [vmem:[%s1 + $0x22d0] sm:$0xff]
    %v1144 = vld [vmem:[%s1 + $0x22d8] sm:$0xff]
    %v1145 = vld [vmem:[%s1 + $0x22e0] sm:$0xff]
    %v1146 = vld [vmem:[%s1 + $0x22e8] sm:$0xff]
    %v1147 = vld [vmem:[%s1 + $0x22f0] sm:$0xff]
    %v1148 = vld [vmem:[%s1 + $0x22f8] sm:$0xff]
    %v1149 = vld [vmem:[%s1 + $0x2300] sm:$0xff]
    %v1150 = vld [vmem:[%s1 + $0x2308] sm:$0xff]
    %v1151 = vld [vmem:[%s1 + $0x2310] sm:$0xff]
    %v1152 = vld [vmem:[%s1 + $0x2318] sm:$0xff]
    %v1153 = vld [vmem:[%s1 + $0x2320] sm:$0xff]
    %v1154 = vld [vmem:[%s1 + $0x2328] sm:$0xff]
    %v1155 = vld [vmem:[%s1 + $0x2330] sm:$0xff]
    %v1156 = vld [vmem:[%s1 + $0x2338] sm:$0xff]
    %v1157 = vld [vmem:[%s1 + $0x2340] sm:$0xff]
    %v1158 = vld [vmem:[%s1 + $0x2348] sm:$0xff]
    %v1159 = vld [vmem:[%s1 + $0x2350] sm:$0xff]
    %v1160 = vld [vmem:[%s1 + $0x2358] sm:$0xff]
    %v1161 = vld [vmem:[%s1 + $0x2360] sm:$0xff]
    %v1162 = vld [vmem:[%s1 + $0x2368] sm:$0xff]
    %v1163 = vld [vmem:[%s1 + $0x2370] sm:$0xff]
    %v1164 = vld [vmem:[%s1 + $0x2378] sm:$0xff]
    %v1165 = vld [vmem:[%s1 + $0x2380] sm:$0xff]
    %v1166 = vld [vmem:[%s1 + $0x2388] sm:$0xff]
    %v1167 = vld [vmem:[%s1 + $0x2390] sm:$0xff]
    %v1168 = vld [vmem:[%s1 + $0x2398] sm:$0xff]
    %v1169 = vld [vmem:[%s1 + $0x23a0] sm:$0xff]
    %v1170 = vld [vmem:[%s1 + $0x23a8] sm:$0xff]
    %v1171 = vld [vmem:[%s1 + $0x23b0] sm:$0xff]
    %v1172 = vld [vmem:[%s1 + $0x23b8] sm:$0xff]
    %v1173 = vld [vmem:[%s1 + $0x23c0] sm:$0xff]
    %v1174 = vld [vmem:[%s1 + $0x23c8] sm:$0xff]
    %v1175 = vld [vmem:[%s1 + $0x23d0] sm:$0xff]
    %v1176 = vld [vmem:[%s1 + $0x23d8] sm:$0xff]
    %v1177 = vld [vmem:[%s1 + $0x23e0] sm:$0xff]
    %v1178 = vld [vmem:[%s1 + $0x23e8] sm:$0xff]
    %v1179 = vld [vmem:[%s1 + $0x23f0] sm:$0xff]
    %v1180 = vld [vmem:[%s1 + $0x23f8] sm:$0xff]
    %v1181 = vld [vmem:[%s1 + $0x2400] sm:$0xff]
    %v1182 = vld [vmem:[%s1 + $0x2408] sm:$0xff]
    %v1183 = vld [vmem:[%s1 + $0x2410] sm:$0xff]
    %v1184 = vld [vmem:[%s1 + $0x2418] sm:$0xff]
    %v1185 = vld [vmem:[%s1 + $0x2420] sm:$0xff]
    %v1186 = vld [vmem:[%s1 + $0x2428] sm:$0xff]
    %v1187 = vld [vmem:[%s1 + $0x2430] sm:$0xff]
    %v1188 = vld [vmem:[%s1 + $0x2438] sm:$0xff]
    %v1189 = vld [vmem:[%s1 + $0x2440] sm:$0xff]
    %v1190 = vld [vmem:[%s1 + $0x2448] sm:$0xff]
    %v1191 = vld [vmem:[%s1 + $0x2450] sm:$0xff]
    %v1192 = vld [vmem:[%s1 + $0x2458] sm:$0xff]
    %v1193 = vld [vmem:[%s1 + $0x2460] sm:$0xff]
    %v1194 = vld [vmem:[%s1 + $0x2468] sm:$0xff]
    %v1195 = vld [vmem:[%s1 + $0x2470] sm:$0xff]
    %v1196 = vld [vmem:[%s1 + $0x2478] sm:$0xff]
    %v1197 = vld [vmem:[%s1 + $0x2480] sm:$0xff]
    %v1198 = vld [vmem:[%s1 + $0x2488] sm:$0xff]
    %v1199 = vld [vmem:[%s1 + $0x2490] sm:$0xff]
    %v1200 = vld [vmem:[%s1 + $0x2498] sm:$0xff]
    %v1201 = vld [vmem:[%s1 + $0x24a0] sm:$0xff]
    %v1202 = vld [vmem:[%s1 + $0x24a8] sm:$0xff]
    %v1203 = vld [vmem:[%s1 + $0x24b0] sm:$0xff]
    %v1204 = vld [vmem:[%s1 + $0x24b8] sm:$0xff]
    %v1205 = vld [vmem:[%s1 + $0x24c0] sm:$0xff]
    %v1206 = vld [vmem:[%s1 + $0x24c8] sm:$0xff]
    %v1207 = vld [vmem:[%s1 + $0x24d0] sm:$0xff]
    %v1208 = vld [vmem:[%s1 + $0x24d8] sm:$0xff]
    %v1209 = vld [vmem:[%s1 + $0x24e0] sm:$0xff]
    %v1210 = vld [vmem:[%s1 + $0x24e8] sm:$0xff]
    %v1211 = vld [vmem:[%s1 + $0x24f0] sm:$0xff]
    %v1212 = vld [vmem:[%s1 + $0x24f8] sm:$0xff]
    %v1213 = vld [vmem:[%s1 + $0x2500] sm:$0xff]
    %v1214 = vld [vmem:[%s1 + $0x2508] sm:$0xff]
    %v1215 = vld [vmem:[%s1 + $0x2510] sm:$0xff]
    %v1216 = vld [vmem:[%s1 + $0x2518] sm:$0xff]
    %v1217 = vld [vmem:[%s1 + $0x2520] sm:$0xff]
    %v1218 = vld [vmem:[%s1 + $0x2528] sm:$0xff]
    %v1219 = vld [vmem:[%s1 + $0x2530] sm:$0xff]
    %v1220 = vld [vmem:[%s1 + $0x2538] sm:$0xff]
    %v1221 = vld [vmem:[%s1 + $0x2540] sm:$0xff]
    %v1222 = vld [vmem:[%s1 + $0x2548] sm:$0xff]
    %v1223 = vld [vmem:[%s1 + $0x2550] sm:$0xff]
    %v1224 = vld [vmem:[%s1 + $0x2558] sm:$0xff]
    %v1225 = vld [vmem:[%s1 + $0x2560] sm:$0xff]
    %v1226 = vld [vmem:[%s1 + $0x2568] sm:$0xff]
    %v1227 = vld [vmem:[%s1 + $0x2570] sm:$0xff]
    %v1228 = vld [vmem:[%s1 + $0x2578] sm:$0xff]
    %v1229 = vld [vmem:[%s1 + $0x2580] sm:$0xff]
    %v1230 = vld [vmem:[%s1 + $0x2588] sm:$0xff]
    %v1231 = vld [vmem:[%s1 + $0x2590] sm:$0xff]
    %v1232 = vld [vmem:[%s1 + $0x2598] sm:$0xff]
    %v1233 = vld [vmem:[%s1 + $0x25a0] sm:$0xff]
    %v1234 = vld [vmem:[%s1 + $0x25a8] sm:$0xff]
    %v1235 = vld [vmem:[%s1 + $0x25b0] sm:$0xff]
    %v1236 = vld [vmem:[%s1 + $0x25b8] sm:$0xff]
    %v1237 = vld [vmem:[%s1 + $0x25c0] sm:$0xff]
    %v1238 = vld [vmem:[%s1 + $0x25c8] sm:$0xff]
    %v1239 = vld [vmem:[%s1 + $0x25d0] sm:$0xff]
    %v1240 = vld [vmem:[%s1 + $0x25d8] sm:$0xff]
    %v1241 = vld [vmem:[%s1 + $0x25e0] sm:$0xff]
    %v1242 = vld [vmem:[%s1 + $0x25e8] sm:$0xff]
    %v1243 = vld [vmem:[%s1 + $0x25f0] sm:$0xff]
    %v1244 = vld [vmem:[%s1 + $0x25f8] sm:$0xff]
    %v1245 = vld [vmem:[%s1 + $0x2600] sm:$0xff]
    %v1246 = vld [vmem:[%s1 + $0x2608] sm:$0xff]
    %v1247 = vld [vmem:[%s1 + $0x2610] sm:$0xff]
    %v1248 = vld [vmem:[%s1 + $0x2618] sm:$0xff]
    %v1249 = vld [vmem:[%s1 + $0x2620] sm:$0xff]
    %v1250 = vld [vmem:[%s1 + $0x2628] sm:$0xff]
    %v1251 = vld [vmem:[%s1 + $0x2630] sm:$0xff]
    %v1252 = vld [vmem:[%s1 + $0x2638] sm:$0xff]
    %v1253 = vld [vmem:[%s1 + $0x2640] sm:$0xff]
    %v1254 = vld [vmem:[%s1 + $0x2648] sm:$0xff]
    %v1255 = vld [vmem:[%s1 + $0x2650] sm:$0xff]
    %v1256 = vld [vmem:[%s1 + $0x2658] sm:$0xff]
    %v1257 = vld [vmem:[%s1 + $0x2660] sm:$0xff]
    %v1258 = vld [vmem:[%s1 + $0x2668] sm:$0xff]
    %v1259 = vld [vmem:[%s1 + $0x2670] sm:$0xff]
    %v1260 = vld [vmem:[%s1 + $0x2678] sm:$0xff]
    %v1261 = vld [vmem:[%s1 + $0x2680] sm:$0xff]
    %v1262 = vld [vmem:[%s1 + $0x2688] sm:$0xff]
    %v1263 = vld [vmem:[%s1 + $0x2690] sm:$0xff]
    %v1264 = vld [vmem:[%s1 + $0x2698] sm:$0xff]
    %v1265 = vld [vmem:[%s1 + $0x26a0] sm:$0xff]
    %v1266 = vld [vmem:[%s1 + $0x26a8] sm:$0xff]
    %v1267 = vld [vmem:[%s1 + $0x26b0] sm:$0xff]
    %v1268 = vld [vmem:[%s1 + $0x26b8] sm:$0xff]
    %v1269 = vld [vmem:[%s1 + $0x26c0] sm:$0xff]
    %v1270 = vld [vmem:[%s1 + $0x26c8] sm:$0xff]
    %v1271 = vld [vmem:[%s1 + $0x26d0] sm:$0xff]
    %v1272 = vld [vmem:[%s1 + $0x26d8] sm:$0xff]
    %v1273 = vld [vmem:[%s1 + $0x26e0] sm:$0xff]
    %v1274 = vld [vmem:[%s1 + $0x26e8] sm:$0xff]
    %v1275 = vld [vmem:[%s1 + $0x26f0] sm:$0xff]
    %v1276 = vld [vmem:[%s1 + $0x26f8] sm:$0xff]
    %v1277 = vld [vmem:[%s1 + $0x2700] sm:$0xff]
    %v1278 = vld [vmem:[%s1 + $0x2708] sm:$0xff]
    %v1279 = vld [vmem:[%s1 + $0x2710] sm:$0xff]
    %v1280 = vld [vmem:[%s1 + $0x2718] sm:$0xff]
    %v1281 = vld [vmem:[%s1 + $0x2720] sm:$0xff]
    %v1282 = vld [vmem:[%s1 + $0x2728] sm:$0xff]
    %v1283 = vld [vmem:[%s1 + $0x2730] sm:$0xff]
    %v1284 = vld [vmem:[%s1 + $0x2738] sm:$0xff]
    %v1285 = vld [vmem:[%s1 + $0x2740] sm:$0xff]
    %v1286 = vld [vmem:[%s1 + $0x2748] sm:$0xff]
    %v1287 = vld [vmem:[%s1 + $0x2750] sm:$0xff]
    %v1288 = vld [vmem:[%s1 + $0x2758] sm:$0xff]
    %v1289 = vld [vmem:[%s1 + $0x2760] sm:$0xff]
    %v1290 = vld [vmem:[%s1 + $0x2768] sm:$0xff]
    %v1291 = vld [vmem:[%s1 + $0x2770] sm:$0xff]
    %v1292 = vld [vmem:[%s1 + $0x2778] sm:$0xff]
    %v1293 = vld [vmem:[%s1 + $0x2780] sm:$0xff]
    %v1294 = vld [vmem:[%s1 + $0x2788] sm:$0xff]
    %v1295 = vld [vmem:[%s1 + $0x2790] sm:$0xff]
    %v1296 = vld [vmem:[%s1 + $0x2798] sm:$0xff]
    %v1297 = vld [vmem:[%s1 + $0x27a0] sm:$0xff]
    %v1298 = vld [vmem:[%s1 + $0x27a8] sm:$0xff]
    %v1299 = vld [vmem:[%s1 + $0x27b0] sm:$0xff]
    %v1300 = vld [vmem:[%s1 + $0x27b8] sm:$0xff]
    %v1301 = vld [vmem:[%s1 + $0x27c0] sm:$0xff]
    %v1302 = vld [vmem:[%s1 + $0x27c8] sm:$0xff]
    %v1303 = vld [vmem:[%s1 + $0x27d0] sm:$0xff]
    %v1304 = vld [vmem:[%s1 + $0x27d8] sm:$0xff]
    %v1305 = vld [vmem:[%s1 + $0x27e0] sm:$0xff]
    %v1306 = vld [vmem:[%s1 + $0x27e8] sm:$0xff]
    %v1307 = vld [vmem:[%s1 + $0x27f0] sm:$0xff]
    %v1308 = vld [vmem:[%s1 + $0x27f8] sm:$0xff]
    %v1309 = vld [vmem:[%s1 + $0x2800] sm:$0xff]
    %v1310 = vld [vmem:[%s1 + $0x2808] sm:$0xff]
    %v1311 = vld [vmem:[%s1 + $0x2810] sm:$0xff]
    %v1312 = vld [vmem:[%s1 + $0x2818] sm:$0xff]
    %v1313 = vld [vmem:[%s1 + $0x2820] sm:$0xff]
    %v1314 = vld [vmem:[%s1 + $0x2828] sm:$0xff]
    %v1315 = vld [vmem:[%s1 + $0x2830] sm:$0xff]
    %v1316 = vld [vmem:[%s1 + $0x2838] sm:$0xff]
    %v1317 = vld [vmem:[%s1 + $0x2840] sm:$0xff]
    %v1318 = vld [vmem:[%s1 + $0x2848] sm:$0xff]
    %v1319 = vld [vmem:[%s1 + $0x2850] sm:$0xff]
    %v1320 = vld [vmem:[%s1 + $0x2858] sm:$0xff]
    %v1321 = vld [vmem:[%s1 + $0x2860] sm:$0xff]
    %v1322 = vld [vmem:[%s1 + $0x2868] sm:$0xff]
    %v1323 = vld [vmem:[%s1 + $0x2870] sm:$0xff]
    %v1324 = vld [vmem:[%s1 + $0x2878] sm:$0xff]
    %v1325 = vld [vmem:[%s1 + $0x2880] sm:$0xff]
    %v1326 = vld [vmem:[%s1 + $0x2888] sm:$0xff]
    %v1327 = vld [vmem:[%s1 + $0x2890] sm:$0xff]
    %v1328 = vld [vmem:[%s1 + $0x2898] sm:$0xff]
    %v1329 = vld [vmem:[%s1 + $0x28a0] sm:$0xff]
    %v1330 = vld [vmem:[%s1 + $0x28a8] sm:$0xff]
    %v1331 = vld [vmem:[%s1 + $0x28b0] sm:$0xff]
    %v1332 = vld [vmem:[%s1 + $0x28b8] sm:$0xff]
    %v1333 = vld [vmem:[%s1 + $0x28c0] sm:$0xff]
    %v1334 = vld [vmem:[%s1 + $0x28c8] sm:$0xff]
    %v1335 = vld [vmem:[%s1 + $0x28d0] sm:$0xff]
    %v1336 = vld [vmem:[%s1 + $0x28d8] sm:$0xff]
    %v1337 = vld [vmem:[%s1 + $0x28e0] sm:$0xff]
    %v1338 = vld [vmem:[%s1 + $0x28e8] sm:$0xff]
    %v1339 = vld [vmem:[%s1 + $0x28f0] sm:$0xff]
    %v1340 = vld [vmem:[%s1 + $0x28f8] sm:$0xff]
    %v1341 = vld [vmem:[%s1 + $0x2900] sm:$0xff]
    %v1342 = vld [vmem:[%s1 + $0x2908] sm:$0xff]
    %v1343 = vld [vmem:[%s1 + $0x2910] sm:$0xff]
    %v1344 = vld [vmem:[%s1 + $0x2918] sm:$0xff]
    %v1345 = vld [vmem:[%s1 + $0x2920] sm:$0xff]
    %v1346 = vld [vmem:[%s1 + $0x2928] sm:$0xff]
    %v1347 = vld [vmem:[%s1 + $0x2930] sm:$0xff]
    %v1348 = vld [vmem:[%s1 + $0x2938] sm:$0xff]
    %v1349 = vld [vmem:[%s1 + $0x2940] sm:$0xff]
    %v1350 = vld [vmem:[%s1 + $0x2948] sm:$0xff]
    %v1351 = vld [vmem:[%s1 + $0x2950] sm:$0xff]
    %v1352 = vld [vmem:[%s1 + $0x2958] sm:$0xff]
    %v1353 = vld [vmem:[%s1 + $0x2960] sm:$0xff]
    %v1354 = vld [vmem:[%s1 + $0x2968] sm:$0xff]
    %v1355 = vld [vmem:[%s1 + $0x2970] sm:$0xff]
    %v1356 = vld [vmem:[%s1 + $0x2978] sm:$0xff]
    %v1357 = vld [vmem:[%s1 + $0x2980] sm:$0xff]
    %v1358 = vld [vmem:[%s1 + $0x2988] sm:$0xff]
    %v1359 = vld [vmem:[%s1 + $0x2990] sm:$0xff]
    %v1360 = vld [vmem:[%s1 + $0x2998] sm:$0xff]
    %v1361 = vld [vmem:[%s1 + $0x29a0] sm:$0xff]
    %v1362 = vld [vmem:[%s1 + $0x29a8] sm:$0xff]
    %v1363 = vld [vmem:[%s1 + $0x29b0] sm:$0xff]
    %v1364 = vld [vmem:[%s1 + $0x29b8] sm:$0xff]
    %v1365 = vld [vmem:[%s1 + $0x29c0] sm:$0xff]
    %v1366 = vld [vmem:[%s1 + $0x29c8] sm:$0xff]
    %v1367 = vld [vmem:[%s1 + $0x29d0] sm:$0xff]
    %v1368 = vld [vmem:[%s1 + $0x29d8] sm:$0xff]
    %v1369 = vld [vmem:[%s1 + $0x29e0] sm:$0xff]
    %v1370 = vld [vmem:[%s1 + $0x29e8] sm:$0xff]
    %v1371 = vld [vmem:[%s1 + $0x29f0] sm:$0xff]
    %v1372 = vld [vmem:[%s1 + $0x29f8] sm:$0xff]
    %v1373 = vld [vmem:[%s1 + $0x2a00] sm:$0xff]
    %v1374 = vld [vmem:[%s1 + $0x2a08] sm:$0xff]
    %v1375 = vld [vmem:[%s1 + $0x2a10] sm:$0xff]
    %v1376 = vld [vmem:[%s1 + $0x2a18] sm:$0xff]
    %v1377 = vld [vmem:[%s1 + $0x2a20] sm:$0xff]
    %v1378 = vld [vmem:[%s1 + $0x2a28] sm:$0xff]
    %v1379 = vld [vmem:[%s1 + $0x2a30] sm:$0xff]
    %v1380 = vld [vmem:[%s1 + $0x2a38] sm:$0xff]
    %v1381 = vld [vmem:[%s1 + $0x2a40] sm:$0xff]
    %v1382 = vld [vmem:[%s1 + $0x2a48] sm:$0xff]
    %v1383 = vld [vmem:[%s1 + $0x2a50] sm:$0xff]
    %v1384 = vld [vmem:[%s1 + $0x2a58] sm:$0xff]
    %v1385 = vld [vmem:[%s1 + $0x2a60] sm:$0xff]
    %v1386 = vld [vmem:[%s1 + $0x2a68] sm:$0xff]
    %v1387 = vld [vmem:[%s1 + $0x2a70] sm:$0xff]
    %v1388 = vld [vmem:[%s1 + $0x2a78] sm:$0xff]
    %v1389 = vld [vmem:[%s1 + $0x2a80] sm:$0xff]
    %v1390 = vld [vmem:[%s1 + $0x2a88] sm:$0xff]
    %v1391 = vld [vmem:[%s1 + $0x2a90] sm:$0xff]
    %v1392 = vld [vmem:[%s1 + $0x2a98] sm:$0xff]
    %v1393 = vld [vmem:[%s1 + $0x2aa0] sm:$0xff]
    %v1394 = vld [vmem:[%s1 + $0x2aa8] sm:$0xff]
    %v1395 = vld [vmem:[%s1 + $0x2ab0] sm:$0xff]
    %v1396 = vld [vmem:[%s1 + $0x2ab8] sm:$0xff]
    %v1397 = vld [vmem:[%s1 + $0x2ac0] sm:$0xff]
    %v1398 = vld [vmem:[%s1 + $0x2ac8] sm:$0xff]
    %v1399 = vld [vmem:[%s1 + $0x2ad0] sm:$0xff]
    %v1400 = vld [vmem:[%s1 + $0x2ad8] sm:$0xff]
    %v1401 = vld [vmem:[%s1 + $0x2ae0] sm:$0xff]
    %v1402 = vld [vmem:[%s1 + $0x2ae8] sm:$0xff]
    %v1403 = vld [vmem:[%s1 + $0x2af0] sm:$0xff]
    %v1404 = vld [vmem:[%s1 + $0x2af8] sm:$0xff]
    %v1405 = vld [vmem:[%s1 + $0x2b00] sm:$0xff]
    %v1406 = vld [vmem:[%s1 + $0x2b08] sm:$0xff]
    %v1407 = vld [vmem:[%s1 + $0x2b10] sm:$0xff]
    %v1408 = vld [vmem:[%s1 + $0x2b18] sm:$0xff]
    %v1409 = vld [vmem:[%s1 + $0x2b20] sm:$0xff]
    %v1410 = vld [vmem:[%s1 + $0x2b28] sm:$0xff]
    %v1411 = vld [vmem:[%s1 + $0x2b30] sm:$0xff]
    %v1412 = vld [vmem:[%s1 + $0x2b38] sm:$0xff]
    %v1413 = vld [vmem:[%s1 + $0x2b40] sm:$0xff]
    %v1414 = vld [vmem:[%s1 + $0x2b48] sm:$0xff]
    %v1415 = vld [vmem:[%s1 + $0x2b50] sm:$0xff]
    %v1416 = vld [vmem:[%s1 + $0x2b58] sm:$0xff]
    %v1417 = vld [vmem:[%s1 + $0x2b60] sm:$0xff]
    %v1418 = vld [vmem:[%s1 + $0x2b68] sm:$0xff]
    %v1419 = vld [vmem:[%s1 + $0x2b70] sm:$0xff]
    %v1420 = vld [vmem:[%s1 + $0x2b78] sm:$0xff]
    %v1421 = vld [vmem:[%s1 + $0x2b80] sm:$0xff]
    %v1422 = vld [vmem:[%s1 + $0x2b88] sm:$0xff]
    %v1423 = vld [vmem:[%s1 + $0x2b90] sm:$0xff]
    %v1424 = vld [vmem:[%s1 + $0x2b98] sm:$0xff]
    %v1425 = vld [vmem:[%s1 + $0x2ba0] sm:$0xff]
    %v1426 = vld [vmem:[%s1 + $0x2ba8] sm:$0xff]
    %v1427 = vld [vmem:[%s1 + $0x2bb0] sm:$0xff]
    %v1428 = vld [vmem:[%s1 + $0x2bb8] sm:$0xff]
    %v1429 = vld [vmem:[%s1 + $0x2bc0] sm:$0xff]
    %v1430 = vld [vmem:[%s1 + $0x2bc8] sm:$0xff]
    %v1431 = vld [vmem:[%s1 + $0x2bd0] sm:$0xff]
    %v1432 = vld [vmem:[%s1 + $0x2bd8] sm:$0xff]
    %v1433 = vld [vmem:[%s1 + $0x2be0] sm:$0xff]
    %v1434 = vld [vmem:[%s1 + $0x2be8] sm:$0xff]
    %v1435 = vld [vmem:[%s1 + $0x2bf0] sm:$0xff]
    %v1436 = vld [vmem:[%s1 + $0x2bf8] sm:$0xff]
    %v1437 = vld [vmem:[%s1 + $0x2c00] sm:$0xff]
    %v1438 = vld [vmem:[%s1 + $0x2c08] sm:$0xff]
    %v1439 = vld [vmem:[%s1 + $0x2c10] sm:$0xff]
    %v1440 = vld [vmem:[%s1 + $0x2c18] sm:$0xff]
    %v1441 = vld [vmem:[%s1 + $0x2c20] sm:$0xff]
    %v1442 = vld [vmem:[%s1 + $0x2c28] sm:$0xff]
    %v1443 = vld [vmem:[%s1 + $0x2c30] sm:$0xff]
    %v1444 = vld [vmem:[%s1 + $0x2c38] sm:$0xff]
    %v1445 = vld [vmem:[%s1 + $0x2c40] sm:$0xff]
    %v1446 = vld [vmem:[%s1 + $0x2c48] sm:$0xff]
    %v1447 = vld [vmem:[%s1 + $0x2c50] sm:$0xff]
    %v1448 = vld [vmem:[%s1 + $0x2c58] sm:$0xff]
    %v1449 = vld [vmem:[%s1 + $0x2c60] sm:$0xff]
    %v1450 = vld [vmem:[%s1 + $0x2c68] sm:$0xff]
    %v1451 = vld [vmem:[%s1 + $0x2c70] sm:$0xff]
    %v1452 = vld [vmem:[%s1 + $0x2c78] sm:$0xff]
    %v1453 = vld [vmem:[%s1 + $0x2c80] sm:$0xff]
    %v1454 = vld [vmem:[%s1 + $0x2c88] sm:$0xff]
    %v1455 = vld [vmem:[%s1 + $0x2c90] sm:$0xff]
    %v1456 = vld [vmem:[%s1 + $0x2c98] sm:$0xff]
    %v1457 = vld [vmem:[%s1 + $0x2ca0] sm:$0xff]
    %v1458 = vld [vmem:[%s1 + $0x2ca8] sm:$0xff]
    %v1459 = vld [vmem:[%s1 + $0x2cb0] sm:$0xff]
    %v1460 = vld [vmem:[%s1 + $0x2cb8] sm:$0xff]
    %v1461 = vld [vmem:[%s1 + $0x2cc0] sm:$0xff]
    %v1462 = vld [vmem:[%s1 + $0x2cc8] sm:$0xff]
    %v1463 = vld [vmem:[%s1 + $0x2cd0] sm:$0xff]
    %v1464 = vld [vmem:[%s1 + $0x2cd8] sm:$0xff]
    %v1465 = vld [vmem:[%s1 + $0x2ce0] sm:$0xff]
    %v1466 = vld [vmem:[%s1 + $0x2ce8] sm:$0xff]
    %v1467 = vld [vmem:[%s1 + $0x2cf0] sm:$0xff]
    %v1468 = vld [vmem:[%s1 + $0x2cf8] sm:$0xff]
    %v1469 = vld [vmem:[%s1 + $0x2d00] sm:$0xff]
    %v1470 = vld [vmem:[%s1 + $0x2d08] sm:$0xff]
    %v1471 = vld [vmem:[%s1 + $0x2d10] sm:$0xff]
    %v1472 = vld [vmem:[%s1 + $0x2d18] sm:$0xff]
    %v1473 = vld [vmem:[%s1 + $0x2d20] sm:$0xff]
    %v1474 = vld [vmem:[%s1 + $0x2d28] sm:$0xff]
    %v1475 = vld [vmem:[%s1 + $0x2d30] sm:$0xff]
    %v1476 = vld [vmem:[%s1 + $0x2d38] sm:$0xff]
    %v1477 = vld [vmem:[%s1 + $0x2d40] sm:$0xff]
    %v1478 = vld [vmem:[%s1 + $0x2d48] sm:$0xff]
    %v1479 = vld [vmem:[%s1 + $0x2d50] sm:$0xff]
    %v1480 = vld [vmem:[%s1 + $0x2d58] sm:$0xff]
    %v1481 = vld [vmem:[%s1 + $0x2d60] sm:$0xff]
    %v1482 = vld [vmem:[%s1 + $0x2d68] sm:$0xff]
    %v1483 = vld [vmem:[%s1 + $0x2d70] sm:$0xff]
    %v1484 = vld [vmem:[%s1 + $0x2d78] sm:$0xff]
    %v1485 = vld [vmem:[%s1 + $0x2d80] sm:$0xff]
    %v1486 = vld [vmem:[%s1 + $0x2d88] sm:$0xff]
    %v1487 = vld [vmem:[%s1 + $0x2d90] sm:$0xff]
    %v1488 = vld [vmem:[%s1 + $0x2d98] sm:$0xff]
    %v1489 = vld [vmem:[%s1 + $0x2da0] sm:$0xff]
    %v1490 = vld [vmem:[%s1 + $0x2da8] sm:$0xff]
    %v1491 = vld [vmem:[%s1 + $0x2db0] sm:$0xff]
    %v1492 = vld [vmem:[%s1 + $0x2db8] sm:$0xff]
    %v1493 = vld [vmem:[%s1 + $0x2dc0] sm:$0xff]
    %v1494 = vld [vmem:[%s1 + $0x2dc8] sm:$0xff]
    %v1495 = vld [vmem:[%s1 + $0x2dd0] sm:$0xff]
    %v1496 = vld [vmem:[%s1 + $0x2dd8] sm:$0xff]
    %v1497 = vld [vmem:[%s1 + $0x2de0] sm:$0xff]
    %v1498 = vld [vmem:[%s1 + $0x2de8] sm:$0xff]
    %v1499 = vld [vmem:[%s1 + $0x2df0] sm:$0xff]
    %v1500 = vld [vmem:[%s1 + $0x2df8] sm:$0xff]
    %v1501 = vld [vmem:[%s1 + $0x2e00] sm:$0xff]
    %v1502 = vld [vmem:[%s1 + $0x2e08] sm:$0xff]
    %v1503 = vld [vmem:[%s1 + $0x2e10] sm:$0xff]
    %v1504 = vld [vmem:[%s1 + $0x2e18] sm:$0xff]
    %v1505 = vld [vmem:[%s1 + $0x2e20] sm:$0xff]
    %v1506 = vld [vmem:[%s1 + $0x2e28] sm:$0xff]
    %v1507 = vld [vmem:[%s1 + $0x2e30] sm:$0xff]
    %v1508 = vld [vmem:[%s1 + $0x2e38] sm:$0xff]
    %v1509 = vld [vmem:[%s1 + $0x2e40] sm:$0xff]
    %v1510 = vld [vmem:[%s1 + $0x2e48] sm:$0xff]
    %v1511 = vld [vmem:[%s1 + $0x2e50] sm:$0xff]
    %v1512 = vld [vmem:[%s1 + $0x2e58] sm:$0xff]
    %v1513 = vld [vmem:[%s1 + $0x2e60] sm:$0xff]
    %v1514 = vld [vmem:[%s1 + $0x2e68] sm:$0xff]
    %v1515 = vld [vmem:[%s1 + $0x2e70] sm:$0xff]
    %v1516 = vld [vmem:[%s1 + $0x2e78] sm:$0xff]
    %v1517 = vld [vmem:[%s1 + $0x2e80] sm:$0xff]
    %v1518 = vld [vmem:[%s1 + $0x2e88] sm:$0xff]
    %v1519 = vld [vmem:[%s1 + $0x2e90] sm:$0xff]
    %v1520 = vld [vmem:[%s1 + $0x2e98] sm:$0xff]
    %v1521 = vld [vmem:[%s1 + $0x2ea0] sm:$0xff]
    %v1522 = vld [vmem:[%s1 + $0x2ea8] sm:$0xff]
    %v1523 = vld [vmem:[%s1 + $0x2eb0] sm:$0xff]
    %v1524 = vld [vmem:[%s1 + $0x2eb8] sm:$0xff]
    %v1525 = vld [vmem:[%s1 + $0x2ec0] sm:$0xff]
    %v1526 = vld [vmem:[%s1 + $0x2ec8] sm:$0xff]
    %v1527 = vld [vmem:[%s1 + $0x2ed0] sm:$0xff]
    %v1528 = vld [vmem:[%s1 + $0x2ed8] sm:$0xff]
    %v1529 = vld [vmem:[%s1 + $0x2ee0] sm:$0xff]
    %v1530 = vld [vmem:[%s1 + $0x2ee8] sm:$0xff]
    %v1531 = vld [vmem:[%s1 + $0x2ef0] sm:$0xff]
    %v1532 = vld [vmem:[%s1 + $0x2ef8] sm:$0xff]
    %v1533 = vld [vmem:[%s1 + $0x2f00] sm:$0xff]
    %v1534 = vld [vmem:[%s1 + $0x2f08] sm:$0xff]
    %v1535 = vld [vmem:[%s1 + $0x2f10] sm:$0xff]
    %v1536 = vld [vmem:[%s1 + $0x2f18] sm:$0xff]
    %v1537 = vld [vmem:[%s1 + $0x2f20] sm:$0xff]
    %v1538 = vld [vmem:[%s1 + $0x2f28] sm:$0xff]
    %v1539 = vld [vmem:[%s1 + $0x2f30] sm:$0xff]
    %v1540 = vld [vmem:[%s1 + $0x2f38] sm:$0xff]
    %v1541 = vld [vmem:[%s1 + $0x2f40] sm:$0xff]
    %v1542 = vld [vmem:[%s1 + $0x2f48] sm:$0xff]
    %v1543 = vld [vmem:[%s1 + $0x2f50] sm:$0xff]
    %v1544 = vld [vmem:[%s1 + $0x2f58] sm:$0xff]
    %v1545 = vld [vmem:[%s1 + $0x2f60] sm:$0xff]
    %v1546 = vld [vmem:[%s1 + $0x2f68] sm:$0xff]
    %v1547 = vld [vmem:[%s1 + $0x2f70] sm:$0xff]
    %v1548 = vld [vmem:[%s1 + $0x2f78] sm:$0xff]
    %v1549 = vld [vmem:[%s1 + $0x2f80] sm:$0xff]
    %v1550 = vld [vmem:[%s1 + $0x2f88] sm:$0xff]
    %v1551 = vld [vmem:[%s1 + $0x2f90] sm:$0xff]
    %v1552 = vld [vmem:[%s1 + $0x2f98] sm:$0xff]
    %v1553 = vld [vmem:[%s1 + $0x2fa0] sm:$0xff]
    %v1554 = vld [vmem:[%s1 + $0x2fa8] sm:$0xff]
    %v1555 = vld [vmem:[%s1 + $0x2fb0] sm:$0xff]
    %v1556 = vld [vmem:[%s1 + $0x2fb8] sm:$0xff]
    %v1557 = vld [vmem:[%s1 + $0x2fc0] sm:$0xff]
    %v1558 = vld [vmem:[%s1 + $0x2fc8] sm:$0xff]
    %v1559 = vld [vmem:[%s1 + $0x2fd0] sm:$0xff]
    %v1560 = vld [vmem:[%s1 + $0x2fd8] sm:$0xff]
    %v1561 = vld [vmem:[%s1 + $0x2fe0] sm:$0xff]
    %v1562 = vld [vmem:[%s1 + $0x2fe8] sm:$0xff]
    %v1563 = vld [vmem:[%s1 + $0x2ff0] sm:$0xff]
    %v1564 = vld [vmem:[%s1 + $0x2ff8] sm:$0xff]
    %v1565 = vld [vmem:[%s2] sm:$0xff]
    %v1566 = vld [vmem:[%s2 + $0x8] sm:$0xff]
    %v1569 = vlaneseq
    %v1570 = vshrl.u32 %v1569, 7
    %v1571 = vsub.s32 0, %v1570
    %v1572 = vrot.slane %v1565, %v1571
    %v1573 = vlaneseq
    %v1574 = vshrl.u32 %v1573, 7
    %v1575 = vsub.s32 1, %v1574
    %v1576 = vrot.slane %v1565, %v1575
    %v1577 = vlaneseq
    %v1578 = vshrl.u32 %v1577, 7
    %v1579 = vsub.s32 2, %v1578
    %v1580 = vrot.slane %v1565, %v1579
    %v1581 = vlaneseq
    %v1582 = vshrl.u32 %v1581, 7
    %v1583 = vsub.s32 3, %v1582
    %v1584 = vrot.slane %v1565, %v1583
    %v1585 = vlaneseq
    %v1586 = vshrl.u32 %v1585, 7
    %v1587 = vsub.s32 4, %v1586
    %v1588 = vrot.slane %v1565, %v1587
    %v1589 = vlaneseq
    %v1590 = vshrl.u32 %v1589, 7
    %v1591 = vsub.s32 5, %v1590
    %v1592 = vrot.slane %v1565, %v1591
    %v1593 = vlaneseq
    %v1594 = vshrl.u32 %v1593, 7
    %v1595 = vsub.s32 6, %v1594
    %v1596 = vrot.slane %v1565, %v1595
    %v1597 = vlaneseq
    %v1598 = vshrl.u32 %v1597, 7
    %v1599 = vsub.s32 7, %v1598
    %v1600 = vrot.slane %v1565, %v1599
    %v1601 = vlaneseq
    %v1602 = vshrl.u32 %v1601, 7
    %v1603 = vsub.s32 0, %v1602
    %v1604 = vrot.slane %v1566, %v1603
    %v1605 = vlaneseq
    %v1606 = vshrl.u32 %v1605, 7
    %v1607 = vsub.s32 1, %v1606
    %v1608 = vrot.slane %v1566, %v1607
    %v1609 = vlaneseq
    %v1610 = vshrl.u32 %v1609, 7
    %v1611 = vsub.s32 2, %v1610
    %v1612 = vrot.slane %v1566, %v1611
    %v1613 = vlaneseq
    %v1614 = vshrl.u32 %v1613, 7
    %v1615 = vsub.s32 3, %v1614
    %v1616 = vrot.slane %v1566, %v1615
    %v1617 = vlaneseq
    %v1618 = vshrl.u32 %v1617, 7
    %v1619 = vsub.s32 4, %v1618
    %v1620 = vrot.slane %v1566, %v1619
    %v1621 = vlaneseq
    %v1622 = vshrl.u32 %v1621, 7
    %v1623 = vsub.s32 5, %v1622
    %v1624 = vrot.slane %v1566, %v1623
    %v1625 = vlaneseq
    %v1626 = vshrl.u32 %v1625, 7
    %v1627 = vsub.s32 6, %v1626
    %v1628 = vrot.slane %v1566, %v1627
    %v1629 = vlaneseq
    %v1630 = vshrl.u32 %v1629, 7
    %v1631 = vsub.s32 7, %v1630
    %v1632 = vrot.slane %v1566, %v1631
    %v1651 = vcombine.high %v27, %v27
    %v1653 = vunpack.c.l.s4 1983009808
    %v1654 = vunpack.c.0.s8 %v1653
    %v1655 = vlaneseq
    %v1656 = vshrl.u32 %v1655, 7
    %v1657 = vsub.s32 %v1654, %v1656
    %v1658 = vrot.slane %v27, %v1657
    %v1660 = vunpack.c.l.s4 1983009808
    %v1661 = vunpack.c.0.s8 %v1660
    %v1662 = vlaneseq
    %v1663 = vshrl.u32 %v1662, 7
    %v1664 = vsub.s32 %v1661, %v1663
    %v1665 = vrot.slane %v1651, %v1664
    %v1666 = vcombine.high %v1658, %v1658
    %v1667 = vcombine.high %v1665, %v1665
    %v1669 = vunpack.c.l.s4 1983009808
    %v1670 = vunpack.c.0.s8 %v1669
    %v1671 = vlaneseq
    %v1672 = vshrl.u32 %v1671, 7
    %v1673 = vsub.s32 %v1670, %v1672
    %v1674 = vrot.slane %v28, %v1673
    %v1675 = vcombine.high %v1674, %v1674
    %1682 = vmatprep.subr.mxu0 %v30
    %1683 = vmatpush1.msra.mxu0 %v29
    %1684 = vmatprep.subr.mxu0 %v46
    %1685 = vmatpush1.msra.mxu0 %v45
    %1686 = vmatprep.subr.mxu0 %v62
    %1687 = vmatpush1.msra.mxu0 %v61
    %1688 = vmatprep.subr.mxu0 %v78
    %1689 = vmatpush1.msra.mxu0 %v77
    %1690 = vmatprep.subr.mxu0 %v94
    %1691 = vmatpush1.msra.mxu0 %v93
    %1692 = vmatprep.subr.mxu0 %v110
    %1693 = vmatpush1.msra.mxu0 %v109
    %1694 = vmatprep.subr.mxu0 %v126
    %1695 = vmatpush1.msra.mxu0 %v125
    %1696 = vmatprep.subr.mxu0 %v142
    %1697 = vmatpush1.msra.mxu0 %v141
    %1698 = vmatprep.subr.mxu0 %v158
    %1699 = vmatpush1.msra.mxu0 %v157
    %1700 = vmatprep.subr.mxu0 %v174
    %1701 = vmatpush1.msra.mxu0 %v173
    %1702 = vmatprep.subr.mxu0 %v190
    %1703 = vmatpush1.msra.mxu0 %v189
    %1704 = vmatprep.subr.mxu0 %v206
    %1705 = vmatpush1.msra.mxu0 %v205
    %1706 = vmatprep.subr.mxu0 %v222
    %1707 = vmatpush1.msra.mxu0 %v221
    %1708 = vmatprep.subr.mxu0 %v238
    %1709 = vmatpush1.msra.mxu0 %v237
    %1710 = vmatprep.subr.mxu0 %v254
    %1711 = vmatpush1.msra.mxu0 %v253
    %1712 = vmatprep.subr.mxu0 %v270
    %1713 = vmatpush1.msra.mxu0 %v269
    %1714 = vmatprep.subr.mxu0 %v286
    %1715 = vmatpush1.msra.mxu0 %v285
    %1716 = vmatprep.subr.mxu0 %v302
    %1717 = vmatpush1.msra.mxu0 %v301
    %1718 = vmatprep.subr.mxu0 %v318
    %1719 = vmatpush1.msra.mxu0 %v317
    %1720 = vmatprep.subr.mxu0 %v334
    %1721 = vmatpush1.msra.mxu0 %v333
    %1722 = vmatprep.subr.mxu0 %v350
    %1723 = vmatpush1.msra.mxu0 %v349
    %1724 = vmatprep.subr.mxu0 %v366
    %1725 = vmatpush1.msra.mxu0 %v365
    %1726 = vmatprep.subr.mxu0 %v382
    %1727 = vmatpush1.msra.mxu0 %v381
    %1728 = vmatprep.subr.mxu0 %v398
    %1729 = vmatpush1.msra.mxu0 %v397
    %1730 = vmatprep.subr.mxu0 %v414
    %1731 = vmatpush1.msra.mxu0 %v413
    %1732 = vmatprep.subr.mxu0 %v430
    %1733 = vmatpush1.msra.mxu0 %v429
    %1734 = vmatprep.subr.mxu0 %v446
    %1735 = vmatpush1.msra.mxu0 %v445
    %1736 = vmatprep.subr.mxu0 %v462
    %1737 = vmatpush1.msra.mxu0 %v461
    %1738 = vmatprep.subr.mxu0 %v478
    %1739 = vmatpush1.msra.mxu0 %v477
    %1740 = vmatprep.subr.mxu0 %v494
    %1741 = vmatpush1.msra.mxu0 %v493
    %1742 = vmatprep.subr.mxu0 %v510
    %1743 = vmatpush1.msra.mxu0 %v509
    %1744 = vmatprep.subr.mxu0 %v526
    %1745 = vmatpush1.msra.mxu0 %v525
    %1746 = vmatprep.mubr.f32.mxu0 %v1666
    %1747 = vmatmul.mubr.f32.gmra.mrb[0].mxu0 %v1658
    %v1748 = vpop.f32.mrb[0].mxu0
    %v1749 = vadd.f32 %v1572, %v1748
    %v1750 = vpop.f32.mrb[0].mxu0
    %v1751 = vadd.f32 %v1576, %v1750
    %1752 = vdwg.mxu0
    %1753 = vmatprep.subr.mxu0 %v542
    %1754 = vmatpush1.msra.mxu0 %v541
    %1755 = vmatprep.subr.mxu0 %v558
    %1756 = vmatpush1.msra.mxu0 %v557
    %1757 = vmatprep.subr.mxu0 %v574
    %1758 = vmatpush1.msra.mxu0 %v573
    %1759 = vmatprep.subr.mxu0 %v590
    %1760 = vmatpush1.msra.mxu0 %v589
    %1761 = vmatprep.subr.mxu0 %v606
    %1762 = vmatpush1.msra.mxu0 %v605
    %1763 = vmatprep.subr.mxu0 %v622
    %1764 = vmatpush1.msra.mxu0 %v621
    %1765 = vmatprep.subr.mxu0 %v638
    %1766 = vmatpush1.msra.mxu0 %v637
    %1767 = vmatprep.subr.mxu0 %v654
    %1768 = vmatpush1.msra.mxu0 %v653
    %1769 = vmatprep.subr.mxu0 %v670
    %1770 = vmatpush1.msra.mxu0 %v669
    %1771 = vmatprep.subr.mxu0 %v686
    %1772 = vmatpush1.msra.mxu0 %v685
    %1773 = vmatprep.subr.mxu0 %v702
    %1774 = vmatpush1.msra.mxu0 %v701
    %1775 = vmatprep.subr.mxu0 %v718
    %1776 = vmatpush1.msra.mxu0 %v717
    %1777 = vmatprep.subr.mxu0 %v734
    %1778 = vmatpush1.msra.mxu0 %v733
    %1779 = vmatprep.subr.mxu0 %v750
    %1780 = vmatpush1.msra.mxu0 %v749
    %1781 = vmatprep.subr.mxu0 %v766
    %1782 = vmatpush1.msra.mxu0 %v765
    %1783 = vmatprep.subr.mxu0 %v782
    %1784 = vmatpush1.msra.mxu0 %v781
    %1785 = vmatprep.subr.mxu0 %v798
    %1786 = vmatpush1.msra.mxu0 %v797
    %1787 = vmatprep.subr.mxu0 %v814
    %1788 = vmatpush1.msra.mxu0 %v813
    %1789 = vmatprep.subr.mxu0 %v830
    %1790 = vmatpush1.msra.mxu0 %v829
    %1791 = vmatprep.subr.mxu0 %v846
    %1792 = vmatpush1.msra.mxu0 %v845
    %1793 = vmatprep.subr.mxu0 %v862
    %1794 = vmatpush1.msra.mxu0 %v861
    %1795 = vmatprep.subr.mxu0 %v878
    %1796 = vmatpush1.msra.mxu0 %v877
    %1797 = vmatprep.subr.mxu0 %v894
    %1798 = vmatpush1.msra.mxu0 %v893
    %1799 = vmatprep.subr.mxu0 %v910
    %1800 = vmatpush1.msra.mxu0 %v909
    %1801 = vmatprep.subr.mxu0 %v926
    %1802 = vmatpush1.msra.mxu0 %v925
    %1803 = vmatprep.subr.mxu0 %v942
    %1804 = vmatpush1.msra.mxu0 %v941
    %1805 = vmatprep.subr.mxu0 %v958
    %1806 = vmatpush1.msra.mxu0 %v957
    %1807 = vmatprep.subr.mxu0 %v974
    %1808 = vmatpush1.msra.mxu0 %v973
    %1809 = vmatprep.subr.mxu0 %v990
    %1810 = vmatpush1.msra.mxu0 %v989
    %1811 = vmatprep.subr.mxu0 %v1006
    %1812 = vmatpush1.msra.mxu0 %v1005
    %1813 = vmatprep.subr.mxu0 %v1022
    %1814 = vmatpush1.msra.mxu0 %v1021
    %1815 = vmatprep.subr.mxu0 %v1038
    %1816 = vmatpush1.msra.mxu0 %v1037
    %1817 = vmatprep.mubr.f32.mxu0 %v1667
    %1818 = vmatmul.mubr.f32.gmra.mrb[0].mxu0 %v1665
    %v1819 = vpop.f32.mrb[0].mxu0
    %v1820 = vadd.f32 %v1749, %v1819
    %v1821 = vpop.f32.mrb[0].mxu0
    %v1822 = vadd.f32 %v1751, %v1821
    %1823 = vdwg.mxu0
    %1824 = vmatprep.subr.mxu0 %v1054
    %1825 = vmatpush1.msra.mxu0 %v1053
    %1826 = vmatprep.subr.mxu0 %v1070
    %1827 = vmatpush1.msra.mxu0 %v1069
    %1828 = vmatprep.subr.mxu0 %v1086
    %1829 = vmatpush1.msra.mxu0 %v1085
    %1830 = vmatprep.subr.mxu0 %v1102
    %1831 = vmatpush1.msra.mxu0 %v1101
    %1832 = vmatprep.subr.mxu0 %v1118
    %1833 = vmatpush1.msra.mxu0 %v1117
    %1834 = vmatprep.subr.mxu0 %v1134
    %1835 = vmatpush1.msra.mxu0 %v1133
    %1836 = vmatprep.subr.mxu0 %v1150
    %1837 = vmatpush1.msra.mxu0 %v1149
    %1838 = vmatprep.subr.mxu0 %v1166
    %1839 = vmatpush1.msra.mxu0 %v1165
    %1840 = vmatprep.subr.mxu0 %v1182
    %1841 = vmatpush1.msra.mxu0 %v1181
    %1842 = vmatprep.subr.mxu0 %v1198
    %1843 = vmatpush1.msra.mxu0 %v1197
    %1844 = vmatprep.subr.mxu0 %v1214
    %1845 = vmatpush1.msra.mxu0 %v1213
    %1846 = vmatprep.subr.mxu0 %v1230
    %1847 = vmatpush1.msra.mxu0 %v1229
    %1848 = vmatprep.subr.mxu0 %v1246
    %1849 = vmatpush1.msra.mxu0 %v1245
    %1850 = vmatprep.subr.mxu0 %v1262
    %1851 = vmatpush1.msra.mxu0 %v1261
    %1852 = vmatprep.subr.mxu0 %v1278
    %1853 = vmatpush1.msra.mxu0 %v1277
    %1854 = vmatprep.subr.mxu0 %v1294
    %1855 = vmatpush1.msra.mxu0 %v1293
    %1856 = vmatprep.subr.mxu0 %v1310
    %1857 = vmatpush1.msra.mxu0 %v1309
    %1858 = vmatprep.subr.mxu0 %v1326
    %1859 = vmatpush1.msra.mxu0 %v1325
    %1860 = vmatprep.subr.mxu0 %v1342
    %1861 = vmatpush1.msra.mxu0 %v1341
    %1862 = vmatprep.subr.mxu0 %v1358
    %1863 = vmatpush1.msra.mxu0 %v1357
    %1864 = vmatprep.subr.mxu0 %v1374
    %1865 = vmatpush1.msra.mxu0 %v1373
    %1866 = vmatprep.subr.mxu0 %v1390
    %1867 = vmatpush1.msra.mxu0 %v1389
    %1868 = vmatprep.subr.mxu0 %v1406
    %1869 = vmatpush1.msra.mxu0 %v1405
    %1870 = vmatprep.subr.mxu0 %v1422
    %1871 = vmatpush1.msra.mxu0 %v1421
    %1872 = vmatprep.subr.mxu0 %v1438
    %1873 = vmatpush1.msra.mxu0 %v1437
    %1874 = vmatprep.subr.mxu0 %v1454
    %1875 = vmatpush1.msra.mxu0 %v1453
    %1876 = vmatprep.subr.mxu0 %v1470
    %1877 = vmatpush1.msra.mxu0 %v1469
    %1878 = vmatprep.subr.mxu0 %v1486
    %1879 = vmatpush1.msra.mxu0 %v1485
    %1880 = vmatprep.subr.mxu0 %v1502
    %1881 = vmatpush1.msra.mxu0 %v1501
    %1882 = vmatprep.subr.mxu0 %v1518
    %1883 = vmatpush1.msra.mxu0 %v1517
    %1884 = vmatprep.subr.mxu0 %v1534
    %1885 = vmatpush1.msra.mxu0 %v1533
    %1886 = vmatprep.subr.mxu0 %v1550
    %1887 = vmatpush1.msra.mxu0 %v1549
    %1888 = vmatprep.mubr.f32.mxu0 %v1675
    %1889 = vmatmul.mubr.f32.gmra.mrb[0].mxu0 %v1674
    %v1890 = vpop.f32.mrb[0].mxu0
    %v1891 = vadd.f32 %v1820, %v1890
    %v1892 = vpop.f32.mrb[0].mxu0
    %v1893 = vadd.f32 %v1822, %v1892
    %1894 = vdwg.mxu0
    %1895 = vmatprep.subr.mxu0 %v32
    %1896 = vmatpush1.msra.mxu0 %v31
    %1897 = vmatprep.subr.mxu0 %v48
    %1898 = vmatpush1.msra.mxu0 %v47
    %1899 = vmatprep.subr.mxu0 %v64
    %1900 = vmatpush1.msra.mxu0 %v63
    %1901 = vmatprep.subr.mxu0 %v80
    %1902 = vmatpush1.msra.mxu0 %v79
    %1903 = vmatprep.subr.mxu0 %v96
    %1904 = vmatpush1.msra.mxu0 %v95
    %1905 = vmatprep.subr.mxu0 %v112
    %1906 = vmatpush1.msra.mxu0 %v111
    %1907 = vmatprep.subr.mxu0 %v128
    %1908 = vmatpush1.msra.mxu0 %v127
    %1909 = vmatprep.subr.mxu0 %v144
    %1910 = vmatpush1.msra.mxu0 %v143
    %1911 = vmatprep.subr.mxu0 %v160
    %1912 = vmatpush1.msra.mxu0 %v159
    %1913 = vmatprep.subr.mxu0 %v176
    %1914 = vmatpush1.msra.mxu0 %v175
    %1915 = vmatprep.subr.mxu0 %v192
    %1916 = vmatpush1.msra.mxu0 %v191
    %1917 = vmatprep.subr.mxu0 %v208
    %1918 = vmatpush1.msra.mxu0 %v207
    %1919 = vmatprep.subr.mxu0 %v224
    %1920 = vmatpush1.msra.mxu0 %v223
    %1921 = vmatprep.subr.mxu0 %v240
    %1922 = vmatpush1.msra.mxu0 %v239
    %1923 = vmatprep.subr.mxu0 %v256
    %1924 = vmatpush1.msra.mxu0 %v255
    %1925 = vmatprep.subr.mxu0 %v272
    %1926 = vmatpush1.msra.mxu0 %v271
    %1927 = vmatprep.subr.mxu0 %v288
    %1928 = vmatpush1.msra.mxu0 %v287
    %1929 = vmatprep.subr.mxu0 %v304
    %1930 = vmatpush1.msra.mxu0 %v303
    %1931 = vmatprep.subr.mxu0 %v320
    %1932 = vmatpush1.msra.mxu0 %v319
    %1933 = vmatprep.subr.mxu0 %v336
    %1934 = vmatpush1.msra.mxu0 %v335
    %1935 = vmatprep.subr.mxu0 %v352
    %1936 = vmatpush1.msra.mxu0 %v351
    %1937 = vmatprep.subr.mxu0 %v368
    %1938 = vmatpush1.msra.mxu0 %v367
    %1939 = vmatprep.subr.mxu0 %v384
    %1940 = vmatpush1.msra.mxu0 %v383
    %1941 = vmatprep.subr.mxu0 %v400
    %1942 = vmatpush1.msra.mxu0 %v399
    %1943 = vmatprep.subr.mxu0 %v416
    %1944 = vmatpush1.msra.mxu0 %v415
    %1945 = vmatprep.subr.mxu0 %v432
    %1946 = vmatpush1.msra.mxu0 %v431
    %1947 = vmatprep.subr.mxu0 %v448
    %1948 = vmatpush1.msra.mxu0 %v447
    %1949 = vmatprep.subr.mxu0 %v464
    %1950 = vmatpush1.msra.mxu0 %v463
    %1951 = vmatprep.subr.mxu0 %v480
    %1952 = vmatpush1.msra.mxu0 %v479
    %1953 = vmatprep.subr.mxu0 %v496
    %1954 = vmatpush1.msra.mxu0 %v495
    %1955 = vmatprep.subr.mxu0 %v512
    %1956 = vmatpush1.msra.mxu0 %v511
    %1957 = vmatprep.subr.mxu0 %v528
    %1958 = vmatpush1.msra.mxu0 %v527
    %1959 = vmatprep.mubr.f32.mxu0 %v1666
    %1960 = vmatmul.mubr.f32.gmra.mrb[0].mxu0 %v1658
    %v1961 = vpop.f32.mrb[0].mxu0
    %v1962 = vadd.f32 %v1580, %v1961
    %v1963 = vpop.f32.mrb[0].mxu0
    %v1964 = vadd.f32 %v1584, %v1963
    %1965 = vdwg.mxu0
    %1966 = vmatprep.subr.mxu0 %v544
    %1967 = vmatpush1.msra.mxu0 %v543
    %1968 = vmatprep.subr.mxu0 %v560
    %1969 = vmatpush1.msra.mxu0 %v559
    %1970 = vmatprep.subr.mxu0 %v576
    %1971 = vmatpush1.msra.mxu0 %v575
    %1972 = vmatprep.subr.mxu0 %v592
    %1973 = vmatpush1.msra.mxu0 %v591
    %1974 = vmatprep.subr.mxu0 %v608
    %1975 = vmatpush1.msra.mxu0 %v607
    %1976 = vmatprep.subr.mxu0 %v624
    %1977 = vmatpush1.msra.mxu0 %v623
    %1978 = vmatprep.subr.mxu0 %v640
    %1979 = vmatpush1.msra.mxu0 %v639
    %1980 = vmatprep.subr.mxu0 %v656
    %1981 = vmatpush1.msra.mxu0 %v655
    %1982 = vmatprep.subr.mxu0 %v672
    %1983 = vmatpush1.msra.mxu0 %v671
    %1984 = vmatprep.subr.mxu0 %v688
    %1985 = vmatpush1.msra.mxu0 %v687
    %1986 = vmatprep.subr.mxu0 %v704
    %1987 = vmatpush1.msra.mxu0 %v703
    %1988 = vmatprep.subr.mxu0 %v720
    %1989 = vmatpush1.msra.mxu0 %v719
    %1990 = vmatprep.subr.mxu0 %v736
    %1991 = vmatpush1.msra.mxu0 %v735
    %1992 = vmatprep.subr.mxu0 %v752
    %1993 = vmatpush1.msra.mxu0 %v751
    %1994 = vmatprep.subr.mxu0 %v768
    %1995 = vmatpush1.msra.mxu0 %v767
    %1996 = vmatprep.subr.mxu0 %v784
    %1997 = vmatpush1.msra.mxu0 %v783
    %1998 = vmatprep.subr.mxu0 %v800
    %1999 = vmatpush1.msra.mxu0 %v799
    %2000 = vmatprep.subr.mxu0 %v816
    %2001 = vmatpush1.msra.mxu0 %v815
    %2002 = vmatprep.subr.mxu0 %v832
    %2003 = vmatpush1.msra.mxu0 %v831
    %2004 = vmatprep.subr.mxu0 %v848
    %2005 = vmatpush1.msra.mxu0 %v847
    %2006 = vmatprep.subr.mxu0 %v864
    %2007 = vmatpush1.msra.mxu0 %v863
    %2008 = vmatprep.subr.mxu0 %v880
    %2009 = vmatpush1.msra.mxu0 %v879
    %2010 = vmatprep.subr.mxu0 %v896
    %2011 = vmatpush1.msra.mxu0 %v895
    %2012 = vmatprep.subr.mxu0 %v912
    %2013 = vmatpush1.msra.mxu0 %v911
    %2014 = vmatprep.subr.mxu0 %v928
    %2015 = vmatpush1.msra.mxu0 %v927
    %2016 = vmatprep.subr.mxu0 %v944
    %2017 = vmatpush1.msra.mxu0 %v943
    %2018 = vmatprep.subr.mxu0 %v960
    %2019 = vmatpush1.msra.mxu0 %v959
    %2020 = vmatprep.subr.mxu0 %v976
    %2021 = vmatpush1.msra.mxu0 %v975
    %2022 = vmatprep.subr.mxu0 %v992
    %2023 = vmatpush1.msra.mxu0 %v991
    %2024 = vmatprep.subr.mxu0 %v1008
    %2025 = vmatpush1.msra.mxu0 %v1007
    %2026 = vmatprep.subr.mxu0 %v1024
    %2027 = vmatpush1.msra.mxu0 %v1023
    %2028 = vmatprep.subr.mxu0 %v1040
    %2029 = vmatpush1.msra.mxu0 %v1039
    %2030 = vmatprep.mubr.f32.mxu0 %v1667
    %2031 = vmatmul.mubr.f32.gmra.mrb[0].mxu0 %v1665
    %v2032 = vpop.f32.mrb[0].mxu0
    %v2033 = vadd.f32 %v1962, %v2032
    %v2034 = vpop.f32.mrb[0].mxu0
    %v2035 = vadd.f32 %v1964, %v2034
    %2036 = vdwg.mxu0
    %2037 = vmatprep.subr.mxu0 %v1056
    %2038 = vmatpush1.msra.mxu0 %v1055
    %2039 = vmatprep.subr.mxu0 %v1072
    %2040 = vmatpush1.msra.mxu0 %v1071
    %2041 = vmatprep.subr.mxu0 %v1088
    %2042 = vmatpush1.msra.mxu0 %v1087
    %2043 = vmatprep.subr.mxu0 %v1104
    %2044 = vmatpush1.msra.mxu0 %v1103
    %2045 = vmatprep.subr.mxu0 %v1120
    %2046 = vmatpush1.msra.mxu0 %v1119
    %2047 = vmatprep.subr.mxu0 %v1136
    %2048 = vmatpush1.msra.mxu0 %v1135
    %2049 = vmatprep.subr.mxu0 %v1152
    %2050 = vmatpush1.msra.mxu0 %v1151
    %2051 = vmatprep.subr.mxu0 %v1168
    %2052 = vmatpush1.msra.mxu0 %v1167
    %2053 = vmatprep.subr.mxu0 %v1184
    %2054 = vmatpush1.msra.mxu0 %v1183
    %2055 = vmatprep.subr.mxu0 %v1200
    %2056 = vmatpush1.msra.mxu0 %v1199
    %2057 = vmatprep.subr.mxu0 %v1216
    %2058 = vmatpush1.msra.mxu0 %v1215
    %2059 = vmatprep.subr.mxu0 %v1232
    %2060 = vmatpush1.msra.mxu0 %v1231
    %2061 = vmatprep.subr.mxu0 %v1248
    %2062 = vmatpush1.msra.mxu0 %v1247
    %2063 = vmatprep.subr.mxu0 %v1264
    %2064 = vmatpush1.msra.mxu0 %v1263
    %2065 = vmatprep.subr.mxu0 %v1280
    %2066 = vmatpush1.msra.mxu0 %v1279
    %2067 = vmatprep.subr.mxu0 %v1296
    %2068 = vmatpush1.msra.mxu0 %v1295
    %2069 = vmatprep.subr.mxu0 %v1312
    %2070 = vmatpush1.msra.mxu0 %v1311
    %2071 = vmatprep.subr.mxu0 %v1328
    %2072 = vmatpush1.msra.mxu0 %v1327
    %2073 = vmatprep.subr.mxu0 %v1344
    %2074 = vmatpush1.msra.mxu0 %v1343
    %2075 = vmatprep.subr.mxu0 %v1360
    %2076 = vmatpush1.msra.mxu0 %v1359
    %2077 = vmatprep.subr.mxu0 %v1376
    %2078 = vmatpush1.msra.mxu0 %v1375
    %2079 = vmatprep.subr.mxu0 %v1392
    %2080 = vmatpush1.msra.mxu0 %v1391
    %2081 = vmatprep.subr.mxu0 %v1408
    %2082 = vmatpush1.msra.mxu0 %v1407
    %2083 = vmatprep.subr.mxu0 %v1424
    %2084 = vmatpush1.msra.mxu0 %v1423
    %2085 = vmatprep.subr.mxu0 %v1440
    %2086 = vmatpush1.msra.mxu0 %v1439
    %2087 = vmatprep.subr.mxu0 %v1456
    %2088 = vmatpush1.msra.mxu0 %v1455
    %2089 = vmatprep.subr.mxu0 %v1472
    %2090 = vmatpush1.msra.mxu0 %v1471
    %2091 = vmatprep.subr.mxu0 %v1488
    %2092 = vmatpush1.msra.mxu0 %v1487
    %2093 = vmatprep.subr.mxu0 %v1504
    %2094 = vmatpush1.msra.mxu0 %v1503
    %2095 = vmatprep.subr.mxu0 %v1520
    %2096 = vmatpush1.msra.mxu0 %v1519
    %2097 = vmatprep.subr.mxu0 %v1536
    %2098 = vmatpush1.msra.mxu0 %v1535
    %2099 = vmatprep.subr.mxu0 %v1552
    %2100 = vmatpush1.msra.mxu0 %v1551
    %2101 = vmatprep.mubr.f32.mxu0 %v1675
    %2102 = vmatmul.mubr.f32.gmra.mrb[0].mxu0 %v1674
    %v2103 = vpop.f32.mrb[0].mxu0
    %v2104 = vadd.f32 %v2033, %v2103
    %v2105 = vpop.f32.mrb[0].mxu0
    %v2106 = vadd.f32 %v2035, %v2105
    %2107 = vdwg.mxu0
    %2108 = vmatprep.subr.mxu0 %v34
    %2109 = vmatpush1.msra.mxu0 %v33
    %2110 = vmatprep.subr.mxu0 %v50
    %2111 = vmatpush1.msra.mxu0 %v49
    %2112 = vmatprep.subr.mxu0 %v66
    %2113 = vmatpush1.msra.mxu0 %v65
    %2114 = vmatprep.subr.mxu0 %v82
    %2115 = vmatpush1.msra.mxu0 %v81
    %2116 = vmatprep.subr.mxu0 %v98
    %2117 = vmatpush1.msra.mxu0 %v97
    %2118 = vmatprep.subr.mxu0 %v114
    %2119 = vmatpush1.msra.mxu0 %v113
    %2120 = vmatprep.subr.mxu0 %v130
    %2121 = vmatpush1.msra.mxu0 %v129
    %2122 = vmatprep.subr.mxu0 %v146
    %2123 = vmatpush1.msra.mxu0 %v145
    %2124 = vmatprep.subr.mxu0 %v162
    %2125 = vmatpush1.msra.mxu0 %v161
    %2126 = vmatprep.subr.mxu0 %v178
    %2127 = vmatpush1.msra.mxu0 %v177
    %2128 = vmatprep.subr.mxu0 %v194
    %2129 = vmatpush1.msra.mxu0 %v193
    %2130 = vmatprep.subr.mxu0 %v210
    %2131 = vmatpush1.msra.mxu0 %v209
    %2132 = vmatprep.subr.mxu0 %v226
    %2133 = vmatpush1.msra.mxu0 %v225
    %2134 = vmatprep.subr.mxu0 %v242
    %2135 = vmatpush1.msra.mxu0 %v241
    %2136 = vmatprep.subr.mxu0 %v258
    %2137 = vmatpush1.msra.mxu0 %v257
    %2138 = vmatprep.subr.mxu0 %v274
    %2139 = vmatpush1.msra.mxu0 %v273
    %2140 = vmatprep.subr.mxu0 %v290
    %2141 = vmatpush1.msra.mxu0 %v289
    %2142 = vmatprep.subr.mxu0 %v306
    %2143 = vmatpush1.msra.mxu0 %v305
    %2144 = vmatprep.subr.mxu0 %v322
    %2145 = vmatpush1.msra.mxu0 %v321
    %2146 = vmatprep.subr.mxu0 %v338
    %2147 = vmatpush1.msra.mxu0 %v337
    %2148 = vmatprep.subr.mxu0 %v354
    %2149 = vmatpush1.msra.mxu0 %v353
    %2150 = vmatprep.subr.mxu0 %v370
    %2151 = vmatpush1.msra.mxu0 %v369
    %2152 = vmatprep.subr.mxu0 %v386
    %2153 = vmatpush1.msra.mxu0 %v385
    %2154 = vmatprep.subr.mxu0 %v402
    %2155 = vmatpush1.msra.mxu0 %v401
    %2156 = vmatprep.subr.mxu0 %v418
    %2157 = vmatpush1.msra.mxu0 %v417
    %2158 = vmatprep.subr.mxu0 %v434
    %2159 = vmatpush1.msra.mxu0 %v433
    %2160 = vmatprep.subr.mxu0 %v450
    %2161 = vmatpush1.msra.mxu0 %v449
    %2162 = vmatprep.subr.mxu0 %v466
    %2163 = vmatpush1.msra.mxu0 %v465
    %2164 = vmatprep.subr.mxu0 %v482
    %2165 = vmatpush1.msra.mxu0 %v481
    %2166 = vmatprep.subr.mxu0 %v498
    %2167 = vmatpush1.msra.mxu0 %v497
    %2168 = vmatprep.subr.mxu0 %v514
    %2169 = vmatpush1.msra.mxu0 %v513
    %2170 = vmatprep.subr.mxu0 %v530
    %2171 = vmatpush1.msra.mxu0 %v529
    %2172 = vmatprep.mubr.f32.mxu0 %v1666
    %2173 = vmatmul.mubr.f32.gmra.mrb[0].mxu0 %v1658
    %v2174 = vpop.f32.mrb[0].mxu0
    %v2175 = vadd.f32 %v1588, %v2174
    %v2176 = vpop.f32.mrb[0].mxu0
    %v2177 = vadd.f32 %v1592, %v2176
    %2178 = vdwg.mxu0
    %2179 = vmatprep.subr.mxu0 %v546
    %2180 = vmatpush1.msra.mxu0 %v545
    %2181 = vmatprep.subr.mxu0 %v562
    %2182 = vmatpush1.msra.mxu0 %v561
    %2183 = vmatprep.subr.mxu0 %v578
    %2184 = vmatpush1.msra.mxu0 %v577
    %2185 = vmatprep.subr.mxu0 %v594
    %2186 = vmatpush1.msra.mxu0 %v593
    %2187 = vmatprep.subr.mxu0 %v610
    %2188 = vmatpush1.msra.mxu0 %v609
    %2189 = vmatprep.subr.mxu0 %v626
    %2190 = vmatpush1.msra.mxu0 %v625
    %2191 = vmatprep.subr.mxu0 %v642
    %2192 = vmatpush1.msra.mxu0 %v641
    %2193 = vmatprep.subr.mxu0 %v658
    %2194 = vmatpush1.msra.mxu0 %v657
    %2195 = vmatprep.subr.mxu0 %v674
    %2196 = vmatpush1.msra.mxu0 %v673
    %2197 = vmatprep.subr.mxu0 %v690
    %2198 = vmatpush1.msra.mxu0 %v689
    %2199 = vmatprep.subr.mxu0 %v706
    %2200 = vmatpush1.msra.mxu0 %v705
    %2201 = vmatprep.subr.mxu0 %v722
    %2202 = vmatpush1.msra.mxu0 %v721
    %2203 = vmatprep.subr.mxu0 %v738
    %2204 = vmatpush1.msra.mxu0 %v737
    %2205 = vmatprep.subr.mxu0 %v754
    %2206 = vmatpush1.msra.mxu0 %v753
    %2207 = vmatprep.subr.mxu0 %v770
    %2208 = vmatpush1.msra.mxu0 %v769
    %2209 = vmatprep.subr.mxu0 %v786
    %2210 = vmatpush1.msra.mxu0 %v785
    %2211 = vmatprep.subr.mxu0 %v802
    %2212 = vmatpush1.msra.mxu0 %v801
    %2213 = vmatprep.subr.mxu0 %v818
    %2214 = vmatpush1.msra.mxu0 %v817
    %2215 = vmatprep.subr.mxu0 %v834
    %2216 = vmatpush1.msra.mxu0 %v833
    %2217 = vmatprep.subr.mxu0 %v850
    %2218 = vmatpush1.msra.mxu0 %v849
    %2219 = vmatprep.subr.mxu0 %v866
    %2220 = vmatpush1.msra.mxu0 %v865
    %2221 = vmatprep.subr.mxu0 %v882
    %2222 = vmatpush1.msra.mxu0 %v881
    %2223 = vmatprep.subr.mxu0 %v898
    %2224 = vmatpush1.msra.mxu0 %v897
    %2225 = vmatprep.subr.mxu0 %v914
    %2226 = vmatpush1.msra.mxu0 %v913
    %2227 = vmatprep.subr.mxu0 %v930
    %2228 = vmatpush1.msra.mxu0 %v929
    %2229 = vmatprep.subr.mxu0 %v946
    %2230 = vmatpush1.msra.mxu0 %v945
    %2231 = vmatprep.subr.mxu0 %v962
    %2232 = vmatpush1.msra.mxu0 %v961
    %2233 = vmatprep.subr.mxu0 %v978
    %2234 = vmatpush1.msra.mxu0 %v977
    %2235 = vmatprep.subr.mxu0 %v994
    %2236 = vmatpush1.msra.mxu0 %v993
    %2237 = vmatprep.subr.mxu0 %v1010
    %2238 = vmatpush1.msra.mxu0 %v1009
    %2239 = vmatprep.subr.mxu0 %v1026
    %2240 = vmatpush1.msra.mxu0 %v1025
    %2241 = vmatprep.subr.mxu0 %v1042
    %2242 = vmatpush1.msra.mxu0 %v1041
    %2243 = vmatprep.mubr.f32.mxu0 %v1667
    %2244 = vmatmul.mubr.f32.gmra.mrb[0].mxu0 %v1665
    %v2245 = vpop.f32.mrb[0].mxu0
    %v2246 = vadd.f32 %v2175, %v2245
    %v2247 = vpop.f32.mrb[0].mxu0
    %v2248 = vadd.f32 %v2177, %v2247
    %2249 = vdwg.mxu0
    %2250 = vmatprep.subr.mxu0 %v1058
    %2251 = vmatpush1.msra.mxu0 %v1057
    %2252 = vmatprep.subr.mxu0 %v1074
    %2253 = vmatpush1.msra.mxu0 %v1073
    %2254 = vmatprep.subr.mxu0 %v1090
    %2255 = vmatpush1.msra.mxu0 %v1089
    %2256 = vmatprep.subr.mxu0 %v1106
    %2257 = vmatpush1.msra.mxu0 %v1105
    %2258 = vmatprep.subr.mxu0 %v1122
    %2259 = vmatpush1.msra.mxu0 %v1121
    %2260 = vmatprep.subr.mxu0 %v1138
    %2261 = vmatpush1.msra.mxu0 %v1137
    %2262 = vmatprep.subr.mxu0 %v1154
    %2263 = vmatpush1.msra.mxu0 %v1153
    %2264 = vmatprep.subr.mxu0 %v1170
    %2265 = vmatpush1.msra.mxu0 %v1169
    %2266 = vmatprep.subr.mxu0 %v1186
    %2267 = vmatpush1.msra.mxu0 %v1185
    %2268 = vmatprep.subr.mxu0 %v1202
    %2269 = vmatpush1.msra.mxu0 %v1201
    %2270 = vmatprep.subr.mxu0 %v1218
    %2271 = vmatpush1.msra.mxu0 %v1217
    %2272 = vmatprep.subr.mxu0 %v1234
    %2273 = vmatpush1.msra.mxu0 %v1233
    %2274 = vmatprep.subr.mxu0 %v1250
    %2275 = vmatpush1.msra.mxu0 %v1249
    %2276 = vmatprep.subr.mxu0 %v1266
    %2277 = vmatpush1.msra.mxu0 %v1265
    %2278 = vmatprep.subr.mxu0 %v1282
    %2279 = vmatpush1.msra.mxu0 %v1281
    %2280 = vmatprep.subr.mxu0 %v1298
    %2281 = vmatpush1.msra.mxu0 %v1297
    %2282 = vmatprep.subr.mxu0 %v1314
    %2283 = vmatpush1.msra.mxu0 %v1313
    %2284 = vmatprep.subr.mxu0 %v1330
    %2285 = vmatpush1.msra.mxu0 %v1329
    %2286 = vmatprep.subr.mxu0 %v1346
    %2287 = vmatpush1.msra.mxu0 %v1345
    %2288 = vmatprep.subr.mxu0 %v1362
    %2289 = vmatpush1.msra.mxu0 %v1361
    %2290 = vmatprep.subr.mxu0 %v1378
    %2291 = vmatpush1.msra.mxu0 %v1377
    %2292 = vmatprep.subr.mxu0 %v1394
    %2293 = vmatpush1.msra.mxu0 %v1393
    %2294 = vmatprep.subr.mxu0 %v1410
    %2295 = vmatpush1.msra.mxu0 %v1409
    %2296 = vmatprep.subr.mxu0 %v1426
    %2297 = vmatpush1.msra.mxu0 %v1425
    %2298 = vmatprep.subr.mxu0 %v1442
    %2299 = vmatpush1.msra.mxu0 %v1441
    %2300 = vmatprep.subr.mxu0 %v1458
    %2301 = vmatpush1.msra.mxu0 %v1457
    %2302 = vmatprep.subr.mxu0 %v1474
    %2303 = vmatpush1.msra.mxu0 %v1473
    %2304 = vmatprep.subr.mxu0 %v1490
    %2305 = vmatpush1.msra.mxu0 %v1489
    %2306 = vmatprep.subr.mxu0 %v1506
    %2307 = vmatpush1.msra.mxu0 %v1505
    %2308 = vmatprep.subr.mxu0 %v1522
    %2309 = vmatpush1.msra.mxu0 %v1521
    %2310 = vmatprep.subr.mxu0 %v1538
    %2311 = vmatpush1.msra.mxu0 %v1537
    %2312 = vmatprep.subr.mxu0 %v1554
    %2313 = vmatpush1.msra.mxu0 %v1553
    %2314 = vmatprep.mubr.f32.mxu0 %v1675
    %2315 = vmatmul.mubr.f32.gmra.mrb[0].mxu0 %v1674
    %v2316 = vpop.f32.mrb[0].mxu0
    %v2317 = vadd.f32 %v2246, %v2316
    %v2318 = vpop.f32.mrb[0].mxu0
    %v2319 = vadd.f32 %v2248, %v2318
    %2320 = vdwg.mxu0
    %2321 = vmatprep.subr.mxu0 %v36
    %2322 = vmatpush1.msra.mxu0 %v35
    %2323 = vmatprep.subr.mxu0 %v52
    %2324 = vmatpush1.msra.mxu0 %v51
    %2325 = vmatprep.subr.mxu0 %v68
    %2326 = vmatpush1.msra.mxu0 %v67
    %2327 = vmatprep.subr.mxu0 %v84
    %2328 = vmatpush1.msra.mxu0 %v83
    %2329 = vmatprep.subr.mxu0 %v100
    %2330 = vmatpush1.msra.mxu0 %v99
    %2331 = vmatprep.subr.mxu0 %v116
    %2332 = vmatpush1.msra.mxu0 %v115
    %2333 = vmatprep.subr.mxu0 %v132
    %2334 = vmatpush1.msra.mxu0 %v131
    %2335 = vmatprep.subr.mxu0 %v148
    %2336 = vmatpush1.msra.mxu0 %v147
    %2337 = vmatprep.subr.mxu0 %v164
    %2338 = vmatpush1.msra.mxu0 %v163
    %2339 = vmatprep.subr.mxu0 %v180
    %2340 = vmatpush1.msra.mxu0 %v179
    %2341 = vmatprep.subr.mxu0 %v196
    %2342 = vmatpush1.msra.mxu0 %v195
    %2343 = vmatprep.subr.mxu0 %v212
    %2344 = vmatpush1.msra.mxu0 %v211
    %2345 = vmatprep.subr.mxu0 %v228
    %2346 = vmatpush1.msra.mxu0 %v227
    %2347 = vmatprep.subr.mxu0 %v244
    %2348 = vmatpush1.msra.mxu0 %v243
    %2349 = vmatprep.subr.mxu0 %v260
    %2350 = vmatpush1.msra.mxu0 %v259
    %2351 = vmatprep.subr.mxu0 %v276
    %2352 = vmatpush1.msra.mxu0 %v275
    %2353 = vmatprep.subr.mxu0 %v292
    %2354 = vmatpush1.msra.mxu0 %v291
    %2355 = vmatprep.subr.mxu0 %v308
    %2356 = vmatpush1.msra.mxu0 %v307
    %2357 = vmatprep.subr.mxu0 %v324
    %2358 = vmatpush1.msra.mxu0 %v323
    %2359 = vmatprep.subr.mxu0 %v340
    %2360 = vmatpush1.msra.mxu0 %v339
    %2361 = vmatprep.subr.mxu0 %v356
    %2362 = vmatpush1.msra.mxu0 %v355
    %2363 = vmatprep.subr.mxu0 %v372
    %2364 = vmatpush1.msra.mxu0 %v371
    %2365 = vmatprep.subr.mxu0 %v388
    %2366 = vmatpush1.msra.mxu0 %v387
    %2367 = vmatprep.subr.mxu0 %v404
    %2368 = vmatpush1.msra.mxu0 %v403
    %2369 = vmatprep.subr.mxu0 %v420
    %2370 = vmatpush1.msra.mxu0 %v419
    %2371 = vmatprep.subr.mxu0 %v436
    %2372 = vmatpush1.msra.mxu0 %v435
    %2373 = vmatprep.subr.mxu0 %v452
    %2374 = vmatpush1.msra.mxu0 %v451
    %2375 = vmatprep.subr.mxu0 %v468
    %2376 = vmatpush1.msra.mxu0 %v467
    %2377 = vmatprep.subr.mxu0 %v484
    %2378 = vmatpush1.msra.mxu0 %v483
    %2379 = vmatprep.subr.mxu0 %v500
    %2380 = vmatpush1.msra.mxu0 %v499
    %2381 = vmatprep.subr.mxu0 %v516
    %2382 = vmatpush1.msra.mxu0 %v515
    %2383 = vmatprep.subr.mxu0 %v532
    %2384 = vmatpush1.msra.mxu0 %v531
    %2385 = vmatprep.mubr.f32.mxu0 %v1666
    %2386 = vmatmul.mubr.f32.gmra.mrb[0].mxu0 %v1658
    %v2387 = vpop.f32.mrb[0].mxu0
    %v2388 = vadd.f32 %v1596, %v2387
    %v2389 = vpop.f32.mrb[0].mxu0
    %v2390 = vadd.f32 %v1600, %v2389
    %2391 = vdwg.mxu0
    %2392 = vmatprep.subr.mxu0 %v548
    %2393 = vmatpush1.msra.mxu0 %v547
    %2394 = vmatprep.subr.mxu0 %v564
    %2395 = vmatpush1.msra.mxu0 %v563
    %2396 = vmatprep.subr.mxu0 %v580
    %2397 = vmatpush1.msra.mxu0 %v579
    %2398 = vmatprep.subr.mxu0 %v596
    %2399 = vmatpush1.msra.mxu0 %v595
    %2400 = vmatprep.subr.mxu0 %v612
    %2401 = vmatpush1.msra.mxu0 %v611
    %2402 = vmatprep.subr.mxu0 %v628
    %2403 = vmatpush1.msra.mxu0 %v627
    %2404 = vmatprep.subr.mxu0 %v644
    %2405 = vmatpush1.msra.mxu0 %v643
    %2406 = vmatprep.subr.mxu0 %v660
    %2407 = vmatpush1.msra.mxu0 %v659
    %2408 = vmatprep.subr.mxu0 %v676
    %2409 = vmatpush1.msra.mxu0 %v675
    %2410 = vmatprep.subr.mxu0 %v692
    %2411 = vmatpush1.msra.mxu0 %v691
    %2412 = vmatprep.subr.mxu0 %v708
    %2413 = vmatpush1.msra.mxu0 %v707
    %2414 = vmatprep.subr.mxu0 %v724
    %2415 = vmatpush1.msra.mxu0 %v723
    %2416 = vmatprep.subr.mxu0 %v740
    %2417 = vmatpush1.msra.mxu0 %v739
    %2418 = vmatprep.subr.mxu0 %v756
    %2419 = vmatpush1.msra.mxu0 %v755
    %2420 = vmatprep.subr.mxu0 %v772
    %2421 = vmatpush1.msra.mxu0 %v771
    %2422 = vmatprep.subr.mxu0 %v788
    %2423 = vmatpush1.msra.mxu0 %v787
    %2424 = vmatprep.subr.mxu0 %v804
    %2425 = vmatpush1.msra.mxu0 %v803
    %2426 = vmatprep.subr.mxu0 %v820
    %2427 = vmatpush1.msra.mxu0 %v819
    %2428 = vmatprep.subr.mxu0 %v836
    %2429 = vmatpush1.msra.mxu0 %v835
    %2430 = vmatprep.subr.mxu0 %v852
    %2431 = vmatpush1.msra.mxu0 %v851
    %2432 = vmatprep.subr.mxu0 %v868
    %2433 = vmatpush1.msra.mxu0 %v867
    %2434 = vmatprep.subr.mxu0 %v884
    %2435 = vmatpush1.msra.mxu0 %v883
    %2436 = vmatprep.subr.mxu0 %v900
    %2437 = vmatpush1.msra.mxu0 %v899
    %2438 = vmatprep.subr.mxu0 %v916
    %2439 = vmatpush1.msra.mxu0 %v915
    %2440 = vmatprep.subr.mxu0 %v932
    %2441 = vmatpush1.msra.mxu0 %v931
    %2442 = vmatprep.subr.mxu0 %v948
    %2443 = vmatpush1.msra.mxu0 %v947
    %2444 = vmatprep.subr.mxu0 %v964
    %2445 = vmatpush1.msra.mxu0 %v963
    %2446 = vmatprep.subr.mxu0 %v980
    %2447 = vmatpush1.msra.mxu0 %v979
    %2448 = vmatprep.subr.mxu0 %v996
    %2449 = vmatpush1.msra.mxu0 %v995
    %2450 = vmatprep.subr.mxu0 %v1012
    %2451 = vmatpush1.msra.mxu0 %v1011
    %2452 = vmatprep.subr.mxu0 %v1028
    %2453 = vmatpush1.msra.mxu0 %v1027
    %2454 = vmatprep.subr.mxu0 %v1044
    %2455 = vmatpush1.msra.mxu0 %v1043
    %2456 = vmatprep.mubr.f32.mxu0 %v1667
    %2457 = vmatmul.mubr.f32.gmra.mrb[0].mxu0 %v1665
    %v2458 = vpop.f32.mrb[0].mxu0
    %v2459 = vadd.f32 %v2388, %v2458
    %v2460 = vpop.f32.mrb[0].mxu0
    %v2461 = vadd.f32 %v2390, %v2460
    %2462 = vdwg.mxu0
    %2463 = vmatprep.subr.mxu0 %v1060
    %2464 = vmatpush1.msra.mxu0 %v1059
    %2465 = vmatprep.subr.mxu0 %v1076
    %2466 = vmatpush1.msra.mxu0 %v1075
    %2467 = vmatprep.subr.mxu0 %v1092
    %2468 = vmatpush1.msra.mxu0 %v1091
    %2469 = vmatprep.subr.mxu0 %v1108
    %2470 = vmatpush1.msra.mxu0 %v1107
    %2471 = vmatprep.subr.mxu0 %v1124
    %2472 = vmatpush1.msra.mxu0 %v1123
    %2473 = vmatprep.subr.mxu0 %v1140
    %2474 = vmatpush1.msra.mxu0 %v1139
    %2475 = vmatprep.subr.mxu0 %v1156
    %2476 = vmatpush1.msra.mxu0 %v1155
    %2477 = vmatprep.subr.mxu0 %v1172
    %2478 = vmatpush1.msra.mxu0 %v1171
    %2479 = vmatprep.subr.mxu0 %v1188
    %2480 = vmatpush1.msra.mxu0 %v1187
    %2481 = vmatprep.subr.mxu0 %v1204
    %2482 = vmatpush1.msra.mxu0 %v1203
    %2483 = vmatprep.subr.mxu0 %v1220
    %2484 = vmatpush1.msra.mxu0 %v1219
    %2485 = vmatprep.subr.mxu0 %v1236
    %2486 = vmatpush1.msra.mxu0 %v1235
    %2487 = vmatprep.subr.mxu0 %v1252
    %2488 = vmatpush1.msra.mxu0 %v1251
    %2489 = vmatprep.subr.mxu0 %v1268
    %2490 = vmatpush1.msra.mxu0 %v1267
    %2491 = vmatprep.subr.mxu0 %v1284
    %2492 = vmatpush1.msra.mxu0 %v1283
    %2493 = vmatprep.subr.mxu0 %v1300
    %2494 = vmatpush1.msra.mxu0 %v1299
    %2495 = vmatprep.subr.mxu0 %v1316
    %2496 = vmatpush1.msra.mxu0 %v1315
    %2497 = vmatprep.subr.mxu0 %v1332
    %2498 = vmatpush1.msra.mxu0 %v1331
    %2499 = vmatprep.subr.mxu0 %v1348
    %2500 = vmatpush1.msra.mxu0 %v1347
    %2501 = vmatprep.subr.mxu0 %v1364
    %2502 = vmatpush1.msra.mxu0 %v1363
    %2503 = vmatprep.subr.mxu0 %v1380
    %2504 = vmatpush1.msra.mxu0 %v1379
    %2505 = vmatprep.subr.mxu0 %v1396
    %2506 = vmatpush1.msra.mxu0 %v1395
    %2507 = vmatprep.subr.mxu0 %v1412
    %2508 = vmatpush1.msra.mxu0 %v1411
    %2509 = vmatprep.subr.mxu0 %v1428
    %2510 = vmatpush1.msra.mxu0 %v1427
    %2511 = vmatprep.subr.mxu0 %v1444
    %2512 = vmatpush1.msra.mxu0 %v1443
    %2513 = vmatprep.subr.mxu0 %v1460
    %2514 = vmatpush1.msra.mxu0 %v1459
    %2515 = vmatprep.subr.mxu0 %v1476
    %2516 = vmatpush1.msra.mxu0 %v1475
    %2517 = vmatprep.subr.mxu0 %v1492
    %2518 = vmatpush1.msra.mxu0 %v1491
    %2519 = vmatprep.subr.mxu0 %v1508
    %2520 = vmatpush1.msra.mxu0 %v1507
    %2521 = vmatprep.subr.mxu0 %v1524
    %2522 = vmatpush1.msra.mxu0 %v1523
    %2523 = vmatprep.subr.mxu0 %v1540
    %2524 = vmatpush1.msra.mxu0 %v1539
    %2525 = vmatprep.subr.mxu0 %v1556
    %2526 = vmatpush1.msra.mxu0 %v1555
    %2527 = vmatprep.mubr.f32.mxu0 %v1675
    %2528 = vmatmul.mubr.f32.gmra.mrb[0].mxu0 %v1674
    %v2529 = vpop.f32.mrb[0].mxu0
    %v2530 = vadd.f32 %v2459, %v2529
    %v2531 = vpop.f32.mrb[0].mxu0
    %v2532 = vadd.f32 %v2461, %v2531
    %2533 = vdwg.mxu0
    %2534 = vmatprep.subr.mxu0 %v38
    %2535 = vmatpush1.msra.mxu0 %v37
    %2536 = vmatprep.subr.mxu0 %v54
    %2537 = vmatpush1.msra.mxu0 %v53
    %2538 = vmatprep.subr.mxu0 %v70
    %2539 = vmatpush1.msra.mxu0 %v69
    %2540 = vmatprep.subr.mxu0 %v86
    %2541 = vmatpush1.msra.mxu0 %v85
    %2542 = vmatprep.subr.mxu0 %v102
    %2543 = vmatpush1.msra.mxu0 %v101
    %2544 = vmatprep.subr.mxu0 %v118
    %2545 = vmatpush1.msra.mxu0 %v117
    %2546 = vmatprep.subr.mxu0 %v134
    %2547 = vmatpush1.msra.mxu0 %v133
    %2548 = vmatprep.subr.mxu0 %v150
    %2549 = vmatpush1.msra.mxu0 %v149
    %2550 = vmatprep.subr.mxu0 %v166
    %2551 = vmatpush1.msra.mxu0 %v165
    %2552 = vmatprep.subr.mxu0 %v182
    %2553 = vmatpush1.msra.mxu0 %v181
    %2554 = vmatprep.subr.mxu0 %v198
    %2555 = vmatpush1.msra.mxu0 %v197
    %2556 = vmatprep.subr.mxu0 %v214
    %2557 = vmatpush1.msra.mxu0 %v213
    %2558 = vmatprep.subr.mxu0 %v230
    %2559 = vmatpush1.msra.mxu0 %v229
    %2560 = vmatprep.subr.mxu0 %v246
    %2561 = vmatpush1.msra.mxu0 %v245
    %2562 = vmatprep.subr.mxu0 %v262
    %2563 = vmatpush1.msra.mxu0 %v261
    %2564 = vmatprep.subr.mxu0 %v278
    %2565 = vmatpush1.msra.mxu0 %v277
    %2566 = vmatprep.subr.mxu0 %v294
    %2567 = vmatpush1.msra.mxu0 %v293
    %2568 = vmatprep.subr.mxu0 %v310
    %2569 = vmatpush1.msra.mxu0 %v309
    %2570 = vmatprep.subr.mxu0 %v326
    %2571 = vmatpush1.msra.mxu0 %v325
    %2572 = vmatprep.subr.mxu0 %v342
    %2573 = vmatpush1.msra.mxu0 %v341
    %2574 = vmatprep.subr.mxu0 %v358
    %2575 = vmatpush1.msra.mxu0 %v357
    %2576 = vmatprep.subr.mxu0 %v374
    %2577 = vmatpush1.msra.mxu0 %v373
    %2578 = vmatprep.subr.mxu0 %v390
    %2579 = vmatpush1.msra.mxu0 %v389
    %2580 = vmatprep.subr.mxu0 %v406
    %2581 = vmatpush1.msra.mxu0 %v405
    %2582 = vmatprep.subr.mxu0 %v422
    %2583 = vmatpush1.msra.mxu0 %v421
    %2584 = vmatprep.subr.mxu0 %v438
    %2585 = vmatpush1.msra.mxu0 %v437
    %2586 = vmatprep.subr.mxu0 %v454
    %2587 = vmatpush1.msra.mxu0 %v453
    %2588 = vmatprep.subr.mxu0 %v470
    %2589 = vmatpush1.msra.mxu0 %v469
    %2590 = vmatprep.subr.mxu0 %v486
    %2591 = vmatpush1.msra.mxu0 %v485
    %2592 = vmatprep.subr.mxu0 %v502
    %2593 = vmatpush1.msra.mxu0 %v501
    %2594 = vmatprep.subr.mxu0 %v518
    %2595 = vmatpush1.msra.mxu0 %v517
    %2596 = vmatprep.subr.mxu0 %v534
    %2597 = vmatpush1.msra.mxu0 %v533
    %2598 = vmatprep.mubr.f32.mxu0 %v1666
    %2599 = vmatmul.mubr.f32.gmra.mrb[0].mxu0 %v1658
    %v2600 = vpop.f32.mrb[0].mxu0
    %v2601 = vadd.f32 %v1604, %v2600
    %v2602 = vpop.f32.mrb[0].mxu0
    %v2603 = vadd.f32 %v1608, %v2602
    %2604 = vdwg.mxu0
    %2605 = vmatprep.subr.mxu0 %v550
    %2606 = vmatpush1.msra.mxu0 %v549
    %2607 = vmatprep.subr.mxu0 %v566
    %2608 = vmatpush1.msra.mxu0 %v565
    %2609 = vmatprep.subr.mxu0 %v582
    %2610 = vmatpush1.msra.mxu0 %v581
    %2611 = vmatprep.subr.mxu0 %v598
    %2612 = vmatpush1.msra.mxu0 %v597
    %2613 = vmatprep.subr.mxu0 %v614
    %2614 = vmatpush1.msra.mxu0 %v613
    %2615 = vmatprep.subr.mxu0 %v630
    %2616 = vmatpush1.msra.mxu0 %v629
    %2617 = vmatprep.subr.mxu0 %v646
    %2618 = vmatpush1.msra.mxu0 %v645
    %2619 = vmatprep.subr.mxu0 %v662
    %2620 = vmatpush1.msra.mxu0 %v661
    %2621 = vmatprep.subr.mxu0 %v678
    %2622 = vmatpush1.msra.mxu0 %v677
    %2623 = vmatprep.subr.mxu0 %v694
    %2624 = vmatpush1.msra.mxu0 %v693
    %2625 = vmatprep.subr.mxu0 %v710
    %2626 = vmatpush1.msra.mxu0 %v709
    %2627 = vmatprep.subr.mxu0 %v726
    %2628 = vmatpush1.msra.mxu0 %v725
    %2629 = vmatprep.subr.mxu0 %v742
    %2630 = vmatpush1.msra.mxu0 %v741
    %2631 = vmatprep.subr.mxu0 %v758
    %2632 = vmatpush1.msra.mxu0 %v757
    %2633 = vmatprep.subr.mxu0 %v774
    %2634 = vmatpush1.msra.mxu0 %v773
    %2635 = vmatprep.subr.mxu0 %v790
    %2636 = vmatpush1.msra.mxu0 %v789
    %2637 = vmatprep.subr.mxu0 %v806
    %2638 = vmatpush1.msra.mxu0 %v805
    %2639 = vmatprep.subr.mxu0 %v822
    %2640 = vmatpush1.msra.mxu0 %v821
    %2641 = vmatprep.subr.mxu0 %v838
    %2642 = vmatpush1.msra.mxu0 %v837
    %2643 = vmatprep.subr.mxu0 %v854
    %2644 = vmatpush1.msra.mxu0 %v853
    %2645 = vmatprep.subr.mxu0 %v870
    %2646 = vmatpush1.msra.mxu0 %v869
    %2647 = vmatprep.subr.mxu0 %v886
    %2648 = vmatpush1.msra.mxu0 %v885
    %2649 = vmatprep.subr.mxu0 %v902
    %2650 = vmatpush1.msra.mxu0 %v901
    %2651 = vmatprep.subr.mxu0 %v918
    %2652 = vmatpush1.msra.mxu0 %v917
    %2653 = vmatprep.subr.mxu0 %v934
    %2654 = vmatpush1.msra.mxu0 %v933
    %2655 = vmatprep.subr.mxu0 %v950
    %2656 = vmatpush1.msra.mxu0 %v949
    %2657 = vmatprep.subr.mxu0 %v966
    %2658 = vmatpush1.msra.mxu0 %v965
    %2659 = vmatprep.subr.mxu0 %v982
    %2660 = vmatpush1.msra.mxu0 %v981
    %2661 = vmatprep.subr.mxu0 %v998
    %2662 = vmatpush1.msra.mxu0 %v997
    %2663 = vmatprep.subr.mxu0 %v1014
    %2664 = vmatpush1.msra.mxu0 %v1013
    %2665 = vmatprep.subr.mxu0 %v1030
    %2666 = vmatpush1.msra.mxu0 %v1029
    %2667 = vmatprep.subr.mxu0 %v1046
    %2668 = vmatpush1.msra.mxu0 %v1045
    %2669 = vmatprep.mubr.f32.mxu0 %v1667
    %2670 = vmatmul.mubr.f32.gmra.mrb[0].mxu0 %v1665
    %v2671 = vpop.f32.mrb[0].mxu0
    %v2672 = vadd.f32 %v2601, %v2671
    %v2673 = vpop.f32.mrb[0].mxu0
    %v2674 = vadd.f32 %v2603, %v2673
    %2675 = vdwg.mxu0
    %2676 = vmatprep.subr.mxu0 %v1062
    %2677 = vmatpush1.msra.mxu0 %v1061
    %2678 = vmatprep.subr.mxu0 %v1078
    %2679 = vmatpush1.msra.mxu0 %v1077
    %2680 = vmatprep.subr.mxu0 %v1094
    %2681 = vmatpush1.msra.mxu0 %v1093
    %2682 = vmatprep.subr.mxu0 %v1110
    %2683 = vmatpush1.msra.mxu0 %v1109
    %2684 = vmatprep.subr.mxu0 %v1126
    %2685 = vmatpush1.msra.mxu0 %v1125
    %2686 = vmatprep.subr.mxu0 %v1142
    %2687 = vmatpush1.msra.mxu0 %v1141
    %2688 = vmatprep.subr.mxu0 %v1158
    %2689 = vmatpush1.msra.mxu0 %v1157
    %2690 = vmatprep.subr.mxu0 %v1174
    %2691 = vmatpush1.msra.mxu0 %v1173
    %2692 = vmatprep.subr.mxu0 %v1190
    %2693 = vmatpush1.msra.mxu0 %v1189
    %2694 = vmatprep.subr.mxu0 %v1206
    %2695 = vmatpush1.msra.mxu0 %v1205
    %2696 = vmatprep.subr.mxu0 %v1222
    %2697 = vmatpush1.msra.mxu0 %v1221
    %2698 = vmatprep.subr.mxu0 %v1238
    %2699 = vmatpush1.msra.mxu0 %v1237
    %2700 = vmatprep.subr.mxu0 %v1254
    %2701 = vmatpush1.msra.mxu0 %v1253
    %2702 = vmatprep.subr.mxu0 %v1270
    %2703 = vmatpush1.msra.mxu0 %v1269
    %2704 = vmatprep.subr.mxu0 %v1286
    %2705 = vmatpush1.msra.mxu0 %v1285
    %2706 = vmatprep.subr.mxu0 %v1302
    %2707 = vmatpush1.msra.mxu0 %v1301
    %2708 = vmatprep.subr.mxu0 %v1318
    %2709 = vmatpush1.msra.mxu0 %v1317
    %2710 = vmatprep.subr.mxu0 %v1334
    %2711 = vmatpush1.msra.mxu0 %v1333
    %2712 = vmatprep.subr.mxu0 %v1350
    %2713 = vmatpush1.msra.mxu0 %v1349
    %2714 = vmatprep.subr.mxu0 %v1366
    %2715 = vmatpush1.msra.mxu0 %v1365
    %2716 = vmatprep.subr.mxu0 %v1382
    %2717 = vmatpush1.msra.mxu0 %v1381
    %2718 = vmatprep.subr.mxu0 %v1398
    %2719 = vmatpush1.msra.mxu0 %v1397
    %2720 = vmatprep.subr.mxu0 %v1414
    %2721 = vmatpush1.msra.mxu0 %v1413
    %2722 = vmatprep.subr.mxu0 %v1430
    %2723 = vmatpush1.msra.mxu0 %v1429
    %2724 = vmatprep.subr.mxu0 %v1446
    %2725 = vmatpush1.msra.mxu0 %v1445
    %2726 = vmatprep.subr.mxu0 %v1462
    %2727 = vmatpush1.msra.mxu0 %v1461
    %2728 = vmatprep.subr.mxu0 %v1478
    %2729 = vmatpush1.msra.mxu0 %v1477
    %2730 = vmatprep.subr.mxu0 %v1494
    %2731 = vmatpush1.msra.mxu0 %v1493
    %2732 = vmatprep.subr.mxu0 %v1510
    %2733 = vmatpush1.msra.mxu0 %v1509
    %2734 = vmatprep.subr.mxu0 %v1526
    %2735 = vmatpush1.msra.mxu0 %v1525
    %2736 = vmatprep.subr.mxu0 %v1542
    %2737 = vmatpush1.msra.mxu0 %v1541
    %2738 = vmatprep.subr.mxu0 %v1558
    %2739 = vmatpush1.msra.mxu0 %v1557
    %2740 = vmatprep.mubr.f32.mxu0 %v1675
    %2741 = vmatmul.mubr.f32.gmra.mrb[0].mxu0 %v1674
    %v2742 = vpop.f32.mrb[0].mxu0
    %v2743 = vadd.f32 %v2672, %v2742
    %v2744 = vpop.f32.mrb[0].mxu0
    %v2745 = vadd.f32 %v2674, %v2744
    %2746 = vdwg.mxu0
    %2747 = vmatprep.subr.mxu0 %v40
    %2748 = vmatpush1.msra.mxu0 %v39
    %2749 = vmatprep.subr.mxu0 %v56
    %2750 = vmatpush1.msra.mxu0 %v55
    %2751 = vmatprep.subr.mxu0 %v72
    %2752 = vmatpush1.msra.mxu0 %v71
    %2753 = vmatprep.subr.mxu0 %v88
    %2754 = vmatpush1.msra.mxu0 %v87
    %2755 = vmatprep.subr.mxu0 %v104
    %2756 = vmatpush1.msra.mxu0 %v103
    %2757 = vmatprep.subr.mxu0 %v120
    %2758 = vmatpush1.msra.mxu0 %v119
    %2759 = vmatprep.subr.mxu0 %v136
    %2760 = vmatpush1.msra.mxu0 %v135
    %2761 = vmatprep.subr.mxu0 %v152
    %2762 = vmatpush1.msra.mxu0 %v151
    %2763 = vmatprep.subr.mxu0 %v168
    %2764 = vmatpush1.msra.mxu0 %v167
    %2765 = vmatprep.subr.mxu0 %v184
    %2766 = vmatpush1.msra.mxu0 %v183
    %2767 = vmatprep.subr.mxu0 %v200
    %2768 = vmatpush1.msra.mxu0 %v199
    %2769 = vmatprep.subr.mxu0 %v216
    %2770 = vmatpush1.msra.mxu0 %v215
    %2771 = vmatprep.subr.mxu0 %v232
    %2772 = vmatpush1.msra.mxu0 %v231
    %2773 = vmatprep.subr.mxu0 %v248
    %2774 = vmatpush1.msra.mxu0 %v247
    %2775 = vmatprep.subr.mxu0 %v264
    %2776 = vmatpush1.msra.mxu0 %v263
    %2777 = vmatprep.subr.mxu0 %v280
    %2778 = vmatpush1.msra.mxu0 %v279
    %2779 = vmatprep.subr.mxu0 %v296
    %2780 = vmatpush1.msra.mxu0 %v295
    %2781 = vmatprep.subr.mxu0 %v312
    %2782 = vmatpush1.msra.mxu0 %v311
    %2783 = vmatprep.subr.mxu0 %v328
    %2784 = vmatpush1.msra.mxu0 %v327
    %2785 = vmatprep.subr.mxu0 %v344
    %2786 = vmatpush1.msra.mxu0 %v343
    %2787 = vmatprep.subr.mxu0 %v360
    %2788 = vmatpush1.msra.mxu0 %v359
    %2789 = vmatprep.subr.mxu0 %v376
    %2790 = vmatpush1.msra.mxu0 %v375
    %2791 = vmatprep.subr.mxu0 %v392
    %2792 = vmatpush1.msra.mxu0 %v391
    %2793 = vmatprep.subr.mxu0 %v408
    %2794 = vmatpush1.msra.mxu0 %v407
    %2795 = vmatprep.subr.mxu0 %v424
    %2796 = vmatpush1.msra.mxu0 %v423
    %2797 = vmatprep.subr.mxu0 %v440
    %2798 = vmatpush1.msra.mxu0 %v439
    %2799 = vmatprep.subr.mxu0 %v456
    %2800 = vmatpush1.msra.mxu0 %v455
    %2801 = vmatprep.subr.mxu0 %v472
    %2802 = vmatpush1.msra.mxu0 %v471
    %2803 = vmatprep.subr.mxu0 %v488
    %2804 = vmatpush1.msra.mxu0 %v487
    %2805 = vmatprep.subr.mxu0 %v504
    %2806 = vmatpush1.msra.mxu0 %v503
    %2807 = vmatprep.subr.mxu0 %v520
    %2808 = vmatpush1.msra.mxu0 %v519
    %2809 = vmatprep.subr.mxu0 %v536
    %2810 = vmatpush1.msra.mxu0 %v535
    %2811 = vmatprep.mubr.f32.mxu0 %v1666
    %2812 = vmatmul.mubr.f32.gmra.mrb[0].mxu0 %v1658
    %v2813 = vpop.f32.mrb[0].mxu0
    %v2814 = vadd.f32 %v1612, %v2813
    %v2815 = vpop.f32.mrb[0].mxu0
    %v2816 = vadd.f32 %v1616, %v2815
    %2817 = vdwg.mxu0
    %2818 = vmatprep.subr.mxu0 %v552
    %2819 = vmatpush1.msra.mxu0 %v551
    %2820 = vmatprep.subr.mxu0 %v568
    %2821 = vmatpush1.msra.mxu0 %v567
    %2822 = vmatprep.subr.mxu0 %v584
    %2823 = vmatpush1.msra.mxu0 %v583
    %2824 = vmatprep.subr.mxu0 %v600
    %2825 = vmatpush1.msra.mxu0 %v599
    %2826 = vmatprep.subr.mxu0 %v616
    %2827 = vmatpush1.msra.mxu0 %v615
    %2828 = vmatprep.subr.mxu0 %v632
    %2829 = vmatpush1.msra.mxu0 %v631
    %2830 = vmatprep.subr.mxu0 %v648
    %2831 = vmatpush1.msra.mxu0 %v647
    %2832 = vmatprep.subr.mxu0 %v664
    %2833 = vmatpush1.msra.mxu0 %v663
    %2834 = vmatprep.subr.mxu0 %v680
    %2835 = vmatpush1.msra.mxu0 %v679
    %2836 = vmatprep.subr.mxu0 %v696
    %2837 = vmatpush1.msra.mxu0 %v695
    %2838 = vmatprep.subr.mxu0 %v712
    %2839 = vmatpush1.msra.mxu0 %v711
    %2840 = vmatprep.subr.mxu0 %v728
    %2841 = vmatpush1.msra.mxu0 %v727
    %2842 = vmatprep.subr.mxu0 %v744
    %2843 = vmatpush1.msra.mxu0 %v743
    %2844 = vmatprep.subr.mxu0 %v760
    %2845 = vmatpush1.msra.mxu0 %v759
    %2846 = vmatprep.subr.mxu0 %v776
    %2847 = vmatpush1.msra.mxu0 %v775
    %2848 = vmatprep.subr.mxu0 %v792
    %2849 = vmatpush1.msra.mxu0 %v791
    %2850 = vmatprep.subr.mxu0 %v808
    %2851 = vmatpush1.msra.mxu0 %v807
    %2852 = vmatprep.subr.mxu0 %v824
    %2853 = vmatpush1.msra.mxu0 %v823
    %2854 = vmatprep.subr.mxu0 %v840
    %2855 = vmatpush1.msra.mxu0 %v839
    %2856 = vmatprep.subr.mxu0 %v856
    %2857 = vmatpush1.msra.mxu0 %v855
    %2858 = vmatprep.subr.mxu0 %v872
    %2859 = vmatpush1.msra.mxu0 %v871
    %2860 = vmatprep.subr.mxu0 %v888
    %2861 = vmatpush1.msra.mxu0 %v887
    %2862 = vmatprep.subr.mxu0 %v904
    %2863 = vmatpush1.msra.mxu0 %v903
    %2864 = vmatprep.subr.mxu0 %v920
    %2865 = vmatpush1.msra.mxu0 %v919
    %2866 = vmatprep.subr.mxu0 %v936
    %2867 = vmatpush1.msra.mxu0 %v935
    %2868 = vmatprep.subr.mxu0 %v952
    %2869 = vmatpush1.msra.mxu0 %v951
    %2870 = vmatprep.subr.mxu0 %v968
    %2871 = vmatpush1.msra.mxu0 %v967
    %2872 = vmatprep.subr.mxu0 %v984
    %2873 = vmatpush1.msra.mxu0 %v983
    %2874 = vmatprep.subr.mxu0 %v1000
    %2875 = vmatpush1.msra.mxu0 %v999
    %2876 = vmatprep.subr.mxu0 %v1016
    %2877 = vmatpush1.msra.mxu0 %v1015
    %2878 = vmatprep.subr.mxu0 %v1032
    %2879 = vmatpush1.msra.mxu0 %v1031
    %2880 = vmatprep.subr.mxu0 %v1048
    %2881 = vmatpush1.msra.mxu0 %v1047
    %2882 = vmatprep.mubr.f32.mxu0 %v1667
    %2883 = vmatmul.mubr.f32.gmra.mrb[0].mxu0 %v1665
    %v2884 = vpop.f32.mrb[0].mxu0
    %v2885 = vadd.f32 %v2814, %v2884
    %v2886 = vpop.f32.mrb[0].mxu0
    %v2887 = vadd.f32 %v2816, %v2886
    %2888 = vdwg.mxu0
    %2889 = vmatprep.subr.mxu0 %v1064
    %2890 = vmatpush1.msra.mxu0 %v1063
    %2891 = vmatprep.subr.mxu0 %v1080
    %2892 = vmatpush1.msra.mxu0 %v1079
    %2893 = vmatprep.subr.mxu0 %v1096
    %2894 = vmatpush1.msra.mxu0 %v1095
    %2895 = vmatprep.subr.mxu0 %v1112
    %2896 = vmatpush1.msra.mxu0 %v1111
    %2897 = vmatprep.subr.mxu0 %v1128
    %2898 = vmatpush1.msra.mxu0 %v1127
    %2899 = vmatprep.subr.mxu0 %v1144
    %2900 = vmatpush1.msra.mxu0 %v1143
    %2901 = vmatprep.subr.mxu0 %v1160
    %2902 = vmatpush1.msra.mxu0 %v1159
    %2903 = vmatprep.subr.mxu0 %v1176
    %2904 = vmatpush1.msra.mxu0 %v1175
    %2905 = vmatprep.subr.mxu0 %v1192
    %2906 = vmatpush1.msra.mxu0 %v1191
    %2907 = vmatprep.subr.mxu0 %v1208
    %2908 = vmatpush1.msra.mxu0 %v1207
    %2909 = vmatprep.subr.mxu0 %v1224
    %2910 = vmatpush1.msra.mxu0 %v1223
    %2911 = vmatprep.subr.mxu0 %v1240
    %2912 = vmatpush1.msra.mxu0 %v1239
    %2913 = vmatprep.subr.mxu0 %v1256
    %2914 = vmatpush1.msra.mxu0 %v1255
    %2915 = vmatprep.subr.mxu0 %v1272
    %2916 = vmatpush1.msra.mxu0 %v1271
    %2917 = vmatprep.subr.mxu0 %v1288
    %2918 = vmatpush1.msra.mxu0 %v1287
    %2919 = vmatprep.subr.mxu0 %v1304
    %2920 = vmatpush1.msra.mxu0 %v1303
    %2921 = vmatprep.subr.mxu0 %v1320
    %2922 = vmatpush1.msra.mxu0 %v1319
    %2923 = vmatprep.subr.mxu0 %v1336
    %2924 = vmatpush1.msra.mxu0 %v1335
    %2925 = vmatprep.subr.mxu0 %v1352
    %2926 = vmatpush1.msra.mxu0 %v1351
    %2927 = vmatprep.subr.mxu0 %v1368
    %2928 = vmatpush1.msra.mxu0 %v1367
    %2929 = vmatprep.subr.mxu0 %v1384
    %2930 = vmatpush1.msra.mxu0 %v1383
    %2931 = vmatprep.subr.mxu0 %v1400
    %2932 = vmatpush1.msra.mxu0 %v1399
    %2933 = vmatprep.subr.mxu0 %v1416
    %2934 = vmatpush1.msra.mxu0 %v1415
    %2935 = vmatprep.subr.mxu0 %v1432
    %2936 = vmatpush1.msra.mxu0 %v1431
    %2937 = vmatprep.subr.mxu0 %v1448
    %2938 = vmatpush1.msra.mxu0 %v1447
    %2939 = vmatprep.subr.mxu0 %v1464
    %2940 = vmatpush1.msra.mxu0 %v1463
    %2941 = vmatprep.subr.mxu0 %v1480
    %2942 = vmatpush1.msra.mxu0 %v1479
    %2943 = vmatprep.subr.mxu0 %v1496
    %2944 = vmatpush1.msra.mxu0 %v1495
    %2945 = vmatprep.subr.mxu0 %v1512
    %2946 = vmatpush1.msra.mxu0 %v1511
    %2947 = vmatprep.subr.mxu0 %v1528
    %2948 = vmatpush1.msra.mxu0 %v1527
    %2949 = vmatprep.subr.mxu0 %v1544
    %2950 = vmatpush1.msra.mxu0 %v1543
    %2951 = vmatprep.subr.mxu0 %v1560
    %2952 = vmatpush1.msra.mxu0 %v1559
    %2953 = vmatprep.mubr.f32.mxu0 %v1675
    %2954 = vmatmul.mubr.f32.gmra.mrb[0].mxu0 %v1674
    %v2955 = vpop.f32.mrb[0].mxu0
    %v2956 = vadd.f32 %v2885, %v2955
    %v2957 = vpop.f32.mrb[0].mxu0
    %v2958 = vadd.f32 %v2887, %v2957
    %2959 = vdwg.mxu0
    %2960 = vmatprep.subr.mxu0 %v42
    %2961 = vmatpush1.msra.mxu0 %v41
    %2962 = vmatprep.subr.mxu0 %v58
    %2963 = vmatpush1.msra.mxu0 %v57
    %2964 = vmatprep.subr.mxu0 %v74
    %2965 = vmatpush1.msra.mxu0 %v73
    %2966 = vmatprep.subr.mxu0 %v90
    %2967 = vmatpush1.msra.mxu0 %v89
    %2968 = vmatprep.subr.mxu0 %v106
    %2969 = vmatpush1.msra.mxu0 %v105
    %2970 = vmatprep.subr.mxu0 %v122
    %2971 = vmatpush1.msra.mxu0 %v121
    %2972 = vmatprep.subr.mxu0 %v138
    %2973 = vmatpush1.msra.mxu0 %v137
    %2974 = vmatprep.subr.mxu0 %v154
    %2975 = vmatpush1.msra.mxu0 %v153
    %2976 = vmatprep.subr.mxu0 %v170
    %2977 = vmatpush1.msra.mxu0 %v169
    %2978 = vmatprep.subr.mxu0 %v186
    %2979 = vmatpush1.msra.mxu0 %v185
    %2980 = vmatprep.subr.mxu0 %v202
    %2981 = vmatpush1.msra.mxu0 %v201
    %2982 = vmatprep.subr.mxu0 %v218
    %2983 = vmatpush1.msra.mxu0 %v217
    %2984 = vmatprep.subr.mxu0 %v234
    %2985 = vmatpush1.msra.mxu0 %v233
    %2986 = vmatprep.subr.mxu0 %v250
    %2987 = vmatpush1.msra.mxu0 %v249
    %2988 = vmatprep.subr.mxu0 %v266
    %2989 = vmatpush1.msra.mxu0 %v265
    %2990 = vmatprep.subr.mxu0 %v282
    %2991 = vmatpush1.msra.mxu0 %v281
    %2992 = vmatprep.subr.mxu0 %v298
    %2993 = vmatpush1.msra.mxu0 %v297
    %2994 = vmatprep.subr.mxu0 %v314
    %2995 = vmatpush1.msra.mxu0 %v313
    %2996 = vmatprep.subr.mxu0 %v330
    %2997 = vmatpush1.msra.mxu0 %v329
    %2998 = vmatprep.subr.mxu0 %v346
    %2999 = vmatpush1.msra.mxu0 %v345
    %3000 = vmatprep.subr.mxu0 %v362
    %3001 = vmatpush1.msra.mxu0 %v361
    %3002 = vmatprep.subr.mxu0 %v378
    %3003 = vmatpush1.msra.mxu0 %v377
    %3004 = vmatprep.subr.mxu0 %v394
    %3005 = vmatpush1.msra.mxu0 %v393
    %3006 = vmatprep.subr.mxu0 %v410
    %3007 = vmatpush1.msra.mxu0 %v409
    %3008 = vmatprep.subr.mxu0 %v426
    %3009 = vmatpush1.msra.mxu0 %v425
    %3010 = vmatprep.subr.mxu0 %v442
    %3011 = vmatpush1.msra.mxu0 %v441
    %3012 = vmatprep.subr.mxu0 %v458
    %3013 = vmatpush1.msra.mxu0 %v457
    %3014 = vmatprep.subr.mxu0 %v474
    %3015 = vmatpush1.msra.mxu0 %v473
    %3016 = vmatprep.subr.mxu0 %v490
    %3017 = vmatpush1.msra.mxu0 %v489
    %3018 = vmatprep.subr.mxu0 %v506
    %3019 = vmatpush1.msra.mxu0 %v505
    %3020 = vmatprep.subr.mxu0 %v522
    %3021 = vmatpush1.msra.mxu0 %v521
    %3022 = vmatprep.subr.mxu0 %v538
    %3023 = vmatpush1.msra.mxu0 %v537
    %3024 = vmatprep.mubr.f32.mxu0 %v1666
    %3025 = vmatmul.mubr.f32.gmra.mrb[0].mxu0 %v1658
    %v3026 = vpop.f32.mrb[0].mxu0
    %v3027 = vadd.f32 %v1620, %v3026
    %v3028 = vpop.f32.mrb[0].mxu0
    %v3029 = vadd.f32 %v1624, %v3028
    %3030 = vdwg.mxu0
    %3031 = vmatprep.subr.mxu0 %v554
    %3032 = vmatpush1.msra.mxu0 %v553
    %3033 = vmatprep.subr.mxu0 %v570
    %3034 = vmatpush1.msra.mxu0 %v569
    %3035 = vmatprep.subr.mxu0 %v586
    %3036 = vmatpush1.msra.mxu0 %v585
    %3037 = vmatprep.subr.mxu0 %v602
    %3038 = vmatpush1.msra.mxu0 %v601
    %3039 = vmatprep.subr.mxu0 %v618
    %3040 = vmatpush1.msra.mxu0 %v617
    %3041 = vmatprep.subr.mxu0 %v634
    %3042 = vmatpush1.msra.mxu0 %v633
    %3043 = vmatprep.subr.mxu0 %v650
    %3044 = vmatpush1.msra.mxu0 %v649
    %3045 = vmatprep.subr.mxu0 %v666
    %3046 = vmatpush1.msra.mxu0 %v665
    %3047 = vmatprep.subr.mxu0 %v682
    %3048 = vmatpush1.msra.mxu0 %v681
    %3049 = vmatprep.subr.mxu0 %v698
    %3050 = vmatpush1.msra.mxu0 %v697
    %3051 = vmatprep.subr.mxu0 %v714
    %3052 = vmatpush1.msra.mxu0 %v713
    %3053 = vmatprep.subr.mxu0 %v730
    %3054 = vmatpush1.msra.mxu0 %v729
    %3055 = vmatprep.subr.mxu0 %v746
    %3056 = vmatpush1.msra.mxu0 %v745
    %3057 = vmatprep.subr.mxu0 %v762
    %3058 = vmatpush1.msra.mxu0 %v761
    %3059 = vmatprep.subr.mxu0 %v778
    %3060 = vmatpush1.msra.mxu0 %v777
    %3061 = vmatprep.subr.mxu0 %v794
    %3062 = vmatpush1.msra.mxu0 %v793
    %3063 = vmatprep.subr.mxu0 %v810
    %3064 = vmatpush1.msra.mxu0 %v809
    %3065 = vmatprep.subr.mxu0 %v826
    %3066 = vmatpush1.msra.mxu0 %v825
    %3067 = vmatprep.subr.mxu0 %v842
    %3068 = vmatpush1.msra.mxu0 %v841
    %3069 = vmatprep.subr.mxu0 %v858
    %3070 = vmatpush1.msra.mxu0 %v857
    %3071 = vmatprep.subr.mxu0 %v874
    %3072 = vmatpush1.msra.mxu0 %v873
    %3073 = vmatprep.subr.mxu0 %v890
    %3074 = vmatpush1.msra.mxu0 %v889
    %3075 = vmatprep.subr.mxu0 %v906
    %3076 = vmatpush1.msra.mxu0 %v905
    %3077 = vmatprep.subr.mxu0 %v922
    %3078 = vmatpush1.msra.mxu0 %v921
    %3079 = vmatprep.subr.mxu0 %v938
    %3080 = vmatpush1.msra.mxu0 %v937
    %3081 = vmatprep.subr.mxu0 %v954
    %3082 = vmatpush1.msra.mxu0 %v953
    %3083 = vmatprep.subr.mxu0 %v970
    %3084 = vmatpush1.msra.mxu0 %v969
    %3085 = vmatprep.subr.mxu0 %v986
    %3086 = vmatpush1.msra.mxu0 %v985
    %3087 = vmatprep.subr.mxu0 %v1002
    %3088 = vmatpush1.msra.mxu0 %v1001
    %3089 = vmatprep.subr.mxu0 %v1018
    %3090 = vmatpush1.msra.mxu0 %v1017
    %3091 = vmatprep.subr.mxu0 %v1034
    %3092 = vmatpush1.msra.mxu0 %v1033
    %3093 = vmatprep.subr.mxu0 %v1050
    %3094 = vmatpush1.msra.mxu0 %v1049
    %3095 = vmatprep.mubr.f32.mxu0 %v1667
    %3096 = vmatmul.mubr.f32.gmra.mrb[0].mxu0 %v1665
    %v3097 = vpop.f32.mrb[0].mxu0
    %v3098 = vadd.f32 %v3027, %v3097
    %v3099 = vpop.f32.mrb[0].mxu0
    %v3100 = vadd.f32 %v3029, %v3099
    %3101 = vdwg.mxu0
    %3102 = vmatprep.subr.mxu0 %v1066
    %3103 = vmatpush1.msra.mxu0 %v1065
    %3104 = vmatprep.subr.mxu0 %v1082
    %3105 = vmatpush1.msra.mxu0 %v1081
    %3106 = vmatprep.subr.mxu0 %v1098
    %3107 = vmatpush1.msra.mxu0 %v1097
    %3108 = vmatprep.subr.mxu0 %v1114
    %3109 = vmatpush1.msra.mxu0 %v1113
    %3110 = vmatprep.subr.mxu0 %v1130
    %3111 = vmatpush1.msra.mxu0 %v1129
    %3112 = vmatprep.subr.mxu0 %v1146
    %3113 = vmatpush1.msra.mxu0 %v1145
    %3114 = vmatprep.subr.mxu0 %v1162
    %3115 = vmatpush1.msra.mxu0 %v1161
    %3116 = vmatprep.subr.mxu0 %v1178
    %3117 = vmatpush1.msra.mxu0 %v1177
    %3118 = vmatprep.subr.mxu0 %v1194
    %3119 = vmatpush1.msra.mxu0 %v1193
    %3120 = vmatprep.subr.mxu0 %v1210
    %3121 = vmatpush1.msra.mxu0 %v1209
    %3122 = vmatprep.subr.mxu0 %v1226
    %3123 = vmatpush1.msra.mxu0 %v1225
    %3124 = vmatprep.subr.mxu0 %v1242
    %3125 = vmatpush1.msra.mxu0 %v1241
    %3126 = vmatprep.subr.mxu0 %v1258
    %3127 = vmatpush1.msra.mxu0 %v1257
    %3128 = vmatprep.subr.mxu0 %v1274
    %3129 = vmatpush1.msra.mxu0 %v1273
    %3130 = vmatprep.subr.mxu0 %v1290
    %3131 = vmatpush1.msra.mxu0 %v1289
    %3132 = vmatprep.subr.mxu0 %v1306
    %3133 = vmatpush1.msra.mxu0 %v1305
    %3134 = vmatprep.subr.mxu0 %v1322
    %3135 = vmatpush1.msra.mxu0 %v1321
    %3136 = vmatprep.subr.mxu0 %v1338
    %3137 = vmatpush1.msra.mxu0 %v1337
    %3138 = vmatprep.subr.mxu0 %v1354
    %3139 = vmatpush1.msra.mxu0 %v1353
    %3140 = vmatprep.subr.mxu0 %v1370
    %3141 = vmatpush1.msra.mxu0 %v1369
    %3142 = vmatprep.subr.mxu0 %v1386
    %3143 = vmatpush1.msra.mxu0 %v1385
    %3144 = vmatprep.subr.mxu0 %v1402
    %3145 = vmatpush1.msra.mxu0 %v1401
    %3146 = vmatprep.subr.mxu0 %v1418
    %3147 = vmatpush1.msra.mxu0 %v1417
    %3148 = vmatprep.subr.mxu0 %v1434
    %3149 = vmatpush1.msra.mxu0 %v1433
    %3150 = vmatprep.subr.mxu0 %v1450
    %3151 = vmatpush1.msra.mxu0 %v1449
    %3152 = vmatprep.subr.mxu0 %v1466
    %3153 = vmatpush1.msra.mxu0 %v1465
    %3154 = vmatprep.subr.mxu0 %v1482
    %3155 = vmatpush1.msra.mxu0 %v1481
    %3156 = vmatprep.subr.mxu0 %v1498
    %3157 = vmatpush1.msra.mxu0 %v1497
    %3158 = vmatprep.subr.mxu0 %v1514
    %3159 = vmatpush1.msra.mxu0 %v1513
    %3160 = vmatprep.subr.mxu0 %v1530
    %3161 = vmatpush1.msra.mxu0 %v1529
    %3162 = vmatprep.subr.mxu0 %v1546
    %3163 = vmatpush1.msra.mxu0 %v1545
    %3164 = vmatprep.subr.mxu0 %v1562
    %3165 = vmatpush1.msra.mxu0 %v1561
    %3166 = vmatprep.mubr.f32.mxu0 %v1675
    %3167 = vmatmul.mubr.f32.gmra.mrb[0].mxu0 %v1674
    %v3168 = vpop.f32.mrb[0].mxu0
    %v3169 = vadd.f32 %v3098, %v3168
    %v3170 = vpop.f32.mrb[0].mxu0
    %v3171 = vadd.f32 %v3100, %v3170
    %3172 = vdwg.mxu0
    %3173 = vmatprep.subr.mxu0 %v44
    %3174 = vmatpush1.msra.mxu0 %v43
    %3175 = vmatprep.subr.mxu0 %v60
    %3176 = vmatpush1.msra.mxu0 %v59
    %3177 = vmatprep.subr.mxu0 %v76
    %3178 = vmatpush1.msra.mxu0 %v75
    %3179 = vmatprep.subr.mxu0 %v92
    %3180 = vmatpush1.msra.mxu0 %v91
    %3181 = vmatprep.subr.mxu0 %v108
    %3182 = vmatpush1.msra.mxu0 %v107
    %3183 = vmatprep.subr.mxu0 %v124
    %3184 = vmatpush1.msra.mxu0 %v123
    %3185 = vmatprep.subr.mxu0 %v140
    %3186 = vmatpush1.msra.mxu0 %v139
    %3187 = vmatprep.subr.mxu0 %v156
    %3188 = vmatpush1.msra.mxu0 %v155
    %3189 = vmatprep.subr.mxu0 %v172
    %3190 = vmatpush1.msra.mxu0 %v171
    %3191 = vmatprep.subr.mxu0 %v188
    %3192 = vmatpush1.msra.mxu0 %v187
    %3193 = vmatprep.subr.mxu0 %v204
    %3194 = vmatpush1.msra.mxu0 %v203
    %3195 = vmatprep.subr.mxu0 %v220
    %3196 = vmatpush1.msra.mxu0 %v219
    %3197 = vmatprep.subr.mxu0 %v236
    %3198 = vmatpush1.msra.mxu0 %v235
    %3199 = vmatprep.subr.mxu0 %v252
    %3200 = vmatpush1.msra.mxu0 %v251
    %3201 = vmatprep.subr.mxu0 %v268
    %3202 = vmatpush1.msra.mxu0 %v267
    %3203 = vmatprep.subr.mxu0 %v284
    %3204 = vmatpush1.msra.mxu0 %v283
    %3205 = vmatprep.subr.mxu0 %v300
    %3206 = vmatpush1.msra.mxu0 %v299
    %3207 = vmatprep.subr.mxu0 %v316
    %3208 = vmatpush1.msra.mxu0 %v315
    %3209 = vmatprep.subr.mxu0 %v332
    %3210 = vmatpush1.msra.mxu0 %v331
    %3211 = vmatprep.subr.mxu0 %v348
    %3212 = vmatpush1.msra.mxu0 %v347
    %3213 = vmatprep.subr.mxu0 %v364
    %3214 = vmatpush1.msra.mxu0 %v363
    %3215 = vmatprep.subr.mxu0 %v380
    %3216 = vmatpush1.msra.mxu0 %v379
    %3217 = vmatprep.subr.mxu0 %v396
    %3218 = vmatpush1.msra.mxu0 %v395
    %3219 = vmatprep.subr.mxu0 %v412
    %3220 = vmatpush1.msra.mxu0 %v411
    %3221 = vmatprep.subr.mxu0 %v428
    %3222 = vmatpush1.msra.mxu0 %v427
    %3223 = vmatprep.subr.mxu0 %v444
    %3224 = vmatpush1.msra.mxu0 %v443
    %3225 = vmatprep.subr.mxu0 %v460
    %3226 = vmatpush1.msra.mxu0 %v459
    %3227 = vmatprep.subr.mxu0 %v476
    %3228 = vmatpush1.msra.mxu0 %v475
    %3229 = vmatprep.subr.mxu0 %v492
    %3230 = vmatpush1.msra.mxu0 %v491
    %3231 = vmatprep.subr.mxu0 %v508
    %3232 = vmatpush1.msra.mxu0 %v507
    %3233 = vmatprep.subr.mxu0 %v524
    %3234 = vmatpush1.msra.mxu0 %v523
    %3235 = vmatprep.subr.mxu0 %v540
    %3236 = vmatpush1.msra.mxu0 %v539
    %3237 = vmatprep.mubr.f32.mxu0 %v1666
    %3238 = vmatmul.mubr.f32.gmra.mrb[0].mxu0 %v1658
    %v3239 = vpop.f32.mrb[0].mxu0
    %v3240 = vadd.f32 %v1628, %v3239
    %v3241 = vpop.f32.mrb[0].mxu0
    %v3242 = vadd.f32 %v1632, %v3241
    %3243 = vdwg.mxu0
    %3244 = vmatprep.subr.mxu0 %v556
    %3245 = vmatpush1.msra.mxu0 %v555
    %3246 = vmatprep.subr.mxu0 %v572
    %3247 = vmatpush1.msra.mxu0 %v571
    %3248 = vmatprep.subr.mxu0 %v588
    %3249 = vmatpush1.msra.mxu0 %v587
    %3250 = vmatprep.subr.mxu0 %v604
    %3251 = vmatpush1.msra.mxu0 %v603
    %3252 = vmatprep.subr.mxu0 %v620
    %3253 = vmatpush1.msra.mxu0 %v619
    %3254 = vmatprep.subr.mxu0 %v636
    %3255 = vmatpush1.msra.mxu0 %v635
    %3256 = vmatprep.subr.mxu0 %v652
    %3257 = vmatpush1.msra.mxu0 %v651
    %3258 = vmatprep.subr.mxu0 %v668
    %3259 = vmatpush1.msra.mxu0 %v667
    %3260 = vmatprep.subr.mxu0 %v684
    %3261 = vmatpush1.msra.mxu0 %v683
    %3262 = vmatprep.subr.mxu0 %v700
    %3263 = vmatpush1.msra.mxu0 %v699
    %3264 = vmatprep.subr.mxu0 %v716
    %3265 = vmatpush1.msra.mxu0 %v715
    %3266 = vmatprep.subr.mxu0 %v732
    %3267 = vmatpush1.msra.mxu0 %v731
    %3268 = vmatprep.subr.mxu0 %v748
    %3269 = vmatpush1.msra.mxu0 %v747
    %3270 = vmatprep.subr.mxu0 %v764
    %3271 = vmatpush1.msra.mxu0 %v763
    %3272 = vmatprep.subr.mxu0 %v780
    %3273 = vmatpush1.msra.mxu0 %v779
    %3274 = vmatprep.subr.mxu0 %v796
    %3275 = vmatpush1.msra.mxu0 %v795
    %3276 = vmatprep.subr.mxu0 %v812
    %3277 = vmatpush1.msra.mxu0 %v811
    %3278 = vmatprep.subr.mxu0 %v828
    %3279 = vmatpush1.msra.mxu0 %v827
    %3280 = vmatprep.subr.mxu0 %v844
    %3281 = vmatpush1.msra.mxu0 %v843
    %3282 = vmatprep.subr.mxu0 %v860
    %3283 = vmatpush1.msra.mxu0 %v859
    %3284 = vmatprep.subr.mxu0 %v876
    %3285 = vmatpush1.msra.mxu0 %v875
    %3286 = vmatprep.subr.mxu0 %v892
    %3287 = vmatpush1.msra.mxu0 %v891
    %3288 = vmatprep.subr.mxu0 %v908
    %3289 = vmatpush1.msra.mxu0 %v907
    %3290 = vmatprep.subr.mxu0 %v924
    %3291 = vmatpush1.msra.mxu0 %v923
    %3292 = vmatprep.subr.mxu0 %v940
    %3293 = vmatpush1.msra.mxu0 %v939
    %3294 = vmatprep.subr.mxu0 %v956
    %3295 = vmatpush1.msra.mxu0 %v955
    %3296 = vmatprep.subr.mxu0 %v972
    %3297 = vmatpush1.msra.mxu0 %v971
    %3298 = vmatprep.subr.mxu0 %v988
    %3299 = vmatpush1.msra.mxu0 %v987
    %3300 = vmatprep.subr.mxu0 %v1004
    %3301 = vmatpush1.msra.mxu0 %v1003
    %3302 = vmatprep.subr.mxu0 %v1020
    %3303 = vmatpush1.msra.mxu0 %v1019
    %3304 = vmatprep.subr.mxu0 %v1036
    %3305 = vmatpush1.msra.mxu0 %v1035
    %3306 = vmatprep.subr.mxu0 %v1052
    %3307 = vmatpush1.msra.mxu0 %v1051
    %3308 = vmatprep.mubr.f32.mxu0 %v1667
    %3309 = vmatmul.mubr.f32.gmra.mrb[0].mxu0 %v1665
    %v3310 = vpop.f32.mrb[0].mxu0
    %v3311 = vadd.f32 %v3240, %v3310
    %v3312 = vpop.f32.mrb[0].mxu0
    %v3313 = vadd.f32 %v3242, %v3312
    %3314 = vdwg.mxu0
    %3315 = vmatprep.subr.mxu0 %v1068
    %3316 = vmatpush1.msra.mxu0 %v1067
    %3317 = vmatprep.subr.mxu0 %v1084
    %3318 = vmatpush1.msra.mxu0 %v1083
    %3319 = vmatprep.subr.mxu0 %v1100
    %3320 = vmatpush1.msra.mxu0 %v1099
    %3321 = vmatprep.subr.mxu0 %v1116
    %3322 = vmatpush1.msra.mxu0 %v1115
    %3323 = vmatprep.subr.mxu0 %v1132
    %3324 = vmatpush1.msra.mxu0 %v1131
    %3325 = vmatprep.subr.mxu0 %v1148
    %3326 = vmatpush1.msra.mxu0 %v1147
    %3327 = vmatprep.subr.mxu0 %v1164
    %3328 = vmatpush1.msra.mxu0 %v1163
    %3329 = vmatprep.subr.mxu0 %v1180
    %3330 = vmatpush1.msra.mxu0 %v1179
    %3331 = vmatprep.subr.mxu0 %v1196
    %3332 = vmatpush1.msra.mxu0 %v1195
    %3333 = vmatprep.subr.mxu0 %v1212
    %3334 = vmatpush1.msra.mxu0 %v1211
    %3335 = vmatprep.subr.mxu0 %v1228
    %3336 = vmatpush1.msra.mxu0 %v1227
    %3337 = vmatprep.subr.mxu0 %v1244
    %3338 = vmatpush1.msra.mxu0 %v1243
    %3339 = vmatprep.subr.mxu0 %v1260
    %3340 = vmatpush1.msra.mxu0 %v1259
    %3341 = vmatprep.subr.mxu0 %v1276
    %3342 = vmatpush1.msra.mxu0 %v1275
    %3343 = vmatprep.subr.mxu0 %v1292
    %3344 = vmatpush1.msra.mxu0 %v1291
    %3345 = vmatprep.subr.mxu0 %v1308
    %3346 = vmatpush1.msra.mxu0 %v1307
    %3347 = vmatprep.subr.mxu0 %v1324
    %3348 = vmatpush1.msra.mxu0 %v1323
    %3349 = vmatprep.subr.mxu0 %v1340
    %3350 = vmatpush1.msra.mxu0 %v1339
    %3351 = vmatprep.subr.mxu0 %v1356
    %3352 = vmatpush1.msra.mxu0 %v1355
    %3353 = vmatprep.subr.mxu0 %v1372
    %3354 = vmatpush1.msra.mxu0 %v1371
    %3355 = vmatprep.subr.mxu0 %v1388
    %3356 = vmatpush1.msra.mxu0 %v1387
    %3357 = vmatprep.subr.mxu0 %v1404
    %3358 = vmatpush1.msra.mxu0 %v1403
    %3359 = vmatprep.subr.mxu0 %v1420
    %3360 = vmatpush1.msra.mxu0 %v1419
    %3361 = vmatprep.subr.mxu0 %v1436
    %3362 = vmatpush1.msra.mxu0 %v1435
    %3363 = vmatprep.subr.mxu0 %v1452
    %3364 = vmatpush1.msra.mxu0 %v1451
    %3365 = vmatprep.subr.mxu0 %v1468
    %3366 = vmatpush1.msra.mxu0 %v1467
    %3367 = vmatprep.subr.mxu0 %v1484
    %3368 = vmatpush1.msra.mxu0 %v1483
    %3369 = vmatprep.subr.mxu0 %v1500
    %3370 = vmatpush1.msra.mxu0 %v1499
    %3371 = vmatprep.subr.mxu0 %v1516
    %3372 = vmatpush1.msra.mxu0 %v1515
    %3373 = vmatprep.subr.mxu0 %v1532
    %3374 = vmatpush1.msra.mxu0 %v1531
    %3375 = vmatprep.subr.mxu0 %v1548
    %3376 = vmatpush1.msra.mxu0 %v1547
    %3377 = vmatprep.subr.mxu0 %v1564
    %3378 = vmatpush1.msra.mxu0 %v1563
    %3379 = vmatprep.mubr.f32.mxu0 %v1675
    %3380 = vmatmul.mubr.f32.gmra.mrb[0].mxu0 %v1674
    %v3381 = vpop.f32.mrb[0].mxu0
    %v3382 = vadd.f32 %v3311, %v3381
    %v3383 = vpop.f32.mrb[0].mxu0
    %v3384 = vadd.f32 %v3313, %v3383
    %3385 = vdwg.mxu0
    %v3386 = vmax.f32 %v1891, 0.0
    %v3387 = vmax.f32 %v1893, 0.0
    %v3388 = vmax.f32 %v2104, 0.0
    %v3389 = vmax.f32 %v2106, 0.0
    %v3390 = vmax.f32 %v2317, 0.0
    %v3391 = vmax.f32 %v2319, 0.0
    %v3392 = vmax.f32 %v2530, 0.0
    %v3393 = vmax.f32 %v2532, 0.0
    %v3394 = vmax.f32 %v2743, 0.0
    %v3395 = vmax.f32 %v2745, 0.0
    %v3396 = vmax.f32 %v2956, 0.0
    %v3397 = vmax.f32 %v2958, 0.0
    %v3398 = vmax.f32 %v3169, 0.0
    %v3399 = vmax.f32 %v3171, 0.0
    %v3400 = vmax.f32 %v3382, 0.0
    %v3401 = vmax.f32 %v3384, 0.0
    %v3402 = vld [vmem:[%s3] sm:$0xff]
    %v3403 = vld [vmem:[%s3 + $0x8] sm:$0xff]
    %v3404 = vld [vmem:[%s3 + $0x10] sm:$0xff]
    %v3405 = vld [vmem:[%s3 + $0x18] sm:$0xff]
    %v3406 = vld [vmem:[%s3 + $0x20] sm:$0xff]
    %v3407 = vld [vmem:[%s3 + $0x28] sm:$0xff]
    %v3408 = vld [vmem:[%s3 + $0x30] sm:$0xff]
    %v3409 = vld [vmem:[%s3 + $0x38] sm:$0xff]
    %v3410 = vld [vmem:[%s3 + $0x40] sm:$0xff]
    %v3411 = vld [vmem:[%s3 + $0x48] sm:$0xff]
    %v3412 = vld [vmem:[%s3 + $0x50] sm:$0xff]
    %v3413 = vld [vmem:[%s3 + $0x58] sm:$0xff]
    %v3414 = vld [vmem:[%s3 + $0x60] sm:$0xff]
    %v3415 = vld [vmem:[%s3 + $0x68] sm:$0xff]
    %v3416 = vld [vmem:[%s3 + $0x70] sm:$0xff]
    %v3417 = vld [vmem:[%s3 + $0x78] sm:$0xff]
    %v3418 = vld [vmem:[%s3 + $0x80] sm:$0xff]
    %v3419 = vld [vmem:[%s3 + $0x88] sm:$0xff]
    %v3420 = vld [vmem:[%s3 + $0x90] sm:$0xff]
    %v3421 = vld [vmem:[%s3 + $0x98] sm:$0xff]
    %v3422 = vld [vmem:[%s3 + $0xa0] sm:$0xff]
    %v3423 = vld [vmem:[%s3 + $0xa8] sm:$0xff]
    %v3424 = vld [vmem:[%s3 + $0xb0] sm:$0xff]
    %v3425 = vld [vmem:[%s3 + $0xb8] sm:$0xff]
    %v3426 = vld [vmem:[%s3 + $0xc0] sm:$0xff]
    %v3427 = vld [vmem:[%s3 + $0xc8] sm:$0xff]
    %v3428 = vld [vmem:[%s3 + $0xd0] sm:$0xff]
    %v3429 = vld [vmem:[%s3 + $0xd8] sm:$0xff]
    %v3430 = vld [vmem:[%s3 + $0xe0] sm:$0xff]
    %v3431 = vld [vmem:[%s3 + $0xe8] sm:$0xff]
    %v3432 = vld [vmem:[%s3 + $0xf0] sm:$0xff]
    %v3433 = vld [vmem:[%s3 + $0xf8] sm:$0xff]
    %v3434 = vld [vmem:[%s3 + $0x100] sm:$0xff]
    %v3435 = vld [vmem:[%s3 + $0x108] sm:$0xff]
    %v3436 = vld [vmem:[%s3 + $0x110] sm:$0xff]
    %v3437 = vld [vmem:[%s3 + $0x118] sm:$0xff]
    %v3438 = vld [vmem:[%s3 + $0x120] sm:$0xff]
    %v3439 = vld [vmem:[%s3 + $0x128] sm:$0xff]
    %v3440 = vld [vmem:[%s3 + $0x130] sm:$0xff]
    %v3441 = vld [vmem:[%s3 + $0x138] sm:$0xff]
    %v3442 = vld [vmem:[%s3 + $0x140] sm:$0xff]
    %v3443 = vld [vmem:[%s3 + $0x148] sm:$0xff]
    %v3444 = vld [vmem:[%s3 + $0x150] sm:$0xff]
    %v3445 = vld [vmem:[%s3 + $0x158] sm:$0xff]
    %v3446 = vld [vmem:[%s3 + $0x160] sm:$0xff]
    %v3447 = vld [vmem:[%s3 + $0x168] sm:$0xff]
    %v3448 = vld [vmem:[%s3 + $0x170] sm:$0xff]
    %v3449 = vld [vmem:[%s3 + $0x178] sm:$0xff]
    %v3450 = vld [vmem:[%s3 + $0x180] sm:$0xff]
    %v3451 = vld [vmem:[%s3 + $0x188] sm:$0xff]
    %v3452 = vld [vmem:[%s3 + $0x190] sm:$0xff]
    %v3453 = vld [vmem:[%s3 + $0x198] sm:$0xff]
    %v3454 = vld [vmem:[%s3 + $0x1a0] sm:$0xff]
    %v3455 = vld [vmem:[%s3 + $0x1a8] sm:$0xff]
    %v3456 = vld [vmem:[%s3 + $0x1b0] sm:$0xff]
    %v3457 = vld [vmem:[%s3 + $0x1b8] sm:$0xff]
    %v3458 = vld [vmem:[%s3 + $0x1c0] sm:$0xff]
    %v3459 = vld [vmem:[%s3 + $0x1c8] sm:$0xff]
    %v3460 = vld [vmem:[%s3 + $0x1d0] sm:$0xff]
    %v3461 = vld [vmem:[%s3 + $0x1d8] sm:$0xff]
    %v3462 = vld [vmem:[%s3 + $0x1e0] sm:$0xff]
    %v3463 = vld [vmem:[%s3 + $0x1e8] sm:$0xff]
    %v3464 = vld [vmem:[%s3 + $0x1f0] sm:$0xff]
    %v3465 = vld [vmem:[%s3 + $0x1f8] sm:$0xff]
    %v3466 = vld [vmem:[%s3 + $0x200] sm:$0xff]
    %v3467 = vld [vmem:[%s3 + $0x208] sm:$0xff]
    %v3468 = vld [vmem:[%s3 + $0x210] sm:$0xff]
    %v3469 = vld [vmem:[%s3 + $0x218] sm:$0xff]
    %v3470 = vld [vmem:[%s3 + $0x220] sm:$0xff]
    %v3471 = vld [vmem:[%s3 + $0x228] sm:$0xff]
    %v3472 = vld [vmem:[%s3 + $0x230] sm:$0xff]
    %v3473 = vld [vmem:[%s3 + $0x238] sm:$0xff]
    %v3474 = vld [vmem:[%s3 + $0x240] sm:$0xff]
    %v3475 = vld [vmem:[%s3 + $0x248] sm:$0xff]
    %v3476 = vld [vmem:[%s3 + $0x250] sm:$0xff]
    %v3477 = vld [vmem:[%s3 + $0x258] sm:$0xff]
    %v3478 = vld [vmem:[%s3 + $0x260] sm:$0xff]
    %v3479 = vld [vmem:[%s3 + $0x268] sm:$0xff]
    %v3480 = vld [vmem:[%s3 + $0x270] sm:$0xff]
    %v3481 = vld [vmem:[%s3 + $0x278] sm:$0xff]
    %v3482 = vld [vmem:[%s3 + $0x280] sm:$0xff]
    %v3483 = vld [vmem:[%s3 + $0x288] sm:$0xff]
    %v3484 = vld [vmem:[%s3 + $0x290] sm:$0xff]
    %v3485 = vld [vmem:[%s3 + $0x298] sm:$0xff]
    %v3486 = vld [vmem:[%s3 + $0x2a0] sm:$0xff]
    %v3487 = vld [vmem:[%s3 + $0x2a8] sm:$0xff]
    %v3488 = vld [vmem:[%s3 + $0x2b0] sm:$0xff]
    %v3489 = vld [vmem:[%s3 + $0x2b8] sm:$0xff]
    %v3490 = vld [vmem:[%s3 + $0x2c0] sm:$0xff]
    %v3491 = vld [vmem:[%s3 + $0x2c8] sm:$0xff]
    %v3492 = vld [vmem:[%s3 + $0x2d0] sm:$0xff]
    %v3493 = vld [vmem:[%s3 + $0x2d8] sm:$0xff]
    %v3494 = vld [vmem:[%s3 + $0x2e0] sm:$0xff]
    %v3495 = vld [vmem:[%s3 + $0x2e8] sm:$0xff]
    %v3496 = vld [vmem:[%s3 + $0x2f0] sm:$0xff]
    %v3497 = vld [vmem:[%s3 + $0x2f8] sm:$0xff]
    %v3498 = vld [vmem:[%s3 + $0x300] sm:$0xff]
    %v3499 = vld [vmem:[%s3 + $0x308] sm:$0xff]
    %v3500 = vld [vmem:[%s3 + $0x310] sm:$0xff]
    %v3501 = vld [vmem:[%s3 + $0x318] sm:$0xff]
    %v3502 = vld [vmem:[%s3 + $0x320] sm:$0xff]
    %v3503 = vld [vmem:[%s3 + $0x328] sm:$0xff]
    %v3504 = vld [vmem:[%s3 + $0x330] sm:$0xff]
    %v3505 = vld [vmem:[%s3 + $0x338] sm:$0xff]
    %v3506 = vld [vmem:[%s3 + $0x340] sm:$0xff]
    %v3507 = vld [vmem:[%s3 + $0x348] sm:$0xff]
    %v3508 = vld [vmem:[%s3 + $0x350] sm:$0xff]
    %v3509 = vld [vmem:[%s3 + $0x358] sm:$0xff]
    %v3510 = vld [vmem:[%s3 + $0x360] sm:$0xff]
    %v3511 = vld [vmem:[%s3 + $0x368] sm:$0xff]
    %v3512 = vld [vmem:[%s3 + $0x370] sm:$0xff]
    %v3513 = vld [vmem:[%s3 + $0x378] sm:$0xff]
    %v3514 = vld [vmem:[%s3 + $0x380] sm:$0xff]
    %v3515 = vld [vmem:[%s3 + $0x388] sm:$0xff]
    %v3516 = vld [vmem:[%s3 + $0x390] sm:$0xff]
    %v3517 = vld [vmem:[%s3 + $0x398] sm:$0xff]
    %v3518 = vld [vmem:[%s3 + $0x3a0] sm:$0xff]
    %v3519 = vld [vmem:[%s3 + $0x3a8] sm:$0xff]
    %v3520 = vld [vmem:[%s3 + $0x3b0] sm:$0xff]
    %v3521 = vld [vmem:[%s3 + $0x3b8] sm:$0xff]
    %v3522 = vld [vmem:[%s3 + $0x3c0] sm:$0xff]
    %v3523 = vld [vmem:[%s3 + $0x3c8] sm:$0xff]
    %v3524 = vld [vmem:[%s3 + $0x3d0] sm:$0xff]
    %v3525 = vld [vmem:[%s3 + $0x3d8] sm:$0xff]
    %v3526 = vld [vmem:[%s3 + $0x3e0] sm:$0xff]
    %v3527 = vld [vmem:[%s3 + $0x3e8] sm:$0xff]
    %v3528 = vld [vmem:[%s3 + $0x3f0] sm:$0xff]
    %v3529 = vld [vmem:[%s3 + $0x3f8] sm:$0xff]
    %v3530 = vld [vmem:[%s3 + $0x400] sm:$0xff]
    %v3531 = vld [vmem:[%s3 + $0x408] sm:$0xff]
    %v3532 = vld [vmem:[%s3 + $0x410] sm:$0xff]
    %v3533 = vld [vmem:[%s3 + $0x418] sm:$0xff]
    %v3534 = vld [vmem:[%s3 + $0x420] sm:$0xff]
    %v3535 = vld [vmem:[%s3 + $0x428] sm:$0xff]
    %v3536 = vld [vmem:[%s3 + $0x430] sm:$0xff]
    %v3537 = vld [vmem:[%s3 + $0x438] sm:$0xff]
    %v3538 = vld [vmem:[%s3 + $0x440] sm:$0xff]
    %v3539 = vld [vmem:[%s3 + $0x448] sm:$0xff]
    %v3540 = vld [vmem:[%s3 + $0x450] sm:$0xff]
    %v3541 = vld [vmem:[%s3 + $0x458] sm:$0xff]
    %v3542 = vld [vmem:[%s3 + $0x460] sm:$0xff]
    %v3543 = vld [vmem:[%s3 + $0x468] sm:$0xff]
    %v3544 = vld [vmem:[%s3 + $0x470] sm:$0xff]
    %v3545 = vld [vmem:[%s3 + $0x478] sm:$0xff]
    %v3546 = vld [vmem:[%s3 + $0x480] sm:$0xff]
    %v3547 = vld [vmem:[%s3 + $0x488] sm:$0xff]
    %v3548 = vld [vmem:[%s3 + $0x490] sm:$0xff]
    %v3549 = vld [vmem:[%s3 + $0x498] sm:$0xff]
    %v3550 = vld [vmem:[%s3 + $0x4a0] sm:$0xff]
    %v3551 = vld [vmem:[%s3 + $0x4a8] sm:$0xff]
    %v3552 = vld [vmem:[%s3 + $0x4b0] sm:$0xff]
    %v3553 = vld [vmem:[%s3 + $0x4b8] sm:$0xff]
    %v3554 = vld [vmem:[%s3 + $0x4c0] sm:$0xff]
    %v3555 = vld [vmem:[%s3 + $0x4c8] sm:$0xff]
    %v3556 = vld [vmem:[%s3 + $0x4d0] sm:$0xff]
    %v3557 = vld [vmem:[%s3 + $0x4d8] sm:$0xff]
    %v3558 = vld [vmem:[%s3 + $0x4e0] sm:$0xff]
    %v3559 = vld [vmem:[%s3 + $0x4e8] sm:$0xff]
    %v3560 = vld [vmem:[%s3 + $0x4f0] sm:$0xff]
    %v3561 = vld [vmem:[%s3 + $0x4f8] sm:$0xff]
    %v3562 = vld [vmem:[%s3 + $0x500] sm:$0xff]
    %v3563 = vld [vmem:[%s3 + $0x508] sm:$0xff]
    %v3564 = vld [vmem:[%s3 + $0x510] sm:$0xff]
    %v3565 = vld [vmem:[%s3 + $0x518] sm:$0xff]
    %v3566 = vld [vmem:[%s3 + $0x520] sm:$0xff]
    %v3567 = vld [vmem:[%s3 + $0x528] sm:$0xff]
    %v3568 = vld [vmem:[%s3 + $0x530] sm:$0xff]
    %v3569 = vld [vmem:[%s3 + $0x538] sm:$0xff]
    %v3570 = vld [vmem:[%s3 + $0x540] sm:$0xff]
    %v3571 = vld [vmem:[%s3 + $0x548] sm:$0xff]
    %v3572 = vld [vmem:[%s3 + $0x550] sm:$0xff]
    %v3573 = vld [vmem:[%s3 + $0x558] sm:$0xff]
    %v3574 = vld [vmem:[%s3 + $0x560] sm:$0xff]
    %v3575 = vld [vmem:[%s3 + $0x568] sm:$0xff]
    %v3576 = vld [vmem:[%s3 + $0x570] sm:$0xff]
    %v3577 = vld [vmem:[%s3 + $0x578] sm:$0xff]
    %v3578 = vld [vmem:[%s3 + $0x580] sm:$0xff]
    %v3579 = vld [vmem:[%s3 + $0x588] sm:$0xff]
    %v3580 = vld [vmem:[%s3 + $0x590] sm:$0xff]
    %v3581 = vld [vmem:[%s3 + $0x598] sm:$0xff]
    %v3582 = vld [vmem:[%s3 + $0x5a0] sm:$0xff]
    %v3583 = vld [vmem:[%s3 + $0x5a8] sm:$0xff]
    %v3584 = vld [vmem:[%s3 + $0x5b0] sm:$0xff]
    %v3585 = vld [vmem:[%s3 + $0x5b8] sm:$0xff]
    %v3586 = vld [vmem:[%s3 + $0x5c0] sm:$0xff]
    %v3587 = vld [vmem:[%s3 + $0x5c8] sm:$0xff]
    %v3588 = vld [vmem:[%s3 + $0x5d0] sm:$0xff]
    %v3589 = vld [vmem:[%s3 + $0x5d8] sm:$0xff]
    %v3590 = vld [vmem:[%s3 + $0x5e0] sm:$0xff]
    %v3591 = vld [vmem:[%s3 + $0x5e8] sm:$0xff]
    %v3592 = vld [vmem:[%s3 + $0x5f0] sm:$0xff]
    %v3593 = vld [vmem:[%s3 + $0x5f8] sm:$0xff]
    %v3594 = vld [vmem:[%s3 + $0x600] sm:$0xff]
    %v3595 = vld [vmem:[%s3 + $0x608] sm:$0xff]
    %v3596 = vld [vmem:[%s3 + $0x610] sm:$0xff]
    %v3597 = vld [vmem:[%s3 + $0x618] sm:$0xff]
    %v3598 = vld [vmem:[%s3 + $0x620] sm:$0xff]
    %v3599 = vld [vmem:[%s3 + $0x628] sm:$0xff]
    %v3600 = vld [vmem:[%s3 + $0x630] sm:$0xff]
    %v3601 = vld [vmem:[%s3 + $0x638] sm:$0xff]
    %v3602 = vld [vmem:[%s3 + $0x640] sm:$0xff]
    %v3603 = vld [vmem:[%s3 + $0x648] sm:$0xff]
    %v3604 = vld [vmem:[%s3 + $0x650] sm:$0xff]
    %v3605 = vld [vmem:[%s3 + $0x658] sm:$0xff]
    %v3606 = vld [vmem:[%s3 + $0x660] sm:$0xff]
    %v3607 = vld [vmem:[%s3 + $0x668] sm:$0xff]
    %v3608 = vld [vmem:[%s3 + $0x670] sm:$0xff]
    %v3609 = vld [vmem:[%s3 + $0x678] sm:$0xff]
    %v3610 = vld [vmem:[%s3 + $0x680] sm:$0xff]
    %v3611 = vld [vmem:[%s3 + $0x688] sm:$0xff]
    %v3612 = vld [vmem:[%s3 + $0x690] sm:$0xff]
    %v3613 = vld [vmem:[%s3 + $0x698] sm:$0xff]
    %v3614 = vld [vmem:[%s3 + $0x6a0] sm:$0xff]
    %v3615 = vld [vmem:[%s3 + $0x6a8] sm:$0xff]
    %v3616 = vld [vmem:[%s3 + $0x6b0] sm:$0xff]
    %v3617 = vld [vmem:[%s3 + $0x6b8] sm:$0xff]
    %v3618 = vld [vmem:[%s3 + $0x6c0] sm:$0xff]
    %v3619 = vld [vmem:[%s3 + $0x6c8] sm:$0xff]
    %v3620 = vld [vmem:[%s3 + $0x6d0] sm:$0xff]
    %v3621 = vld [vmem:[%s3 + $0x6d8] sm:$0xff]
    %v3622 = vld [vmem:[%s3 + $0x6e0] sm:$0xff]
    %v3623 = vld [vmem:[%s3 + $0x6e8] sm:$0xff]
    %v3624 = vld [vmem:[%s3 + $0x6f0] sm:$0xff]
    %v3625 = vld [vmem:[%s3 + $0x6f8] sm:$0xff]
    %v3626 = vld [vmem:[%s3 + $0x700] sm:$0xff]
    %v3627 = vld [vmem:[%s3 + $0x708] sm:$0xff]
    %v3628 = vld [vmem:[%s3 + $0x710] sm:$0xff]
    %v3629 = vld [vmem:[%s3 + $0x718] sm:$0xff]
    %v3630 = vld [vmem:[%s3 + $0x720] sm:$0xff]
    %v3631 = vld [vmem:[%s3 + $0x728] sm:$0xff]
    %v3632 = vld [vmem:[%s3 + $0x730] sm:$0xff]
    %v3633 = vld [vmem:[%s3 + $0x738] sm:$0xff]
    %v3634 = vld [vmem:[%s3 + $0x740] sm:$0xff]
    %v3635 = vld [vmem:[%s3 + $0x748] sm:$0xff]
    %v3636 = vld [vmem:[%s3 + $0x750] sm:$0xff]
    %v3637 = vld [vmem:[%s3 + $0x758] sm:$0xff]
    %v3638 = vld [vmem:[%s3 + $0x760] sm:$0xff]
    %v3639 = vld [vmem:[%s3 + $0x768] sm:$0xff]
    %v3640 = vld [vmem:[%s3 + $0x770] sm:$0xff]
    %v3641 = vld [vmem:[%s3 + $0x778] sm:$0xff]
    %v3642 = vld [vmem:[%s3 + $0x780] sm:$0xff]
    %v3643 = vld [vmem:[%s3 + $0x788] sm:$0xff]
    %v3644 = vld [vmem:[%s3 + $0x790] sm:$0xff]
    %v3645 = vld [vmem:[%s3 + $0x798] sm:$0xff]
    %v3646 = vld [vmem:[%s3 + $0x7a0] sm:$0xff]
    %v3647 = vld [vmem:[%s3 + $0x7a8] sm:$0xff]
    %v3648 = vld [vmem:[%s3 + $0x7b0] sm:$0xff]
    %v3649 = vld [vmem:[%s3 + $0x7b8] sm:$0xff]
    %v3650 = vld [vmem:[%s3 + $0x7c0] sm:$0xff]
    %v3651 = vld [vmem:[%s3 + $0x7c8] sm:$0xff]
    %v3652 = vld [vmem:[%s3 + $0x7d0] sm:$0xff]
    %v3653 = vld [vmem:[%s3 + $0x7d8] sm:$0xff]
    %v3654 = vld [vmem:[%s3 + $0x7e0] sm:$0xff]
    %v3655 = vld [vmem:[%s3 + $0x7e8] sm:$0xff]
    %v3656 = vld [vmem:[%s3 + $0x7f0] sm:$0xff]
    %v3657 = vld [vmem:[%s3 + $0x7f8] sm:$0xff]
    %v3658 = vld [vmem:[%s4] sm:$0x1]
    %v3660 = vlaneseq
    %v3661 = vshrl.u32 %v3660, 7
    %v3662 = vsub.s32 0, %v3661
    %v3663 = vrot.slane %v3658, %v3662
    %3665 = vmatprep.subr.mxu0 0.0
    %3666 = vmatpush1.msra.mxu0 %v3402
    %3667 = vmatprep.subr.mxu0 0.0
    %3668 = vmatpush1.msra.mxu0 %v3403
    %3669 = vmatprep.subr.mxu0 0.0
    %3670 = vmatpush1.msra.mxu0 %v3404
    %3671 = vmatprep.subr.mxu0 0.0
    %3672 = vmatpush1.msra.mxu0 %v3405
    %3673 = vmatprep.subr.mxu0 0.0
    %3674 = vmatpush1.msra.mxu0 %v3406
    %3675 = vmatprep.subr.mxu0 0.0
    %3676 = vmatpush1.msra.mxu0 %v3407
    %3677 = vmatprep.subr.mxu0 0.0
    %3678 = vmatpush1.msra.mxu0 %v3408
    %3679 = vmatprep.subr.mxu0 0.0
    %3680 = vmatpush1.msra.mxu0 %v3409
    %3681 = vmatprep.subr.mxu0 0.0
    %3682 = vmatpush1.msra.mxu0 %v3410
    %3683 = vmatprep.subr.mxu0 0.0
    %3684 = vmatpush1.msra.mxu0 %v3411
    %3685 = vmatprep.subr.mxu0 0.0
    %3686 = vmatpush1.msra.mxu0 %v3412
    %3687 = vmatprep.subr.mxu0 0.0
    %3688 = vmatpush1.msra.mxu0 %v3413
    %3689 = vmatprep.subr.mxu0 0.0
    %3690 = vmatpush1.msra.mxu0 %v3414
    %3691 = vmatprep.subr.mxu0 0.0
    %3692 = vmatpush1.msra.mxu0 %v3415
    %3693 = vmatprep.subr.mxu0 0.0
    %3694 = vmatpush1.msra.mxu0 %v3416
    %3695 = vmatprep.subr.mxu0 0.0
    %3696 = vmatpush1.msra.mxu0 %v3417
    %3697 = vmatprep.subr.mxu0 0.0
    %3698 = vmatpush1.msra.mxu0 %v3418
    %3699 = vmatprep.subr.mxu0 0.0
    %3700 = vmatpush1.msra.mxu0 %v3419
    %3701 = vmatprep.subr.mxu0 0.0
    %3702 = vmatpush1.msra.mxu0 %v3420
    %3703 = vmatprep.subr.mxu0 0.0
    %3704 = vmatpush1.msra.mxu0 %v3421
    %3705 = vmatprep.subr.mxu0 0.0
    %3706 = vmatpush1.msra.mxu0 %v3422
    %3707 = vmatprep.subr.mxu0 0.0
    %3708 = vmatpush1.msra.mxu0 %v3423
    %3709 = vmatprep.subr.mxu0 0.0
    %3710 = vmatpush1.msra.mxu0 %v3424
    %3711 = vmatprep.subr.mxu0 0.0
    %3712 = vmatpush1.msra.mxu0 %v3425
    %3713 = vmatprep.subr.mxu0 0.0
    %3714 = vmatpush1.msra.mxu0 %v3426
    %3715 = vmatprep.subr.mxu0 0.0
    %3716 = vmatpush1.msra.mxu0 %v3427
    %3717 = vmatprep.subr.mxu0 0.0
    %3718 = vmatpush1.msra.mxu0 %v3428
    %3719 = vmatprep.subr.mxu0 0.0
    %3720 = vmatpush1.msra.mxu0 %v3429
    %3721 = vmatprep.subr.mxu0 0.0
    %3722 = vmatpush1.msra.mxu0 %v3430
    %3723 = vmatprep.subr.mxu0 0.0
    %3724 = vmatpush1.msra.mxu0 %v3431
    %3725 = vmatprep.subr.mxu0 0.0
    %3726 = vmatpush1.msra.mxu0 %v3432
    %3727 = vmatprep.subr.mxu0 0.0
    %3728 = vmatpush1.msra.mxu0 %v3433
    %3729 = vmatprep.mubr.f32.mxu0 %v3387
    %3730 = vmatmul.mubr.f32.gmra.mrb[0].mxu0 %v3386
    %v3731 = vpop.f32.mrb[0].mxu0
    %v3732 = vadd.f32 %v3663, %v3731
    %v3733 = vpop.f32.mrb[0].mxu0
    %3734 = vdwg.mxu0
    %3735 = vmatprep.subr.mxu0 0.0
    %3736 = vmatpush1.msra.mxu0 %v3434
    %3737 = vmatprep.subr.mxu0 0.0
    %3738 = vmatpush1.msra.mxu0 %v3435
    %3739 = vmatprep.subr.mxu0 0.0
    %3740 = vmatpush1.msra.mxu0 %v3436
    %3741 = vmatprep.subr.mxu0 0.0
    %3742 = vmatpush1.msra.mxu0 %v3437
    %3743 = vmatprep.subr.mxu0 0.0
    %3744 = vmatpush1.msra.mxu0 %v3438
    %3745 = vmatprep.subr.mxu0 0.0
    %3746 = vmatpush1.msra.mxu0 %v3439
    %3747 = vmatprep.subr.mxu0 0.0
    %3748 = vmatpush1.msra.mxu0 %v3440
    %3749 = vmatprep.subr.mxu0 0.0
    %3750 = vmatpush1.msra.mxu0 %v3441
    %3751 = vmatprep.subr.mxu0 0.0
    %3752 = vmatpush1.msra.mxu0 %v3442
    %3753 = vmatprep.subr.mxu0 0.0
    %3754 = vmatpush1.msra.mxu0 %v3443
    %3755 = vmatprep.subr.mxu0 0.0
    %3756 = vmatpush1.msra.mxu0 %v3444
    %3757 = vmatprep.subr.mxu0 0.0
    %3758 = vmatpush1.msra.mxu0 %v3445
    %3759 = vmatprep.subr.mxu0 0.0
    %3760 = vmatpush1.msra.mxu0 %v3446
    %3761 = vmatprep.subr.mxu0 0.0
    %3762 = vmatpush1.msra.mxu0 %v3447
    %3763 = vmatprep.subr.mxu0 0.0
    %3764 = vmatpush1.msra.mxu0 %v3448
    %3765 = vmatprep.subr.mxu0 0.0
    %3766 = vmatpush1.msra.mxu0 %v3449
    %3767 = vmatprep.subr.mxu0 0.0
    %3768 = vmatpush1.msra.mxu0 %v3450
    %3769 = vmatprep.subr.mxu0 0.0
    %3770 = vmatpush1.msra.mxu0 %v3451
    %3771 = vmatprep.subr.mxu0 0.0
    %3772 = vmatpush1.msra.mxu0 %v3452
    %3773 = vmatprep.subr.mxu0 0.0
    %3774 = vmatpush1.msra.mxu0 %v3453
    %3775 = vmatprep.subr.mxu0 0.0
    %3776 = vmatpush1.msra.mxu0 %v3454
    %3777 = vmatprep.subr.mxu0 0.0
    %3778 = vmatpush1.msra.mxu0 %v3455
    %3779 = vmatprep.subr.mxu0 0.0
    %3780 = vmatpush1.msra.mxu0 %v3456
    %3781 = vmatprep.subr.mxu0 0.0
    %3782 = vmatpush1.msra.mxu0 %v3457
    %3783 = vmatprep.subr.mxu0 0.0
    %3784 = vmatpush1.msra.mxu0 %v3458
    %3785 = vmatprep.subr.mxu0 0.0
    %3786 = vmatpush1.msra.mxu0 %v3459
    %3787 = vmatprep.subr.mxu0 0.0
    %3788 = vmatpush1.msra.mxu0 %v3460
    %3789 = vmatprep.subr.mxu0 0.0
    %3790 = vmatpush1.msra.mxu0 %v3461
    %3791 = vmatprep.subr.mxu0 0.0
    %3792 = vmatpush1.msra.mxu0 %v3462
    %3793 = vmatprep.subr.mxu0 0.0
    %3794 = vmatpush1.msra.mxu0 %v3463
    %3795 = vmatprep.subr.mxu0 0.0
    %3796 = vmatpush1.msra.mxu0 %v3464
    %3797 = vmatprep.subr.mxu0 0.0
    %3798 = vmatpush1.msra.mxu0 %v3465
    %3799 = vmatprep.mubr.f32.mxu0 %v3389
    %3800 = vmatmul.mubr.f32.gmra.mrb[0].mxu0 %v3388
    %v3801 = vpop.f32.mrb[0].mxu0
    %v3802 = vadd.f32 %v3732, %v3801
    %v3803 = vpop.f32.mrb[0].mxu0
    %3804 = vdwg.mxu0
    %3805 = vmatprep.subr.mxu0 0.0
    %3806 = vmatpush1.msra.mxu0 %v3466
    %3807 = vmatprep.subr.mxu0 0.0
    %3808 = vmatpush1.msra.mxu0 %v3467
    %3809 = vmatprep.subr.mxu0 0.0
    %3810 = vmatpush1.msra.mxu0 %v3468
    %3811 = vmatprep.subr.mxu0 0.0
    %3812 = vmatpush1.msra.mxu0 %v3469
    %3813 = vmatprep.subr.mxu0 0.0
    %3814 = vmatpush1.msra.mxu0 %v3470
    %3815 = vmatprep.subr.mxu0 0.0
    %3816 = vmatpush1.msra.mxu0 %v3471
    %3817 = vmatprep.subr.mxu0 0.0
    %3818 = vmatpush1.msra.mxu0 %v3472
    %3819 = vmatprep.subr.mxu0 0.0
    %3820 = vmatpush1.msra.mxu0 %v3473
    %3821 = vmatprep.subr.mxu0 0.0
    %3822 = vmatpush1.msra.mxu0 %v3474
    %3823 = vmatprep.subr.mxu0 0.0
    %3824 = vmatpush1.msra.mxu0 %v3475
    %3825 = vmatprep.subr.mxu0 0.0
    %3826 = vmatpush1.msra.mxu0 %v3476
    %3827 = vmatprep.subr.mxu0 0.0
    %3828 = vmatpush1.msra.mxu0 %v3477
    %3829 = vmatprep.subr.mxu0 0.0
    %3830 = vmatpush1.msra.mxu0 %v3478
    %3831 = vmatprep.subr.mxu0 0.0
    %3832 = vmatpush1.msra.mxu0 %v3479
    %3833 = vmatprep.subr.mxu0 0.0
    %3834 = vmatpush1.msra.mxu0 %v3480
    %3835 = vmatprep.subr.mxu0 0.0
    %3836 = vmatpush1.msra.mxu0 %v3481
    %3837 = vmatprep.subr.mxu0 0.0
    %3838 = vmatpush1.msra.mxu0 %v3482
    %3839 = vmatprep.subr.mxu0 0.0
    %3840 = vmatpush1.msra.mxu0 %v3483
    %3841 = vmatprep.subr.mxu0 0.0
    %3842 = vmatpush1.msra.mxu0 %v3484
    %3843 = vmatprep.subr.mxu0 0.0
    %3844 = vmatpush1.msra.mxu0 %v3485
    %3845 = vmatprep.subr.mxu0 0.0
    %3846 = vmatpush1.msra.mxu0 %v3486
    %3847 = vmatprep.subr.mxu0 0.0
    %3848 = vmatpush1.msra.mxu0 %v3487
    %3849 = vmatprep.subr.mxu0 0.0
    %3850 = vmatpush1.msra.mxu0 %v3488
    %3851 = vmatprep.subr.mxu0 0.0
    %3852 = vmatpush1.msra.mxu0 %v3489
    %3853 = vmatprep.subr.mxu0 0.0
    %3854 = vmatpush1.msra.mxu0 %v3490
    %3855 = vmatprep.subr.mxu0 0.0
    %3856 = vmatpush1.msra.mxu0 %v3491
    %3857 = vmatprep.subr.mxu0 0.0
    %3858 = vmatpush1.msra.mxu0 %v3492
    %3859 = vmatprep.subr.mxu0 0.0
    %3860 = vmatpush1.msra.mxu0 %v3493
    %3861 = vmatprep.subr.mxu0 0.0
    %3862 = vmatpush1.msra.mxu0 %v3494
    %3863 = vmatprep.subr.mxu0 0.0
    %3864 = vmatpush1.msra.mxu0 %v3495
    %3865 = vmatprep.subr.mxu0 0.0
    %3866 = vmatpush1.msra.mxu0 %v3496
    %3867 = vmatprep.subr.mxu0 0.0
    %3868 = vmatpush1.msra.mxu0 %v3497
    %3869 = vmatprep.mubr.f32.mxu0 %v3391
    %3870 = vmatmul.mubr.f32.gmra.mrb[0].mxu0 %v3390
    %v3871 = vpop.f32.mrb[0].mxu0
    %v3872 = vadd.f32 %v3802, %v3871
    %v3873 = vpop.f32.mrb[0].mxu0
    %3874 = vdwg.mxu0
    %3875 = vmatprep.subr.mxu0 0.0
    %3876 = vmatpush1.msra.mxu0 %v3498
    %3877 = vmatprep.subr.mxu0 0.0
    %3878 = vmatpush1.msra.mxu0 %v3499
    %3879 = vmatprep.subr.mxu0 0.0
    %3880 = vmatpush1.msra.mxu0 %v3500
    %3881 = vmatprep.subr.mxu0 0.0
    %3882 = vmatpush1.msra.mxu0 %v3501
    %3883 = vmatprep.subr.mxu0 0.0
    %3884 = vmatpush1.msra.mxu0 %v3502
    %3885 = vmatprep.subr.mxu0 0.0
    %3886 = vmatpush1.msra.mxu0 %v3503
    %3887 = vmatprep.subr.mxu0 0.0
    %3888 = vmatpush1.msra.mxu0 %v3504
    %3889 = vmatprep.subr.mxu0 0.0
    %3890 = vmatpush1.msra.mxu0 %v3505
    %3891 = vmatprep.subr.mxu0 0.0
    %3892 = vmatpush1.msra.mxu0 %v3506
    %3893 = vmatprep.subr.mxu0 0.0
    %3894 = vmatpush1.msra.mxu0 %v3507
    %3895 = vmatprep.subr.mxu0 0.0
    %3896 = vmatpush1.msra.mxu0 %v3508
    %3897 = vmatprep.subr.mxu0 0.0
    %3898 = vmatpush1.msra.mxu0 %v3509
    %3899 = vmatprep.subr.mxu0 0.0
    %3900 = vmatpush1.msra.mxu0 %v3510
    %3901 = vmatprep.subr.mxu0 0.0
    %3902 = vmatpush1.msra.mxu0 %v3511
    %3903 = vmatprep.subr.mxu0 0.0
    %3904 = vmatpush1.msra.mxu0 %v3512
    %3905 = vmatprep.subr.mxu0 0.0
    %3906 = vmatpush1.msra.mxu0 %v3513
    %3907 = vmatprep.subr.mxu0 0.0
    %3908 = vmatpush1.msra.mxu0 %v3514
    %3909 = vmatprep.subr.mxu0 0.0
    %3910 = vmatpush1.msra.mxu0 %v3515
    %3911 = vmatprep.subr.mxu0 0.0
    %3912 = vmatpush1.msra.mxu0 %v3516
    %3913 = vmatprep.subr.mxu0 0.0
    %3914 = vmatpush1.msra.mxu0 %v3517
    %3915 = vmatprep.subr.mxu0 0.0
    %3916 = vmatpush1.msra.mxu0 %v3518
    %3917 = vmatprep.subr.mxu0 0.0
    %3918 = vmatpush1.msra.mxu0 %v3519
    %3919 = vmatprep.subr.mxu0 0.0
    %3920 = vmatpush1.msra.mxu0 %v3520
    %3921 = vmatprep.subr.mxu0 0.0
    %3922 = vmatpush1.msra.mxu0 %v3521
    %3923 = vmatprep.subr.mxu0 0.0
    %3924 = vmatpush1.msra.mxu0 %v3522
    %3925 = vmatprep.subr.mxu0 0.0
    %3926 = vmatpush1.msra.mxu0 %v3523
    %3927 = vmatprep.subr.mxu0 0.0
    %3928 = vmatpush1.msra.mxu0 %v3524
    %3929 = vmatprep.subr.mxu0 0.0
    %3930 = vmatpush1.msra.mxu0 %v3525
    %3931 = vmatprep.subr.mxu0 0.0
    %3932 = vmatpush1.msra.mxu0 %v3526
    %3933 = vmatprep.subr.mxu0 0.0
    %3934 = vmatpush1.msra.mxu0 %v3527
    %3935 = vmatprep.subr.mxu0 0.0
    %3936 = vmatpush1.msra.mxu0 %v3528
    %3937 = vmatprep.subr.mxu0 0.0
    %3938 = vmatpush1.msra.mxu0 %v3529
    %3939 = vmatprep.mubr.f32.mxu0 %v3393
    %3940 = vmatmul.mubr.f32.gmra.mrb[0].mxu0 %v3392
    %v3941 = vpop.f32.mrb[0].mxu0
    %v3942 = vadd.f32 %v3872, %v3941
    %v3943 = vpop.f32.mrb[0].mxu0
    %3944 = vdwg.mxu0
    %3945 = vmatprep.subr.mxu0 0.0
    %3946 = vmatpush1.msra.mxu0 %v3530
    %3947 = vmatprep.subr.mxu0 0.0
    %3948 = vmatpush1.msra.mxu0 %v3531
    %3949 = vmatprep.subr.mxu0 0.0
    %3950 = vmatpush1.msra.mxu0 %v3532
    %3951 = vmatprep.subr.mxu0 0.0
    %3952 = vmatpush1.msra.mxu0 %v3533
    %3953 = vmatprep.subr.mxu0 0.0
    %3954 = vmatpush1.msra.mxu0 %v3534
    %3955 = vmatprep.subr.mxu0 0.0
    %3956 = vmatpush1.msra.mxu0 %v3535
    %3957 = vmatprep.subr.mxu0 0.0
    %3958 = vmatpush1.msra.mxu0 %v3536
    %3959 = vmatprep.subr.mxu0 0.0
    %3960 = vmatpush1.msra.mxu0 %v3537
    %3961 = vmatprep.subr.mxu0 0.0
    %3962 = vmatpush1.msra.mxu0 %v3538
    %3963 = vmatprep.subr.mxu0 0.0
    %3964 = vmatpush1.msra.mxu0 %v3539
    %3965 = vmatprep.subr.mxu0 0.0
    %3966 = vmatpush1.msra.mxu0 %v3540
    %3967 = vmatprep.subr.mxu0 0.0
    %3968 = vmatpush1.msra.mxu0 %v3541
    %3969 = vmatprep.subr.mxu0 0.0
    %3970 = vmatpush1.msra.mxu0 %v3542
    %3971 = vmatprep.subr.mxu0 0.0
    %3972 = vmatpush1.msra.mxu0 %v3543
    %3973 = vmatprep.subr.mxu0 0.0
    %3974 = vmatpush1.msra.mxu0 %v3544
    %3975 = vmatprep.subr.mxu0 0.0
    %3976 = vmatpush1.msra.mxu0 %v3545
    %3977 = vmatprep.subr.mxu0 0.0
    %3978 = vmatpush1.msra.mxu0 %v3546
    %3979 = vmatprep.subr.mxu0 0.0
    %3980 = vmatpush1.msra.mxu0 %v3547
    %3981 = vmatprep.subr.mxu0 0.0
    %3982 = vmatpush1.msra.mxu0 %v3548
    %3983 = vmatprep.subr.mxu0 0.0
    %3984 = vmatpush1.msra.mxu0 %v3549
    %3985 = vmatprep.subr.mxu0 0.0
    %3986 = vmatpush1.msra.mxu0 %v3550
    %3987 = vmatprep.subr.mxu0 0.0
    %3988 = vmatpush1.msra.mxu0 %v3551
    %3989 = vmatprep.subr.mxu0 0.0
    %3990 = vmatpush1.msra.mxu0 %v3552
    %3991 = vmatprep.subr.mxu0 0.0
    %3992 = vmatpush1.msra.mxu0 %v3553
    %3993 = vmatprep.subr.mxu0 0.0
    %3994 = vmatpush1.msra.mxu0 %v3554
    %3995 = vmatprep.subr.mxu0 0.0
    %3996 = vmatpush1.msra.mxu0 %v3555
    %3997 = vmatprep.subr.mxu0 0.0
    %3998 = vmatpush1.msra.mxu0 %v3556
    %3999 = vmatprep.subr.mxu0 0.0
    %4000 = vmatpush1.msra.mxu0 %v3557
    %4001 = vmatprep.subr.mxu0 0.0
    %4002 = vmatpush1.msra.mxu0 %v3558
    %4003 = vmatprep.subr.mxu0 0.0
    %4004 = vmatpush1.msra.mxu0 %v3559
    %4005 = vmatprep.subr.mxu0 0.0
    %4006 = vmatpush1.msra.mxu0 %v3560
    %4007 = vmatprep.subr.mxu0 0.0
    %4008 = vmatpush1.msra.mxu0 %v3561
    %4009 = vmatprep.mubr.f32.mxu0 %v3395
    %4010 = vmatmul.mubr.f32.gmra.mrb[0].mxu0 %v3394
    %v4011 = vpop.f32.mrb[0].mxu0
    %v4012 = vadd.f32 %v3942, %v4011
    %v4013 = vpop.f32.mrb[0].mxu0
    %4014 = vdwg.mxu0
    %4015 = vmatprep.subr.mxu0 0.0
    %4016 = vmatpush1.msra.mxu0 %v3562
    %4017 = vmatprep.subr.mxu0 0.0
    %4018 = vmatpush1.msra.mxu0 %v3563
    %4019 = vmatprep.subr.mxu0 0.0
    %4020 = vmatpush1.msra.mxu0 %v3564
    %4021 = vmatprep.subr.mxu0 0.0
    %4022 = vmatpush1.msra.mxu0 %v3565
    %4023 = vmatprep.subr.mxu0 0.0
    %4024 = vmatpush1.msra.mxu0 %v3566
    %4025 = vmatprep.subr.mxu0 0.0
    %4026 = vmatpush1.msra.mxu0 %v3567
    %4027 = vmatprep.subr.mxu0 0.0
    %4028 = vmatpush1.msra.mxu0 %v3568
    %4029 = vmatprep.subr.mxu0 0.0
    %4030 = vmatpush1.msra.mxu0 %v3569
    %4031 = vmatprep.subr.mxu0 0.0
    %4032 = vmatpush1.msra.mxu0 %v3570
    %4033 = vmatprep.subr.mxu0 0.0
    %4034 = vmatpush1.msra.mxu0 %v3571
    %4035 = vmatprep.subr.mxu0 0.0
    %4036 = vmatpush1.msra.mxu0 %v3572
    %4037 = vmatprep.subr.mxu0 0.0
    %4038 = vmatpush1.msra.mxu0 %v3573
    %4039 = vmatprep.subr.mxu0 0.0
    %4040 = vmatpush1.msra.mxu0 %v3574
    %4041 = vmatprep.subr.mxu0 0.0
    %4042 = vmatpush1.msra.mxu0 %v3575
    %4043 = vmatprep.subr.mxu0 0.0
    %4044 = vmatpush1.msra.mxu0 %v3576
    %4045 = vmatprep.subr.mxu0 0.0
    %4046 = vmatpush1.msra.mxu0 %v3577
    %4047 = vmatprep.subr.mxu0 0.0
    %4048 = vmatpush1.msra.mxu0 %v3578
    %4049 = vmatprep.subr.mxu0 0.0
    %4050 = vmatpush1.msra.mxu0 %v3579
    %4051 = vmatprep.subr.mxu0 0.0
    %4052 = vmatpush1.msra.mxu0 %v3580
    %4053 = vmatprep.subr.mxu0 0.0
    %4054 = vmatpush1.msra.mxu0 %v3581
    %4055 = vmatprep.subr.mxu0 0.0
    %4056 = vmatpush1.msra.mxu0 %v3582
    %4057 = vmatprep.subr.mxu0 0.0
    %4058 = vmatpush1.msra.mxu0 %v3583
    %4059 = vmatprep.subr.mxu0 0.0
    %4060 = vmatpush1.msra.mxu0 %v3584
    %4061 = vmatprep.subr.mxu0 0.0
    %4062 = vmatpush1.msra.mxu0 %v3585
    %4063 = vmatprep.subr.mxu0 0.0
    %4064 = vmatpush1.msra.mxu0 %v3586
    %4065 = vmatprep.subr.mxu0 0.0
    %4066 = vmatpush1.msra.mxu0 %v3587
    %4067 = vmatprep.subr.mxu0 0.0
    %4068 = vmatpush1.msra.mxu0 %v3588
    %4069 = vmatprep.subr.mxu0 0.0
    %4070 = vmatpush1.msra.mxu0 %v3589
    %4071 = vmatprep.subr.mxu0 0.0
    %4072 = vmatpush1.msra.mxu0 %v3590
    %4073 = vmatprep.subr.mxu0 0.0
    %4074 = vmatpush1.msra.mxu0 %v3591
    %4075 = vmatprep.subr.mxu0 0.0
    %4076 = vmatpush1.msra.mxu0 %v3592
    %4077 = vmatprep.subr.mxu0 0.0
    %4078 = vmatpush1.msra.mxu0 %v3593
    %4079 = vmatprep.mubr.f32.mxu0 %v3397
    %4080 = vmatmul.mubr.f32.gmra.mrb[0].mxu0 %v3396
    %v4081 = vpop.f32.mrb[0].mxu0
    %v4082 = vadd.f32 %v4012, %v4081
    %v4083 = vpop.f32.mrb[0].mxu0
    %4084 = vdwg.mxu0
    %4085 = vmatprep.subr.mxu0 0.0
    %4086 = vmatpush1.msra.mxu0 %v3594
    %4087 = vmatprep.subr.mxu0 0.0
    %4088 = vmatpush1.msra.mxu0 %v3595
    %4089 = vmatprep.subr.mxu0 0.0
    %4090 = vmatpush1.msra.mxu0 %v3596
    %4091 = vmatprep.subr.mxu0 0.0
    %4092 = vmatpush1.msra.mxu0 %v3597
    %4093 = vmatprep.subr.mxu0 0.0
    %4094 = vmatpush1.msra.mxu0 %v3598
    %4095 = vmatprep.subr.mxu0 0.0
    %4096 = vmatpush1.msra.mxu0 %v3599
    %4097 = vmatprep.subr.mxu0 0.0
    %4098 = vmatpush1.msra.mxu0 %v3600
    %4099 = vmatprep.subr.mxu0 0.0
    %4100 = vmatpush1.msra.mxu0 %v3601
    %4101 = vmatprep.subr.mxu0 0.0
    %4102 = vmatpush1.msra.mxu0 %v3602
    %4103 = vmatprep.subr.mxu0 0.0
    %4104 = vmatpush1.msra.mxu0 %v3603
    %4105 = vmatprep.subr.mxu0 0.0
    %4106 = vmatpush1.msra.mxu0 %v3604
    %4107 = vmatprep.subr.mxu0 0.0
    %4108 = vmatpush1.msra.mxu0 %v3605
    %4109 = vmatprep.subr.mxu0 0.0
    %4110 = vmatpush1.msra.mxu0 %v3606
    %4111 = vmatprep.subr.mxu0 0.0
    %4112 = vmatpush1.msra.mxu0 %v3607
    %4113 = vmatprep.subr.mxu0 0.0
    %4114 = vmatpush1.msra.mxu0 %v3608
    %4115 = vmatprep.subr.mxu0 0.0
    %4116 = vmatpush1.msra.mxu0 %v3609
    %4117 = vmatprep.subr.mxu0 0.0
    %4118 = vmatpush1.msra.mxu0 %v3610
    %4119 = vmatprep.subr.mxu0 0.0
    %4120 = vmatpush1.msra.mxu0 %v3611
    %4121 = vmatprep.subr.mxu0 0.0
    %4122 = vmatpush1.msra.mxu0 %v3612
    %4123 = vmatprep.subr.mxu0 0.0
    %4124 = vmatpush1.msra.mxu0 %v3613
    %4125 = vmatprep.subr.mxu0 0.0
    %4126 = vmatpush1.msra.mxu0 %v3614
    %4127 = vmatprep.subr.mxu0 0.0
    %4128 = vmatpush1.msra.mxu0 %v3615
    %4129 = vmatprep.subr.mxu0 0.0
    %4130 = vmatpush1.msra.mxu0 %v3616
    %4131 = vmatprep.subr.mxu0 0.0
    %4132 = vmatpush1.msra.mxu0 %v3617
    %4133 = vmatprep.subr.mxu0 0.0
    %4134 = vmatpush1.msra.mxu0 %v3618
    %4135 = vmatprep.subr.mxu0 0.0
    %4136 = vmatpush1.msra.mxu0 %v3619
    %4137 = vmatprep.subr.mxu0 0.0
    %4138 = vmatpush1.msra.mxu0 %v3620
    %4139 = vmatprep.subr.mxu0 0.0
    %4140 = vmatpush1.msra.mxu0 %v3621
    %4141 = vmatprep.subr.mxu0 0.0
    %4142 = vmatpush1.msra.mxu0 %v3622
    %4143 = vmatprep.subr.mxu0 0.0
    %4144 = vmatpush1.msra.mxu0 %v3623
    %4145 = vmatprep.subr.mxu0 0.0
    %4146 = vmatpush1.msra.mxu0 %v3624
    %4147 = vmatprep.subr.mxu0 0.0
    %4148 = vmatpush1.msra.mxu0 %v3625
    %4149 = vmatprep.mubr.f32.mxu0 %v3399
    %4150 = vmatmul.mubr.f32.gmra.mrb[0].mxu0 %v3398
    %v4151 = vpop.f32.mrb[0].mxu0
    %v4152 = vadd.f32 %v4082, %v4151
    %v4153 = vpop.f32.mrb[0].mxu0
    %4154 = vdwg.mxu0
    %4155 = vmatprep.subr.mxu0 0.0
    %4156 = vmatpush1.msra.mxu0 %v3626
    %4157 = vmatprep.subr.mxu0 0.0
    %4158 = vmatpush1.msra.mxu0 %v3627
    %4159 = vmatprep.subr.mxu0 0.0
    %4160 = vmatpush1.msra.mxu0 %v3628
    %4161 = vmatprep.subr.mxu0 0.0
    %4162 = vmatpush1.msra.mxu0 %v3629
    %4163 = vmatprep.subr.mxu0 0.0
    %4164 = vmatpush1.msra.mxu0 %v3630
    %4165 = vmatprep.subr.mxu0 0.0
    %4166 = vmatpush1.msra.mxu0 %v3631
    %4167 = vmatprep.subr.mxu0 0.0
    %4168 = vmatpush1.msra.mxu0 %v3632
    %4169 = vmatprep.subr.mxu0 0.0
    %4170 = vmatpush1.msra.mxu0 %v3633
    %4171 = vmatprep.subr.mxu0 0.0
    %4172 = vmatpush1.msra.mxu0 %v3634
    %4173 = vmatprep.subr.mxu0 0.0
    %4174 = vmatpush1.msra.mxu0 %v3635
    %4175 = vmatprep.subr.mxu0 0.0
    %4176 = vmatpush1.msra.mxu0 %v3636
    %4177 = vmatprep.subr.mxu0 0.0
    %4178 = vmatpush1.msra.mxu0 %v3637
    %4179 = vmatprep.subr.mxu0 0.0
    %4180 = vmatpush1.msra.mxu0 %v3638
    %4181 = vmatprep.subr.mxu0 0.0
    %4182 = vmatpush1.msra.mxu0 %v3639
    %4183 = vmatprep.subr.mxu0 0.0
    %4184 = vmatpush1.msra.mxu0 %v3640
    %4185 = vmatprep.subr.mxu0 0.0
    %4186 = vmatpush1.msra.mxu0 %v3641
    %4187 = vmatprep.subr.mxu0 0.0
    %4188 = vmatpush1.msra.mxu0 %v3642
    %4189 = vmatprep.subr.mxu0 0.0
    %4190 = vmatpush1.msra.mxu0 %v3643
    %4191 = vmatprep.subr.mxu0 0.0
    %4192 = vmatpush1.msra.mxu0 %v3644
    %4193 = vmatprep.subr.mxu0 0.0
    %4194 = vmatpush1.msra.mxu0 %v3645
    %4195 = vmatprep.subr.mxu0 0.0
    %4196 = vmatpush1.msra.mxu0 %v3646
    %4197 = vmatprep.subr.mxu0 0.0
    %4198 = vmatpush1.msra.mxu0 %v3647
    %4199 = vmatprep.subr.mxu0 0.0
    %4200 = vmatpush1.msra.mxu0 %v3648
    %4201 = vmatprep.subr.mxu0 0.0
    %4202 = vmatpush1.msra.mxu0 %v3649
    %4203 = vmatprep.subr.mxu0 0.0
    %4204 = vmatpush1.msra.mxu0 %v3650
    %4205 = vmatprep.subr.mxu0 0.0
    %4206 = vmatpush1.msra.mxu0 %v3651
    %4207 = vmatprep.subr.mxu0 0.0
    %4208 = vmatpush1.msra.mxu0 %v3652
    %4209 = vmatprep.subr.mxu0 0.0
    %4210 = vmatpush1.msra.mxu0 %v3653
    %4211 = vmatprep.subr.mxu0 0.0
    %4212 = vmatpush1.msra.mxu0 %v3654
    %4213 = vmatprep.subr.mxu0 0.0
    %4214 = vmatpush1.msra.mxu0 %v3655
    %4215 = vmatprep.subr.mxu0 0.0
    %4216 = vmatpush1.msra.mxu0 %v3656
    %4217 = vmatprep.subr.mxu0 0.0
    %4218 = vmatpush1.msra.mxu0 %v3657
    %4219 = vmatprep.mubr.f32.mxu0 %v3401
    %4220 = vmatmul.mubr.f32.gmra.mrb[0].mxu0 %v3400
    %v4221 = vpop.f32.mrb[0].mxu0
    %v4222 = vadd.f32 %v4152, %v4221
    %v4223 = vpop.f32.mrb[0].mxu0
    %4224 = vdwg.mxu0
    %v4225 = vmax.f32 %v4222, 0.0
    %v4226 = vld [vmem:[%s5] sm:$0xff]
    %v4227 = vld [vmem:[%s5 + $0x8] sm:$0xff]
    %v4228 = vld [vmem:[%s5 + $0x10] sm:$0xff]
    %v4229 = vld [vmem:[%s5 + $0x18] sm:$0xff]
    %v4230 = vld [vmem:[%s5 + $0x20] sm:$0xff]
    %v4231 = vld [vmem:[%s5 + $0x28] sm:$0xff]
    %v4232 = vld [vmem:[%s5 + $0x30] sm:$0xff]
    %v4233 = vld [vmem:[%s5 + $0x38] sm:$0xff]
    %v4234 = vld [vmem:[%s5 + $0x40] sm:$0xff]
    %v4235 = vld [vmem:[%s5 + $0x48] sm:$0xff]
    %v4236 = vld [vmem:[%s5 + $0x50] sm:$0xff]
    %v4237 = vld [vmem:[%s5 + $0x58] sm:$0xff]
    %v4238 = vld [vmem:[%s5 + $0x60] sm:$0xff]
    %v4239 = vld [vmem:[%s5 + $0x68] sm:$0xff]
    %v4240 = vld [vmem:[%s5 + $0x70] sm:$0xff]
    %v4241 = vld [vmem:[%s5 + $0x78] sm:$0xff]
    %v4242 = vld [vmem:[%s6] sm:$0x1]
    %v4244 = vlaneseq
    %v4245 = vshrl.u32 %v4244, 7
    %v4246 = vsub.s32 0, %v4245
    %v4247 = vrot.slane %v4242, %v4246
    %4249 = vmatprep.subr.mxu0 0.0
    %4250 = vmatpush1.msra.mxu0 %v4226
    %4251 = vmatprep.subr.mxu0 0.0
    %4252 = vmatpush1.msra.mxu0 %v4227
    %4253 = vmatprep.subr.mxu0 0.0
    %4254 = vmatpush1.msra.mxu0 %v4228
    %4255 = vmatprep.subr.mxu0 0.0
    %4256 = vmatpush1.msra.mxu0 %v4229
    %4257 = vmatprep.subr.mxu0 0.0
    %4258 = vmatpush1.msra.mxu0 %v4230
    %4259 = vmatprep.subr.mxu0 0.0
    %4260 = vmatpush1.msra.mxu0 %v4231
    %4261 = vmatprep.subr.mxu0 0.0
    %4262 = vmatpush1.msra.mxu0 %v4232
    %4263 = vmatprep.subr.mxu0 0.0
    %4264 = vmatpush1.msra.mxu0 %v4233
    %4265 = vmatprep.subr.mxu0 0.0
    %4266 = vmatpush1.msra.mxu0 %v4234
    %4267 = vmatprep.subr.mxu0 0.0
    %4268 = vmatpush1.msra.mxu0 %v4235
    %4269 = vmatprep.subr.mxu0 0.0
    %4270 = vmatpush1.msra.mxu0 %v4236
    %4271 = vmatprep.subr.mxu0 0.0
    %4272 = vmatpush1.msra.mxu0 %v4237
    %4273 = vmatprep.subr.mxu0 0.0
    %4274 = vmatpush1.msra.mxu0 %v4238
    %4275 = vmatprep.subr.mxu0 0.0
    %4276 = vmatpush1.msra.mxu0 %v4239
    %4277 = vmatprep.subr.mxu0 0.0
    %4278 = vmatpush1.msra.mxu0 %v4240
    %4279 = vmatprep.subr.mxu0 0.0
    %4280 = vmatpush1.msra.mxu0 %v4241
    %4281 = vmatprep.subr.mxu0 0.0
    %4282 = vmatpush1.msra.mxu0 0.0
    %4283 = vmatprep.subr.mxu0 0.0
    %4284 = vmatpush1.msra.mxu0 0.0
    %4285 = vmatprep.subr.mxu0 0.0
    %4286 = vmatpush1.msra.mxu0 0.0
    %4287 = vmatprep.subr.mxu0 0.0
    %4288 = vmatpush1.msra.mxu0 0.0
    %4289 = vmatprep.subr.mxu0 0.0
    %4290 = vmatpush1.msra.mxu0 0.0
    %4291 = vmatprep.subr.mxu0 0.0
    %4292 = vmatpush1.msra.mxu0 0.0
    %4293 = vmatprep.subr.mxu0 0.0
    %4294 = vmatpush1.msra.mxu0 0.0
    %4295 = vmatprep.subr.mxu0 0.0
    %4296 = vmatpush1.msra.mxu0 0.0
    %4297 = vmatprep.subr.mxu0 0.0
    %4298 = vmatpush1.msra.mxu0 0.0
    %4299 = vmatprep.subr.mxu0 0.0
    %4300 = vmatpush1.msra.mxu0 0.0
    %4301 = vmatprep.subr.mxu0 0.0
    %4302 = vmatpush1.msra.mxu0 0.0
    %4303 = vmatprep.subr.mxu0 0.0
    %4304 = vmatpush1.msra.mxu0 0.0
    %4305 = vmatprep.subr.mxu0 0.0
    %4306 = vmatpush1.msra.mxu0 0.0
    %4307 = vmatprep.subr.mxu0 0.0
    %4308 = vmatpush1.msra.mxu0 0.0
    %4309 = vmatprep.subr.mxu0 0.0
    %4310 = vmatpush1.msra.mxu0 0.0
    %4311 = vmatprep.subr.mxu0 0.0
    %4312 = vmatpush1.msra.mxu0 0.0
    %4313 = vmatprep.mubr.f32.mxu0 0.0
    %4314 = vmatmul.mubr.f32.gmra.mrb[0].mxu0 %v4225
    %v4315 = vpop.f32.mrb[0].mxu0
    %v4316 = vadd.f32 %v4247, %v4315
    %v4317 = vpop.f32.mrb[0].mxu0
    %4318 = vdwg.mxu0
    %4319 = vst [vmem:[#allocation2] sm:$0x3] %v4316
    // Predicated region
    $region30: #{nn2dmel_forward.5} parent=1 // pred_check
      _
    $region31: #{nn2dmel_forward.5} parent=1 // pred_check_branch
      %4321 = sbr.rel (0) target = $region33
    $region32: #{nn2dmel_forward.5} parent=1 // pred_region
      %s4323 = ssub.s32 32, 32
      %4324 = vsyncadd [#allocation3], %s4323
      %s4326 = sshll.u32 [#allocation2], 4
      %s4327 = int_to_ptr.vmem [resolvable:$true] %s4326
      %4329 = dma.vmem_to_hbm [thread:$0]  %s4327, 32, %s7, [#allocation3]
    $region33: #{nn2dmel_forward.5} parent=1 // pred_fallthru
      _
    // Predicated region
    $region34: #{nn2dmel_forward.5} parent=1 // pred_check
      _
    $region35: #{nn2dmel_forward.5} parent=1 // pred_check_branch
      %4331 = sbr.rel (0) target = $region37
    $region36: #{nn2dmel_forward.5} parent=1 // pred_region
      %4332 = dma.done [#allocation3], 32
    $region37: #{nn2dmel_forward.5} parent=1 // pred_fallthru
      _
    %4333 = vsyncpa [#allocation3], 1

</llo_original>
